<compile_context>
chip_gen: v5e
topology: v5e:2x2
jax: 0.10.0
libtpu: 0.0.40
codegen_flags: <defaults>
</compile_context>

<pallas_src>
import jax
import jax.numpy as jnp
from jax.experimental import pallas as pl
from jax.experimental.pallas import tpu as pltpu


# ----------------------------------------------------------------------------
# Model structure
# ----------------------------------------------------------------------------
RELATIONS = [
    ("pfas_sites", "dis_edge", "gw_wells"),
    ("gw_wells", "dis_edge", "pfas_sites"),
    ("pfas_sites", "dis_edge", "sw_stations"),
    ("sw_stations", "dis_edge", "pfas_sites"),
    ("sw_stations", "dis_edge", "gw_wells"),
    ("gw_wells", "dis_edge", "sw_stations"),
    ("gw_wells", "dis_edge", "gw_wells"),
    ("gw_wells", "self_loop", "gw_wells"),
    ("sw_stations", "self_loop", "sw_stations"),
    ("pfas_sites", "self_loop", "pfas_sites"),
]

NODE_TYPES = ["pfas_sites", "gw_wells", "sw_stations"]
TYPE_INDEX = {t: i for i, t in enumerate(NODE_TYPES)}
NUM_LAYERS = 3
C_PAD = 128  # lane-dense padded channel width

# Relation indices grouped by source / destination type (static).
SRC_REL = {s: [r for r, rel in enumerate(RELATIONS) if TYPE_INDEX[rel[0]] == s]
           for s in range(len(NODE_TYPES))}
DST_REL = {d: [r for r, rel in enumerate(RELATIONS) if TYPE_INDEX[rel[2]] == d]
           for d in range(len(NODE_TYPES))}
# relation index -> (src type index, lane-slot within that src's batched Wl slab)
REL_SRC_SLOT = {}
for _s, _rels in SRC_REL.items():
    for _j, _r in enumerate(_rels):
        REL_SRC_SLOT[_r] = (_s, _j)


def _round_up(x, m):
    return ((x + m - 1) // m) * m


# ----------------------------------------------------------------------------
# Fused Pallas kernel: whole forward pass, everything VMEM-resident
# ----------------------------------------------------------------------------
def _fused_forward_kernel(x0_ref,
                          a0_ref, a1_ref, a2_ref,
                          wl0_ref, wl1_ref, wl2_ref,
                          wr_ref, b_ref, hw_ref, hb_ref,
                          pfas_ref, gw_ref, sw_ref):
    a_refs = (a0_ref, a1_ref, a2_ref)      # per-dst lane-concatenated adjacency
    wl_refs = (wl0_ref, wl1_ref, wl2_ref)  # per-src lane-batched neighbor weights
    nt = len(NODE_TYPES)

    # bf16 hidden state per node type; stays VMEM/vreg-resident across layers.
    h = [x0_ref[t] for t in range(nt)]     # each [N_PAD, C_PAD] bf16

    for layer in range(NUM_LAYERS):        # fully unrolled (static Python loop)
        # --- one batched projection matmul per SOURCE type ---
        #   P[s] = h[s] @ [Wl_r1 | Wl_r2 | ...]   -> [N_PAD, k_s * C_PAD]
        proj = [
            jnp.dot(h[s], wl_refs[s][layer],
                    preferred_element_type=jnp.float32).astype(jnp.bfloat16)
            for s in range(nt)
        ]
        new_h = []
        for d in range(nt):
            # Row-stack the projected slabs of this dst's relations, matching
            # the lane order of the pre-concatenated adjacency A_cat[d].
            blocks = []
            for r in DST_REL[d]:
                s, j = REL_SRC_SLOT[r]
                blocks.append(proj[s][:, j * C_PAD:(j + 1) * C_PAD])
            p_cat = jnp.concatenate(blocks, axis=0)    # [k_d*N_PAD, C_PAD] bf16

            # --- one aggregation matmul per DEST type ---
            #   sum_r A_r @ (h_src @ Wl_r)
            nbr = jnp.dot(a_refs[d][...], p_cat,
                          preferred_element_type=jnp.float32)
            # pre-summed root term + pre-summed bias (per dst)
            root = jnp.dot(h[d], wr_ref[layer, d],
                           preferred_element_type=jnp.float32)
            out = jnp.maximum(nbr + root + b_ref[layer, d], 0.0)
            new_h.append(out.astype(jnp.bfloat16))
        h = new_h

    # Lane-dense [N_PAD, C_PAD] output slabs; wrapper slices the real columns.
    pfas_ref[...] = h[TYPE_INDEX["pfas_sites"]].astype(jnp.float32)
    gw_ref[...] = (jnp.dot(h[TYPE_INDEX["gw_wells"]], hw_ref[0],
                           preferred_element_type=jnp.float32) + hb_ref[0])
    sw_ref[...] = (jnp.dot(h[TYPE_INDEX["sw_stations"]], hw_ref[1],
                           preferred_element_type=jnp.float32) + hb_ref[1])


def _full_spec(shape):
    n = len(shape)
    return pl.BlockSpec(shape, lambda i, _n=n: (0,) * _n)


def fused_forward(x0, A, WL, WR, B, HW, HB, n_pad):
    inputs = (x0, *A, *WL, WR, B, HW, HB)
    out_shape = tuple(
        jax.ShapeDtypeStruct((n_pad, C_PAD), jnp.float32) for _ in range(3)
    )
    return pl.pallas_call(
        _fused_forward_kernel,
        out_shape=out_shape,
        grid=(1,),
        in_specs=[_full_spec(v.shape) for v in inputs],
        out_specs=tuple(_full_spec((n_pad, C_PAD)) for _ in range(3)),
        compiler_params=pltpu.CompilerParams(
            dimension_semantics=("arbitrary",),
        ),
    )(*inputs)


# ----------------------------------------------------------------------------
# Parameters (same logical shapes as the PyTorch module)
# ----------------------------------------------------------------------------
def init_params(key, in_channels_dict, out_channels):
    params = {"out_channels": out_channels, "conv": [], "heads": {}}
    for layer in range(NUM_LAYERS):
        layer_params = {}
        for rel in RELATIONS:
            src, _, dst = rel
            c_in_src = in_channels_dict[src] if layer == 0 else out_channels
            # lin_r acts on DST features -> use the dst input width at layer 0.
            c_in_dst = in_channels_dict[dst] if layer == 0 else out_channels
            key, k1, k2, k3 = jax.random.split(key, 4)
            scale = 1.0 / float(c_in_src) ** 0.5
            layer_params[rel] = {
                # stored as [C_in, C_out] so the kernel does x @ W
                "wl": jax.random.uniform(k1, (c_in_src, out_channels),
                                         jnp.float32, -scale, scale),
                "wr": jax.random.uniform(k2, (c_in_dst, out_channels),
                                         jnp.float32, -scale, scale),
                "b": jax.random.uniform(k3, (out_channels,), jnp.float32,
                                        -scale, scale),
            }
        params["conv"].append(layer_params)
    for name in ("gw_wells", "sw_stations"):
        key, k1, k2 = jax.random.split(key, 3)
        scale = 1.0 / float(out_channels) ** 0.5
        params["heads"][name] = {
            "w": jax.random.uniform(k1, (out_channels, 1), jnp.float32,
                                    -scale, scale),
            "b": jax.random.uniform(k2, (1,), jnp.float32, -scale, scale),
        }
    return params


# ----------------------------------------------------------------------------
# One-time packing (hoist out of the per-call path)
# ----------------------------------------------------------------------------
def pack_params(params):
    """Zero-pad, batch per-src, pre-sum per-dst, and cast to bf16 MXU slabs."""
    oc = params["out_channels"]
    nt = len(NODE_TYPES)

    # Per-src lane-batched neighbor weights: WL[s] is [L, C_PAD, k_s*C_PAD] bf16
    WL = []
    for s in range(nt):
        rels = SRC_REL[s]
        layers = []
        for layer in range(NUM_LAYERS):
            w = jnp.zeros((C_PAD, len(rels) * C_PAD), jnp.float32)
            for j, r in enumerate(rels):
                p = params["conv"][layer][RELATIONS[r]]
                c_in = p["wl"].shape[0]
                w = w.at[:c_in, j * C_PAD:j * C_PAD + oc].set(p["wl"])
            layers.append(w)
        WL.append(jnp.stack(layers).astype(jnp.bfloat16))

    # Per-dst pre-summed root weights / biases (HeteroConv aggr='sum').
    wr_layers, b_layers = [], []
    for layer in range(NUM_LAYERS):
        wr_d, b_d = [], []
        for d in range(nt):
            w = jnp.zeros((C_PAD, C_PAD), jnp.float32)
            b = jnp.zeros((1, C_PAD), jnp.float32)
            for r in DST_REL[d]:
                p = params["conv"][layer][RELATIONS[r]]
                c_in = p["wr"].shape[0]
                w = w.at[:c_in, :oc].add(p["wr"])
                b = b.at[0, :oc].add(p["b"])
            wr_d.append(w)
            b_d.append(b)
        wr_layers.append(jnp.stack(wr_d))
        b_layers.append(jnp.stack(b_d))
    WR = jnp.stack(wr_layers).astype(jnp.bfloat16)  # [L, 3, C_PAD, C_PAD]
    B = jnp.stack(b_layers)                         # [L, 3, 1, C_PAD] f32

    hws, hbs = [], []
    for name in ("gw_wells", "sw_stations"):
        hp = params["heads"][name]
        hws.append(jnp.zeros((C_PAD, C_PAD), jnp.float32).at[:oc, :1].set(hp["w"]))
        hbs.append(jnp.zeros((1, C_PAD), jnp.float32).at[0, :1].set(hp["b"]))
    HW = jnp.stack(hws).astype(jnp.bfloat16)        # [2, C_PAD, C_PAD]
    HB = jnp.stack(hbs)                             # [2, 1, C_PAD] f32
    return {"WL": tuple(WL), "WR": WR, "B": B, "HW": HW, "HB": HB}


def _edge_index_to_mean_adj(edge_index, n_pad):
    """Dense row-normalized adjacency for mean aggregation (empty rows -> 0)."""
    src, dst = edge_index[0], edge_index[1]
    A = jnp.zeros((n_pad, n_pad), jnp.float32).at[dst, src].add(1.0)
    deg = jnp.sum(A, axis=1, keepdims=True)
    return A / jnp.maximum(deg, 1.0)


def pack_graph(edge_index_dict, num_nodes_dict):
    """edge_index -> per-dst lane-concatenated, row-normalized bf16 adjacency."""
    # Pad the node axis to 128 so A is lane-dense and K is a full MXU width.
    n_pad = _round_up(max(num_nodes_dict.values()), 128)
    adj = [_edge_index_to_mean_adj(edge_index_dict[RELATIONS[r]], n_pad)
           for r in range(len(RELATIONS))]
    A_cat = tuple(
        jnp.concatenate([adj[r] for r in DST_REL[d]], axis=1).astype(jnp.bfloat16)
        for d in range(len(NODE_TYPES))
    )  # A_cat[d]: [n_pad, k_d * n_pad]
    return {"A": A_cat, "n_pad": n_pad}


# ----------------------------------------------------------------------------
# Forward
# ----------------------------------------------------------------------------
def apply_model(packed_params, packed_graph, x_dict, out_channels):
    n = {t: x_dict[t].shape[0] for t in NODE_TYPES}
    n_pad = packed_graph["n_pad"]

    # [3, n_pad, C_PAD] zero-padded bf16 input features, one slab per node type.
    x0 = jnp.stack([
        jnp.zeros((n_pad, C_PAD), jnp.float32)
        .at[:n[t], :x_dict[t].shape[1]].set(x_dict[t])
        for t in NODE_TYPES
    ]).astype(jnp.bfloat16)

    pfas, gw, sw = fused_forward(
        x0, packed_graph["A"], packed_params["WL"], packed_params["WR"],
        packed_params["B"], packed_params["HW"], packed_params["HB"], n_pad)

    return {
        "pfas_sites": pfas[:n["pfas_sites"], :out_channels],
        "gw_wells": gw[:n["gw_wells"], :1],
        "sw_stations": sw[:n["sw_stations"], :1],
    }


def deep_graph_sage_forward(params, x_dict, edge_index_dict):
    """Convenience wrapper matching the PyTorch module interface."""
    packed_params = pack_params(params)
    packed_graph = pack_graph(edge_index_dict,
                              {t: x_dict[t].shape[0] for t in NODE_TYPES})
    return apply_model(packed_params, packed_graph, x_dict,
                       params["out_channels"])


# ----------------------------------------------------------------------------
# Main
# ----------------------------------------------------------------------------
if __name__ == "__main__":
    key = jax.random.PRNGKey(0)

    num_nodes = {"pfas_sites": 16, "gw_wells": 24, "sw_stations": 16}
    in_channels_dict = {"pfas_sites": 8, "gw_wells": 8, "sw_stations": 8}
    out_channels = 32
    n_edges = 32

    # node features
    x_dict = {}
    for t in NODE_TYPES:
        key, k = jax.random.split(key)
        x_dict[t] = jax.random.normal(k, (num_nodes[t], in_channels_dict[t]),
                                      jnp.float32)

    # edge indices (deterministic); self-loop relations are identity edges
    edge_index_dict = {}
    for rel in RELATIONS:
        src, kind, dst = rel
        if kind == "self_loop":
            idx = jnp.arange(num_nodes[src], dtype=jnp.int32)
            edge_index_dict[rel] = jnp.stack([idx, idx], axis=0)
        else:
            key, k1, k2 = jax.random.split(key, 3)
            s = jax.random.randint(k1, (n_edges,), 0, num_nodes[src], jnp.int32)
            d = jax.random.randint(k2, (n_edges,), 0, num_nodes[dst], jnp.int32)
            edge_index_dict[rel] = jnp.stack([s, d], axis=0)

    key, pkey = jax.random.split(key)
    params = init_params(pkey, in_channels_dict, out_channels)

    # One-time packing hoisted out of the per-call path (params + static graph).
    packed_params = pack_params(params)
    packed_graph = pack_graph(edge_index_dict, num_nodes)

    out = apply_model(packed_params, packed_graph, x_dict, out_channels)
    jax.block_until_ready(out)

    assert out["gw_wells"].shape == (num_nodes["gw_wells"], 1)
    assert out["sw_stations"].shape == (num_nodes["sw_stations"], 1)
    assert out["pfas_sites"].shape == (num_nodes["pfas_sites"], out_channels)
    assert all(jnp.all(jnp.isfinite(v)) for v in out.values())
    print("KERNEL_OK")
</pallas_src>

<mosaic_0001>
module attributes {stable_mosaic.version = 11 : i64} {
  func.func @_fused_forward_kernel(%arg0: i32, %arg1: memref<3x128x128xbf16, #tpu.memory_space<vmem>>, %arg2: memref<128x384xbf16, #tpu.memory_space<vmem>>, %arg3: memref<128x512xbf16, #tpu.memory_space<vmem>>, %arg4: memref<128x384xbf16, #tpu.memory_space<vmem>>, %arg5: memref<3x128x384xbf16, #tpu.memory_space<vmem>>, %arg6: memref<3x128x512xbf16, #tpu.memory_space<vmem>>, %arg7: memref<3x128x384xbf16, #tpu.memory_space<vmem>>, %arg8: memref<3x3x128x128xbf16, #tpu.memory_space<vmem>>, %arg9: memref<3x3x1x128xf32, #tpu.memory_space<vmem>>, %arg10: memref<2x128x128xbf16, #tpu.memory_space<vmem>>, %arg11: memref<2x1x128xf32, #tpu.memory_space<vmem>>, %arg12: memref<128x128xf32, #tpu.memory_space<vmem>>, %arg13: memref<128x128xf32, #tpu.memory_space<vmem>>, %arg14: memref<128x128xf32, #tpu.memory_space<vmem>>) attributes {dimension_semantics = [#tpu.dimension_semantics<arbitrary>], iteration_bounds = array<i64: 1>, scalar_prefetch = 0 : i64, scratch_operands = 0 : i64, tpu.core_type = #tpu.core_type<tc>, window_params = [{pipeline_mode = #tpu.pipeline_mode<synchronous>, transform_indices = @transform_0, window_bounds = array<i64: 3, 128, 128>}, {pipeline_mode = #tpu.pipeline_mode<synchronous>, transform_indices = @transform_1, window_bounds = array<i64: 128, 384>}, {pipeline_mode = #tpu.pipeline_mode<synchronous>, transform_indices = @transform_2, window_bounds = array<i64: 128, 512>}, {pipeline_mode = #tpu.pipeline_mode<synchronous>, transform_indices = @transform_3, window_bounds = array<i64: 128, 384>}, {pipeline_mode = #tpu.pipeline_mode<synchronous>, transform_indices = @transform_4, window_bounds = array<i64: 3, 128, 384>}, {pipeline_mode = #tpu.pipeline_mode<synchronous>, transform_indices = @transform_5, window_bounds = array<i64: 3, 128, 512>}, {pipeline_mode = #tpu.pipeline_mode<synchronous>, transform_indices = @transform_6, window_bounds = array<i64: 3, 128, 384>}, {pipeline_mode = #tpu.pipeline_mode<synchronous>, transform_indices = @transform_7, window_bounds = array<i64: 3, 3, 128, 128>}, {pipeline_mode = #tpu.pipeline_mode<synchronous>, transform_indices = @transform_8, window_bounds = array<i64: 3, 3, 1, 128>}, {pipeline_mode = #tpu.pipeline_mode<synchronous>, transform_indices = @transform_9, window_bounds = array<i64: 2, 128, 128>}, {pipeline_mode = #tpu.pipeline_mode<synchronous>, transform_indices = @transform_10, window_bounds = array<i64: 2, 1, 128>}, {pipeline_mode = #tpu.pipeline_mode<synchronous>, transform_indices = @transform_11, window_bounds = array<i64: 128, 128>}, {pipeline_mode = #tpu.pipeline_mode<synchronous>, transform_indices = @transform_12, window_bounds = array<i64: 128, 128>}, {pipeline_mode = #tpu.pipeline_mode<synchronous>, transform_indices = @transform_13, window_bounds = array<i64: 128, 128>}]} {
    %c0 = arith.constant 0 : index
    %c0_0 = arith.constant 0 : index
    %c0_1 = arith.constant 0 : index
    %0 = vector.load %arg1[%c0, %c0_0, %c0_1] : memref<3x128x128xbf16, #tpu.memory_space<vmem>>, vector<1x128x128xbf16>
    %1 = vector.shape_cast %0 : vector<1x128x128xbf16> to vector<128x128xbf16>
    %c1 = arith.constant 1 : index
    %c0_2 = arith.constant 0 : index
    %c0_3 = arith.constant 0 : index
    %2 = vector.load %arg1[%c1, %c0_2, %c0_3] : memref<3x128x128xbf16, #tpu.memory_space<vmem>>, vector<1x128x128xbf16>
    %3 = vector.shape_cast %2 : vector<1x128x128xbf16> to vector<128x128xbf16>
    %c2 = arith.constant 2 : index
    %c0_4 = arith.constant 0 : index
    %c0_5 = arith.constant 0 : index
    %4 = vector.load %arg1[%c2, %c0_4, %c0_5] : memref<3x128x128xbf16, #tpu.memory_space<vmem>>, vector<1x128x128xbf16>
    %5 = vector.shape_cast %4 : vector<1x128x128xbf16> to vector<128x128xbf16>
    %c0_6 = arith.constant 0 : index
    %c0_7 = arith.constant 0 : index
    %c0_8 = arith.constant 0 : index
    %6 = vector.load %arg5[%c0_6, %c0_7, %c0_8] : memref<3x128x384xbf16, #tpu.memory_space<vmem>>, vector<1x128x384xbf16>
    %7 = vector.shape_cast %6 : vector<1x128x384xbf16> to vector<128x384xbf16>
    %cst = arith.constant dense<0.000000e+00> : vector<128x384xf32>
    %8 = tpu.matmul %1, %7, %cst {dimension_numbers = #tpu.dot_dimension_numbers<[1], [0], [0], [1], [0, 0, 1, 1], [], []>} : vector<128x128xbf16>, vector<128x384xbf16>, vector<128x384xf32> -> vector<128x384xf32>
    %9 = arith.truncf %8 : vector<128x384xf32> to vector<128x384xbf16>
    %c0_9 = arith.constant 0 : index
    %c0_10 = arith.constant 0 : index
    %c0_11 = arith.constant 0 : index
    %10 = vector.load %arg6[%c0_9, %c0_10, %c0_11] : memref<3x128x512xbf16, #tpu.memory_space<vmem>>, vector<1x128x512xbf16>
    %11 = vector.shape_cast %10 : vector<1x128x512xbf16> to vector<128x512xbf16>
    %cst_12 = arith.constant dense<0.000000e+00> : vector<128x512xf32>
    %12 = tpu.matmul %3, %11, %cst_12 {dimension_numbers = #tpu.dot_dimension_numbers<[1], [0], [0], [1], [0, 0, 1, 1], [], []>} : vector<128x128xbf16>, vector<128x512xbf16>, vector<128x512xf32> -> vector<128x512xf32>
    %13 = arith.truncf %12 : vector<128x512xf32> to vector<128x512xbf16>
    %c0_13 = arith.constant 0 : index
    %c0_14 = arith.constant 0 : index
    %c0_15 = arith.constant 0 : index
    %14 = vector.load %arg7[%c0_13, %c0_14, %c0_15] : memref<3x128x384xbf16, #tpu.memory_space<vmem>>, vector<1x128x384xbf16>
    %15 = vector.shape_cast %14 : vector<1x128x384xbf16> to vector<128x384xbf16>
    %cst_16 = arith.constant dense<0.000000e+00> : vector<128x384xf32>
    %16 = tpu.matmul %5, %15, %cst_16 {dimension_numbers = #tpu.dot_dimension_numbers<[1], [0], [0], [1], [0, 0, 1, 1], [], []>} : vector<128x128xbf16>, vector<128x384xbf16>, vector<128x384xf32> -> vector<128x384xf32>
    %17 = arith.truncf %16 : vector<128x384xf32> to vector<128x384xbf16>
    %18 = vector.extract_strided_slice %13 {offsets = [0, 0], sizes = [128, 128], strides = [1, 1]} : vector<128x512xbf16> to vector<128x128xbf16>
    %19 = vector.extract_strided_slice %17 {offsets = [0, 0], sizes = [128, 128], strides = [1, 1]} : vector<128x384xbf16> to vector<128x128xbf16>
    %20 = vector.extract_strided_slice %9 {offsets = [0, 256], sizes = [128, 128], strides = [1, 1]} : vector<128x384xbf16> to vector<128x128xbf16>
    %21 = tpu.concatenate %18, %19, %20 in 0 : vector<128x128xbf16>, vector<128x128xbf16>, vector<128x128xbf16> -> vector<384x128xbf16>
    %c0_17 = arith.constant 0 : index
    %c0_18 = arith.constant 0 : index
    %22 = vector.load %arg2[%c0_17, %c0_18] : memref<128x384xbf16, #tpu.memory_space<vmem>>, vector<128x384xbf16>
    %cst_19 = arith.constant dense<0.000000e+00> : vector<128x128xf32>
    %23 = tpu.matmul %22, %21, %cst_19 {dimension_numbers = #tpu.dot_dimension_numbers<[1], [0], [0], [1], [0, 0, 1, 1], [], []>} : vector<128x384xbf16>, vector<384x128xbf16>, vector<128x128xf32> -> vector<128x128xf32>
    %c0_20 = arith.constant 0 : index
    %c0_21 = arith.constant 0 : index
    %c0_22 = arith.constant 0 : index
    %c0_23 = arith.constant 0 : index
    %24 = vector.load %arg8[%c0_20, %c0_21, %c0_22, %c0_23] : memref<3x3x128x128xbf16, #tpu.memory_space<vmem>>, vector<1x1x128x128xbf16>
    %25 = vector.shape_cast %24 : vector<1x1x128x128xbf16> to vector<128x128xbf16>
    %cst_24 = arith.constant dense<0.000000e+00> : vector<128x128xf32>
    %26 = tpu.matmul %1, %25, %cst_24 {dimension_numbers = #tpu.dot_dimension_numbers<[1], [0], [0], [1], [0, 0, 1, 1], [], []>} : vector<128x128xbf16>, vector<128x128xbf16>, vector<128x128xf32> -> vector<128x128xf32>
    %27 = arith.addf %23, %26 : vector<128x128xf32>
    %c0_25 = arith.constant 0 : index
    %c0_26 = arith.constant 0 : index
    %c0_27 = arith.constant 0 : index
    %c0_28 = arith.constant 0 : index
    %28 = vector.load %arg9[%c0_25, %c0_26, %c0_27, %c0_28] : memref<3x3x1x128xf32, #tpu.memory_space<vmem>>, vector<1x1x1x128xf32>
    %29 = vector.shape_cast %28 : vector<1x1x1x128xf32> to vector<1x128xf32>
    %30 = vector.broadcast %29 : vector<1x128xf32> to vector<128x128xf32>
    %31 = arith.addf %27, %30 : vector<128x128xf32>
    %cst_29 = arith.constant 0.000000e+00 : f32
    %32 = vector.broadcast %cst_29 : f32 to vector<128x128xf32>
    %33 = arith.maximumf %31, %32 : vector<128x128xf32>
    %34 = arith.truncf %33 : vector<128x128xf32> to vector<128x128xbf16>
    %35 = vector.extract_strided_slice %9 {offsets = [0, 0], sizes = [128, 128], strides = [1, 1]} : vector<128x384xbf16> to vector<128x128xbf16>
    %36 = vector.extract_strided_slice %17 {offsets = [0, 128], sizes = [128, 128], strides = [1, 1]} : vector<128x384xbf16> to vector<128x128xbf16>
    %37 = vector.extract_strided_slice %13 {offsets = [0, 256], sizes = [128, 128], strides = [1, 1]} : vector<128x512xbf16> to vector<128x128xbf16>
    %38 = vector.extract_strided_slice %13 {offsets = [0, 384], sizes = [128, 128], strides = [1, 1]} : vector<128x512xbf16> to vector<128x128xbf16>
    %39 = tpu.concatenate %35, %36, %37, %38 in 0 : vector<128x128xbf16>, vector<128x128xbf16>, vector<128x128xbf16>, vector<128x128xbf16> -> vector<512x128xbf16>
    %c0_30 = arith.constant 0 : index
    %c0_31 = arith.constant 0 : index
    %40 = vector.load %arg3[%c0_30, %c0_31] : memref<128x512xbf16, #tpu.memory_space<vmem>>, vector<128x512xbf16>
    %cst_32 = arith.constant dense<0.000000e+00> : vector<128x128xf32>
    %41 = tpu.matmul %40, %39, %cst_32 {dimension_numbers = #tpu.dot_dimension_numbers<[1], [0], [0], [1], [0, 0, 1, 1], [], []>} : vector<128x512xbf16>, vector<512x128xbf16>, vector<128x128xf32> -> vector<128x128xf32>
    %c0_33 = arith.constant 0 : index
    %c1_34 = arith.constant 1 : index
    %c0_35 = arith.constant 0 : index
    %c0_36 = arith.constant 0 : index
    %42 = vector.load %arg8[%c0_33, %c1_34, %c0_35, %c0_36] : memref<3x3x128x128xbf16, #tpu.memory_space<vmem>>, vector<1x1x128x128xbf16>
    %43 = vector.shape_cast %42 : vector<1x1x128x128xbf16> to vector<128x128xbf16>
    %cst_37 = arith.constant dense<0.000000e+00> : vector<128x128xf32>
    %44 = tpu.matmul %3, %43, %cst_37 {dimension_numbers = #tpu.dot_dimension_numbers<[1], [0], [0], [1], [0, 0, 1, 1], [], []>} : vector<128x128xbf16>, vector<128x128xbf16>, vector<128x128xf32> -> vector<128x128xf32>
    %45 = arith.addf %41, %44 : vector<128x128xf32>
    %c0_38 = arith.constant 0 : index
    %c1_39 = arith.constant 1 : index
    %c0_40 = arith.constant 0 : index
    %c0_41 = arith.constant 0 : index
    %46 = vector.load %arg9[%c0_38, %c1_39, %c0_40, %c0_41] : memref<3x3x1x128xf32, #tpu.memory_space<vmem>>, vector<1x1x1x128xf32>
    %47 = vector.shape_cast %46 : vector<1x1x1x128xf32> to vector<1x128xf32>
    %48 = vector.broadcast %47 : vector<1x128xf32> to vector<128x128xf32>
    %49 = arith.addf %45, %48 : vector<128x128xf32>
    %cst_42 = arith.constant 0.000000e+00 : f32
    %50 = vector.broadcast %cst_42 : f32 to vector<128x128xf32>
    %51 = arith.maximumf %49, %50 : vector<128x128xf32>
    %52 = arith.truncf %51 : vector<128x128xf32> to vector<128x128xbf16>
    %53 = vector.extract_strided_slice %9 {offsets = [0, 128], sizes = [128, 128], strides = [1, 1]} : vector<128x384xbf16> to vector<128x128xbf16>
    %54 = vector.extract_strided_slice %13 {offsets = [0, 128], sizes = [128, 128], strides = [1, 1]} : vector<128x512xbf16> to vector<128x128xbf16>
    %55 = vector.extract_strided_slice %17 {offsets = [0, 256], sizes = [128, 128], strides = [1, 1]} : vector<128x384xbf16> to vector<128x128xbf16>
    %56 = tpu.concatenate %53, %54, %55 in 0 : vector<128x128xbf16>, vector<128x128xbf16>, vector<128x128xbf16> -> vector<384x128xbf16>
    %c0_43 = arith.constant 0 : index
    %c0_44 = arith.constant 0 : index
    %57 = vector.load %arg4[%c0_43, %c0_44] : memref<128x384xbf16, #tpu.memory_space<vmem>>, vector<128x384xbf16>
    %cst_45 = arith.constant dense<0.000000e+00> : vector<128x128xf32>
    %58 = tpu.matmul %57, %56, %cst_45 {dimension_numbers = #tpu.dot_dimension_numbers<[1], [0], [0], [1], [0, 0, 1, 1], [], []>} : vector<128x384xbf16>, vector<384x128xbf16>, vector<128x128xf32> -> vector<128x128xf32>
    %c0_46 = arith.constant 0 : index
    %c2_47 = arith.constant 2 : index
    %c0_48 = arith.constant 0 : index
    %c0_49 = arith.constant 0 : index
    %59 = vector.load %arg8[%c0_46, %c2_47, %c0_48, %c0_49] : memref<3x3x128x128xbf16, #tpu.memory_space<vmem>>, vector<1x1x128x128xbf16>
    %60 = vector.shape_cast %59 : vector<1x1x128x128xbf16> to vector<128x128xbf16>
    %cst_50 = arith.constant dense<0.000000e+00> : vector<128x128xf32>
    %61 = tpu.matmul %5, %60, %cst_50 {dimension_numbers = #tpu.dot_dimension_numbers<[1], [0], [0], [1], [0, 0, 1, 1], [], []>} : vector<128x128xbf16>, vector<128x128xbf16>, vector<128x128xf32> -> vector<128x128xf32>
    %62 = arith.addf %58, %61 : vector<128x128xf32>
    %c0_51 = arith.constant 0 : index
    %c2_52 = arith.constant 2 : index
    %c0_53 = arith.constant 0 : index
    %c0_54 = arith.constant 0 : index
    %63 = vector.load %arg9[%c0_51, %c2_52, %c0_53, %c0_54] : memref<3x3x1x128xf32, #tpu.memory_space<vmem>>, vector<1x1x1x128xf32>
    %64 = vector.shape_cast %63 : vector<1x1x1x128xf32> to vector<1x128xf32>
    %65 = vector.broadcast %64 : vector<1x128xf32> to vector<128x128xf32>
    %66 = arith.addf %62, %65 : vector<128x128xf32>
    %cst_55 = arith.constant 0.000000e+00 : f32
    %67 = vector.broadcast %cst_55 : f32 to vector<128x128xf32>
    %68 = arith.maximumf %66, %67 : vector<128x128xf32>
    %69 = arith.truncf %68 : vector<128x128xf32> to vector<128x128xbf16>
    %c1_56 = arith.constant 1 : index
    %c0_57 = arith.constant 0 : index
    %c0_58 = arith.constant 0 : index
    %70 = vector.load %arg5[%c1_56, %c0_57, %c0_58] : memref<3x128x384xbf16, #tpu.memory_space<vmem>>, vector<1x128x384xbf16>
    %71 = vector.shape_cast %70 : vector<1x128x384xbf16> to vector<128x384xbf16>
    %cst_59 = arith.constant dense<0.000000e+00> : vector<128x384xf32>
    %72 = tpu.matmul %34, %71, %cst_59 {dimension_numbers = #tpu.dot_dimension_numbers<[1], [0], [0], [1], [0, 0, 1, 1], [], []>} : vector<128x128xbf16>, vector<128x384xbf16>, vector<128x384xf32> -> vector<128x384xf32>
    %73 = arith.truncf %72 : vector<128x384xf32> to vector<128x384xbf16>
    %c1_60 = arith.constant 1 : index
    %c0_61 = arith.constant 0 : index
    %c0_62 = arith.constant 0 : index
    %74 = vector.load %arg6[%c1_60, %c0_61, %c0_62] : memref<3x128x512xbf16, #tpu.memory_space<vmem>>, vector<1x128x512xbf16>
    %75 = vector.shape_cast %74 : vector<1x128x512xbf16> to vector<128x512xbf16>
    %cst_63 = arith.constant dense<0.000000e+00> : vector<128x512xf32>
    %76 = tpu.matmul %52, %75, %cst_63 {dimension_numbers = #tpu.dot_dimension_numbers<[1], [0], [0], [1], [0, 0, 1, 1], [], []>} : vector<128x128xbf16>, vector<128x512xbf16>, vector<128x512xf32> -> vector<128x512xf32>
    %77 = arith.truncf %76 : vector<128x512xf32> to vector<128x512xbf16>
    %c1_64 = arith.constant 1 : index
    %c0_65 = arith.constant 0 : index
    %c0_66 = arith.constant 0 : index
    %78 = vector.load %arg7[%c1_64, %c0_65, %c0_66] : memref<3x128x384xbf16, #tpu.memory_space<vmem>>, vector<1x128x384xbf16>
    %79 = vector.shape_cast %78 : vector<1x128x384xbf16> to vector<128x384xbf16>
    %cst_67 = arith.constant dense<0.000000e+00> : vector<128x384xf32>
    %80 = tpu.matmul %69, %79, %cst_67 {dimension_numbers = #tpu.dot_dimension_numbers<[1], [0], [0], [1], [0, 0, 1, 1], [], []>} : vector<128x128xbf16>, vector<128x384xbf16>, vector<128x384xf32> -> vector<128x384xf32>
    %81 = arith.truncf %80 : vector<128x384xf32> to vector<128x384xbf16>
    %82 = vector.extract_strided_slice %77 {offsets = [0, 0], sizes = [128, 128], strides = [1, 1]} : vector<128x512xbf16> to vector<128x128xbf16>
    %83 = vector.extract_strided_slice %81 {offsets = [0, 0], sizes = [128, 128], strides = [1, 1]} : vector<128x384xbf16> to vector<128x128xbf16>
    %84 = vector.extract_strided_slice %73 {offsets = [0, 256], sizes = [128, 128], strides = [1, 1]} : vector<128x384xbf16> to vector<128x128xbf16>
    %85 = tpu.concatenate %82, %83, %84 in 0 : vector<128x128xbf16>, vector<128x128xbf16>, vector<128x128xbf16> -> vector<384x128xbf16>
    %c0_68 = arith.constant 0 : index
    %c0_69 = arith.constant 0 : index
    %86 = vector.load %arg2[%c0_68, %c0_69] : memref<128x384xbf16, #tpu.memory_space<vmem>>, vector<128x384xbf16>
    %cst_70 = arith.constant dense<0.000000e+00> : vector<128x128xf32>
    %87 = tpu.matmul %86, %85, %cst_70 {dimension_numbers = #tpu.dot_dimension_numbers<[1], [0], [0], [1], [0, 0, 1, 1], [], []>} : vector<128x384xbf16>, vector<384x128xbf16>, vector<128x128xf32> -> vector<128x128xf32>
    %c1_71 = arith.constant 1 : index
    %c0_72 = arith.constant 0 : index
    %c0_73 = arith.constant 0 : index
    %c0_74 = arith.constant 0 : index
    %88 = vector.load %arg8[%c1_71, %c0_72, %c0_73, %c0_74] : memref<3x3x128x128xbf16, #tpu.memory_space<vmem>>, vector<1x1x128x128xbf16>
    %89 = vector.shape_cast %88 : vector<1x1x128x128xbf16> to vector<128x128xbf16>
    %cst_75 = arith.constant dense<0.000000e+00> : vector<128x128xf32>
    %90 = tpu.matmul %34, %89, %cst_75 {dimension_numbers = #tpu.dot_dimension_numbers<[1], [0], [0], [1], [0, 0, 1, 1], [], []>} : vector<128x128xbf16>, vector<128x128xbf16>, vector<128x128xf32> -> vector<128x128xf32>
    %91 = arith.addf %87, %90 : vector<128x128xf32>
    %c1_76 = arith.constant 1 : index
    %c0_77 = arith.constant 0 : index
    %c0_78 = arith.constant 0 : index
    %c0_79 = arith.constant 0 : index
    %92 = vector.load %arg9[%c1_76, %c0_77, %c0_78, %c0_79] : memref<3x3x1x128xf32, #tpu.memory_space<vmem>>, vector<1x1x1x128xf32>
    %93 = vector.shape_cast %92 : vector<1x1x1x128xf32> to vector<1x128xf32>
    %94 = vector.broadcast %93 : vector<1x128xf32> to vector<128x128xf32>
    %95 = arith.addf %91, %94 : vector<128x128xf32>
    %cst_80 = arith.constant 0.000000e+00 : f32
    %96 = vector.broadcast %cst_80 : f32 to vector<128x128xf32>
    %97 = arith.maximumf %95, %96 : vector<128x128xf32>
    %98 = arith.truncf %97 : vector<128x128xf32> to vector<128x128xbf16>
    %99 = vector.extract_strided_slice %73 {offsets = [0, 0], sizes = [128, 128], strides = [1, 1]} : vector<128x384xbf16> to vector<128x128xbf16>
    %100 = vector.extract_strided_slice %81 {offsets = [0, 128], sizes = [128, 128], strides = [1, 1]} : vector<128x384xbf16> to vector<128x128xbf16>
    %101 = vector.extract_strided_slice %77 {offsets = [0, 256], sizes = [128, 128], strides = [1, 1]} : vector<128x512xbf16> to vector<128x128xbf16>
    %102 = vector.extract_strided_slice %77 {offsets = [0, 384], sizes = [128, 128], strides = [1, 1]} : vector<128x512xbf16> to vector<128x128xbf16>
    %103 = tpu.concatenate %99, %100, %101, %102 in 0 : vector<128x128xbf16>, vector<128x128xbf16>, vector<128x128xbf16>, vector<128x128xbf16> -> vector<512x128xbf16>
    %c0_81 = arith.constant 0 : index
    %c0_82 = arith.constant 0 : index
    %104 = vector.load %arg3[%c0_81, %c0_82] : memref<128x512xbf16, #tpu.memory_space<vmem>>, vector<128x512xbf16>
    %cst_83 = arith.constant dense<0.000000e+00> : vector<128x128xf32>
    %105 = tpu.matmul %104, %103, %cst_83 {dimension_numbers = #tpu.dot_dimension_numbers<[1], [0], [0], [1], [0, 0, 1, 1], [], []>} : vector<128x512xbf16>, vector<512x128xbf16>, vector<128x128xf32> -> vector<128x128xf32>
    %c1_84 = arith.constant 1 : index
    %c1_85 = arith.constant 1 : index
    %c0_86 = arith.constant 0 : index
    %c0_87 = arith.constant 0 : index
    %106 = vector.load %arg8[%c1_84, %c1_85, %c0_86, %c0_87] : memref<3x3x128x128xbf16, #tpu.memory_space<vmem>>, vector<1x1x128x128xbf16>
    %107 = vector.shape_cast %106 : vector<1x1x128x128xbf16> to vector<128x128xbf16>
    %cst_88 = arith.constant dense<0.000000e+00> : vector<128x128xf32>
    %108 = tpu.matmul %52, %107, %cst_88 {dimension_numbers = #tpu.dot_dimension_numbers<[1], [0], [0], [1], [0, 0, 1, 1], [], []>} : vector<128x128xbf16>, vector<128x128xbf16>, vector<128x128xf32> -> vector<128x128xf32>
    %109 = arith.addf %105, %108 : vector<128x128xf32>
    %c1_89 = arith.constant 1 : index
    %c1_90 = arith.constant 1 : index
    %c0_91 = arith.constant 0 : index
    %c0_92 = arith.constant 0 : index
    %110 = vector.load %arg9[%c1_89, %c1_90, %c0_91, %c0_92] : memref<3x3x1x128xf32, #tpu.memory_space<vmem>>, vector<1x1x1x128xf32>
    %111 = vector.shape_cast %110 : vector<1x1x1x128xf32> to vector<1x128xf32>
    %112 = vector.broadcast %111 : vector<1x128xf32> to vector<128x128xf32>
    %113 = arith.addf %109, %112 : vector<128x128xf32>
    %cst_93 = arith.constant 0.000000e+00 : f32
    %114 = vector.broadcast %cst_93 : f32 to vector<128x128xf32>
    %115 = arith.maximumf %113, %114 : vector<128x128xf32>
    %116 = arith.truncf %115 : vector<128x128xf32> to vector<128x128xbf16>
    %117 = vector.extract_strided_slice %73 {offsets = [0, 128], sizes = [128, 128], strides = [1, 1]} : vector<128x384xbf16> to vector<128x128xbf16>
    %118 = vector.extract_strided_slice %77 {offsets = [0, 128], sizes = [128, 128], strides = [1, 1]} : vector<128x512xbf16> to vector<128x128xbf16>
    %119 = vector.extract_strided_slice %81 {offsets = [0, 256], sizes = [128, 128], strides = [1, 1]} : vector<128x384xbf16> to vector<128x128xbf16>
    %120 = tpu.concatenate %117, %118, %119 in 0 : vector<128x128xbf16>, vector<128x128xbf16>, vector<128x128xbf16> -> vector<384x128xbf16>
    %c0_94 = arith.constant 0 : index
    %c0_95 = arith.constant 0 : index
    %121 = vector.load %arg4[%c0_94, %c0_95] : memref<128x384xbf16, #tpu.memory_space<vmem>>, vector<128x384xbf16>
    %cst_96 = arith.constant dense<0.000000e+00> : vector<128x128xf32>
    %122 = tpu.matmul %121, %120, %cst_96 {dimension_numbers = #tpu.dot_dimension_numbers<[1], [0], [0], [1], [0, 0, 1, 1], [], []>} : vector<128x384xbf16>, vector<384x128xbf16>, vector<128x128xf32> -> vector<128x128xf32>
    %c1_97 = arith.constant 1 : index
    %c2_98 = arith.constant 2 : index
    %c0_99 = arith.constant 0 : index
    %c0_100 = arith.constant 0 : index
    %123 = vector.load %arg8[%c1_97, %c2_98, %c0_99, %c0_100] : memref<3x3x128x128xbf16, #tpu.memory_space<vmem>>, vector<1x1x128x128xbf16>
    %124 = vector.shape_cast %123 : vector<1x1x128x128xbf16> to vector<128x128xbf16>
    %cst_101 = arith.constant dense<0.000000e+00> : vector<128x128xf32>
    %125 = tpu.matmul %69, %124, %cst_101 {dimension_numbers = #tpu.dot_dimension_numbers<[1], [0], [0], [1], [0, 0, 1, 1], [], []>} : vector<128x128xbf16>, vector<128x128xbf16>, vector<128x128xf32> -> vector<128x128xf32>
    %126 = arith.addf %122, %125 : vector<128x128xf32>
    %c1_102 = arith.constant 1 : index
    %c2_103 = arith.constant 2 : index
    %c0_104 = arith.constant 0 : index
    %c0_105 = arith.constant 0 : index
    %127 = vector.load %arg9[%c1_102, %c2_103, %c0_104, %c0_105] : memref<3x3x1x128xf32, #tpu.memory_space<vmem>>, vector<1x1x1x128xf32>
    %128 = vector.shape_cast %127 : vector<1x1x1x128xf32> to vector<1x128xf32>
    %129 = vector.broadcast %128 : vector<1x128xf32> to vector<128x128xf32>
    %130 = arith.addf %126, %129 : vector<128x128xf32>
    %cst_106 = arith.constant 0.000000e+00 : f32
    %131 = vector.broadcast %cst_106 : f32 to vector<128x128xf32>
    %132 = arith.maximumf %130, %131 : vector<128x128xf32>
    %133 = arith.truncf %132 : vector<128x128xf32> to vector<128x128xbf16>
    %c2_107 = arith.constant 2 : index
    %c0_108 = arith.constant 0 : index
    %c0_109 = arith.constant 0 : index
    %134 = vector.load %arg5[%c2_107, %c0_108, %c0_109] : memref<3x128x384xbf16, #tpu.memory_space<vmem>>, vector<1x128x384xbf16>
    %135 = vector.shape_cast %134 : vector<1x128x384xbf16> to vector<128x384xbf16>
    %cst_110 = arith.constant dense<0.000000e+00> : vector<128x384xf32>
    %136 = tpu.matmul %98, %135, %cst_110 {dimension_numbers = #tpu.dot_dimension_numbers<[1], [0], [0], [1], [0, 0, 1, 1], [], []>} : vector<128x128xbf16>, vector<128x384xbf16>, vector<128x384xf32> -> vector<128x384xf32>
    %137 = arith.truncf %136 : vector<128x384xf32> to vector<128x384xbf16>
    %c2_111 = arith.constant 2 : index
    %c0_112 = arith.constant 0 : index
    %c0_113 = arith.constant 0 : index
    %138 = vector.load %arg6[%c2_111, %c0_112, %c0_113] : memref<3x128x512xbf16, #tpu.memory_space<vmem>>, vector<1x128x512xbf16>
    %139 = vector.shape_cast %138 : vector<1x128x512xbf16> to vector<128x512xbf16>
    %cst_114 = arith.constant dense<0.000000e+00> : vector<128x512xf32>
    %140 = tpu.matmul %116, %139, %cst_114 {dimension_numbers = #tpu.dot_dimension_numbers<[1], [0], [0], [1], [0, 0, 1, 1], [], []>} : vector<128x128xbf16>, vector<128x512xbf16>, vector<128x512xf32> -> vector<128x512xf32>
    %141 = arith.truncf %140 : vector<128x512xf32> to vector<128x512xbf16>
    %c2_115 = arith.constant 2 : index
    %c0_116 = arith.constant 0 : index
    %c0_117 = arith.constant 0 : index
    %142 = vector.load %arg7[%c2_115, %c0_116, %c0_117] : memref<3x128x384xbf16, #tpu.memory_space<vmem>>, vector<1x128x384xbf16>
    %143 = vector.shape_cast %142 : vector<1x128x384xbf16> to vector<128x384xbf16>
    %cst_118 = arith.constant dense<0.000000e+00> : vector<128x384xf32>
    %144 = tpu.matmul %133, %143, %cst_118 {dimension_numbers = #tpu.dot_dimension_numbers<[1], [0], [0], [1], [0, 0, 1, 1], [], []>} : vector<128x128xbf16>, vector<128x384xbf16>, vector<128x384xf32> -> vector<128x384xf32>
    %145 = arith.truncf %144 : vector<128x384xf32> to vector<128x384xbf16>
    %146 = vector.extract_strided_slice %141 {offsets = [0, 0], sizes = [128, 128], strides = [1, 1]} : vector<128x512xbf16> to vector<128x128xbf16>
    %147 = vector.extract_strided_slice %145 {offsets = [0, 0], sizes = [128, 128], strides = [1, 1]} : vector<128x384xbf16> to vector<128x128xbf16>
    %148 = vector.extract_strided_slice %137 {offsets = [0, 256], sizes = [128, 128], strides = [1, 1]} : vector<128x384xbf16> to vector<128x128xbf16>
    %149 = tpu.concatenate %146, %147, %148 in 0 : vector<128x128xbf16>, vector<128x128xbf16>, vector<128x128xbf16> -> vector<384x128xbf16>
    %c0_119 = arith.constant 0 : index
    %c0_120 = arith.constant 0 : index
    %150 = vector.load %arg2[%c0_119, %c0_120] : memref<128x384xbf16, #tpu.memory_space<vmem>>, vector<128x384xbf16>
    %cst_121 = arith.constant dense<0.000000e+00> : vector<128x128xf32>
    %151 = tpu.matmul %150, %149, %cst_121 {dimension_numbers = #tpu.dot_dimension_numbers<[1], [0], [0], [1], [0, 0, 1, 1], [], []>} : vector<128x384xbf16>, vector<384x128xbf16>, vector<128x128xf32> -> vector<128x128xf32>
    %c2_122 = arith.constant 2 : index
    %c0_123 = arith.constant 0 : index
    %c0_124 = arith.constant 0 : index
    %c0_125 = arith.constant 0 : index
    %152 = vector.load %arg8[%c2_122, %c0_123, %c0_124, %c0_125] : memref<3x3x128x128xbf16, #tpu.memory_space<vmem>>, vector<1x1x128x128xbf16>
    %153 = vector.shape_cast %152 : vector<1x1x128x128xbf16> to vector<128x128xbf16>
    %cst_126 = arith.constant dense<0.000000e+00> : vector<128x128xf32>
    %154 = tpu.matmul %98, %153, %cst_126 {dimension_numbers = #tpu.dot_dimension_numbers<[1], [0], [0], [1], [0, 0, 1, 1], [], []>} : vector<128x128xbf16>, vector<128x128xbf16>, vector<128x128xf32> -> vector<128x128xf32>
    %155 = arith.addf %151, %154 : vector<128x128xf32>
    %c2_127 = arith.constant 2 : index
    %c0_128 = arith.constant 0 : index
    %c0_129 = arith.constant 0 : index
    %c0_130 = arith.constant 0 : index
    %156 = vector.load %arg9[%c2_127, %c0_128, %c0_129, %c0_130] : memref<3x3x1x128xf32, #tpu.memory_space<vmem>>, vector<1x1x1x128xf32>
    %157 = vector.shape_cast %156 : vector<1x1x1x128xf32> to vector<1x128xf32>
    %158 = vector.broadcast %157 : vector<1x128xf32> to vector<128x128xf32>
    %159 = arith.addf %155, %158 : vector<128x128xf32>
    %cst_131 = arith.constant 0.000000e+00 : f32
    %160 = vector.broadcast %cst_131 : f32 to vector<128x128xf32>
    %161 = arith.maximumf %159, %160 : vector<128x128xf32>
    %162 = arith.truncf %161 : vector<128x128xf32> to vector<128x128xbf16>
    %163 = vector.extract_strided_slice %137 {offsets = [0, 0], sizes = [128, 128], strides = [1, 1]} : vector<128x384xbf16> to vector<128x128xbf16>
    %164 = vector.extract_strided_slice %145 {offsets = [0, 128], sizes = [128, 128], strides = [1, 1]} : vector<128x384xbf16> to vector<128x128xbf16>
    %165 = vector.extract_strided_slice %141 {offsets = [0, 256], sizes = [128, 128], strides = [1, 1]} : vector<128x512xbf16> to vector<128x128xbf16>
    %166 = vector.extract_strided_slice %141 {offsets = [0, 384], sizes = [128, 128], strides = [1, 1]} : vector<128x512xbf16> to vector<128x128xbf16>
    %167 = tpu.concatenate %163, %164, %165, %166 in 0 : vector<128x128xbf16>, vector<128x128xbf16>, vector<128x128xbf16>, vector<128x128xbf16> -> vector<512x128xbf16>
    %c0_132 = arith.constant 0 : index
    %c0_133 = arith.constant 0 : index
    %168 = vector.load %arg3[%c0_132, %c0_133] : memref<128x512xbf16, #tpu.memory_space<vmem>>, vector<128x512xbf16>
    %cst_134 = arith.constant dense<0.000000e+00> : vector<128x128xf32>
    %169 = tpu.matmul %168, %167, %cst_134 {dimension_numbers = #tpu.dot_dimension_numbers<[1], [0], [0], [1], [0, 0, 1, 1], [], []>} : vector<128x512xbf16>, vector<512x128xbf16>, vector<128x128xf32> -> vector<128x128xf32>
    %c2_135 = arith.constant 2 : index
    %c1_136 = arith.constant 1 : index
    %c0_137 = arith.constant 0 : index
    %c0_138 = arith.constant 0 : index
    %170 = vector.load %arg8[%c2_135, %c1_136, %c0_137, %c0_138] : memref<3x3x128x128xbf16, #tpu.memory_space<vmem>>, vector<1x1x128x128xbf16>
    %171 = vector.shape_cast %170 : vector<1x1x128x128xbf16> to vector<128x128xbf16>
    %cst_139 = arith.constant dense<0.000000e+00> : vector<128x128xf32>
    %172 = tpu.matmul %116, %171, %cst_139 {dimension_numbers = #tpu.dot_dimension_numbers<[1], [0], [0], [1], [0, 0, 1, 1], [], []>} : vector<128x128xbf16>, vector<128x128xbf16>, vector<128x128xf32> -> vector<128x128xf32>
    %173 = arith.addf %169, %172 : vector<128x128xf32>
    %c2_140 = arith.constant 2 : index
    %c1_141 = arith.constant 1 : index
    %c0_142 = arith.constant 0 : index
    %c0_143 = arith.constant 0 : index
    %174 = vector.load %arg9[%c2_140, %c1_141, %c0_142, %c0_143] : memref<3x3x1x128xf32, #tpu.memory_space<vmem>>, vector<1x1x1x128xf32>
    %175 = vector.shape_cast %174 : vector<1x1x1x128xf32> to vector<1x128xf32>
    %176 = vector.broadcast %175 : vector<1x128xf32> to vector<128x128xf32>
    %177 = arith.addf %173, %176 : vector<128x128xf32>
    %cst_144 = arith.constant 0.000000e+00 : f32
    %178 = vector.broadcast %cst_144 : f32 to vector<128x128xf32>
    %179 = arith.maximumf %177, %178 : vector<128x128xf32>
    %180 = arith.truncf %179 : vector<128x128xf32> to vector<128x128xbf16>
    %181 = vector.extract_strided_slice %137 {offsets = [0, 128], sizes = [128, 128], strides = [1, 1]} : vector<128x384xbf16> to vector<128x128xbf16>
    %182 = vector.extract_strided_slice %141 {offsets = [0, 128], sizes = [128, 128], strides = [1, 1]} : vector<128x512xbf16> to vector<128x128xbf16>
    %183 = vector.extract_strided_slice %145 {offsets = [0, 256], sizes = [128, 128], strides = [1, 1]} : vector<128x384xbf16> to vector<128x128xbf16>
    %184 = tpu.concatenate %181, %182, %183 in 0 : vector<128x128xbf16>, vector<128x128xbf16>, vector<128x128xbf16> -> vector<384x128xbf16>
    %c0_145 = arith.constant 0 : index
    %c0_146 = arith.constant 0 : index
    %185 = vector.load %arg4[%c0_145, %c0_146] : memref<128x384xbf16, #tpu.memory_space<vmem>>, vector<128x384xbf16>
    %cst_147 = arith.constant dense<0.000000e+00> : vector<128x128xf32>
    %186 = tpu.matmul %185, %184, %cst_147 {dimension_numbers = #tpu.dot_dimension_numbers<[1], [0], [0], [1], [0, 0, 1, 1], [], []>} : vector<128x384xbf16>, vector<384x128xbf16>, vector<128x128xf32> -> vector<128x128xf32>
    %c2_148 = arith.constant 2 : index
    %c2_149 = arith.constant 2 : index
    %c0_150 = arith.constant 0 : index
    %c0_151 = arith.constant 0 : index
    %187 = vector.load %arg8[%c2_148, %c2_149, %c0_150, %c0_151] : memref<3x3x128x128xbf16, #tpu.memory_space<vmem>>, vector<1x1x128x128xbf16>
    %188 = vector.shape_cast %187 : vector<1x1x128x128xbf16> to vector<128x128xbf16>
    %cst_152 = arith.constant dense<0.000000e+00> : vector<128x128xf32>
    %189 = tpu.matmul %133, %188, %cst_152 {dimension_numbers = #tpu.dot_dimension_numbers<[1], [0], [0], [1], [0, 0, 1, 1], [], []>} : vector<128x128xbf16>, vector<128x128xbf16>, vector<128x128xf32> -> vector<128x128xf32>
    %190 = arith.addf %186, %189 : vector<128x128xf32>
    %c2_153 = arith.constant 2 : index
    %c2_154 = arith.constant 2 : index
    %c0_155 = arith.constant 0 : index
    %c0_156 = arith.constant 0 : index
    %191 = vector.load %arg9[%c2_153, %c2_154, %c0_155, %c0_156] : memref<3x3x1x128xf32, #tpu.memory_space<vmem>>, vector<1x1x1x128xf32>
    %192 = vector.shape_cast %191 : vector<1x1x1x128xf32> to vector<1x128xf32>
    %193 = vector.broadcast %192 : vector<1x128xf32> to vector<128x128xf32>
    %194 = arith.addf %190, %193 : vector<128x128xf32>
    %cst_157 = arith.constant 0.000000e+00 : f32
    %195 = vector.broadcast %cst_157 : f32 to vector<128x128xf32>
    %196 = arith.maximumf %194, %195 : vector<128x128xf32>
    %197 = arith.truncf %196 : vector<128x128xf32> to vector<128x128xbf16>
    %198 = arith.extf %162 : vector<128x128xbf16> to vector<128x128xf32>
    %c0_158 = arith.constant 0 : index
    %c0_159 = arith.constant 0 : index
    %199 = vector.load %arg12[%c0_158, %c0_159] : memref<128x128xf32, #tpu.memory_space<vmem>>, vector<128x128xf32>
    tpu.vector_store %arg12[%c0_158, %c0_159], %198 {strides = array<i32>} : memref<128x128xf32, #tpu.memory_space<vmem>>, vector<128x128xf32>,
    %c0_160 = arith.constant 0 : index
    %c0_161 = arith.constant 0 : index
    %c0_162 = arith.constant 0 : index
    %200 = vector.load %arg10[%c0_160, %c0_161, %c0_162] : memref<2x128x128xbf16, #tpu.memory_space<vmem>>, vector<1x128x128xbf16>
    %201 = vector.shape_cast %200 : vector<1x128x128xbf16> to vector<128x128xbf16>
    %cst_163 = arith.constant dense<0.000000e+00> : vector<128x128xf32>
    %202 = tpu.matmul %180, %201, %cst_163 {dimension_numbers = #tpu.dot_dimension_numbers<[1], [0], [0], [1], [0, 0, 1, 1], [], []>} : vector<128x128xbf16>, vector<128x128xbf16>, vector<128x128xf32> -> vector<128x128xf32>
    %c0_164 = arith.constant 0 : index
    %c0_165 = arith.constant 0 : index
    %c0_166 = arith.constant 0 : index
    %203 = vector.load %arg11[%c0_164, %c0_165, %c0_166] : memref<2x1x128xf32, #tpu.memory_space<vmem>>, vector<1x1x128xf32>
    %204 = vector.shape_cast %203 : vector<1x1x128xf32> to vector<1x128xf32>
    %205 = vector.broadcast %204 : vector<1x128xf32> to vector<128x128xf32>
    %206 = arith.addf %202, %205 : vector<128x128xf32>
    %c0_167 = arith.constant 0 : index
    %c0_168 = arith.constant 0 : index
    %207 = vector.load %arg13[%c0_167, %c0_168] : memref<128x128xf32, #tpu.memory_space<vmem>>, vector<128x128xf32>
    tpu.vector_store %arg13[%c0_167, %c0_168], %206 {strides = array<i32>} : memref<128x128xf32, #tpu.memory_space<vmem>>, vector<128x128xf32>,
    %c1_169 = arith.constant 1 : index
    %c0_170 = arith.constant 0 : index
    %c0_171 = arith.constant 0 : index
    %208 = vector.load %arg10[%c1_169, %c0_170, %c0_171] : memref<2x128x128xbf16, #tpu.memory_space<vmem>>, vector<1x128x128xbf16>
    %209 = vector.shape_cast %208 : vector<1x128x128xbf16> to vector<128x128xbf16>
    %cst_172 = arith.constant dense<0.000000e+00> : vector<128x128xf32>
    %210 = tpu.matmul %197, %209, %cst_172 {dimension_numbers = #tpu.dot_dimension_numbers<[1], [0], [0], [1], [0, 0, 1, 1], [], []>} : vector<128x128xbf16>, vector<128x128xbf16>, vector<128x128xf32> -> vector<128x128xf32>
    %c1_173 = arith.constant 1 : index
    %c0_174 = arith.constant 0 : index
    %c0_175 = arith.constant 0 : index
    %211 = vector.load %arg11[%c1_173, %c0_174, %c0_175] : memref<2x1x128xf32, #tpu.memory_space<vmem>>, vector<1x1x128xf32>
    %212 = vector.shape_cast %211 : vector<1x1x128xf32> to vector<1x128xf32>
    %213 = vector.broadcast %212 : vector<1x128xf32> to vector<128x128xf32>
    %214 = arith.addf %210, %213 : vector<128x128xf32>
    %c0_176 = arith.constant 0 : index
    %c0_177 = arith.constant 0 : index
    %215 = vector.load %arg14[%c0_176, %c0_177] : memref<128x128xf32, #tpu.memory_space<vmem>>, vector<128x128xf32>
    tpu.vector_store %arg14[%c0_176, %c0_177], %214 {strides = array<i32>} : memref<128x128xf32, #tpu.memory_space<vmem>>, vector<128x128xf32>,
    return
  }
  func.func @transform_0(%arg0: i32) -> (i32, i32, i32) {
    %c0_i32 = arith.constant 0 : i32
    %c0_i32_0 = arith.constant 0 : i32
    %c0_i32_1 = arith.constant 0 : i32
    %c0_i32_2 = arith.constant 0 : i32
    return %c0_i32, %c0_i32_0, %c0_i32_1 : i32, i32, i32
  }
  func.func @transform_1(%arg0: i32) -> (i32, i32) {
    %c0_i32 = arith.constant 0 : i32
    %c0_i32_0 = arith.constant 0 : i32
    %c0_i32_1 = arith.constant 0 : i32
    return %c0_i32, %c0_i32_0 : i32, i32
  }
  func.func @transform_2(%arg0: i32) -> (i32, i32) {
    %c0_i32 = arith.constant 0 : i32
    %c0_i32_0 = arith.constant 0 : i32
    %c0_i32_1 = arith.constant 0 : i32
    return %c0_i32, %c0_i32_0 : i32, i32
  }
  func.func @transform_3(%arg0: i32) -> (i32, i32) {
    %c0_i32 = arith.constant 0 : i32
    %c0_i32_0 = arith.constant 0 : i32
    %c0_i32_1 = arith.constant 0 : i32
    return %c0_i32, %c0_i32_0 : i32, i32
  }
  func.func @transform_4(%arg0: i32) -> (i32, i32, i32) {
    %c0_i32 = arith.constant 0 : i32
    %c0_i32_0 = arith.constant 0 : i32
    %c0_i32_1 = arith.constant 0 : i32
    %c0_i32_2 = arith.constant 0 : i32
    return %c0_i32, %c0_i32_0, %c0_i32_1 : i32, i32, i32
  }
  func.func @transform_5(%arg0: i32) -> (i32, i32, i32) {
    %c0_i32 = arith.constant 0 : i32
    %c0_i32_0 = arith.constant 0 : i32
    %c0_i32_1 = arith.constant 0 : i32
    %c0_i32_2 = arith.constant 0 : i32
    return %c0_i32, %c0_i32_0, %c0_i32_1 : i32, i32, i32
  }
  func.func @transform_6(%arg0: i32) -> (i32, i32, i32) {
    %c0_i32 = arith.constant 0 : i32
    %c0_i32_0 = arith.constant 0 : i32
    %c0_i32_1 = arith.constant 0 : i32
    %c0_i32_2 = arith.constant 0 : i32
    return %c0_i32, %c0_i32_0, %c0_i32_1 : i32, i32, i32
  }
  func.func @transform_7(%arg0: i32) -> (i32, i32, i32, i32) {
    %c0_i32 = arith.constant 0 : i32
    %c0_i32_0 = arith.constant 0 : i32
    %c0_i32_1 = arith.constant 0 : i32
    %c0_i32_2 = arith.constant 0 : i32
    %c0_i32_3 = arith.constant 0 : i32
    return %c0_i32, %c0_i32_0, %c0_i32_1, %c0_i32_2 : i32, i32, i32, i32
  }
  func.func @transform_8(%arg0: i32) -> (i32, i32, i32, i32) {
    %c0_i32 = arith.constant 0 : i32
    %c0_i32_0 = arith.constant 0 : i32
    %c0_i32_1 = arith.constant 0 : i32
    %c0_i32_2 = arith.constant 0 : i32
    %c0_i32_3 = arith.constant 0 : i32
    return %c0_i32, %c0_i32_0, %c0_i32_1, %c0_i32_2 : i32, i32, i32, i32
  }
  func.func @transform_9(%arg0: i32) -> (i32, i32, i32) {
    %c0_i32 = arith.constant 0 : i32
    %c0_i32_0 = arith.constant 0 : i32
    %c0_i32_1 = arith.constant 0 : i32
    %c0_i32_2 = arith.constant 0 : i32
    return %c0_i32, %c0_i32_0, %c0_i32_1 : i32, i32, i32
  }
  func.func @transform_10(%arg0: i32) -> (i32, i32, i32) {
    %c0_i32 = arith.constant 0 : i32
    %c0_i32_0 = arith.constant 0 : i32
    %c0_i32_1 = arith.constant 0 : i32
    %c0_i32_2 = arith.constant 0 : i32
    return %c0_i32, %c0_i32_0, %c0_i32_1 : i32, i32, i32
  }
  func.func @transform_11(%arg0: i32) -> (i32, i32) {
    %c0_i32 = arith.constant 0 : i32
    %c0_i32_0 = arith.constant 0 : i32
    %c0_i32_1 = arith.constant 0 : i32
    return %c0_i32, %c0_i32_0 : i32, i32
  }
  func.func @transform_12(%arg0: i32) -> (i32, i32) {
    %c0_i32 = arith.constant 0 : i32
    %c0_i32_0 = arith.constant 0 : i32
    %c0_i32_1 = arith.constant 0 : i32
    return %c0_i32, %c0_i32_0 : i32, i32
  }
  func.func @transform_13(%arg0: i32) -> (i32, i32) {
    %c0_i32 = arith.constant 0 : i32
    %c0_i32_0 = arith.constant 0 : i32
    %c0_i32_1 = arith.constant 0 : i32
    return %c0_i32, %c0_i32_0 : i32, i32
  }
}

</mosaic_0001>

<llo_original>
// kernel: tpu_custom_call.1
$region0: #{tpu_custom_call.1}
  #allocation0 [shape = 'u32[]', space=smem, size = 0x4, offset = 0x4, fixed_abs, tag = 'smem constant byte address 0x4 - core index']
  #allocation1 [shape = 'u32[72,128]{1,0:T(1,128)}', space=vmem, size = 0x9000, scoped, tag = 'internal scratch']
  %s0 = inlined_call_operand.hbm [shape: bf16[3,128,128], index: 0, kind: input, shape index: {}]
  %s1 = inlined_call_operand.hbm [shape: bf16[128,384], index: 1, kind: input, shape index: {}]
  %s2 = inlined_call_operand.hbm [shape: bf16[128,512], index: 2, kind: input, shape index: {}]
  %s3 = inlined_call_operand.hbm [shape: bf16[128,384], index: 3, kind: input, shape index: {}]
  %s4 = inlined_call_operand.hbm [shape: bf16[3,128,384], index: 4, kind: input, shape index: {}]
  %s5 = inlined_call_operand.hbm [shape: bf16[3,128,512], index: 5, kind: input, shape index: {}]
  %s6 = inlined_call_operand.hbm [shape: bf16[3,128,384], index: 6, kind: input, shape index: {}]
  %s7 = inlined_call_operand.hbm [shape: bf16[3,3,128,128], index: 7, kind: input, shape index: {}]
  %s8 = inlined_call_operand.hbm [shape: f32[3,3,1,128], index: 8, kind: input, shape index: {}]
  %s9 = inlined_call_operand.hbm [shape: bf16[2,128,128], index: 9, kind: input, shape index: {}]
  %s10 = inlined_call_operand.vmem [shape: f32[2,1,128], index: 10, kind: input, shape index: {}]
  %s11 = inlined_call_operand.hbm [shape: f32[128,128], index: 11, kind: output, shape index: {0}]
  %s12 = inlined_call_operand.hbm [shape: f32[128,128], index: 12, kind: output, shape index: {1}]
  %s13 = inlined_call_operand.hbm [shape: f32[128,128], index: 13, kind: output, shape index: {2}]
  %14 = xla_tuple %s11, %s12, %s13
  %s15 = sld [smem:[#allocation0]]
  $region110: #{tpu_custom_call.1} parent=0
    _
  %s17 = ssub.s32 1, %s15
  %s18 = scalar_select 0, %s17, %s15
  $region1: #{tpu_custom_call.1} parent=0
    #allocation2 [shape = 'u8[98304]{0}', space=vmem, size = 0x18000, scoped, tag = 'input window, operand 0, single buffered']
    #allocation3 [shape = 's32[1]{0}', space=sflag, size = 0x4, scoped, tag = 'scoped memory for tpu_custom_call.1']
    #allocation4 [shape = 's32[1]{0}', space=sflag, size = 0x4, scoped, tag = 'scoped memory for tpu_custom_call.1']
    #allocation5 [shape = 'u8[98304]{0}', space=vmem, size = 0x18000, scoped, tag = 'input window, operand 1, single buffered']
    #allocation6 [shape = 's32[1]{0}', space=sflag, size = 0x4, scoped, tag = 'scoped memory for tpu_custom_call.1']
    #allocation7 [shape = 'u8[131072]{0}', space=vmem, size = 0x20000, scoped, tag = 'input window, operand 2, single buffered']
    #allocation8 [shape = 'u8[98304]{0}', space=vmem, size = 0x18000, scoped, tag = 'input window, operand 3, single buffered']
    #allocation9 [shape = 's32[1]{0}', space=sflag, size = 0x4, scoped, tag = 'scoped memory for tpu_custom_call.1']
    #allocation10 [shape = 'u8[294912]{0}', space=vmem, size = 0x48000, scoped, tag = 'input window, operand 4, single buffered']
    #allocation11 [shape = 'u8[393216]{0}', space=vmem, size = 0x60000, scoped, tag = 'input window, operand 5, single buffered']
    #allocation12 [shape = 's32[1]{0}', space=sflag, size = 0x4, scoped, tag = 'scoped memory for tpu_custom_call.1']
    #allocation13 [shape = 'u8[294912]{0}', space=vmem, size = 0x48000, scoped, tag = 'input window, operand 6, single buffered']
    #allocation14 [shape = 'u8[294912]{0}', space=vmem, size = 0x48000, scoped, tag = 'input window, operand 7, single buffered']
    #allocation15 [shape = 's32[1]{0}', space=sflag, size = 0x4, scoped, tag = 'scoped memory for tpu_custom_call.1']
    #allocation16 [shape = 'u8[4608]{0}', space=vmem, size = 0x1400, scoped, tag = 'input window, operand 8, single buffered']
    #allocation17 [shape = 'u8[65536]{0}', space=vmem, size = 0x10000, scoped, tag = 'input window, operand 9, single buffered']
    #allocation18 [shape = 's32[1]{0}', space=sflag, size = 0x4, scoped, tag = 'scoped memory for tpu_custom_call.1']
    #allocation19 [shape = 'u8[65536]{0}', space=vmem, size = 0x10000, scoped, tag = 'output window, operand 0, single buffered']
    #allocation20 [shape = 'u8[65536]{0}', space=vmem, size = 0x10000, scoped, tag = 'output window, operand 1, single buffered']
    #allocation21 [shape = 's32[1]{0}', space=sflag, size = 0x4, scoped, tag = 'scoped memory for tpu_custom_call.1']
    #allocation22 [shape = 'u8[65536]{0}', space=vmem, size = 0x10000, scoped, tag = 'output window, operand 2, single buffered']
    %19 = vsyncpa [#allocation3], 0
    %20 = vsyncpa [#allocation6], 0
    %21 = vsyncpa [#allocation9], 0
    %22 = vsyncpa [#allocation12], 0
    %23 = vsyncpa [#allocation15], 0
    %24 = vsyncpa [#allocation18], 0
    %25 = vsyncpa [#allocation4], 0
    %26 = vsyncpa [#allocation21], 0
    // Predicated region
    $region2: #{tpu_custom_call.1} parent=1 // pred_check
      _
    $region3: #{tpu_custom_call.1} parent=1 // pred_check_branch
      %28 = sbr.rel (0) target = $region5
    $region4: #{tpu_custom_call.1} parent=1 // pred_region
      %30 = vsyncadd [#allocation3], 0
      %s31 = sshll.u32 %s0, 4
      %s32 = int_to_ptr.hbm [resolvable:$true] %s31
      %s33 = sshll.u32 [#allocation2], 4
      %s34 = int_to_ptr.vmem [resolvable:$true] %s33
      %39 = dma.hbm_to_vmem [thread:$0]  %s32, 3072, %s34, [#allocation3], 64, 64, 4
    $region5: #{tpu_custom_call.1} parent=1 // pred_fallthru
      _
    // Predicated region
    $region6: #{tpu_custom_call.1} parent=1 // pred_check
      _
    $region7: #{tpu_custom_call.1} parent=1 // pred_check_branch
      %41 = sbr.rel (0) target = $region9
    $region8: #{tpu_custom_call.1} parent=1 // pred_region
      %43 = vsyncadd [#allocation6], 0
      %s44 = sshll.u32 %s1, 4
      %s45 = int_to_ptr.hbm [resolvable:$true] %s44
      %s46 = sshll.u32 [#allocation5], 4
      %s47 = int_to_ptr.vmem [resolvable:$true] %s46
      %52 = dma.hbm_to_vmem [thread:$0]  %s45, 3072, %s47, [#allocation6], 192, 192, 12
    $region9: #{tpu_custom_call.1} parent=1 // pred_fallthru
      _
    // Predicated region
    $region10: #{tpu_custom_call.1} parent=1 // pred_check
      _
    $region11: #{tpu_custom_call.1} parent=1 // pred_check_branch
      %54 = sbr.rel (0) target = $region13
    $region12: #{tpu_custom_call.1} parent=1 // pred_region
      %56 = vsyncadd [#allocation6], 0
      %s57 = sshll.u32 %s2, 4
      %s58 = int_to_ptr.hbm [resolvable:$true] %s57
      %s59 = sshll.u32 [#allocation7], 4
      %s60 = int_to_ptr.vmem [resolvable:$true] %s59
      %65 = dma.hbm_to_vmem [thread:$0]  %s58, 4096, %s60, [#allocation6], 256, 256, 16
    $region13: #{tpu_custom_call.1} parent=1 // pred_fallthru
      _
    // Predicated region
    $region14: #{tpu_custom_call.1} parent=1 // pred_check
      _
    $region15: #{tpu_custom_call.1} parent=1 // pred_check_branch
      %67 = sbr.rel (0) target = $region17
    $region16: #{tpu_custom_call.1} parent=1 // pred_region
      %69 = vsyncadd [#allocation9], 0
      %s70 = sshll.u32 %s3, 4
      %s71 = int_to_ptr.hbm [resolvable:$true] %s70
      %s72 = sshll.u32 [#allocation8], 4
      %s73 = int_to_ptr.vmem [resolvable:$true] %s72
      %78 = dma.hbm_to_vmem [thread:$0]  %s71, 3072, %s73, [#allocation9], 192, 192, 12
    $region17: #{tpu_custom_call.1} parent=1 // pred_fallthru
      _
    // Predicated region
    $region18: #{tpu_custom_call.1} parent=1 // pred_check
      _
    $region19: #{tpu_custom_call.1} parent=1 // pred_check_branch
      %80 = sbr.rel (0) target = $region21
    $region20: #{tpu_custom_call.1} parent=1 // pred_region
      %82 = vsyncadd [#allocation9], 0
      %s83 = sshll.u32 %s4, 4
      %s84 = int_to_ptr.hbm [resolvable:$true] %s83
      %s85 = sshll.u32 [#allocation10], 4
      %s86 = int_to_ptr.vmem [resolvable:$true] %s85
      %91 = dma.hbm_to_vmem [thread:$0]  %s84, 9216, %s86, [#allocation9], 192, 192, 12
    $region21: #{tpu_custom_call.1} parent=1 // pred_fallthru
      _
    // Predicated region
    $region22: #{tpu_custom_call.1} parent=1 // pred_check
      _
    $region23: #{tpu_custom_call.1} parent=1 // pred_check_branch
      %93 = sbr.rel (0) target = $region25
    $region24: #{tpu_custom_call.1} parent=1 // pred_region
      %95 = vsyncadd [#allocation12], 0
      %s96 = sshll.u32 %s5, 4
      %s97 = int_to_ptr.hbm [resolvable:$true] %s96
      %s98 = sshll.u32 [#allocation11], 4
      %s99 = int_to_ptr.vmem [resolvable:$true] %s98
      %104 = dma.hbm_to_vmem [thread:$0]  %s97, 12288, %s99, [#allocation12], 256, 256, 16
    $region25: #{tpu_custom_call.1} parent=1 // pred_fallthru
      _
    // Predicated region
    $region26: #{tpu_custom_call.1} parent=1 // pred_check
      _
    $region27: #{tpu_custom_call.1} parent=1 // pred_check_branch
      %106 = sbr.rel (0) target = $region29
    $region28: #{tpu_custom_call.1} parent=1 // pred_region
      %108 = vsyncadd [#allocation12], 0
      %s109 = sshll.u32 %s6, 4
      %s110 = int_to_ptr.hbm [resolvable:$true] %s109
      %s111 = sshll.u32 [#allocation13], 4
      %s112 = int_to_ptr.vmem [resolvable:$true] %s111
      %117 = dma.hbm_to_vmem [thread:$0]  %s110, 9216, %s112, [#allocation12], 192, 192, 12
    $region29: #{tpu_custom_call.1} parent=1 // pred_fallthru
      _
    // Predicated region
    $region30: #{tpu_custom_call.1} parent=1 // pred_check
      _
    $region31: #{tpu_custom_call.1} parent=1 // pred_check_branch
      %119 = sbr.rel (0) target = $region33
    $region32: #{tpu_custom_call.1} parent=1 // pred_region
      %121 = vsyncadd [#allocation15], 0
      %s122 = sshll.u32 %s7, 4
      %s123 = int_to_ptr.hbm [resolvable:$true] %s122
      %s124 = sshll.u32 [#allocation14], 4
      %s125 = int_to_ptr.vmem [resolvable:$true] %s124
      %130 = dma.hbm_to_vmem [thread:$0]  %s123, 9216, %s125, [#allocation15], 64, 64, 4
    $region33: #{tpu_custom_call.1} parent=1 // pred_fallthru
      _
    // Predicated region
    $region34: #{tpu_custom_call.1} parent=1 // pred_check
      _
    $region35: #{tpu_custom_call.1} parent=1 // pred_check_branch
      %132 = sbr.rel (0) target = $region37
    $region36: #{tpu_custom_call.1} parent=1 // pred_region
      %134 = vsyncadd [#allocation15], 0
      %s135 = sshll.u32 %s8, 4
      %s136 = int_to_ptr.hbm [resolvable:$true] %s135
      %s137 = sshll.u32 [#allocation16], 4
      %s138 = int_to_ptr.vmem [resolvable:$true] %s137
      %143 = dma.hbm_to_vmem [thread:$0]  %s136, 144, %s138, [#allocation15], 16, 16, 1
    $region37: #{tpu_custom_call.1} parent=1 // pred_fallthru
      _
    // Predicated region
    $region38: #{tpu_custom_call.1} parent=1 // pred_check
      _
    $region39: #{tpu_custom_call.1} parent=1 // pred_check_branch
      %145 = sbr.rel (0) target = $region41
    $region40: #{tpu_custom_call.1} parent=1 // pred_region
      %147 = vsyncadd [#allocation18], 0
      %s148 = sshll.u32 %s9, 4
      %s149 = int_to_ptr.hbm [resolvable:$true] %s148
      %s150 = sshll.u32 [#allocation17], 4
      %s151 = int_to_ptr.vmem [resolvable:$true] %s150
      %156 = dma.hbm_to_vmem [thread:$0]  %s149, 2048, %s151, [#allocation18], 64, 64, 4
    $region41: #{tpu_custom_call.1} parent=1 // pred_fallthru
      _
    // Predicated region
    $region42: #{tpu_custom_call.1} parent=1 // pred_check
      _
    $region43: #{tpu_custom_call.1} parent=1 // pred_check_branch
      %158 = sbr.rel (0) target = $region45
    $region44: #{tpu_custom_call.1} parent=1 // pred_region
      _
    $region45: #{tpu_custom_call.1} parent=1 // pred_fallthru
      _
    // Predicated region
    $region46: #{tpu_custom_call.1} parent=1 // pred_check
      _
    $region47: #{tpu_custom_call.1} parent=1 // pred_check_branch
      %160 = sbr.rel (0) target = $region49
    $region48: #{tpu_custom_call.1} parent=1 // pred_region
      %162 = dma.done [#allocation3], 3072
    $region49: #{tpu_custom_call.1} parent=1 // pred_fallthru
      _
    // Predicated region
    $region50: #{tpu_custom_call.1} parent=1 // pred_check
      _
    $region51: #{tpu_custom_call.1} parent=1 // pred_check_branch
      %164 = sbr.rel (0) target = $region53
    $region52: #{tpu_custom_call.1} parent=1 // pred_region
      %166 = dma.done [#allocation6], 3072
    $region53: #{tpu_custom_call.1} parent=1 // pred_fallthru
      _
    // Predicated region
    $region54: #{tpu_custom_call.1} parent=1 // pred_check
      _
    $region55: #{tpu_custom_call.1} parent=1 // pred_check_branch
      %168 = sbr.rel (0) target = $region57
    $region56: #{tpu_custom_call.1} parent=1 // pred_region
      %170 = dma.done [#allocation6], 4096
    $region57: #{tpu_custom_call.1} parent=1 // pred_fallthru
      _
    // Predicated region
    $region58: #{tpu_custom_call.1} parent=1 // pred_check
      _
    $region59: #{tpu_custom_call.1} parent=1 // pred_check_branch
      %172 = sbr.rel (0) target = $region61
    $region60: #{tpu_custom_call.1} parent=1 // pred_region
      %174 = dma.done [#allocation9], 3072
    $region61: #{tpu_custom_call.1} parent=1 // pred_fallthru
      _
    // Predicated region
    $region62: #{tpu_custom_call.1} parent=1 // pred_check
      _
    $region63: #{tpu_custom_call.1} parent=1 // pred_check_branch
      %176 = sbr.rel (0) target = $region65
    $region64: #{tpu_custom_call.1} parent=1 // pred_region
      %178 = dma.done [#allocation9], 9216
    $region65: #{tpu_custom_call.1} parent=1 // pred_fallthru
      _
    // Predicated region
    $region66: #{tpu_custom_call.1} parent=1 // pred_check
      _
    $region67: #{tpu_custom_call.1} parent=1 // pred_check_branch
      %180 = sbr.rel (0) target = $region69
    $region68: #{tpu_custom_call.1} parent=1 // pred_region
      %182 = dma.done [#allocation12], 12288
    $region69: #{tpu_custom_call.1} parent=1 // pred_fallthru
      _
    // Predicated region
    $region70: #{tpu_custom_call.1} parent=1 // pred_check
      _
    $region71: #{tpu_custom_call.1} parent=1 // pred_check_branch
      %184 = sbr.rel (0) target = $region73
    $region72: #{tpu_custom_call.1} parent=1 // pred_region
      %186 = dma.done [#allocation12], 9216
    $region73: #{tpu_custom_call.1} parent=1 // pred_fallthru
      _
    // Predicated region
    $region74: #{tpu_custom_call.1} parent=1 // pred_check
      _
    $region75: #{tpu_custom_call.1} parent=1 // pred_check_branch
      %188 = sbr.rel (0) target = $region77
    $region76: #{tpu_custom_call.1} parent=1 // pred_region
      %190 = dma.done [#allocation15], 9216
    $region77: #{tpu_custom_call.1} parent=1 // pred_fallthru
      _
    // Predicated region
    $region78: #{tpu_custom_call.1} parent=1 // pred_check
      _
    $region79: #{tpu_custom_call.1} parent=1 // pred_check_branch
      %192 = sbr.rel (0) target = $region81
    $region80: #{tpu_custom_call.1} parent=1 // pred_region
      %194 = dma.done [#allocation15], 144
    $region81: #{tpu_custom_call.1} parent=1 // pred_fallthru
      _
    // Predicated region
    $region82: #{tpu_custom_call.1} parent=1 // pred_check
      _
    $region83: #{tpu_custom_call.1} parent=1 // pred_check_branch
      %196 = sbr.rel (0) target = $region85
    $region84: #{tpu_custom_call.1} parent=1 // pred_region
      %198 = dma.done [#allocation18], 2048
    $region85: #{tpu_custom_call.1} parent=1 // pred_fallthru
      _
    %v199 = vld [vmem:[#allocation2] sm:$0xf]
    %v200 = vld [vmem:[#allocation2 + $0x4] sm:$0xf]
    %v201 = vld [vmem:[#allocation2 + $0x8] sm:$0xf]
    %v202 = vld [vmem:[#allocation2 + $0xc] sm:$0xf]
    %v203 = vld [vmem:[#allocation2 + $0x10] sm:$0xf]
    %v204 = vld [vmem:[#allocation2 + $0x14] sm:$0xf]
    %v205 = vld [vmem:[#allocation2 + $0x18] sm:$0xf]
    %v206 = vld [vmem:[#allocation2 + $0x1c] sm:$0xf]
    %v207 = vld [vmem:[#allocation2 + $0x20] sm:$0xf]
    %v208 = vld [vmem:[#allocation2 + $0x24] sm:$0xf]
    %v209 = vld [vmem:[#allocation2 + $0x28] sm:$0xf]
    %v210 = vld [vmem:[#allocation2 + $0x2c] sm:$0xf]
    %v211 = vld [vmem:[#allocation2 + $0x30] sm:$0xf]
    %v212 = vld [vmem:[#allocation2 + $0x34] sm:$0xf]
    %v213 = vld [vmem:[#allocation2 + $0x38] sm:$0xf]
    %v214 = vld [vmem:[#allocation2 + $0x3c] sm:$0xf]
    %s215 = scalar_lea.vmem [#allocation2], 64
    %v216 = vld [vmem:[%s215] sm:$0xf]
    %v217 = vld [vmem:[%s215 + $0x4] sm:$0xf]
    %v218 = vld [vmem:[%s215 + $0x8] sm:$0xf]
    %v219 = vld [vmem:[%s215 + $0xc] sm:$0xf]
    %v220 = vld [vmem:[%s215 + $0x10] sm:$0xf]
    %v221 = vld [vmem:[%s215 + $0x14] sm:$0xf]
    %v222 = vld [vmem:[%s215 + $0x18] sm:$0xf]
    %v223 = vld [vmem:[%s215 + $0x1c] sm:$0xf]
    %v224 = vld [vmem:[%s215 + $0x20] sm:$0xf]
    %v225 = vld [vmem:[%s215 + $0x24] sm:$0xf]
    %v226 = vld [vmem:[%s215 + $0x28] sm:$0xf]
    %v227 = vld [vmem:[%s215 + $0x2c] sm:$0xf]
    %v228 = vld [vmem:[%s215 + $0x30] sm:$0xf]
    %v229 = vld [vmem:[%s215 + $0x34] sm:$0xf]
    %v230 = vld [vmem:[%s215 + $0x38] sm:$0xf]
    %v231 = vld [vmem:[%s215 + $0x3c] sm:$0xf]
    %s232 = scalar_lea.vmem [#allocation2], 128
    %v233 = vld [vmem:[%s232] sm:$0xf]
    %v234 = vld [vmem:[%s232 + $0x4] sm:$0xf]
    %v235 = vld [vmem:[%s232 + $0x8] sm:$0xf]
    %v236 = vld [vmem:[%s232 + $0xc] sm:$0xf]
    %v237 = vld [vmem:[%s232 + $0x10] sm:$0xf]
    %v238 = vld [vmem:[%s232 + $0x14] sm:$0xf]
    %v239 = vld [vmem:[%s232 + $0x18] sm:$0xf]
    %v240 = vld [vmem:[%s232 + $0x1c] sm:$0xf]
    %v241 = vld [vmem:[%s232 + $0x20] sm:$0xf]
    %v242 = vld [vmem:[%s232 + $0x24] sm:$0xf]
    %v243 = vld [vmem:[%s232 + $0x28] sm:$0xf]
    %v244 = vld [vmem:[%s232 + $0x2c] sm:$0xf]
    %v245 = vld [vmem:[%s232 + $0x30] sm:$0xf]
    %v246 = vld [vmem:[%s232 + $0x34] sm:$0xf]
    %v247 = vld [vmem:[%s232 + $0x38] sm:$0xf]
    %v248 = vld [vmem:[%s232 + $0x3c] sm:$0xf]
    %v249 = vld [vmem:[#allocation10] sm:$0xff]
    %v250 = vld [vmem:[#allocation10 + $0x8] sm:$0xf]
    %v251 = vld [vmem:[#allocation10 + $0xc] sm:$0xff]
    %v252 = vld [vmem:[#allocation10 + $0x14] sm:$0xf]
    %v253 = vld [vmem:[#allocation10 + $0x18] sm:$0xff]
    %v254 = vld [vmem:[#allocation10 + $0x20] sm:$0xf]
    %v255 = vld [vmem:[#allocation10 + $0x24] sm:$0xff]
    %v256 = vld [vmem:[#allocation10 + $0x2c] sm:$0xf]
    %v257 = vld [vmem:[#allocation10 + $0x30] sm:$0xff]
    %v258 = vld [vmem:[#allocation10 + $0x38] sm:$0xf]
    %v259 = vld [vmem:[#allocation10 + $0x3c] sm:$0xff]
    %v260 = vld [vmem:[#allocation10 + $0x44] sm:$0xf]
    %v261 = vld [vmem:[#allocation10 + $0x48] sm:$0xff]
    %v262 = vld [vmem:[#allocation10 + $0x50] sm:$0xf]
    %v263 = vld [vmem:[#allocation10 + $0x54] sm:$0xff]
    %v264 = vld [vmem:[#allocation10 + $0x5c] sm:$0xf]
    %v265 = vld [vmem:[#allocation10 + $0x60] sm:$0xff]
    %v266 = vld [vmem:[#allocation10 + $0x68] sm:$0xf]
    %v267 = vld [vmem:[#allocation10 + $0x6c] sm:$0xff]
    %v268 = vld [vmem:[#allocation10 + $0x74] sm:$0xf]
    %v269 = vld [vmem:[#allocation10 + $0x78] sm:$0xff]
    %v270 = vld [vmem:[#allocation10 + $0x80] sm:$0xf]
    %v271 = vld [vmem:[#allocation10 + $0x84] sm:$0xff]
    %v272 = vld [vmem:[#allocation10 + $0x8c] sm:$0xf]
    %v273 = vld [vmem:[#allocation10 + $0x90] sm:$0xff]
    %v274 = vld [vmem:[#allocation10 + $0x98] sm:$0xf]
    %v275 = vld [vmem:[#allocation10 + $0x9c] sm:$0xff]
    %v276 = vld [vmem:[#allocation10 + $0xa4] sm:$0xf]
    %v277 = vld [vmem:[#allocation10 + $0xa8] sm:$0xff]
    %v278 = vld [vmem:[#allocation10 + $0xb0] sm:$0xf]
    %v279 = vld [vmem:[#allocation10 + $0xb4] sm:$0xff]
    %v280 = vld [vmem:[#allocation10 + $0xbc] sm:$0xf]
    %v297 = vunpack.c.l.b16 %v199
    %v298 = vunpack.c.l.b16 %v200
    %v299 = vunpack.c.l.b16 %v201
    %v300 = vunpack.c.l.b16 %v202
    %v301 = vunpack.c.l.b16 %v203
    %v302 = vunpack.c.l.b16 %v204
    %v303 = vunpack.c.l.b16 %v205
    %v304 = vunpack.c.l.b16 %v206
    %v305 = vunpack.c.l.b16 %v207
    %v306 = vunpack.c.l.b16 %v208
    %v307 = vunpack.c.l.b16 %v209
    %v308 = vunpack.c.l.b16 %v210
    %v309 = vunpack.c.l.b16 %v211
    %v310 = vunpack.c.l.b16 %v212
    %v311 = vunpack.c.l.b16 %v213
    %v312 = vunpack.c.l.b16 %v214
    %v313 = vpack.c.b16 %v298, %v297
    %v314 = vpack.c.b16 %v300, %v299
    %v315 = vpack.c.b16 %v302, %v301
    %v316 = vpack.c.b16 %v304, %v303
    %v317 = vpack.c.b16 %v306, %v305
    %v318 = vpack.c.b16 %v308, %v307
    %v319 = vpack.c.b16 %v310, %v309
    %v320 = vpack.c.b16 %v312, %v311
    %v361 = vunpack.c.l.b16 %v249
    %v362 = vunpack.c.h.b16 %v249
    %v363 = vunpack.c.l.b16 %v250
    %v364 = vunpack.c.l.b16 %v251
    %v365 = vunpack.c.h.b16 %v251
    %v366 = vunpack.c.l.b16 %v252
    %v367 = vunpack.c.l.b16 %v253
    %v368 = vunpack.c.h.b16 %v253
    %v369 = vunpack.c.l.b16 %v254
    %v370 = vunpack.c.l.b16 %v255
    %v371 = vunpack.c.h.b16 %v255
    %v372 = vunpack.c.l.b16 %v256
    %v373 = vunpack.c.l.b16 %v257
    %v374 = vunpack.c.h.b16 %v257
    %v375 = vunpack.c.l.b16 %v258
    %v376 = vunpack.c.l.b16 %v259
    %v377 = vunpack.c.h.b16 %v259
    %v378 = vunpack.c.l.b16 %v260
    %v379 = vunpack.c.l.b16 %v261
    %v380 = vunpack.c.h.b16 %v261
    %v381 = vunpack.c.l.b16 %v262
    %v382 = vunpack.c.l.b16 %v263
    %v383 = vunpack.c.h.b16 %v263
    %v384 = vunpack.c.l.b16 %v264
    %v385 = vunpack.c.l.b16 %v265
    %v386 = vunpack.c.h.b16 %v265
    %v387 = vunpack.c.l.b16 %v266
    %v388 = vunpack.c.l.b16 %v267
    %v389 = vunpack.c.h.b16 %v267
    %v390 = vunpack.c.l.b16 %v268
    %v391 = vunpack.c.l.b16 %v269
    %v392 = vunpack.c.h.b16 %v269
    %v393 = vunpack.c.l.b16 %v270
    %v394 = vunpack.c.l.b16 %v271
    %v395 = vunpack.c.h.b16 %v271
    %v396 = vunpack.c.l.b16 %v272
    %v397 = vunpack.c.l.b16 %v273
    %v398 = vunpack.c.h.b16 %v273
    %v399 = vunpack.c.l.b16 %v274
    %v400 = vunpack.c.l.b16 %v275
    %v401 = vunpack.c.h.b16 %v275
    %v402 = vunpack.c.l.b16 %v276
    %v403 = vunpack.c.l.b16 %v277
    %v404 = vunpack.c.h.b16 %v277
    %v405 = vunpack.c.l.b16 %v278
    %v406 = vunpack.c.l.b16 %v279
    %v407 = vunpack.c.h.b16 %v279
    %v408 = vunpack.c.l.b16 %v280
    %v409 = vpack.c.b16 %v364, %v361
    %v410 = vpack.c.b16 %v365, %v362
    %v411 = vpack.c.b16 %v366, %v363
    %v412 = vpack.c.b16 %v370, %v367
    %v413 = vpack.c.b16 %v371, %v368
    %v414 = vpack.c.b16 %v372, %v369
    %v415 = vpack.c.b16 %v376, %v373
    %v416 = vpack.c.b16 %v377, %v374
    %v417 = vpack.c.b16 %v378, %v375
    %v418 = vpack.c.b16 %v382, %v379
    %v419 = vpack.c.b16 %v383, %v380
    %v420 = vpack.c.b16 %v384, %v381
    %v421 = vpack.c.b16 %v388, %v385
    %v422 = vpack.c.b16 %v389, %v386
    %v423 = vpack.c.b16 %v390, %v387
    %v424 = vpack.c.b16 %v394, %v391
    %v425 = vpack.c.b16 %v395, %v392
    %v426 = vpack.c.b16 %v396, %v393
    %v427 = vpack.c.b16 %v400, %v397
    %v428 = vpack.c.b16 %v401, %v398
    %v429 = vpack.c.b16 %v402, %v399
    %v430 = vpack.c.b16 %v406, %v403
    %v431 = vpack.c.b16 %v407, %v404
    %v432 = vpack.c.b16 %v408, %v405
    %457 = vmatpush.bf16.msra.mxu0 %v430
    %458 = vmatpush.bf16.msra.mxu0 %v427
    %459 = vmatpush.bf16.msra.mxu0 %v424
    %460 = vmatpush.bf16.msra.mxu0 %v421
    %461 = vmatpush.bf16.msra.mxu0 %v418
    %462 = vmatpush.bf16.msra.mxu0 %v415
    %463 = vmatpush.bf16.msra.mxu0 %v412
    %464 = vmatpush.bf16.msra.mxu0 %v409
    %465 = vmatmul.bf16.gmra.mxu0 %v313
    %v466 = vpop.f32.mrf.mxu0
    %v467 = vadd.f32 0.0, %v466
    %v468 = vpop.f32.mrf.mxu0
    %v469 = vadd.f32 0.0, %v468
    %470 = vmatmul.bf16.gmra.mxu0 %v314
    %v471 = vpop.f32.mrf.mxu0
    %v472 = vadd.f32 0.0, %v471
    %v473 = vpop.f32.mrf.mxu0
    %v474 = vadd.f32 0.0, %v473
    %475 = vmatmul.bf16.gmra.mxu0 %v315
    %v476 = vpop.f32.mrf.mxu0
    %v477 = vadd.f32 0.0, %v476
    %v478 = vpop.f32.mrf.mxu0
    %v479 = vadd.f32 0.0, %v478
    %480 = vmatmul.bf16.gmra.mxu0 %v316
    %v481 = vpop.f32.mrf.mxu0
    %v482 = vadd.f32 0.0, %v481
    %v483 = vpop.f32.mrf.mxu0
    %v484 = vadd.f32 0.0, %v483
    %485 = vmatmul.bf16.gmra.mxu0 %v317
    %v486 = vpop.f32.mrf.mxu0
    %v487 = vadd.f32 0.0, %v486
    %v488 = vpop.f32.mrf.mxu0
    %v489 = vadd.f32 0.0, %v488
    %490 = vmatmul.bf16.gmra.mxu0 %v318
    %v491 = vpop.f32.mrf.mxu0
    %v492 = vadd.f32 0.0, %v491
    %v493 = vpop.f32.mrf.mxu0
    %v494 = vadd.f32 0.0, %v493
    %495 = vmatmul.bf16.gmra.mxu0 %v319
    %v496 = vpop.f32.mrf.mxu0
    %v497 = vadd.f32 0.0, %v496
    %v498 = vpop.f32.mrf.mxu0
    %v499 = vadd.f32 0.0, %v498
    %500 = vmatmul.bf16.gmra.mxu0 %v320
    %v501 = vpop.f32.mrf.mxu0
    %v502 = vadd.f32 0.0, %v501
    %v503 = vpop.f32.mrf.mxu0
    %v504 = vadd.f32 0.0, %v503
    %505 = vdwg.mxu0
    %506 = vmatpush.bf16.msra.mxu0 %v431
    %507 = vmatpush.bf16.msra.mxu0 %v428
    %508 = vmatpush.bf16.msra.mxu0 %v425
    %509 = vmatpush.bf16.msra.mxu0 %v422
    %510 = vmatpush.bf16.msra.mxu0 %v419
    %511 = vmatpush.bf16.msra.mxu0 %v416
    %512 = vmatpush.bf16.msra.mxu0 %v413
    %513 = vmatpush.bf16.msra.mxu0 %v410
    %514 = vmatmul.bf16.gmra.mxu0 %v313
    %v515 = vpop.f32.mrf.mxu0
    %v516 = vadd.f32 0.0, %v515
    %v517 = vpop.f32.mrf.mxu0
    %v518 = vadd.f32 0.0, %v517
    %519 = vmatmul.bf16.gmra.mxu0 %v314
    %v520 = vpop.f32.mrf.mxu0
    %v521 = vadd.f32 0.0, %v520
    %v522 = vpop.f32.mrf.mxu0
    %v523 = vadd.f32 0.0, %v522
    %524 = vmatmul.bf16.gmra.mxu0 %v315
    %v525 = vpop.f32.mrf.mxu0
    %v526 = vadd.f32 0.0, %v525
    %v527 = vpop.f32.mrf.mxu0
    %v528 = vadd.f32 0.0, %v527
    %529 = vmatmul.bf16.gmra.mxu0 %v316
    %v530 = vpop.f32.mrf.mxu0
    %v531 = vadd.f32 0.0, %v530
    %v532 = vpop.f32.mrf.mxu0
    %v533 = vadd.f32 0.0, %v532
    %534 = vmatmul.bf16.gmra.mxu0 %v317
    %v535 = vpop.f32.mrf.mxu0
    %v536 = vadd.f32 0.0, %v535
    %v537 = vpop.f32.mrf.mxu0
    %v538 = vadd.f32 0.0, %v537
    %539 = vmatmul.bf16.gmra.mxu0 %v318
    %v540 = vpop.f32.mrf.mxu0
    %v541 = vadd.f32 0.0, %v540
    %v542 = vpop.f32.mrf.mxu0
    %v543 = vadd.f32 0.0, %v542
    %544 = vmatmul.bf16.gmra.mxu0 %v319
    %v545 = vpop.f32.mrf.mxu0
    %v546 = vadd.f32 0.0, %v545
    %v547 = vpop.f32.mrf.mxu0
    %v548 = vadd.f32 0.0, %v547
    %549 = vmatmul.bf16.gmra.mxu0 %v320
    %v550 = vpop.f32.mrf.mxu0
    %v551 = vadd.f32 0.0, %v550
    %v552 = vpop.f32.mrf.mxu0
    %v553 = vadd.f32 0.0, %v552
    %554 = vdwg.mxu0
    %555 = vmatpush.bf16.msra.mxu0 %v432
    %556 = vmatpush.bf16.msra.mxu0 %v429
    %557 = vmatpush.bf16.msra.mxu0 %v426
    %558 = vmatpush.bf16.msra.mxu0 %v423
    %559 = vmatpush.bf16.msra.mxu0 %v420
    %560 = vmatpush.bf16.msra.mxu0 %v417
    %561 = vmatpush.bf16.msra.mxu0 %v414
    %562 = vmatpush.bf16.msra.mxu0 %v411
    %563 = vmatmul.bf16.gmra.mxu0 %v313
    %v564 = vpop.f32.mrf.mxu0
    %v565 = vadd.f32 0.0, %v564
    %v566 = vpop.f32.mrf.mxu0
    %v567 = vadd.f32 0.0, %v566
    %568 = vmatmul.bf16.gmra.mxu0 %v314
    %v569 = vpop.f32.mrf.mxu0
    %v570 = vadd.f32 0.0, %v569
    %v571 = vpop.f32.mrf.mxu0
    %v572 = vadd.f32 0.0, %v571
    %573 = vmatmul.bf16.gmra.mxu0 %v315
    %v574 = vpop.f32.mrf.mxu0
    %v575 = vadd.f32 0.0, %v574
    %v576 = vpop.f32.mrf.mxu0
    %v577 = vadd.f32 0.0, %v576
    %578 = vmatmul.bf16.gmra.mxu0 %v316
    %v579 = vpop.f32.mrf.mxu0
    %v580 = vadd.f32 0.0, %v579
    %v581 = vpop.f32.mrf.mxu0
    %v582 = vadd.f32 0.0, %v581
    %583 = vmatmul.bf16.gmra.mxu0 %v317
    %v584 = vpop.f32.mrf.mxu0
    %v585 = vadd.f32 0.0, %v584
    %v586 = vpop.f32.mrf.mxu0
    %v587 = vadd.f32 0.0, %v586
    %588 = vmatmul.bf16.gmra.mxu0 %v318
    %v589 = vpop.f32.mrf.mxu0
    %v590 = vadd.f32 0.0, %v589
    %v591 = vpop.f32.mrf.mxu0
    %v592 = vadd.f32 0.0, %v591
    %593 = vmatmul.bf16.gmra.mxu0 %v319
    %v594 = vpop.f32.mrf.mxu0
    %v595 = vadd.f32 0.0, %v594
    %v596 = vpop.f32.mrf.mxu0
    %v597 = vadd.f32 0.0, %v596
    %598 = vmatmul.bf16.gmra.mxu0 %v320
    %v599 = vpop.f32.mrf.mxu0
    %v600 = vadd.f32 0.0, %v599
    %v601 = vpop.f32.mrf.mxu0
    %v602 = vadd.f32 0.0, %v601
    %603 = vdwg.mxu0
    %v604 = vpack.c.bf16 %v516, %v467
    %v605 = vpack.c.bf16 %v565, %v565
    %v606 = vpack.c.bf16 %v518, %v469
    %v607 = vpack.c.bf16 %v567, %v567
    %v608 = vpack.c.bf16 %v521, %v472
    %v609 = vpack.c.bf16 %v570, %v570
    %v610 = vpack.c.bf16 %v523, %v474
    %v611 = vpack.c.bf16 %v572, %v572
    %v612 = vpack.c.bf16 %v526, %v477
    %v613 = vpack.c.bf16 %v575, %v575
    %v614 = vpack.c.bf16 %v528, %v479
    %v615 = vpack.c.bf16 %v577, %v577
    %v616 = vpack.c.bf16 %v531, %v482
    %v617 = vpack.c.bf16 %v580, %v580
    %v618 = vpack.c.bf16 %v533, %v484
    %v619 = vpack.c.bf16 %v582, %v582
    %v620 = vpack.c.bf16 %v536, %v487
    %v621 = vpack.c.bf16 %v585, %v585
    %v622 = vpack.c.bf16 %v538, %v489
    %v623 = vpack.c.bf16 %v587, %v587
    %v624 = vpack.c.bf16 %v541, %v492
    %v625 = vpack.c.bf16 %v590, %v590
    %v626 = vpack.c.bf16 %v543, %v494
    %v627 = vpack.c.bf16 %v592, %v592
    %v628 = vpack.c.bf16 %v546, %v497
    %v629 = vpack.c.bf16 %v595, %v595
    %v630 = vpack.c.bf16 %v548, %v499
    %v631 = vpack.c.bf16 %v597, %v597
    %v632 = vpack.c.bf16 %v551, %v502
    %v633 = vpack.c.bf16 %v600, %v600
    %v634 = vpack.c.bf16 %v553, %v504
    %v635 = vpack.c.bf16 %v602, %v602
    %v636 = vld [vmem:[#allocation11] sm:$0xff]
    %v637 = vld [vmem:[#allocation11 + $0x8] sm:$0xff]
    %v638 = vld [vmem:[#allocation11 + $0x10] sm:$0xff]
    %v639 = vld [vmem:[#allocation11 + $0x18] sm:$0xff]
    %v640 = vld [vmem:[#allocation11 + $0x20] sm:$0xff]
    %v641 = vld [vmem:[#allocation11 + $0x28] sm:$0xff]
    %v642 = vld [vmem:[#allocation11 + $0x30] sm:$0xff]
    %v643 = vld [vmem:[#allocation11 + $0x38] sm:$0xff]
    %v644 = vld [vmem:[#allocation11 + $0x40] sm:$0xff]
    %v645 = vld [vmem:[#allocation11 + $0x48] sm:$0xff]
    %v646 = vld [vmem:[#allocation11 + $0x50] sm:$0xff]
    %v647 = vld [vmem:[#allocation11 + $0x58] sm:$0xff]
    %v648 = vld [vmem:[#allocation11 + $0x60] sm:$0xff]
    %v649 = vld [vmem:[#allocation11 + $0x68] sm:$0xff]
    %v650 = vld [vmem:[#allocation11 + $0x70] sm:$0xff]
    %v651 = vld [vmem:[#allocation11 + $0x78] sm:$0xff]
    %v652 = vld [vmem:[#allocation11 + $0x80] sm:$0xff]
    %v653 = vld [vmem:[#allocation11 + $0x88] sm:$0xff]
    %v654 = vld [vmem:[#allocation11 + $0x90] sm:$0xff]
    %v655 = vld [vmem:[#allocation11 + $0x98] sm:$0xff]
    %v656 = vld [vmem:[#allocation11 + $0xa0] sm:$0xff]
    %v657 = vld [vmem:[#allocation11 + $0xa8] sm:$0xff]
    %v658 = vld [vmem:[#allocation11 + $0xb0] sm:$0xff]
    %v659 = vld [vmem:[#allocation11 + $0xb8] sm:$0xff]
    %v660 = vld [vmem:[#allocation11 + $0xc0] sm:$0xff]
    %v661 = vld [vmem:[#allocation11 + $0xc8] sm:$0xff]
    %v662 = vld [vmem:[#allocation11 + $0xd0] sm:$0xff]
    %v663 = vld [vmem:[#allocation11 + $0xd8] sm:$0xff]
    %v664 = vld [vmem:[#allocation11 + $0xe0] sm:$0xff]
    %v665 = vld [vmem:[#allocation11 + $0xe8] sm:$0xff]
    %v666 = vld [vmem:[#allocation11 + $0xf0] sm:$0xff]
    %v667 = vld [vmem:[#allocation11 + $0xf8] sm:$0xff]
    %v684 = vunpack.c.l.b16 %v216
    %v685 = vunpack.c.l.b16 %v217
    %v686 = vunpack.c.l.b16 %v218
    %v687 = vunpack.c.l.b16 %v219
    %v688 = vunpack.c.l.b16 %v220
    %v689 = vunpack.c.l.b16 %v221
    %v690 = vunpack.c.l.b16 %v222
    %v691 = vunpack.c.l.b16 %v223
    %v692 = vunpack.c.l.b16 %v224
    %v693 = vunpack.c.l.b16 %v225
    %v694 = vunpack.c.l.b16 %v226
    %v695 = vunpack.c.l.b16 %v227
    %v696 = vunpack.c.l.b16 %v228
    %v697 = vunpack.c.l.b16 %v229
    %v698 = vunpack.c.l.b16 %v230
    %v699 = vunpack.c.l.b16 %v231
    %v700 = vpack.c.b16 %v685, %v684
    %v701 = vpack.c.b16 %v687, %v686
    %v702 = vpack.c.b16 %v689, %v688
    %v703 = vpack.c.b16 %v691, %v690
    %v704 = vpack.c.b16 %v693, %v692
    %v705 = vpack.c.b16 %v695, %v694
    %v706 = vpack.c.b16 %v697, %v696
    %v707 = vpack.c.b16 %v699, %v698
    %v748 = vunpack.c.l.b16 %v636
    %v749 = vunpack.c.h.b16 %v636
    %v750 = vunpack.c.l.b16 %v637
    %v751 = vunpack.c.h.b16 %v637
    %v752 = vunpack.c.l.b16 %v638
    %v753 = vunpack.c.h.b16 %v638
    %v754 = vunpack.c.l.b16 %v639
    %v755 = vunpack.c.h.b16 %v639
    %v756 = vunpack.c.l.b16 %v640
    %v757 = vunpack.c.h.b16 %v640
    %v758 = vunpack.c.l.b16 %v641
    %v759 = vunpack.c.h.b16 %v641
    %v760 = vunpack.c.l.b16 %v642
    %v761 = vunpack.c.h.b16 %v642
    %v762 = vunpack.c.l.b16 %v643
    %v763 = vunpack.c.h.b16 %v643
    %v764 = vunpack.c.l.b16 %v644
    %v765 = vunpack.c.h.b16 %v644
    %v766 = vunpack.c.l.b16 %v645
    %v767 = vunpack.c.h.b16 %v645
    %v768 = vunpack.c.l.b16 %v646
    %v769 = vunpack.c.h.b16 %v646
    %v770 = vunpack.c.l.b16 %v647
    %v771 = vunpack.c.h.b16 %v647
    %v772 = vunpack.c.l.b16 %v648
    %v773 = vunpack.c.h.b16 %v648
    %v774 = vunpack.c.l.b16 %v649
    %v775 = vunpack.c.h.b16 %v649
    %v776 = vunpack.c.l.b16 %v650
    %v777 = vunpack.c.h.b16 %v650
    %v778 = vunpack.c.l.b16 %v651
    %v779 = vunpack.c.h.b16 %v651
    %v780 = vunpack.c.l.b16 %v652
    %v781 = vunpack.c.h.b16 %v652
    %v782 = vunpack.c.l.b16 %v653
    %v783 = vunpack.c.h.b16 %v653
    %v784 = vunpack.c.l.b16 %v654
    %v785 = vunpack.c.h.b16 %v654
    %v786 = vunpack.c.l.b16 %v655
    %v787 = vunpack.c.h.b16 %v655
    %v788 = vunpack.c.l.b16 %v656
    %v789 = vunpack.c.h.b16 %v656
    %v790 = vunpack.c.l.b16 %v657
    %v791 = vunpack.c.h.b16 %v657
    %v792 = vunpack.c.l.b16 %v658
    %v793 = vunpack.c.h.b16 %v658
    %v794 = vunpack.c.l.b16 %v659
    %v795 = vunpack.c.h.b16 %v659
    %v796 = vunpack.c.l.b16 %v660
    %v797 = vunpack.c.h.b16 %v660
    %v798 = vunpack.c.l.b16 %v661
    %v799 = vunpack.c.h.b16 %v661
    %v800 = vunpack.c.l.b16 %v662
    %v801 = vunpack.c.h.b16 %v662
    %v802 = vunpack.c.l.b16 %v663
    %v803 = vunpack.c.h.b16 %v663
    %v804 = vunpack.c.l.b16 %v664
    %v805 = vunpack.c.h.b16 %v664
    %v806 = vunpack.c.l.b16 %v665
    %v807 = vunpack.c.h.b16 %v665
    %v808 = vunpack.c.l.b16 %v666
    %v809 = vunpack.c.h.b16 %v666
    %v810 = vunpack.c.l.b16 %v667
    %v811 = vunpack.c.h.b16 %v667
    %v812 = vpack.c.b16 %v752, %v748
    %v813 = vpack.c.b16 %v753, %v749
    %v814 = vpack.c.b16 %v754, %v750
    %v815 = vpack.c.b16 %v755, %v751
    %v816 = vpack.c.b16 %v760, %v756
    %v817 = vpack.c.b16 %v761, %v757
    %v818 = vpack.c.b16 %v762, %v758
    %v819 = vpack.c.b16 %v763, %v759
    %v820 = vpack.c.b16 %v768, %v764
    %v821 = vpack.c.b16 %v769, %v765
    %v822 = vpack.c.b16 %v770, %v766
    %v823 = vpack.c.b16 %v771, %v767
    %v824 = vpack.c.b16 %v776, %v772
    %v825 = vpack.c.b16 %v777, %v773
    %v826 = vpack.c.b16 %v778, %v774
    %v827 = vpack.c.b16 %v779, %v775
    %v828 = vpack.c.b16 %v784, %v780
    %v829 = vpack.c.b16 %v785, %v781
    %v830 = vpack.c.b16 %v786, %v782
    %v831 = vpack.c.b16 %v787, %v783
    %v832 = vpack.c.b16 %v792, %v788
    %v833 = vpack.c.b16 %v793, %v789
    %v834 = vpack.c.b16 %v794, %v790
    %v835 = vpack.c.b16 %v795, %v791
    %v836 = vpack.c.b16 %v800, %v796
    %v837 = vpack.c.b16 %v801, %v797
    %v838 = vpack.c.b16 %v802, %v798
    %v839 = vpack.c.b16 %v803, %v799
    %v840 = vpack.c.b16 %v808, %v804
    %v841 = vpack.c.b16 %v809, %v805
    %v842 = vpack.c.b16 %v810, %v806
    %v843 = vpack.c.b16 %v811, %v807
    %876 = vmatpush.bf16.msra.mxu0 %v840
    %877 = vmatpush.bf16.msra.mxu0 %v836
    %878 = vmatpush.bf16.msra.mxu0 %v832
    %879 = vmatpush.bf16.msra.mxu0 %v828
    %880 = vmatpush.bf16.msra.mxu0 %v824
    %881 = vmatpush.bf16.msra.mxu0 %v820
    %882 = vmatpush.bf16.msra.mxu0 %v816
    %883 = vmatpush.bf16.msra.mxu0 %v812
    %884 = vmatmul.bf16.gmra.mxu0 %v700
    %v885 = vpop.f32.mrf.mxu0
    %v886 = vadd.f32 0.0, %v885
    %v887 = vpop.f32.mrf.mxu0
    %v888 = vadd.f32 0.0, %v887
    %889 = vmatmul.bf16.gmra.mxu0 %v701
    %v890 = vpop.f32.mrf.mxu0
    %v891 = vadd.f32 0.0, %v890
    %v892 = vpop.f32.mrf.mxu0
    %v893 = vadd.f32 0.0, %v892
    %894 = vmatmul.bf16.gmra.mxu0 %v702
    %v895 = vpop.f32.mrf.mxu0
    %v896 = vadd.f32 0.0, %v895
    %v897 = vpop.f32.mrf.mxu0
    %v898 = vadd.f32 0.0, %v897
    %899 = vmatmul.bf16.gmra.mxu0 %v703
    %v900 = vpop.f32.mrf.mxu0
    %v901 = vadd.f32 0.0, %v900
    %v902 = vpop.f32.mrf.mxu0
    %v903 = vadd.f32 0.0, %v902
    %904 = vmatmul.bf16.gmra.mxu0 %v704
    %v905 = vpop.f32.mrf.mxu0
    %v906 = vadd.f32 0.0, %v905
    %v907 = vpop.f32.mrf.mxu0
    %v908 = vadd.f32 0.0, %v907
    %909 = vmatmul.bf16.gmra.mxu0 %v705
    %v910 = vpop.f32.mrf.mxu0
    %v911 = vadd.f32 0.0, %v910
    %v912 = vpop.f32.mrf.mxu0
    %v913 = vadd.f32 0.0, %v912
    %914 = vmatmul.bf16.gmra.mxu0 %v706
    %v915 = vpop.f32.mrf.mxu0
    %v916 = vadd.f32 0.0, %v915
    %v917 = vpop.f32.mrf.mxu0
    %v918 = vadd.f32 0.0, %v917
    %919 = vmatmul.bf16.gmra.mxu0 %v707
    %v920 = vpop.f32.mrf.mxu0
    %v921 = vadd.f32 0.0, %v920
    %v922 = vpop.f32.mrf.mxu0
    %v923 = vadd.f32 0.0, %v922
    %924 = vdwg.mxu0
    %925 = vmatpush.bf16.msra.mxu0 %v841
    %926 = vmatpush.bf16.msra.mxu0 %v837
    %927 = vmatpush.bf16.msra.mxu0 %v833
    %928 = vmatpush.bf16.msra.mxu0 %v829
    %929 = vmatpush.bf16.msra.mxu0 %v825
    %930 = vmatpush.bf16.msra.mxu0 %v821
    %931 = vmatpush.bf16.msra.mxu0 %v817
    %932 = vmatpush.bf16.msra.mxu0 %v813
    %933 = vmatmul.bf16.gmra.mxu0 %v700
    %v934 = vpop.f32.mrf.mxu0
    %v935 = vadd.f32 0.0, %v934
    %v936 = vpop.f32.mrf.mxu0
    %v937 = vadd.f32 0.0, %v936
    %938 = vmatmul.bf16.gmra.mxu0 %v701
    %v939 = vpop.f32.mrf.mxu0
    %v940 = vadd.f32 0.0, %v939
    %v941 = vpop.f32.mrf.mxu0
    %v942 = vadd.f32 0.0, %v941
    %943 = vmatmul.bf16.gmra.mxu0 %v702
    %v944 = vpop.f32.mrf.mxu0
    %v945 = vadd.f32 0.0, %v944
    %v946 = vpop.f32.mrf.mxu0
    %v947 = vadd.f32 0.0, %v946
    %948 = vmatmul.bf16.gmra.mxu0 %v703
    %v949 = vpop.f32.mrf.mxu0
    %v950 = vadd.f32 0.0, %v949
    %v951 = vpop.f32.mrf.mxu0
    %v952 = vadd.f32 0.0, %v951
    %953 = vmatmul.bf16.gmra.mxu0 %v704
    %v954 = vpop.f32.mrf.mxu0
    %v955 = vadd.f32 0.0, %v954
    %v956 = vpop.f32.mrf.mxu0
    %v957 = vadd.f32 0.0, %v956
    %958 = vmatmul.bf16.gmra.mxu0 %v705
    %v959 = vpop.f32.mrf.mxu0
    %v960 = vadd.f32 0.0, %v959
    %v961 = vpop.f32.mrf.mxu0
    %v962 = vadd.f32 0.0, %v961
    %963 = vmatmul.bf16.gmra.mxu0 %v706
    %v964 = vpop.f32.mrf.mxu0
    %v965 = vadd.f32 0.0, %v964
    %v966 = vpop.f32.mrf.mxu0
    %v967 = vadd.f32 0.0, %v966
    %968 = vmatmul.bf16.gmra.mxu0 %v707
    %v969 = vpop.f32.mrf.mxu0
    %v970 = vadd.f32 0.0, %v969
    %v971 = vpop.f32.mrf.mxu0
    %v972 = vadd.f32 0.0, %v971
    %973 = vdwg.mxu0
    %974 = vmatpush.bf16.msra.mxu0 %v842
    %975 = vmatpush.bf16.msra.mxu0 %v838
    %976 = vmatpush.bf16.msra.mxu0 %v834
    %977 = vmatpush.bf16.msra.mxu0 %v830
    %978 = vmatpush.bf16.msra.mxu0 %v826
    %979 = vmatpush.bf16.msra.mxu0 %v822
    %980 = vmatpush.bf16.msra.mxu0 %v818
    %981 = vmatpush.bf16.msra.mxu0 %v814
    %982 = vmatmul.bf16.gmra.mxu0 %v700
    %v983 = vpop.f32.mrf.mxu0
    %v984 = vadd.f32 0.0, %v983
    %v985 = vpop.f32.mrf.mxu0
    %v986 = vadd.f32 0.0, %v985
    %987 = vmatmul.bf16.gmra.mxu0 %v701
    %v988 = vpop.f32.mrf.mxu0
    %v989 = vadd.f32 0.0, %v988
    %v990 = vpop.f32.mrf.mxu0
    %v991 = vadd.f32 0.0, %v990
    %992 = vmatmul.bf16.gmra.mxu0 %v702
    %v993 = vpop.f32.mrf.mxu0
    %v994 = vadd.f32 0.0, %v993
    %v995 = vpop.f32.mrf.mxu0
    %v996 = vadd.f32 0.0, %v995
    %997 = vmatmul.bf16.gmra.mxu0 %v703
    %v998 = vpop.f32.mrf.mxu0
    %v999 = vadd.f32 0.0, %v998
    %v1000 = vpop.f32.mrf.mxu0
    %v1001 = vadd.f32 0.0, %v1000
    %1002 = vmatmul.bf16.gmra.mxu0 %v704
    %v1003 = vpop.f32.mrf.mxu0
    %v1004 = vadd.f32 0.0, %v1003
    %v1005 = vpop.f32.mrf.mxu0
    %v1006 = vadd.f32 0.0, %v1005
    %1007 = vmatmul.bf16.gmra.mxu0 %v705
    %v1008 = vpop.f32.mrf.mxu0
    %v1009 = vadd.f32 0.0, %v1008
    %v1010 = vpop.f32.mrf.mxu0
    %v1011 = vadd.f32 0.0, %v1010
    %1012 = vmatmul.bf16.gmra.mxu0 %v706
    %v1013 = vpop.f32.mrf.mxu0
    %v1014 = vadd.f32 0.0, %v1013
    %v1015 = vpop.f32.mrf.mxu0
    %v1016 = vadd.f32 0.0, %v1015
    %1017 = vmatmul.bf16.gmra.mxu0 %v707
    %v1018 = vpop.f32.mrf.mxu0
    %v1019 = vadd.f32 0.0, %v1018
    %v1020 = vpop.f32.mrf.mxu0
    %v1021 = vadd.f32 0.0, %v1020
    %1022 = vdwg.mxu0
    %1023 = vmatpush.bf16.msra.mxu0 %v843
    %1024 = vmatpush.bf16.msra.mxu0 %v839
    %1025 = vmatpush.bf16.msra.mxu0 %v835
    %1026 = vmatpush.bf16.msra.mxu0 %v831
    %1027 = vmatpush.bf16.msra.mxu0 %v827
    %1028 = vmatpush.bf16.msra.mxu0 %v823
    %1029 = vmatpush.bf16.msra.mxu0 %v819
    %1030 = vmatpush.bf16.msra.mxu0 %v815
    %1031 = vmatmul.bf16.gmra.mxu0 %v700
    %v1032 = vpop.f32.mrf.mxu0
    %v1033 = vadd.f32 0.0, %v1032
    %v1034 = vpop.f32.mrf.mxu0
    %v1035 = vadd.f32 0.0, %v1034
    %1036 = vmatmul.bf16.gmra.mxu0 %v701
    %v1037 = vpop.f32.mrf.mxu0
    %v1038 = vadd.f32 0.0, %v1037
    %v1039 = vpop.f32.mrf.mxu0
    %v1040 = vadd.f32 0.0, %v1039
    %1041 = vmatmul.bf16.gmra.mxu0 %v702
    %v1042 = vpop.f32.mrf.mxu0
    %v1043 = vadd.f32 0.0, %v1042
    %v1044 = vpop.f32.mrf.mxu0
    %v1045 = vadd.f32 0.0, %v1044
    %1046 = vmatmul.bf16.gmra.mxu0 %v703
    %v1047 = vpop.f32.mrf.mxu0
    %v1048 = vadd.f32 0.0, %v1047
    %v1049 = vpop.f32.mrf.mxu0
    %v1050 = vadd.f32 0.0, %v1049
    %1051 = vmatmul.bf16.gmra.mxu0 %v704
    %v1052 = vpop.f32.mrf.mxu0
    %v1053 = vadd.f32 0.0, %v1052
    %v1054 = vpop.f32.mrf.mxu0
    %v1055 = vadd.f32 0.0, %v1054
    %1056 = vmatmul.bf16.gmra.mxu0 %v705
    %v1057 = vpop.f32.mrf.mxu0
    %v1058 = vadd.f32 0.0, %v1057
    %v1059 = vpop.f32.mrf.mxu0
    %v1060 = vadd.f32 0.0, %v1059
    %1061 = vmatmul.bf16.gmra.mxu0 %v706
    %v1062 = vpop.f32.mrf.mxu0
    %v1063 = vadd.f32 0.0, %v1062
    %v1064 = vpop.f32.mrf.mxu0
    %v1065 = vadd.f32 0.0, %v1064
    %1066 = vmatmul.bf16.gmra.mxu0 %v707
    %v1067 = vpop.f32.mrf.mxu0
    %v1068 = vadd.f32 0.0, %v1067
    %v1069 = vpop.f32.mrf.mxu0
    %v1070 = vadd.f32 0.0, %v1069
    %1071 = vdwg.mxu0
    %v1072 = vpack.c.bf16 %v935, %v886
    %v1073 = vpack.c.bf16 %v1033, %v984
    %v1074 = vpack.c.bf16 %v937, %v888
    %v1075 = vpack.c.bf16 %v1035, %v986
    %v1076 = vpack.c.bf16 %v940, %v891
    %v1077 = vpack.c.bf16 %v1038, %v989
    %v1078 = vpack.c.bf16 %v942, %v893
    %v1079 = vpack.c.bf16 %v1040, %v991
    %v1080 = vpack.c.bf16 %v945, %v896
    %v1081 = vpack.c.bf16 %v1043, %v994
    %v1082 = vpack.c.bf16 %v947, %v898
    %v1083 = vpack.c.bf16 %v1045, %v996
    %v1084 = vpack.c.bf16 %v950, %v901
    %v1085 = vpack.c.bf16 %v1048, %v999
    %v1086 = vpack.c.bf16 %v952, %v903
    %v1087 = vpack.c.bf16 %v1050, %v1001
    %v1088 = vpack.c.bf16 %v955, %v906
    %v1089 = vpack.c.bf16 %v1053, %v1004
    %v1090 = vpack.c.bf16 %v957, %v908
    %v1091 = vpack.c.bf16 %v1055, %v1006
    %v1092 = vpack.c.bf16 %v960, %v911
    %v1093 = vpack.c.bf16 %v1058, %v1009
    %v1094 = vpack.c.bf16 %v962, %v913
    %v1095 = vpack.c.bf16 %v1060, %v1011
    %v1096 = vpack.c.bf16 %v965, %v916
    %v1097 = vpack.c.bf16 %v1063, %v1014
    %v1098 = vpack.c.bf16 %v967, %v918
    %v1099 = vpack.c.bf16 %v1065, %v1016
    %v1100 = vpack.c.bf16 %v970, %v921
    %v1101 = vpack.c.bf16 %v1068, %v1019
    %v1102 = vpack.c.bf16 %v972, %v923
    %v1103 = vpack.c.bf16 %v1070, %v1021
    %v1104 = vld [vmem:[#allocation13] sm:$0xff]
    %v1105 = vld [vmem:[#allocation13 + $0x8] sm:$0xf]
    %v1106 = vld [vmem:[#allocation13 + $0xc] sm:$0xff]
    %v1107 = vld [vmem:[#allocation13 + $0x14] sm:$0xf]
    %v1108 = vld [vmem:[#allocation13 + $0x18] sm:$0xff]
    %v1109 = vld [vmem:[#allocation13 + $0x20] sm:$0xf]
    %v1110 = vld [vmem:[#allocation13 + $0x24] sm:$0xff]
    %v1111 = vld [vmem:[#allocation13 + $0x2c] sm:$0xf]
    %v1112 = vld [vmem:[#allocation13 + $0x30] sm:$0xff]
    %v1113 = vld [vmem:[#allocation13 + $0x38] sm:$0xf]
    %v1114 = vld [vmem:[#allocation13 + $0x3c] sm:$0xff]
    %v1115 = vld [vmem:[#allocation13 + $0x44] sm:$0xf]
    %v1116 = vld [vmem:[#allocation13 + $0x48] sm:$0xff]
    %v1117 = vld [vmem:[#allocation13 + $0x50] sm:$0xf]
    %v1118 = vld [vmem:[#allocation13 + $0x54] sm:$0xff]
    %v1119 = vld [vmem:[#allocation13 + $0x5c] sm:$0xf]
    %v1120 = vld [vmem:[#allocation13 + $0x60] sm:$0xff]
    %v1121 = vld [vmem:[#allocation13 + $0x68] sm:$0xf]
    %v1122 = vld [vmem:[#allocation13 + $0x6c] sm:$0xff]
    %v1123 = vld [vmem:[#allocation13 + $0x74] sm:$0xf]
    %v1124 = vld [vmem:[#allocation13 + $0x78] sm:$0xff]
    %v1125 = vld [vmem:[#allocation13 + $0x80] sm:$0xf]
    %v1126 = vld [vmem:[#allocation13 + $0x84] sm:$0xff]
    %v1127 = vld [vmem:[#allocation13 + $0x8c] sm:$0xf]
    %v1128 = vld [vmem:[#allocation13 + $0x90] sm:$0xff]
    %v1129 = vld [vmem:[#allocation13 + $0x98] sm:$0xf]
    %v1130 = vld [vmem:[#allocation13 + $0x9c] sm:$0xff]
    %v1131 = vld [vmem:[#allocation13 + $0xa4] sm:$0xf]
    %v1132 = vld [vmem:[#allocation13 + $0xa8] sm:$0xff]
    %v1133 = vld [vmem:[#allocation13 + $0xb0] sm:$0xf]
    %v1134 = vld [vmem:[#allocation13 + $0xb4] sm:$0xff]
    %v1135 = vld [vmem:[#allocation13 + $0xbc] sm:$0xf]
    %v1152 = vunpack.c.l.b16 %v233
    %v1153 = vunpack.c.l.b16 %v234
    %v1154 = vunpack.c.l.b16 %v235
    %v1155 = vunpack.c.l.b16 %v236
    %v1156 = vunpack.c.l.b16 %v237
    %v1157 = vunpack.c.l.b16 %v238
    %v1158 = vunpack.c.l.b16 %v239
    %v1159 = vunpack.c.l.b16 %v240
    %v1160 = vunpack.c.l.b16 %v241
    %v1161 = vunpack.c.l.b16 %v242
    %v1162 = vunpack.c.l.b16 %v243
    %v1163 = vunpack.c.l.b16 %v244
    %v1164 = vunpack.c.l.b16 %v245
    %v1165 = vunpack.c.l.b16 %v246
    %v1166 = vunpack.c.l.b16 %v247
    %v1167 = vunpack.c.l.b16 %v248
    %v1168 = vpack.c.b16 %v1153, %v1152
    %v1169 = vpack.c.b16 %v1155, %v1154
    %v1170 = vpack.c.b16 %v1157, %v1156
    %v1171 = vpack.c.b16 %v1159, %v1158
    %v1172 = vpack.c.b16 %v1161, %v1160
    %v1173 = vpack.c.b16 %v1163, %v1162
    %v1174 = vpack.c.b16 %v1165, %v1164
    %v1175 = vpack.c.b16 %v1167, %v1166
    %v1216 = vunpack.c.l.b16 %v1104
    %v1217 = vunpack.c.h.b16 %v1104
    %v1218 = vunpack.c.l.b16 %v1105
    %v1219 = vunpack.c.l.b16 %v1106
    %v1220 = vunpack.c.h.b16 %v1106
    %v1221 = vunpack.c.l.b16 %v1107
    %v1222 = vunpack.c.l.b16 %v1108
    %v1223 = vunpack.c.h.b16 %v1108
    %v1224 = vunpack.c.l.b16 %v1109
    %v1225 = vunpack.c.l.b16 %v1110
    %v1226 = vunpack.c.h.b16 %v1110
    %v1227 = vunpack.c.l.b16 %v1111
    %v1228 = vunpack.c.l.b16 %v1112
    %v1229 = vunpack.c.h.b16 %v1112
    %v1230 = vunpack.c.l.b16 %v1113
    %v1231 = vunpack.c.l.b16 %v1114
    %v1232 = vunpack.c.h.b16 %v1114
    %v1233 = vunpack.c.l.b16 %v1115
    %v1234 = vunpack.c.l.b16 %v1116
    %v1235 = vunpack.c.h.b16 %v1116
    %v1236 = vunpack.c.l.b16 %v1117
    %v1237 = vunpack.c.l.b16 %v1118
    %v1238 = vunpack.c.h.b16 %v1118
    %v1239 = vunpack.c.l.b16 %v1119
    %v1240 = vunpack.c.l.b16 %v1120
    %v1241 = vunpack.c.h.b16 %v1120
    %v1242 = vunpack.c.l.b16 %v1121
    %v1243 = vunpack.c.l.b16 %v1122
    %v1244 = vunpack.c.h.b16 %v1122
    %v1245 = vunpack.c.l.b16 %v1123
    %v1246 = vunpack.c.l.b16 %v1124
    %v1247 = vunpack.c.h.b16 %v1124
    %v1248 = vunpack.c.l.b16 %v1125
    %v1249 = vunpack.c.l.b16 %v1126
    %v1250 = vunpack.c.h.b16 %v1126
    %v1251 = vunpack.c.l.b16 %v1127
    %v1252 = vunpack.c.l.b16 %v1128
    %v1253 = vunpack.c.h.b16 %v1128
    %v1254 = vunpack.c.l.b16 %v1129
    %v1255 = vunpack.c.l.b16 %v1130
    %v1256 = vunpack.c.h.b16 %v1130
    %v1257 = vunpack.c.l.b16 %v1131
    %v1258 = vunpack.c.l.b16 %v1132
    %v1259 = vunpack.c.h.b16 %v1132
    %v1260 = vunpack.c.l.b16 %v1133
    %v1261 = vunpack.c.l.b16 %v1134
    %v1262 = vunpack.c.h.b16 %v1134
    %v1263 = vunpack.c.l.b16 %v1135
    %v1264 = vpack.c.b16 %v1219, %v1216
    %v1265 = vpack.c.b16 %v1220, %v1217
    %v1266 = vpack.c.b16 %v1221, %v1218
    %v1267 = vpack.c.b16 %v1225, %v1222
    %v1268 = vpack.c.b16 %v1226, %v1223
    %v1269 = vpack.c.b16 %v1227, %v1224
    %v1270 = vpack.c.b16 %v1231, %v1228
    %v1271 = vpack.c.b16 %v1232, %v1229
    %v1272 = vpack.c.b16 %v1233, %v1230
    %v1273 = vpack.c.b16 %v1237, %v1234
    %v1274 = vpack.c.b16 %v1238, %v1235
    %v1275 = vpack.c.b16 %v1239, %v1236
    %v1276 = vpack.c.b16 %v1243, %v1240
    %v1277 = vpack.c.b16 %v1244, %v1241
    %v1278 = vpack.c.b16 %v1245, %v1242
    %v1279 = vpack.c.b16 %v1249, %v1246
    %v1280 = vpack.c.b16 %v1250, %v1247
    %v1281 = vpack.c.b16 %v1251, %v1248
    %v1282 = vpack.c.b16 %v1255, %v1252
    %v1283 = vpack.c.b16 %v1256, %v1253
    %v1284 = vpack.c.b16 %v1257, %v1254
    %v1285 = vpack.c.b16 %v1261, %v1258
    %v1286 = vpack.c.b16 %v1262, %v1259
    %v1287 = vpack.c.b16 %v1263, %v1260
    %1312 = vmatpush.bf16.msra.mxu0 %v1285
    %1313 = vmatpush.bf16.msra.mxu0 %v1282
    %1314 = vmatpush.bf16.msra.mxu0 %v1279
    %1315 = vmatpush.bf16.msra.mxu0 %v1276
    %1316 = vmatpush.bf16.msra.mxu0 %v1273
    %1317 = vmatpush.bf16.msra.mxu0 %v1270
    %1318 = vmatpush.bf16.msra.mxu0 %v1267
    %1319 = vmatpush.bf16.msra.mxu0 %v1264
    %1320 = vmatmul.bf16.gmra.mxu0 %v1168
    %v1321 = vpop.f32.mrf.mxu0
    %v1322 = vadd.f32 0.0, %v1321
    %v1323 = vpop.f32.mrf.mxu0
    %v1324 = vadd.f32 0.0, %v1323
    %1325 = vmatmul.bf16.gmra.mxu0 %v1169
    %v1326 = vpop.f32.mrf.mxu0
    %v1327 = vadd.f32 0.0, %v1326
    %v1328 = vpop.f32.mrf.mxu0
    %v1329 = vadd.f32 0.0, %v1328
    %1330 = vmatmul.bf16.gmra.mxu0 %v1170
    %v1331 = vpop.f32.mrf.mxu0
    %v1332 = vadd.f32 0.0, %v1331
    %v1333 = vpop.f32.mrf.mxu0
    %v1334 = vadd.f32 0.0, %v1333
    %1335 = vmatmul.bf16.gmra.mxu0 %v1171
    %v1336 = vpop.f32.mrf.mxu0
    %v1337 = vadd.f32 0.0, %v1336
    %v1338 = vpop.f32.mrf.mxu0
    %v1339 = vadd.f32 0.0, %v1338
    %1340 = vmatmul.bf16.gmra.mxu0 %v1172
    %v1341 = vpop.f32.mrf.mxu0
    %v1342 = vadd.f32 0.0, %v1341
    %v1343 = vpop.f32.mrf.mxu0
    %v1344 = vadd.f32 0.0, %v1343
    %1345 = vmatmul.bf16.gmra.mxu0 %v1173
    %v1346 = vpop.f32.mrf.mxu0
    %v1347 = vadd.f32 0.0, %v1346
    %v1348 = vpop.f32.mrf.mxu0
    %v1349 = vadd.f32 0.0, %v1348
    %1350 = vmatmul.bf16.gmra.mxu0 %v1174
    %v1351 = vpop.f32.mrf.mxu0
    %v1352 = vadd.f32 0.0, %v1351
    %v1353 = vpop.f32.mrf.mxu0
    %v1354 = vadd.f32 0.0, %v1353
    %1355 = vmatmul.bf16.gmra.mxu0 %v1175
    %v1356 = vpop.f32.mrf.mxu0
    %v1357 = vadd.f32 0.0, %v1356
    %v1358 = vpop.f32.mrf.mxu0
    %v1359 = vadd.f32 0.0, %v1358
    %1360 = vdwg.mxu0
    %1361 = vmatpush.bf16.msra.mxu0 %v1286
    %1362 = vmatpush.bf16.msra.mxu0 %v1283
    %1363 = vmatpush.bf16.msra.mxu0 %v1280
    %1364 = vmatpush.bf16.msra.mxu0 %v1277
    %1365 = vmatpush.bf16.msra.mxu0 %v1274
    %1366 = vmatpush.bf16.msra.mxu0 %v1271
    %1367 = vmatpush.bf16.msra.mxu0 %v1268
    %1368 = vmatpush.bf16.msra.mxu0 %v1265
    %1369 = vmatmul.bf16.gmra.mxu0 %v1168
    %v1370 = vpop.f32.mrf.mxu0
    %v1371 = vadd.f32 0.0, %v1370
    %v1372 = vpop.f32.mrf.mxu0
    %v1373 = vadd.f32 0.0, %v1372
    %1374 = vmatmul.bf16.gmra.mxu0 %v1169
    %v1375 = vpop.f32.mrf.mxu0
    %v1376 = vadd.f32 0.0, %v1375
    %v1377 = vpop.f32.mrf.mxu0
    %v1378 = vadd.f32 0.0, %v1377
    %1379 = vmatmul.bf16.gmra.mxu0 %v1170
    %v1380 = vpop.f32.mrf.mxu0
    %v1381 = vadd.f32 0.0, %v1380
    %v1382 = vpop.f32.mrf.mxu0
    %v1383 = vadd.f32 0.0, %v1382
    %1384 = vmatmul.bf16.gmra.mxu0 %v1171
    %v1385 = vpop.f32.mrf.mxu0
    %v1386 = vadd.f32 0.0, %v1385
    %v1387 = vpop.f32.mrf.mxu0
    %v1388 = vadd.f32 0.0, %v1387
    %1389 = vmatmul.bf16.gmra.mxu0 %v1172
    %v1390 = vpop.f32.mrf.mxu0
    %v1391 = vadd.f32 0.0, %v1390
    %v1392 = vpop.f32.mrf.mxu0
    %v1393 = vadd.f32 0.0, %v1392
    %1394 = vmatmul.bf16.gmra.mxu0 %v1173
    %v1395 = vpop.f32.mrf.mxu0
    %v1396 = vadd.f32 0.0, %v1395
    %v1397 = vpop.f32.mrf.mxu0
    %v1398 = vadd.f32 0.0, %v1397
    %1399 = vmatmul.bf16.gmra.mxu0 %v1174
    %v1400 = vpop.f32.mrf.mxu0
    %v1401 = vadd.f32 0.0, %v1400
    %v1402 = vpop.f32.mrf.mxu0
    %v1403 = vadd.f32 0.0, %v1402
    %1404 = vmatmul.bf16.gmra.mxu0 %v1175
    %v1405 = vpop.f32.mrf.mxu0
    %v1406 = vadd.f32 0.0, %v1405
    %v1407 = vpop.f32.mrf.mxu0
    %v1408 = vadd.f32 0.0, %v1407
    %1409 = vdwg.mxu0
    %1410 = vmatpush.bf16.msra.mxu0 %v1287
    %1411 = vmatpush.bf16.msra.mxu0 %v1284
    %1412 = vmatpush.bf16.msra.mxu0 %v1281
    %1413 = vmatpush.bf16.msra.mxu0 %v1278
    %1414 = vmatpush.bf16.msra.mxu0 %v1275
    %1415 = vmatpush.bf16.msra.mxu0 %v1272
    %1416 = vmatpush.bf16.msra.mxu0 %v1269
    %1417 = vmatpush.bf16.msra.mxu0 %v1266
    %1418 = vmatmul.bf16.gmra.mxu0 %v1168
    %v1419 = vpop.f32.mrf.mxu0
    %v1420 = vadd.f32 0.0, %v1419
    %v1421 = vpop.f32.mrf.mxu0
    %v1422 = vadd.f32 0.0, %v1421
    %1423 = vmatmul.bf16.gmra.mxu0 %v1169
    %v1424 = vpop.f32.mrf.mxu0
    %v1425 = vadd.f32 0.0, %v1424
    %v1426 = vpop.f32.mrf.mxu0
    %v1427 = vadd.f32 0.0, %v1426
    %1428 = vmatmul.bf16.gmra.mxu0 %v1170
    %v1429 = vpop.f32.mrf.mxu0
    %v1430 = vadd.f32 0.0, %v1429
    %v1431 = vpop.f32.mrf.mxu0
    %v1432 = vadd.f32 0.0, %v1431
    %1433 = vmatmul.bf16.gmra.mxu0 %v1171
    %v1434 = vpop.f32.mrf.mxu0
    %v1435 = vadd.f32 0.0, %v1434
    %v1436 = vpop.f32.mrf.mxu0
    %v1437 = vadd.f32 0.0, %v1436
    %1438 = vmatmul.bf16.gmra.mxu0 %v1172
    %v1439 = vpop.f32.mrf.mxu0
    %v1440 = vadd.f32 0.0, %v1439
    %v1441 = vpop.f32.mrf.mxu0
    %v1442 = vadd.f32 0.0, %v1441
    %1443 = vmatmul.bf16.gmra.mxu0 %v1173
    %v1444 = vpop.f32.mrf.mxu0
    %v1445 = vadd.f32 0.0, %v1444
    %v1446 = vpop.f32.mrf.mxu0
    %v1447 = vadd.f32 0.0, %v1446
    %1448 = vmatmul.bf16.gmra.mxu0 %v1174
    %v1449 = vpop.f32.mrf.mxu0
    %v1450 = vadd.f32 0.0, %v1449
    %v1451 = vpop.f32.mrf.mxu0
    %v1452 = vadd.f32 0.0, %v1451
    %1453 = vmatmul.bf16.gmra.mxu0 %v1175
    %v1454 = vpop.f32.mrf.mxu0
    %v1455 = vadd.f32 0.0, %v1454
    %v1456 = vpop.f32.mrf.mxu0
    %v1457 = vadd.f32 0.0, %v1456
    %1458 = vdwg.mxu0
    %v1459 = vpack.c.bf16 %v1371, %v1322
    %v1460 = vpack.c.bf16 %v1420, %v1420
    %v1461 = vpack.c.bf16 %v1373, %v1324
    %v1462 = vpack.c.bf16 %v1422, %v1422
    %v1463 = vpack.c.bf16 %v1376, %v1327
    %v1464 = vpack.c.bf16 %v1425, %v1425
    %v1465 = vpack.c.bf16 %v1378, %v1329
    %v1466 = vpack.c.bf16 %v1427, %v1427
    %v1467 = vpack.c.bf16 %v1381, %v1332
    %v1468 = vpack.c.bf16 %v1430, %v1430
    %v1469 = vpack.c.bf16 %v1383, %v1334
    %v1470 = vpack.c.bf16 %v1432, %v1432
    %v1471 = vpack.c.bf16 %v1386, %v1337
    %v1472 = vpack.c.bf16 %v1435, %v1435
    %v1473 = vpack.c.bf16 %v1388, %v1339
    %v1474 = vpack.c.bf16 %v1437, %v1437
    %v1475 = vpack.c.bf16 %v1391, %v1342
    %v1476 = vpack.c.bf16 %v1440, %v1440
    %v1477 = vpack.c.bf16 %v1393, %v1344
    %v1478 = vpack.c.bf16 %v1442, %v1442
    %v1479 = vpack.c.bf16 %v1396, %v1347
    %v1480 = vpack.c.bf16 %v1445, %v1445
    %v1481 = vpack.c.bf16 %v1398, %v1349
    %v1482 = vpack.c.bf16 %v1447, %v1447
    %v1483 = vpack.c.bf16 %v1401, %v1352
    %v1484 = vpack.c.bf16 %v1450, %v1450
    %v1485 = vpack.c.bf16 %v1403, %v1354
    %v1486 = vpack.c.bf16 %v1452, %v1452
    %v1487 = vpack.c.bf16 %v1406, %v1357
    %v1488 = vpack.c.bf16 %v1455, %v1455
    %v1489 = vpack.c.bf16 %v1408, %v1359
    %v1490 = vpack.c.bf16 %v1457, %v1457
    %v1507 = vunpack.c.l.b16 %v1072
    %v1508 = vunpack.c.l.b16 %v1074
    %v1509 = vunpack.c.l.b16 %v1076
    %v1510 = vunpack.c.l.b16 %v1078
    %v1511 = vunpack.c.l.b16 %v1080
    %v1512 = vunpack.c.l.b16 %v1082
    %v1513 = vunpack.c.l.b16 %v1084
    %v1514 = vunpack.c.l.b16 %v1086
    %v1515 = vunpack.c.l.b16 %v1088
    %v1516 = vunpack.c.l.b16 %v1090
    %v1517 = vunpack.c.l.b16 %v1092
    %v1518 = vunpack.c.l.b16 %v1094
    %v1519 = vunpack.c.l.b16 %v1096
    %v1520 = vunpack.c.l.b16 %v1098
    %v1521 = vunpack.c.l.b16 %v1100
    %v1522 = vunpack.c.l.b16 %v1102
    %v1523 = vpack.c.b16 %v1508, %v1507
    %v1524 = vpack.c.b16 %v1510, %v1509
    %v1525 = vpack.c.b16 %v1512, %v1511
    %v1526 = vpack.c.b16 %v1514, %v1513
    %v1527 = vpack.c.b16 %v1516, %v1515
    %v1528 = vpack.c.b16 %v1518, %v1517
    %v1529 = vpack.c.b16 %v1520, %v1519
    %v1530 = vpack.c.b16 %v1522, %v1521
    %v1555 = vunpack.c.l.b16 %v1459
    %v1556 = vunpack.c.l.b16 %v1461
    %v1557 = vunpack.c.l.b16 %v1463
    %v1558 = vunpack.c.l.b16 %v1465
    %v1559 = vunpack.c.l.b16 %v1467
    %v1560 = vunpack.c.l.b16 %v1469
    %v1561 = vunpack.c.l.b16 %v1471
    %v1562 = vunpack.c.l.b16 %v1473
    %v1563 = vunpack.c.l.b16 %v1475
    %v1564 = vunpack.c.l.b16 %v1477
    %v1565 = vunpack.c.l.b16 %v1479
    %v1566 = vunpack.c.l.b16 %v1481
    %v1567 = vunpack.c.l.b16 %v1483
    %v1568 = vunpack.c.l.b16 %v1485
    %v1569 = vunpack.c.l.b16 %v1487
    %v1570 = vunpack.c.l.b16 %v1489
    %v1571 = vpack.c.b16 %v1556, %v1555
    %v1572 = vpack.c.b16 %v1558, %v1557
    %v1573 = vpack.c.b16 %v1560, %v1559
    %v1574 = vpack.c.b16 %v1562, %v1561
    %v1575 = vpack.c.b16 %v1564, %v1563
    %v1576 = vpack.c.b16 %v1566, %v1565
    %v1577 = vpack.c.b16 %v1568, %v1567
    %v1578 = vpack.c.b16 %v1570, %v1569
    %v1603 = vunpack.c.l.b16 %v605
    %v1604 = vunpack.c.l.b16 %v607
    %v1605 = vunpack.c.l.b16 %v609
    %v1606 = vunpack.c.l.b16 %v611
    %v1607 = vunpack.c.l.b16 %v613
    %v1608 = vunpack.c.l.b16 %v615
    %v1609 = vunpack.c.l.b16 %v617
    %v1610 = vunpack.c.l.b16 %v619
    %v1611 = vunpack.c.l.b16 %v621
    %v1612 = vunpack.c.l.b16 %v623
    %v1613 = vunpack.c.l.b16 %v625
    %v1614 = vunpack.c.l.b16 %v627
    %v1615 = vunpack.c.l.b16 %v629
    %v1616 = vunpack.c.l.b16 %v631
    %v1617 = vunpack.c.l.b16 %v633
    %v1618 = vunpack.c.l.b16 %v635
    %v1619 = vpack.c.b16 %v1604, %v1603
    %v1620 = vpack.c.b16 %v1606, %v1605
    %v1621 = vpack.c.b16 %v1608, %v1607
    %v1622 = vpack.c.b16 %v1610, %v1609
    %v1623 = vpack.c.b16 %v1612, %v1611
    %v1624 = vpack.c.b16 %v1614, %v1613
    %v1625 = vpack.c.b16 %v1616, %v1615
    %v1626 = vpack.c.b16 %v1618, %v1617
    %v1635 = vld [vmem:[#allocation5] sm:$0xff]
    %v1636 = vld [vmem:[#allocation5 + $0x8] sm:$0xf]
    %v1637 = vld [vmem:[#allocation5 + $0xc] sm:$0xff]
    %v1638 = vld [vmem:[#allocation5 + $0x14] sm:$0xf]
    %v1639 = vld [vmem:[#allocation5 + $0x18] sm:$0xff]
    %v1640 = vld [vmem:[#allocation5 + $0x20] sm:$0xf]
    %v1641 = vld [vmem:[#allocation5 + $0x24] sm:$0xff]
    %v1642 = vld [vmem:[#allocation5 + $0x2c] sm:$0xf]
    %v1643 = vld [vmem:[#allocation5 + $0x30] sm:$0xff]
    %v1644 = vld [vmem:[#allocation5 + $0x38] sm:$0xf]
    %v1645 = vld [vmem:[#allocation5 + $0x3c] sm:$0xff]
    %v1646 = vld [vmem:[#allocation5 + $0x44] sm:$0xf]
    %v1647 = vld [vmem:[#allocation5 + $0x48] sm:$0xff]
    %v1648 = vld [vmem:[#allocation5 + $0x50] sm:$0xf]
    %v1649 = vld [vmem:[#allocation5 + $0x54] sm:$0xff]
    %v1650 = vld [vmem:[#allocation5 + $0x5c] sm:$0xf]
    %v1651 = vld [vmem:[#allocation5 + $0x60] sm:$0xff]
    %v1652 = vld [vmem:[#allocation5 + $0x68] sm:$0xf]
    %v1653 = vld [vmem:[#allocation5 + $0x6c] sm:$0xff]
    %v1654 = vld [vmem:[#allocation5 + $0x74] sm:$0xf]
    %v1655 = vld [vmem:[#allocation5 + $0x78] sm:$0xff]
    %v1656 = vld [vmem:[#allocation5 + $0x80] sm:$0xf]
    %v1657 = vld [vmem:[#allocation5 + $0x84] sm:$0xff]
    %v1658 = vld [vmem:[#allocation5 + $0x8c] sm:$0xf]
    %v1659 = vld [vmem:[#allocation5 + $0x90] sm:$0xff]
    %v1660 = vld [vmem:[#allocation5 + $0x98] sm:$0xf]
    %v1661 = vld [vmem:[#allocation5 + $0x9c] sm:$0xff]
    %v1662 = vld [vmem:[#allocation5 + $0xa4] sm:$0xf]
    %v1663 = vld [vmem:[#allocation5 + $0xa8] sm:$0xff]
    %v1664 = vld [vmem:[#allocation5 + $0xb0] sm:$0xf]
    %v1665 = vld [vmem:[#allocation5 + $0xb4] sm:$0xff]
    %v1666 = vld [vmem:[#allocation5 + $0xbc] sm:$0xf]
    %v1667 = vld [vmem:[#allocation14] sm:$0xf]
    %v1668 = vld [vmem:[#allocation14 + $0x4] sm:$0xf]
    %v1669 = vld [vmem:[#allocation14 + $0x8] sm:$0xf]
    %v1670 = vld [vmem:[#allocation14 + $0xc] sm:$0xf]
    %v1671 = vld [vmem:[#allocation14 + $0x10] sm:$0xf]
    %v1672 = vld [vmem:[#allocation14 + $0x14] sm:$0xf]
    %v1673 = vld [vmem:[#allocation14 + $0x18] sm:$0xf]
    %v1674 = vld [vmem:[#allocation14 + $0x1c] sm:$0xf]
    %v1675 = vld [vmem:[#allocation14 + $0x20] sm:$0xf]
    %v1676 = vld [vmem:[#allocation14 + $0x24] sm:$0xf]
    %v1677 = vld [vmem:[#allocation14 + $0x28] sm:$0xf]
    %v1678 = vld [vmem:[#allocation14 + $0x2c] sm:$0xf]
    %v1679 = vld [vmem:[#allocation14 + $0x30] sm:$0xf]
    %v1680 = vld [vmem:[#allocation14 + $0x34] sm:$0xf]
    %v1681 = vld [vmem:[#allocation14 + $0x38] sm:$0xf]
    %v1682 = vld [vmem:[#allocation14 + $0x3c] sm:$0xf]
    %v1699 = vunpack.c.l.b16 %v1667
    %v1700 = vunpack.c.l.b16 %v1668
    %v1701 = vunpack.c.l.b16 %v1669
    %v1702 = vunpack.c.l.b16 %v1670
    %v1703 = vunpack.c.l.b16 %v1671
    %v1704 = vunpack.c.l.b16 %v1672
    %v1705 = vunpack.c.l.b16 %v1673
    %v1706 = vunpack.c.l.b16 %v1674
    %v1707 = vunpack.c.l.b16 %v1675
    %v1708 = vunpack.c.l.b16 %v1676
    %v1709 = vunpack.c.l.b16 %v1677
    %v1710 = vunpack.c.l.b16 %v1678
    %v1711 = vunpack.c.l.b16 %v1679
    %v1712 = vunpack.c.l.b16 %v1680
    %v1713 = vunpack.c.l.b16 %v1681
    %v1714 = vunpack.c.l.b16 %v1682
    %v1715 = vpack.c.b16 %v1700, %v1699
    %v1716 = vpack.c.b16 %v1702, %v1701
    %v1717 = vpack.c.b16 %v1704, %v1703
    %v1718 = vpack.c.b16 %v1706, %v1705
    %v1719 = vpack.c.b16 %v1708, %v1707
    %v1720 = vpack.c.b16 %v1710, %v1709
    %v1721 = vpack.c.b16 %v1712, %v1711
    %v1722 = vpack.c.b16 %v1714, %v1713
    %1731 = vmatpush.bf16.msra.mxu0 %v1722
    %1732 = vmatpush.bf16.msra.mxu0 %v1721
    %1733 = vmatpush.bf16.msra.mxu0 %v1720
    %1734 = vmatpush.bf16.msra.mxu0 %v1719
    %1735 = vmatpush.bf16.msra.mxu0 %v1718
    %1736 = vmatpush.bf16.msra.mxu0 %v1717
    %1737 = vmatpush.bf16.msra.mxu0 %v1716
    %1738 = vmatpush.bf16.msra.mxu0 %v1715
    %1739 = vmatmul.bf16.gmra.mxu0 %v313
    %v1740 = vpop.f32.mrf.mxu0
    %v1741 = vadd.f32 0.0, %v1740
    %v1742 = vpop.f32.mrf.mxu0
    %v1743 = vadd.f32 0.0, %v1742
    %1744 = vmatmul.bf16.gmra.mxu0 %v314
    %v1745 = vpop.f32.mrf.mxu0
    %v1746 = vadd.f32 0.0, %v1745
    %v1747 = vpop.f32.mrf.mxu0
    %v1748 = vadd.f32 0.0, %v1747
    %1749 = vmatmul.bf16.gmra.mxu0 %v315
    %v1750 = vpop.f32.mrf.mxu0
    %v1751 = vadd.f32 0.0, %v1750
    %v1752 = vpop.f32.mrf.mxu0
    %v1753 = vadd.f32 0.0, %v1752
    %1754 = vmatmul.bf16.gmra.mxu0 %v316
    %v1755 = vpop.f32.mrf.mxu0
    %v1756 = vadd.f32 0.0, %v1755
    %v1757 = vpop.f32.mrf.mxu0
    %v1758 = vadd.f32 0.0, %v1757
    %1759 = vmatmul.bf16.gmra.mxu0 %v317
    %v1760 = vpop.f32.mrf.mxu0
    %v1761 = vadd.f32 0.0, %v1760
    %v1762 = vpop.f32.mrf.mxu0
    %v1763 = vadd.f32 0.0, %v1762
    %1764 = vmatmul.bf16.gmra.mxu0 %v318
    %v1765 = vpop.f32.mrf.mxu0
    %v1766 = vadd.f32 0.0, %v1765
    %v1767 = vpop.f32.mrf.mxu0
    %v1768 = vadd.f32 0.0, %v1767
    %1769 = vmatmul.bf16.gmra.mxu0 %v319
    %v1770 = vpop.f32.mrf.mxu0
    %v1771 = vadd.f32 0.0, %v1770
    %v1772 = vpop.f32.mrf.mxu0
    %v1773 = vadd.f32 0.0, %v1772
    %1774 = vmatmul.bf16.gmra.mxu0 %v320
    %v1775 = vpop.f32.mrf.mxu0
    %v1776 = vadd.f32 0.0, %v1775
    %v1777 = vpop.f32.mrf.mxu0
    %v1778 = vadd.f32 0.0, %v1777
    %1779 = vdwg.mxu0
    %v1812 = vunpack.c.l.b16 %v1635
    %v1813 = vunpack.c.h.b16 %v1635
    %v1814 = vunpack.c.l.b16 %v1636
    %v1815 = vunpack.c.l.b16 %v1637
    %v1816 = vunpack.c.h.b16 %v1637
    %v1817 = vunpack.c.l.b16 %v1638
    %v1818 = vunpack.c.l.b16 %v1639
    %v1819 = vunpack.c.h.b16 %v1639
    %v1820 = vunpack.c.l.b16 %v1640
    %v1821 = vunpack.c.l.b16 %v1641
    %v1822 = vunpack.c.h.b16 %v1641
    %v1823 = vunpack.c.l.b16 %v1642
    %v1824 = vunpack.c.l.b16 %v1643
    %v1825 = vunpack.c.h.b16 %v1643
    %v1826 = vunpack.c.l.b16 %v1644
    %v1827 = vunpack.c.l.b16 %v1645
    %v1828 = vunpack.c.h.b16 %v1645
    %v1829 = vunpack.c.l.b16 %v1646
    %v1830 = vunpack.c.l.b16 %v1647
    %v1831 = vunpack.c.h.b16 %v1647
    %v1832 = vunpack.c.l.b16 %v1648
    %v1833 = vunpack.c.l.b16 %v1649
    %v1834 = vunpack.c.h.b16 %v1649
    %v1835 = vunpack.c.l.b16 %v1650
    %v1836 = vunpack.c.l.b16 %v1651
    %v1837 = vunpack.c.h.b16 %v1651
    %v1838 = vunpack.c.l.b16 %v1652
    %v1839 = vunpack.c.l.b16 %v1653
    %v1840 = vunpack.c.h.b16 %v1653
    %v1841 = vunpack.c.l.b16 %v1654
    %v1842 = vunpack.c.l.b16 %v1655
    %v1843 = vunpack.c.h.b16 %v1655
    %v1844 = vunpack.c.l.b16 %v1656
    %v1845 = vunpack.c.l.b16 %v1657
    %v1846 = vunpack.c.h.b16 %v1657
    %v1847 = vunpack.c.l.b16 %v1658
    %v1848 = vunpack.c.l.b16 %v1659
    %v1849 = vunpack.c.h.b16 %v1659
    %v1850 = vunpack.c.l.b16 %v1660
    %v1851 = vunpack.c.l.b16 %v1661
    %v1852 = vunpack.c.h.b16 %v1661
    %v1853 = vunpack.c.l.b16 %v1662
    %v1854 = vunpack.c.l.b16 %v1663
    %v1855 = vunpack.c.h.b16 %v1663
    %v1856 = vunpack.c.l.b16 %v1664
    %v1857 = vunpack.c.l.b16 %v1665
    %v1858 = vunpack.c.h.b16 %v1665
    %v1859 = vunpack.c.l.b16 %v1666
    %v1860 = vpack.c.b16 %v1815, %v1812
    %v1861 = vpack.c.b16 %v1816, %v1813
    %v1862 = vpack.c.b16 %v1817, %v1814
    %v1863 = vpack.c.b16 %v1821, %v1818
    %v1864 = vpack.c.b16 %v1822, %v1819
    %v1865 = vpack.c.b16 %v1823, %v1820
    %v1866 = vpack.c.b16 %v1827, %v1824
    %v1867 = vpack.c.b16 %v1828, %v1825
    %v1868 = vpack.c.b16 %v1829, %v1826
    %v1869 = vpack.c.b16 %v1833, %v1830
    %v1870 = vpack.c.b16 %v1834, %v1831
    %v1871 = vpack.c.b16 %v1835, %v1832
    %v1872 = vpack.c.b16 %v1839, %v1836
    %v1873 = vpack.c.b16 %v1840, %v1837
    %v1874 = vpack.c.b16 %v1841, %v1838
    %v1875 = vpack.c.b16 %v1845, %v1842
    %v1876 = vpack.c.b16 %v1846, %v1843
    %v1877 = vpack.c.b16 %v1847, %v1844
    %v1878 = vpack.c.b16 %v1851, %v1848
    %v1879 = vpack.c.b16 %v1852, %v1849
    %v1880 = vpack.c.b16 %v1853, %v1850
    %v1881 = vpack.c.b16 %v1857, %v1854
    %v1882 = vpack.c.b16 %v1858, %v1855
    %v1883 = vpack.c.b16 %v1859, %v1856
    %1908 = vmatpush.bf16.msra.mxu0 %v1530
    %1909 = vmatpush.bf16.msra.mxu0 %v1529
    %1910 = vmatpush.bf16.msra.mxu0 %v1528
    %1911 = vmatpush.bf16.msra.mxu0 %v1527
    %1912 = vmatpush.bf16.msra.mxu0 %v1526
    %1913 = vmatpush.bf16.msra.mxu0 %v1525
    %1914 = vmatpush.bf16.msra.mxu0 %v1524
    %1915 = vmatpush.bf16.msra.mxu0 %v1523
    %1916 = vmatmul.bf16.gmra.mxu0 %v1860
    %v1917 = vpop.f32.mrf.mxu0
    %v1918 = vadd.f32 %v1741, %v1917
    %v1919 = vpop.f32.mrf.mxu0
    %v1920 = vadd.f32 %v1743, %v1919
    %1921 = vmatmul.bf16.gmra.mxu0 %v1863
    %v1922 = vpop.f32.mrf.mxu0
    %v1923 = vadd.f32 %v1746, %v1922
    %v1924 = vpop.f32.mrf.mxu0
    %v1925 = vadd.f32 %v1748, %v1924
    %1926 = vmatmul.bf16.gmra.mxu0 %v1866
    %v1927 = vpop.f32.mrf.mxu0
    %v1928 = vadd.f32 %v1751, %v1927
    %v1929 = vpop.f32.mrf.mxu0
    %v1930 = vadd.f32 %v1753, %v1929
    %1931 = vmatmul.bf16.gmra.mxu0 %v1869
    %v1932 = vpop.f32.mrf.mxu0
    %v1933 = vadd.f32 %v1756, %v1932
    %v1934 = vpop.f32.mrf.mxu0
    %v1935 = vadd.f32 %v1758, %v1934
    %1936 = vmatmul.bf16.gmra.mxu0 %v1872
    %v1937 = vpop.f32.mrf.mxu0
    %v1938 = vadd.f32 %v1761, %v1937
    %v1939 = vpop.f32.mrf.mxu0
    %v1940 = vadd.f32 %v1763, %v1939
    %1941 = vmatmul.bf16.gmra.mxu0 %v1875
    %v1942 = vpop.f32.mrf.mxu0
    %v1943 = vadd.f32 %v1766, %v1942
    %v1944 = vpop.f32.mrf.mxu0
    %v1945 = vadd.f32 %v1768, %v1944
    %1946 = vmatmul.bf16.gmra.mxu0 %v1878
    %v1947 = vpop.f32.mrf.mxu0
    %v1948 = vadd.f32 %v1771, %v1947
    %v1949 = vpop.f32.mrf.mxu0
    %v1950 = vadd.f32 %v1773, %v1949
    %1951 = vmatmul.bf16.gmra.mxu0 %v1881
    %v1952 = vpop.f32.mrf.mxu0
    %v1953 = vadd.f32 %v1776, %v1952
    %v1954 = vpop.f32.mrf.mxu0
    %v1955 = vadd.f32 %v1778, %v1954
    %1956 = vdwg.mxu0
    %1957 = vmatpush.bf16.msra.mxu0 %v1578
    %1958 = vmatpush.bf16.msra.mxu0 %v1577
    %1959 = vmatpush.bf16.msra.mxu0 %v1576
    %1960 = vmatpush.bf16.msra.mxu0 %v1575
    %1961 = vmatpush.bf16.msra.mxu0 %v1574
    %1962 = vmatpush.bf16.msra.mxu0 %v1573
    %1963 = vmatpush.bf16.msra.mxu0 %v1572
    %1964 = vmatpush.bf16.msra.mxu0 %v1571
    %1965 = vmatmul.bf16.gmra.mxu0 %v1861
    %v1966 = vpop.f32.mrf.mxu0
    %v1967 = vadd.f32 %v1918, %v1966
    %v1968 = vpop.f32.mrf.mxu0
    %v1969 = vadd.f32 %v1920, %v1968
    %1970 = vmatmul.bf16.gmra.mxu0 %v1864
    %v1971 = vpop.f32.mrf.mxu0
    %v1972 = vadd.f32 %v1923, %v1971
    %v1973 = vpop.f32.mrf.mxu0
    %v1974 = vadd.f32 %v1925, %v1973
    %1975 = vmatmul.bf16.gmra.mxu0 %v1867
    %v1976 = vpop.f32.mrf.mxu0
    %v1977 = vadd.f32 %v1928, %v1976
    %v1978 = vpop.f32.mrf.mxu0
    %v1979 = vadd.f32 %v1930, %v1978
    %1980 = vmatmul.bf16.gmra.mxu0 %v1870
    %v1981 = vpop.f32.mrf.mxu0
    %v1982 = vadd.f32 %v1933, %v1981
    %v1983 = vpop.f32.mrf.mxu0
    %v1984 = vadd.f32 %v1935, %v1983
    %1985 = vmatmul.bf16.gmra.mxu0 %v1873
    %v1986 = vpop.f32.mrf.mxu0
    %v1987 = vadd.f32 %v1938, %v1986
    %v1988 = vpop.f32.mrf.mxu0
    %v1989 = vadd.f32 %v1940, %v1988
    %1990 = vmatmul.bf16.gmra.mxu0 %v1876
    %v1991 = vpop.f32.mrf.mxu0
    %v1992 = vadd.f32 %v1943, %v1991
    %v1993 = vpop.f32.mrf.mxu0
    %v1994 = vadd.f32 %v1945, %v1993
    %1995 = vmatmul.bf16.gmra.mxu0 %v1879
    %v1996 = vpop.f32.mrf.mxu0
    %v1997 = vadd.f32 %v1948, %v1996
    %v1998 = vpop.f32.mrf.mxu0
    %v1999 = vadd.f32 %v1950, %v1998
    %2000 = vmatmul.bf16.gmra.mxu0 %v1882
    %v2001 = vpop.f32.mrf.mxu0
    %v2002 = vadd.f32 %v1953, %v2001
    %v2003 = vpop.f32.mrf.mxu0
    %v2004 = vadd.f32 %v1955, %v2003
    %2005 = vdwg.mxu0
    %2006 = vmatpush.bf16.msra.mxu0 %v1626
    %2007 = vmatpush.bf16.msra.mxu0 %v1625
    %2008 = vmatpush.bf16.msra.mxu0 %v1624
    %2009 = vmatpush.bf16.msra.mxu0 %v1623
    %2010 = vmatpush.bf16.msra.mxu0 %v1622
    %2011 = vmatpush.bf16.msra.mxu0 %v1621
    %2012 = vmatpush.bf16.msra.mxu0 %v1620
    %2013 = vmatpush.bf16.msra.mxu0 %v1619
    %2014 = vmatmul.bf16.gmra.mxu0 %v1862
    %v2015 = vpop.f32.mrf.mxu0
    %v2016 = vadd.f32 %v1967, %v2015
    %v2017 = vpop.f32.mrf.mxu0
    %v2018 = vadd.f32 %v1969, %v2017
    %2019 = vmatmul.bf16.gmra.mxu0 %v1865
    %v2020 = vpop.f32.mrf.mxu0
    %v2021 = vadd.f32 %v1972, %v2020
    %v2022 = vpop.f32.mrf.mxu0
    %v2023 = vadd.f32 %v1974, %v2022
    %2024 = vmatmul.bf16.gmra.mxu0 %v1868
    %v2025 = vpop.f32.mrf.mxu0
    %v2026 = vadd.f32 %v1977, %v2025
    %v2027 = vpop.f32.mrf.mxu0
    %v2028 = vadd.f32 %v1979, %v2027
    %2029 = vmatmul.bf16.gmra.mxu0 %v1871
    %v2030 = vpop.f32.mrf.mxu0
    %v2031 = vadd.f32 %v1982, %v2030
    %v2032 = vpop.f32.mrf.mxu0
    %v2033 = vadd.f32 %v1984, %v2032
    %2034 = vmatmul.bf16.gmra.mxu0 %v1874
    %v2035 = vpop.f32.mrf.mxu0
    %v2036 = vadd.f32 %v1987, %v2035
    %v2037 = vpop.f32.mrf.mxu0
    %v2038 = vadd.f32 %v1989, %v2037
    %2039 = vmatmul.bf16.gmra.mxu0 %v1877
    %v2040 = vpop.f32.mrf.mxu0
    %v2041 = vadd.f32 %v1992, %v2040
    %v2042 = vpop.f32.mrf.mxu0
    %v2043 = vadd.f32 %v1994, %v2042
    %2044 = vmatmul.bf16.gmra.mxu0 %v1880
    %v2045 = vpop.f32.mrf.mxu0
    %v2046 = vadd.f32 %v1997, %v2045
    %v2047 = vpop.f32.mrf.mxu0
    %v2048 = vadd.f32 %v1999, %v2047
    %2049 = vmatmul.bf16.gmra.mxu0 %v1883
    %v2050 = vpop.f32.mrf.mxu0
    %v2051 = vadd.f32 %v2002, %v2050
    %v2052 = vpop.f32.mrf.mxu0
    %v2053 = vadd.f32 %v2004, %v2052
    %2054 = vdwg.mxu0
    %v2055 = vld [vmem:[#allocation16] sm:$0x1]
    %v2057 = vperm.slane %v2055, 0
    %v2059 = vadd.f32 %v2016, %v2057
    %v2060 = vadd.f32 %v2018, %v2057
    %v2061 = vadd.f32 %v2021, %v2057
    %v2062 = vadd.f32 %v2023, %v2057
    %v2063 = vadd.f32 %v2026, %v2057
    %v2064 = vadd.f32 %v2028, %v2057
    %v2065 = vadd.f32 %v2031, %v2057
    %v2066 = vadd.f32 %v2033, %v2057
    %v2067 = vadd.f32 %v2036, %v2057
    %v2068 = vadd.f32 %v2038, %v2057
    %v2069 = vadd.f32 %v2041, %v2057
    %v2070 = vadd.f32 %v2043, %v2057
    %v2071 = vadd.f32 %v2046, %v2057
    %v2072 = vadd.f32 %v2048, %v2057
    %v2073 = vadd.f32 %v2051, %v2057
    %v2074 = vadd.f32 %v2053, %v2057
    %v2075 = vmax.f32 %v2059, 0.0
    %v2076 = vmax.f32 %v2060, 0.0
    %v2077 = vmax.f32 %v2061, 0.0
    %v2078 = vmax.f32 %v2062, 0.0
    %v2079 = vmax.f32 %v2063, 0.0
    %v2080 = vmax.f32 %v2064, 0.0
    %v2081 = vmax.f32 %v2065, 0.0
    %v2082 = vmax.f32 %v2066, 0.0
    %v2083 = vmax.f32 %v2067, 0.0
    %v2084 = vmax.f32 %v2068, 0.0
    %v2085 = vmax.f32 %v2069, 0.0
    %v2086 = vmax.f32 %v2070, 0.0
    %v2087 = vmax.f32 %v2071, 0.0
    %v2088 = vmax.f32 %v2072, 0.0
    %v2089 = vmax.f32 %v2073, 0.0
    %v2090 = vmax.f32 %v2074, 0.0
    %v2091 = vpack.c.bf16 %v2076, %v2075
    %v2092 = vpack.c.bf16 %v2078, %v2077
    %v2093 = vpack.c.bf16 %v2080, %v2079
    %v2094 = vpack.c.bf16 %v2082, %v2081
    %v2095 = vpack.c.bf16 %v2084, %v2083
    %v2096 = vpack.c.bf16 %v2086, %v2085
    %v2097 = vpack.c.bf16 %v2088, %v2087
    %v2098 = vpack.c.bf16 %v2090, %v2089
    %v2115 = vunpack.c.l.b16 %v604
    %v2116 = vunpack.c.l.b16 %v606
    %v2117 = vunpack.c.l.b16 %v608
    %v2118 = vunpack.c.l.b16 %v610
    %v2119 = vunpack.c.l.b16 %v612
    %v2120 = vunpack.c.l.b16 %v614
    %v2121 = vunpack.c.l.b16 %v616
    %v2122 = vunpack.c.l.b16 %v618
    %v2123 = vunpack.c.l.b16 %v620
    %v2124 = vunpack.c.l.b16 %v622
    %v2125 = vunpack.c.l.b16 %v624
    %v2126 = vunpack.c.l.b16 %v626
    %v2127 = vunpack.c.l.b16 %v628
    %v2128 = vunpack.c.l.b16 %v630
    %v2129 = vunpack.c.l.b16 %v632
    %v2130 = vunpack.c.l.b16 %v634
    %v2131 = vpack.c.b16 %v2116, %v2115
    %v2132 = vpack.c.b16 %v2118, %v2117
    %v2133 = vpack.c.b16 %v2120, %v2119
    %v2134 = vpack.c.b16 %v2122, %v2121
    %v2135 = vpack.c.b16 %v2124, %v2123
    %v2136 = vpack.c.b16 %v2126, %v2125
    %v2137 = vpack.c.b16 %v2128, %v2127
    %v2138 = vpack.c.b16 %v2130, %v2129
    %v2147 = vunpack.c.h.b16 %v1459
    %v2148 = vunpack.c.h.b16 %v1461
    %v2149 = vunpack.c.h.b16 %v1463
    %v2150 = vunpack.c.h.b16 %v1465
    %v2151 = vunpack.c.h.b16 %v1467
    %v2152 = vunpack.c.h.b16 %v1469
    %v2153 = vunpack.c.h.b16 %v1471
    %v2154 = vunpack.c.h.b16 %v1473
    %v2155 = vunpack.c.h.b16 %v1475
    %v2156 = vunpack.c.h.b16 %v1477
    %v2157 = vunpack.c.h.b16 %v1479
    %v2158 = vunpack.c.h.b16 %v1481
    %v2159 = vunpack.c.h.b16 %v1483
    %v2160 = vunpack.c.h.b16 %v1485
    %v2161 = vunpack.c.h.b16 %v1487
    %v2162 = vunpack.c.h.b16 %v1489
    %v2163 = vpack.c.b16 %v2148, %v2147
    %v2164 = vpack.c.b16 %v2150, %v2149
    %v2165 = vpack.c.b16 %v2152, %v2151
    %v2166 = vpack.c.b16 %v2154, %v2153
    %v2167 = vpack.c.b16 %v2156, %v2155
    %v2168 = vpack.c.b16 %v2158, %v2157
    %v2169 = vpack.c.b16 %v2160, %v2159
    %v2170 = vpack.c.b16 %v2162, %v2161
    %v2195 = vunpack.c.l.b16 %v1073
    %v2196 = vunpack.c.l.b16 %v1075
    %v2197 = vunpack.c.l.b16 %v1077
    %v2198 = vunpack.c.l.b16 %v1079
    %v2199 = vunpack.c.l.b16 %v1081
    %v2200 = vunpack.c.l.b16 %v1083
    %v2201 = vunpack.c.l.b16 %v1085
    %v2202 = vunpack.c.l.b16 %v1087
    %v2203 = vunpack.c.l.b16 %v1089
    %v2204 = vunpack.c.l.b16 %v1091
    %v2205 = vunpack.c.l.b16 %v1093
    %v2206 = vunpack.c.l.b16 %v1095
    %v2207 = vunpack.c.l.b16 %v1097
    %v2208 = vunpack.c.l.b16 %v1099
    %v2209 = vunpack.c.l.b16 %v1101
    %v2210 = vunpack.c.l.b16 %v1103
    %v2211 = vpack.c.b16 %v2196, %v2195
    %v2212 = vpack.c.b16 %v2198, %v2197
    %v2213 = vpack.c.b16 %v2200, %v2199
    %v2214 = vpack.c.b16 %v2202, %v2201
    %v2215 = vpack.c.b16 %v2204, %v2203
    %v2216 = vpack.c.b16 %v2206, %v2205
    %v2217 = vpack.c.b16 %v2208, %v2207
    %v2218 = vpack.c.b16 %v2210, %v2209
    %v2227 = vunpack.c.h.b16 %v1073
    %v2228 = vunpack.c.h.b16 %v1075
    %v2229 = vunpack.c.h.b16 %v1077
    %v2230 = vunpack.c.h.b16 %v1079
    %v2231 = vunpack.c.h.b16 %v1081
    %v2232 = vunpack.c.h.b16 %v1083
    %v2233 = vunpack.c.h.b16 %v1085
    %v2234 = vunpack.c.h.b16 %v1087
    %v2235 = vunpack.c.h.b16 %v1089
    %v2236 = vunpack.c.h.b16 %v1091
    %v2237 = vunpack.c.h.b16 %v1093
    %v2238 = vunpack.c.h.b16 %v1095
    %v2239 = vunpack.c.h.b16 %v1097
    %v2240 = vunpack.c.h.b16 %v1099
    %v2241 = vunpack.c.h.b16 %v1101
    %v2242 = vunpack.c.h.b16 %v1103
    %v2243 = vpack.c.b16 %v2228, %v2227
    %v2244 = vpack.c.b16 %v2230, %v2229
    %v2245 = vpack.c.b16 %v2232, %v2231
    %v2246 = vpack.c.b16 %v2234, %v2233
    %v2247 = vpack.c.b16 %v2236, %v2235
    %v2248 = vpack.c.b16 %v2238, %v2237
    %v2249 = vpack.c.b16 %v2240, %v2239
    %v2250 = vpack.c.b16 %v2242, %v2241
    %v2259 = vld [vmem:[#allocation7] sm:$0xff]
    %v2260 = vld [vmem:[#allocation7 + $0x8] sm:$0xff]
    %v2261 = vld [vmem:[#allocation7 + $0x10] sm:$0xff]
    %v2262 = vld [vmem:[#allocation7 + $0x18] sm:$0xff]
    %v2263 = vld [vmem:[#allocation7 + $0x20] sm:$0xff]
    %v2264 = vld [vmem:[#allocation7 + $0x28] sm:$0xff]
    %v2265 = vld [vmem:[#allocation7 + $0x30] sm:$0xff]
    %v2266 = vld [vmem:[#allocation7 + $0x38] sm:$0xff]
    %v2267 = vld [vmem:[#allocation7 + $0x40] sm:$0xff]
    %v2268 = vld [vmem:[#allocation7 + $0x48] sm:$0xff]
    %v2269 = vld [vmem:[#allocation7 + $0x50] sm:$0xff]
    %v2270 = vld [vmem:[#allocation7 + $0x58] sm:$0xff]
    %v2271 = vld [vmem:[#allocation7 + $0x60] sm:$0xff]
    %v2272 = vld [vmem:[#allocation7 + $0x68] sm:$0xff]
    %v2273 = vld [vmem:[#allocation7 + $0x70] sm:$0xff]
    %v2274 = vld [vmem:[#allocation7 + $0x78] sm:$0xff]
    %v2275 = vld [vmem:[#allocation7 + $0x80] sm:$0xff]
    %v2276 = vld [vmem:[#allocation7 + $0x88] sm:$0xff]
    %v2277 = vld [vmem:[#allocation7 + $0x90] sm:$0xff]
    %v2278 = vld [vmem:[#allocation7 + $0x98] sm:$0xff]
    %v2279 = vld [vmem:[#allocation7 + $0xa0] sm:$0xff]
    %v2280 = vld [vmem:[#allocation7 + $0xa8] sm:$0xff]
    %v2281 = vld [vmem:[#allocation7 + $0xb0] sm:$0xff]
    %v2282 = vld [vmem:[#allocation7 + $0xb8] sm:$0xff]
    %v2283 = vld [vmem:[#allocation7 + $0xc0] sm:$0xff]
    %v2284 = vld [vmem:[#allocation7 + $0xc8] sm:$0xff]
    %v2285 = vld [vmem:[#allocation7 + $0xd0] sm:$0xff]
    %v2286 = vld [vmem:[#allocation7 + $0xd8] sm:$0xff]
    %v2287 = vld [vmem:[#allocation7 + $0xe0] sm:$0xff]
    %v2288 = vld [vmem:[#allocation7 + $0xe8] sm:$0xff]
    %v2289 = vld [vmem:[#allocation7 + $0xf0] sm:$0xff]
    %v2290 = vld [vmem:[#allocation7 + $0xf8] sm:$0xff]
    %s2291 = scalar_lea.vmem [#allocation14], 64
    %v2292 = vld [vmem:[%s2291] sm:$0xf]
    %v2293 = vld [vmem:[%s2291 + $0x4] sm:$0xf]
    %v2294 = vld [vmem:[%s2291 + $0x8] sm:$0xf]
    %v2295 = vld [vmem:[%s2291 + $0xc] sm:$0xf]
    %v2296 = vld [vmem:[%s2291 + $0x10] sm:$0xf]
    %v2297 = vld [vmem:[%s2291 + $0x14] sm:$0xf]
    %v2298 = vld [vmem:[%s2291 + $0x18] sm:$0xf]
    %v2299 = vld [vmem:[%s2291 + $0x1c] sm:$0xf]
    %v2300 = vld [vmem:[%s2291 + $0x20] sm:$0xf]
    %v2301 = vld [vmem:[%s2291 + $0x24] sm:$0xf]
    %v2302 = vld [vmem:[%s2291 + $0x28] sm:$0xf]
    %v2303 = vld [vmem:[%s2291 + $0x2c] sm:$0xf]
    %v2304 = vld [vmem:[%s2291 + $0x30] sm:$0xf]
    %v2305 = vld [vmem:[%s2291 + $0x34] sm:$0xf]
    %v2306 = vld [vmem:[%s2291 + $0x38] sm:$0xf]
    %v2307 = vld [vmem:[%s2291 + $0x3c] sm:$0xf]
    %v2324 = vunpack.c.l.b16 %v2292
    %v2325 = vunpack.c.l.b16 %v2293
    %v2326 = vunpack.c.l.b16 %v2294
    %v2327 = vunpack.c.l.b16 %v2295
    %v2328 = vunpack.c.l.b16 %v2296
    %v2329 = vunpack.c.l.b16 %v2297
    %v2330 = vunpack.c.l.b16 %v2298
    %v2331 = vunpack.c.l.b16 %v2299
    %v2332 = vunpack.c.l.b16 %v2300
    %v2333 = vunpack.c.l.b16 %v2301
    %v2334 = vunpack.c.l.b16 %v2302
    %v2335 = vunpack.c.l.b16 %v2303
    %v2336 = vunpack.c.l.b16 %v2304
    %v2337 = vunpack.c.l.b16 %v2305
    %v2338 = vunpack.c.l.b16 %v2306
    %v2339 = vunpack.c.l.b16 %v2307
    %v2340 = vpack.c.b16 %v2325, %v2324
    %v2341 = vpack.c.b16 %v2327, %v2326
    %v2342 = vpack.c.b16 %v2329, %v2328
    %v2343 = vpack.c.b16 %v2331, %v2330
    %v2344 = vpack.c.b16 %v2333, %v2332
    %v2345 = vpack.c.b16 %v2335, %v2334
    %v2346 = vpack.c.b16 %v2337, %v2336
    %v2347 = vpack.c.b16 %v2339, %v2338
    %2356 = vmatpush.bf16.msra.mxu0 %v2347
    %2357 = vmatpush.bf16.msra.mxu0 %v2346
    %2358 = vmatpush.bf16.msra.mxu0 %v2345
    %2359 = vmatpush.bf16.msra.mxu0 %v2344
    %2360 = vmatpush.bf16.msra.mxu0 %v2343
    %2361 = vmatpush.bf16.msra.mxu0 %v2342
    %2362 = vmatpush.bf16.msra.mxu0 %v2341
    %2363 = vmatpush.bf16.msra.mxu0 %v2340
    %2364 = vmatmul.bf16.gmra.mxu0 %v700
    %v2365 = vpop.f32.mrf.mxu0
    %v2366 = vadd.f32 0.0, %v2365
    %v2367 = vpop.f32.mrf.mxu0
    %v2368 = vadd.f32 0.0, %v2367
    %2369 = vmatmul.bf16.gmra.mxu0 %v701
    %v2370 = vpop.f32.mrf.mxu0
    %v2371 = vadd.f32 0.0, %v2370
    %v2372 = vpop.f32.mrf.mxu0
    %v2373 = vadd.f32 0.0, %v2372
    %2374 = vmatmul.bf16.gmra.mxu0 %v702
    %v2375 = vpop.f32.mrf.mxu0
    %v2376 = vadd.f32 0.0, %v2375
    %v2377 = vpop.f32.mrf.mxu0
    %v2378 = vadd.f32 0.0, %v2377
    %2379 = vmatmul.bf16.gmra.mxu0 %v703
    %v2380 = vpop.f32.mrf.mxu0
    %v2381 = vadd.f32 0.0, %v2380
    %v2382 = vpop.f32.mrf.mxu0
    %v2383 = vadd.f32 0.0, %v2382
    %2384 = vmatmul.bf16.gmra.mxu0 %v704
    %v2385 = vpop.f32.mrf.mxu0
    %v2386 = vadd.f32 0.0, %v2385
    %v2387 = vpop.f32.mrf.mxu0
    %v2388 = vadd.f32 0.0, %v2387
    %2389 = vmatmul.bf16.gmra.mxu0 %v705
    %v2390 = vpop.f32.mrf.mxu0
    %v2391 = vadd.f32 0.0, %v2390
    %v2392 = vpop.f32.mrf.mxu0
    %v2393 = vadd.f32 0.0, %v2392
    %2394 = vmatmul.bf16.gmra.mxu0 %v706
    %v2395 = vpop.f32.mrf.mxu0
    %v2396 = vadd.f32 0.0, %v2395
    %v2397 = vpop.f32.mrf.mxu0
    %v2398 = vadd.f32 0.0, %v2397
    %2399 = vmatmul.bf16.gmra.mxu0 %v707
    %v2400 = vpop.f32.mrf.mxu0
    %v2401 = vadd.f32 0.0, %v2400
    %v2402 = vpop.f32.mrf.mxu0
    %v2403 = vadd.f32 0.0, %v2402
    %2404 = vdwg.mxu0
    %v2437 = vunpack.c.l.b16 %v2259
    %v2438 = vunpack.c.h.b16 %v2259
    %v2439 = vunpack.c.l.b16 %v2260
    %v2440 = vunpack.c.h.b16 %v2260
    %v2441 = vunpack.c.l.b16 %v2261
    %v2442 = vunpack.c.h.b16 %v2261
    %v2443 = vunpack.c.l.b16 %v2262
    %v2444 = vunpack.c.h.b16 %v2262
    %v2445 = vunpack.c.l.b16 %v2263
    %v2446 = vunpack.c.h.b16 %v2263
    %v2447 = vunpack.c.l.b16 %v2264
    %v2448 = vunpack.c.h.b16 %v2264
    %v2449 = vunpack.c.l.b16 %v2265
    %v2450 = vunpack.c.h.b16 %v2265
    %v2451 = vunpack.c.l.b16 %v2266
    %v2452 = vunpack.c.h.b16 %v2266
    %v2453 = vunpack.c.l.b16 %v2267
    %v2454 = vunpack.c.h.b16 %v2267
    %v2455 = vunpack.c.l.b16 %v2268
    %v2456 = vunpack.c.h.b16 %v2268
    %v2457 = vunpack.c.l.b16 %v2269
    %v2458 = vunpack.c.h.b16 %v2269
    %v2459 = vunpack.c.l.b16 %v2270
    %v2460 = vunpack.c.h.b16 %v2270
    %v2461 = vunpack.c.l.b16 %v2271
    %v2462 = vunpack.c.h.b16 %v2271
    %v2463 = vunpack.c.l.b16 %v2272
    %v2464 = vunpack.c.h.b16 %v2272
    %v2465 = vunpack.c.l.b16 %v2273
    %v2466 = vunpack.c.h.b16 %v2273
    %v2467 = vunpack.c.l.b16 %v2274
    %v2468 = vunpack.c.h.b16 %v2274
    %v2469 = vunpack.c.l.b16 %v2275
    %v2470 = vunpack.c.h.b16 %v2275
    %v2471 = vunpack.c.l.b16 %v2276
    %v2472 = vunpack.c.h.b16 %v2276
    %v2473 = vunpack.c.l.b16 %v2277
    %v2474 = vunpack.c.h.b16 %v2277
    %v2475 = vunpack.c.l.b16 %v2278
    %v2476 = vunpack.c.h.b16 %v2278
    %v2477 = vunpack.c.l.b16 %v2279
    %v2478 = vunpack.c.h.b16 %v2279
    %v2479 = vunpack.c.l.b16 %v2280
    %v2480 = vunpack.c.h.b16 %v2280
    %v2481 = vunpack.c.l.b16 %v2281
    %v2482 = vunpack.c.h.b16 %v2281
    %v2483 = vunpack.c.l.b16 %v2282
    %v2484 = vunpack.c.h.b16 %v2282
    %v2485 = vunpack.c.l.b16 %v2283
    %v2486 = vunpack.c.h.b16 %v2283
    %v2487 = vunpack.c.l.b16 %v2284
    %v2488 = vunpack.c.h.b16 %v2284
    %v2489 = vunpack.c.l.b16 %v2285
    %v2490 = vunpack.c.h.b16 %v2285
    %v2491 = vunpack.c.l.b16 %v2286
    %v2492 = vunpack.c.h.b16 %v2286
    %v2493 = vunpack.c.l.b16 %v2287
    %v2494 = vunpack.c.h.b16 %v2287
    %v2495 = vunpack.c.l.b16 %v2288
    %v2496 = vunpack.c.h.b16 %v2288
    %v2497 = vunpack.c.l.b16 %v2289
    %v2498 = vunpack.c.h.b16 %v2289
    %v2499 = vunpack.c.l.b16 %v2290
    %v2500 = vunpack.c.h.b16 %v2290
    %v2501 = vpack.c.b16 %v2441, %v2437
    %v2502 = vpack.c.b16 %v2442, %v2438
    %v2503 = vpack.c.b16 %v2443, %v2439
    %v2504 = vpack.c.b16 %v2444, %v2440
    %v2505 = vpack.c.b16 %v2449, %v2445
    %v2506 = vpack.c.b16 %v2450, %v2446
    %v2507 = vpack.c.b16 %v2451, %v2447
    %v2508 = vpack.c.b16 %v2452, %v2448
    %v2509 = vpack.c.b16 %v2457, %v2453
    %v2510 = vpack.c.b16 %v2458, %v2454
    %v2511 = vpack.c.b16 %v2459, %v2455
    %v2512 = vpack.c.b16 %v2460, %v2456
    %v2513 = vpack.c.b16 %v2465, %v2461
    %v2514 = vpack.c.b16 %v2466, %v2462
    %v2515 = vpack.c.b16 %v2467, %v2463
    %v2516 = vpack.c.b16 %v2468, %v2464
    %v2517 = vpack.c.b16 %v2473, %v2469
    %v2518 = vpack.c.b16 %v2474, %v2470
    %v2519 = vpack.c.b16 %v2475, %v2471
    %v2520 = vpack.c.b16 %v2476, %v2472
    %v2521 = vpack.c.b16 %v2481, %v2477
    %v2522 = vpack.c.b16 %v2482, %v2478
    %v2523 = vpack.c.b16 %v2483, %v2479
    %v2524 = vpack.c.b16 %v2484, %v2480
    %v2525 = vpack.c.b16 %v2489, %v2485
    %v2526 = vpack.c.b16 %v2490, %v2486
    %v2527 = vpack.c.b16 %v2491, %v2487
    %v2528 = vpack.c.b16 %v2492, %v2488
    %v2529 = vpack.c.b16 %v2497, %v2493
    %v2530 = vpack.c.b16 %v2498, %v2494
    %v2531 = vpack.c.b16 %v2499, %v2495
    %v2532 = vpack.c.b16 %v2500, %v2496
    %2565 = vmatpush.bf16.msra.mxu0 %v2138
    %2566 = vmatpush.bf16.msra.mxu0 %v2137
    %2567 = vmatpush.bf16.msra.mxu0 %v2136
    %2568 = vmatpush.bf16.msra.mxu0 %v2135
    %2569 = vmatpush.bf16.msra.mxu0 %v2134
    %2570 = vmatpush.bf16.msra.mxu0 %v2133
    %2571 = vmatpush.bf16.msra.mxu0 %v2132
    %2572 = vmatpush.bf16.msra.mxu0 %v2131
    %2573 = vmatmul.bf16.gmra.mxu0 %v2501
    %v2574 = vpop.f32.mrf.mxu0
    %v2575 = vadd.f32 %v2366, %v2574
    %v2576 = vpop.f32.mrf.mxu0
    %v2577 = vadd.f32 %v2368, %v2576
    %2578 = vmatmul.bf16.gmra.mxu0 %v2505
    %v2579 = vpop.f32.mrf.mxu0
    %v2580 = vadd.f32 %v2371, %v2579
    %v2581 = vpop.f32.mrf.mxu0
    %v2582 = vadd.f32 %v2373, %v2581
    %2583 = vmatmul.bf16.gmra.mxu0 %v2509
    %v2584 = vpop.f32.mrf.mxu0
    %v2585 = vadd.f32 %v2376, %v2584
    %v2586 = vpop.f32.mrf.mxu0
    %v2587 = vadd.f32 %v2378, %v2586
    %2588 = vmatmul.bf16.gmra.mxu0 %v2513
    %v2589 = vpop.f32.mrf.mxu0
    %v2590 = vadd.f32 %v2381, %v2589
    %v2591 = vpop.f32.mrf.mxu0
    %v2592 = vadd.f32 %v2383, %v2591
    %2593 = vmatmul.bf16.gmra.mxu0 %v2517
    %v2594 = vpop.f32.mrf.mxu0
    %v2595 = vadd.f32 %v2386, %v2594
    %v2596 = vpop.f32.mrf.mxu0
    %v2597 = vadd.f32 %v2388, %v2596
    %2598 = vmatmul.bf16.gmra.mxu0 %v2521
    %v2599 = vpop.f32.mrf.mxu0
    %v2600 = vadd.f32 %v2391, %v2599
    %v2601 = vpop.f32.mrf.mxu0
    %v2602 = vadd.f32 %v2393, %v2601
    %2603 = vmatmul.bf16.gmra.mxu0 %v2525
    %v2604 = vpop.f32.mrf.mxu0
    %v2605 = vadd.f32 %v2396, %v2604
    %v2606 = vpop.f32.mrf.mxu0
    %v2607 = vadd.f32 %v2398, %v2606
    %2608 = vmatmul.bf16.gmra.mxu0 %v2529
    %v2609 = vpop.f32.mrf.mxu0
    %v2610 = vadd.f32 %v2401, %v2609
    %v2611 = vpop.f32.mrf.mxu0
    %v2612 = vadd.f32 %v2403, %v2611
    %2613 = vdwg.mxu0
    %2614 = vmatpush.bf16.msra.mxu0 %v2170
    %2615 = vmatpush.bf16.msra.mxu0 %v2169
    %2616 = vmatpush.bf16.msra.mxu0 %v2168
    %2617 = vmatpush.bf16.msra.mxu0 %v2167
    %2618 = vmatpush.bf16.msra.mxu0 %v2166
    %2619 = vmatpush.bf16.msra.mxu0 %v2165
    %2620 = vmatpush.bf16.msra.mxu0 %v2164
    %2621 = vmatpush.bf16.msra.mxu0 %v2163
    %2622 = vmatmul.bf16.gmra.mxu0 %v2502
    %v2623 = vpop.f32.mrf.mxu0
    %v2624 = vadd.f32 %v2575, %v2623
    %v2625 = vpop.f32.mrf.mxu0
    %v2626 = vadd.f32 %v2577, %v2625
    %2627 = vmatmul.bf16.gmra.mxu0 %v2506
    %v2628 = vpop.f32.mrf.mxu0
    %v2629 = vadd.f32 %v2580, %v2628
    %v2630 = vpop.f32.mrf.mxu0
    %v2631 = vadd.f32 %v2582, %v2630
    %2632 = vmatmul.bf16.gmra.mxu0 %v2510
    %v2633 = vpop.f32.mrf.mxu0
    %v2634 = vadd.f32 %v2585, %v2633
    %v2635 = vpop.f32.mrf.mxu0
    %v2636 = vadd.f32 %v2587, %v2635
    %2637 = vmatmul.bf16.gmra.mxu0 %v2514
    %v2638 = vpop.f32.mrf.mxu0
    %v2639 = vadd.f32 %v2590, %v2638
    %v2640 = vpop.f32.mrf.mxu0
    %v2641 = vadd.f32 %v2592, %v2640
    %2642 = vmatmul.bf16.gmra.mxu0 %v2518
    %v2643 = vpop.f32.mrf.mxu0
    %v2644 = vadd.f32 %v2595, %v2643
    %v2645 = vpop.f32.mrf.mxu0
    %v2646 = vadd.f32 %v2597, %v2645
    %2647 = vmatmul.bf16.gmra.mxu0 %v2522
    %v2648 = vpop.f32.mrf.mxu0
    %v2649 = vadd.f32 %v2600, %v2648
    %v2650 = vpop.f32.mrf.mxu0
    %v2651 = vadd.f32 %v2602, %v2650
    %2652 = vmatmul.bf16.gmra.mxu0 %v2526
    %v2653 = vpop.f32.mrf.mxu0
    %v2654 = vadd.f32 %v2605, %v2653
    %v2655 = vpop.f32.mrf.mxu0
    %v2656 = vadd.f32 %v2607, %v2655
    %2657 = vmatmul.bf16.gmra.mxu0 %v2530
    %v2658 = vpop.f32.mrf.mxu0
    %v2659 = vadd.f32 %v2610, %v2658
    %v2660 = vpop.f32.mrf.mxu0
    %v2661 = vadd.f32 %v2612, %v2660
    %2662 = vdwg.mxu0
    %2663 = vmatpush.bf16.msra.mxu0 %v2218
    %2664 = vmatpush.bf16.msra.mxu0 %v2217
    %2665 = vmatpush.bf16.msra.mxu0 %v2216
    %2666 = vmatpush.bf16.msra.mxu0 %v2215
    %2667 = vmatpush.bf16.msra.mxu0 %v2214
    %2668 = vmatpush.bf16.msra.mxu0 %v2213
    %2669 = vmatpush.bf16.msra.mxu0 %v2212
    %2670 = vmatpush.bf16.msra.mxu0 %v2211
    %2671 = vmatmul.bf16.gmra.mxu0 %v2503
    %v2672 = vpop.f32.mrf.mxu0
    %v2673 = vadd.f32 %v2624, %v2672
    %v2674 = vpop.f32.mrf.mxu0
    %v2675 = vadd.f32 %v2626, %v2674
    %2676 = vmatmul.bf16.gmra.mxu0 %v2507
    %v2677 = vpop.f32.mrf.mxu0
    %v2678 = vadd.f32 %v2629, %v2677
    %v2679 = vpop.f32.mrf.mxu0
    %v2680 = vadd.f32 %v2631, %v2679
    %2681 = vmatmul.bf16.gmra.mxu0 %v2511
    %v2682 = vpop.f32.mrf.mxu0
    %v2683 = vadd.f32 %v2634, %v2682
    %v2684 = vpop.f32.mrf.mxu0
    %v2685 = vadd.f32 %v2636, %v2684
    %2686 = vmatmul.bf16.gmra.mxu0 %v2515
    %v2687 = vpop.f32.mrf.mxu0
    %v2688 = vadd.f32 %v2639, %v2687
    %v2689 = vpop.f32.mrf.mxu0
    %v2690 = vadd.f32 %v2641, %v2689
    %2691 = vmatmul.bf16.gmra.mxu0 %v2519
    %v2692 = vpop.f32.mrf.mxu0
    %v2693 = vadd.f32 %v2644, %v2692
    %v2694 = vpop.f32.mrf.mxu0
    %v2695 = vadd.f32 %v2646, %v2694
    %2696 = vmatmul.bf16.gmra.mxu0 %v2523
    %v2697 = vpop.f32.mrf.mxu0
    %v2698 = vadd.f32 %v2649, %v2697
    %v2699 = vpop.f32.mrf.mxu0
    %v2700 = vadd.f32 %v2651, %v2699
    %2701 = vmatmul.bf16.gmra.mxu0 %v2527
    %v2702 = vpop.f32.mrf.mxu0
    %v2703 = vadd.f32 %v2654, %v2702
    %v2704 = vpop.f32.mrf.mxu0
    %v2705 = vadd.f32 %v2656, %v2704
    %2706 = vmatmul.bf16.gmra.mxu0 %v2531
    %v2707 = vpop.f32.mrf.mxu0
    %v2708 = vadd.f32 %v2659, %v2707
    %v2709 = vpop.f32.mrf.mxu0
    %v2710 = vadd.f32 %v2661, %v2709
    %2711 = vdwg.mxu0
    %2712 = vmatpush.bf16.msra.mxu0 %v2250
    %2713 = vmatpush.bf16.msra.mxu0 %v2249
    %2714 = vmatpush.bf16.msra.mxu0 %v2248
    %2715 = vmatpush.bf16.msra.mxu0 %v2247
    %2716 = vmatpush.bf16.msra.mxu0 %v2246
    %2717 = vmatpush.bf16.msra.mxu0 %v2245
    %2718 = vmatpush.bf16.msra.mxu0 %v2244
    %2719 = vmatpush.bf16.msra.mxu0 %v2243
    %2720 = vmatmul.bf16.gmra.mxu0 %v2504
    %v2721 = vpop.f32.mrf.mxu0
    %v2722 = vadd.f32 %v2673, %v2721
    %v2723 = vpop.f32.mrf.mxu0
    %v2724 = vadd.f32 %v2675, %v2723
    %2725 = vmatmul.bf16.gmra.mxu0 %v2508
    %v2726 = vpop.f32.mrf.mxu0
    %v2727 = vadd.f32 %v2678, %v2726
    %v2728 = vpop.f32.mrf.mxu0
    %v2729 = vadd.f32 %v2680, %v2728
    %2730 = vmatmul.bf16.gmra.mxu0 %v2512
    %v2731 = vpop.f32.mrf.mxu0
    %v2732 = vadd.f32 %v2683, %v2731
    %v2733 = vpop.f32.mrf.mxu0
    %v2734 = vadd.f32 %v2685, %v2733
    %2735 = vmatmul.bf16.gmra.mxu0 %v2516
    %v2736 = vpop.f32.mrf.mxu0
    %v2737 = vadd.f32 %v2688, %v2736
    %v2738 = vpop.f32.mrf.mxu0
    %v2739 = vadd.f32 %v2690, %v2738
    %2740 = vmatmul.bf16.gmra.mxu0 %v2520
    %v2741 = vpop.f32.mrf.mxu0
    %v2742 = vadd.f32 %v2693, %v2741
    %v2743 = vpop.f32.mrf.mxu0
    %v2744 = vadd.f32 %v2695, %v2743
    %2745 = vmatmul.bf16.gmra.mxu0 %v2524
    %v2746 = vpop.f32.mrf.mxu0
    %v2747 = vadd.f32 %v2698, %v2746
    %v2748 = vpop.f32.mrf.mxu0
    %v2749 = vadd.f32 %v2700, %v2748
    %2750 = vmatmul.bf16.gmra.mxu0 %v2528
    %v2751 = vpop.f32.mrf.mxu0
    %v2752 = vadd.f32 %v2703, %v2751
    %v2753 = vpop.f32.mrf.mxu0
    %v2754 = vadd.f32 %v2705, %v2753
    %2755 = vmatmul.bf16.gmra.mxu0 %v2532
    %v2756 = vpop.f32.mrf.mxu0
    %v2757 = vadd.f32 %v2708, %v2756
    %v2758 = vpop.f32.mrf.mxu0
    %v2759 = vadd.f32 %v2710, %v2758
    %2760 = vdwg.mxu0
    %s2761 = scalar_lea.vmem [#allocation16], 1
    %v2762 = vld [vmem:[%s2761] sm:$0x1]
    %v2764 = vperm.slane %v2762, 0
    %v2766 = vadd.f32 %v2722, %v2764
    %v2767 = vadd.f32 %v2724, %v2764
    %v2768 = vadd.f32 %v2727, %v2764
    %v2769 = vadd.f32 %v2729, %v2764
    %v2770 = vadd.f32 %v2732, %v2764
    %v2771 = vadd.f32 %v2734, %v2764
    %v2772 = vadd.f32 %v2737, %v2764
    %v2773 = vadd.f32 %v2739, %v2764
    %v2774 = vadd.f32 %v2742, %v2764
    %v2775 = vadd.f32 %v2744, %v2764
    %v2776 = vadd.f32 %v2747, %v2764
    %v2777 = vadd.f32 %v2749, %v2764
    %v2778 = vadd.f32 %v2752, %v2764
    %v2779 = vadd.f32 %v2754, %v2764
    %v2780 = vadd.f32 %v2757, %v2764
    %v2781 = vadd.f32 %v2759, %v2764
    %v2782 = vmax.f32 %v2766, 0.0
    %v2783 = vmax.f32 %v2767, 0.0
    %v2784 = vmax.f32 %v2768, 0.0
    %v2785 = vmax.f32 %v2769, 0.0
    %v2786 = vmax.f32 %v2770, 0.0
    %v2787 = vmax.f32 %v2771, 0.0
    %v2788 = vmax.f32 %v2772, 0.0
    %v2789 = vmax.f32 %v2773, 0.0
    %v2790 = vmax.f32 %v2774, 0.0
    %v2791 = vmax.f32 %v2775, 0.0
    %v2792 = vmax.f32 %v2776, 0.0
    %v2793 = vmax.f32 %v2777, 0.0
    %v2794 = vmax.f32 %v2778, 0.0
    %v2795 = vmax.f32 %v2779, 0.0
    %v2796 = vmax.f32 %v2780, 0.0
    %v2797 = vmax.f32 %v2781, 0.0
    %v2798 = vpack.c.bf16 %v2783, %v2782
    %v2799 = vpack.c.bf16 %v2785, %v2784
    %v2800 = vpack.c.bf16 %v2787, %v2786
    %v2801 = vpack.c.bf16 %v2789, %v2788
    %v2802 = vpack.c.bf16 %v2791, %v2790
    %v2803 = vpack.c.bf16 %v2793, %v2792
    %v2804 = vpack.c.bf16 %v2795, %v2794
    %v2805 = vpack.c.bf16 %v2797, %v2796
    %v2806 = vunpack.c.h.b16 %v604
    %v2807 = vunpack.c.h.b16 %v606
    %v2808 = vunpack.c.h.b16 %v608
    %v2809 = vunpack.c.h.b16 %v610
    %v2810 = vunpack.c.h.b16 %v612
    %v2811 = vunpack.c.h.b16 %v614
    %v2812 = vunpack.c.h.b16 %v616
    %v2813 = vunpack.c.h.b16 %v618
    %v2814 = vunpack.c.h.b16 %v620
    %v2815 = vunpack.c.h.b16 %v622
    %v2816 = vunpack.c.h.b16 %v624
    %v2817 = vunpack.c.h.b16 %v626
    %v2818 = vunpack.c.h.b16 %v628
    %v2819 = vunpack.c.h.b16 %v630
    %v2820 = vunpack.c.h.b16 %v632
    %v2821 = vunpack.c.h.b16 %v634
    %v2822 = vpack.c.b16 %v2807, %v2806
    %v2823 = vpack.c.b16 %v2809, %v2808
    %v2824 = vpack.c.b16 %v2811, %v2810
    %v2825 = vpack.c.b16 %v2813, %v2812
    %v2826 = vpack.c.b16 %v2815, %v2814
    %v2827 = vpack.c.b16 %v2817, %v2816
    %v2828 = vpack.c.b16 %v2819, %v2818
    %v2829 = vpack.c.b16 %v2821, %v2820
    %v2838 = vunpack.c.h.b16 %v1072
    %v2839 = vunpack.c.h.b16 %v1074
    %v2840 = vunpack.c.h.b16 %v1076
    %v2841 = vunpack.c.h.b16 %v1078
    %v2842 = vunpack.c.h.b16 %v1080
    %v2843 = vunpack.c.h.b16 %v1082
    %v2844 = vunpack.c.h.b16 %v1084
    %v2845 = vunpack.c.h.b16 %v1086
    %v2846 = vunpack.c.h.b16 %v1088
    %v2847 = vunpack.c.h.b16 %v1090
    %v2848 = vunpack.c.h.b16 %v1092
    %v2849 = vunpack.c.h.b16 %v1094
    %v2850 = vunpack.c.h.b16 %v1096
    %v2851 = vunpack.c.h.b16 %v1098
    %v2852 = vunpack.c.h.b16 %v1100
    %v2853 = vunpack.c.h.b16 %v1102
    %v2854 = vpack.c.b16 %v2839, %v2838
    %v2855 = vpack.c.b16 %v2841, %v2840
    %v2856 = vpack.c.b16 %v2843, %v2842
    %v2857 = vpack.c.b16 %v2845, %v2844
    %v2858 = vpack.c.b16 %v2847, %v2846
    %v2859 = vpack.c.b16 %v2849, %v2848
    %v2860 = vpack.c.b16 %v2851, %v2850
    %v2861 = vpack.c.b16 %v2853, %v2852
    %v2886 = vunpack.c.l.b16 %v1460
    %v2887 = vunpack.c.l.b16 %v1462
    %v2888 = vunpack.c.l.b16 %v1464
    %v2889 = vunpack.c.l.b16 %v1466
    %v2890 = vunpack.c.l.b16 %v1468
    %v2891 = vunpack.c.l.b16 %v1470
    %v2892 = vunpack.c.l.b16 %v1472
    %v2893 = vunpack.c.l.b16 %v1474
    %v2894 = vunpack.c.l.b16 %v1476
    %v2895 = vunpack.c.l.b16 %v1478
    %v2896 = vunpack.c.l.b16 %v1480
    %v2897 = vunpack.c.l.b16 %v1482
    %v2898 = vunpack.c.l.b16 %v1484
    %v2899 = vunpack.c.l.b16 %v1486
    %v2900 = vunpack.c.l.b16 %v1488
    %v2901 = vunpack.c.l.b16 %v1490
    %v2902 = vpack.c.b16 %v2887, %v2886
    %v2903 = vpack.c.b16 %v2889, %v2888
    %v2904 = vpack.c.b16 %v2891, %v2890
    %v2905 = vpack.c.b16 %v2893, %v2892
    %v2906 = vpack.c.b16 %v2895, %v2894
    %v2907 = vpack.c.b16 %v2897, %v2896
    %v2908 = vpack.c.b16 %v2899, %v2898
    %v2909 = vpack.c.b16 %v2901, %v2900
    %v2918 = vld [vmem:[#allocation8] sm:$0xff]
    %v2919 = vld [vmem:[#allocation8 + $0x8] sm:$0xf]
    %v2920 = vld [vmem:[#allocation8 + $0xc] sm:$0xff]
    %v2921 = vld [vmem:[#allocation8 + $0x14] sm:$0xf]
    %v2922 = vld [vmem:[#allocation8 + $0x18] sm:$0xff]
    %v2923 = vld [vmem:[#allocation8 + $0x20] sm:$0xf]
    %v2924 = vld [vmem:[#allocation8 + $0x24] sm:$0xff]
    %v2925 = vld [vmem:[#allocation8 + $0x2c] sm:$0xf]
    %v2926 = vld [vmem:[#allocation8 + $0x30] sm:$0xff]
    %v2927 = vld [vmem:[#allocation8 + $0x38] sm:$0xf]
    %v2928 = vld [vmem:[#allocation8 + $0x3c] sm:$0xff]
    %v2929 = vld [vmem:[#allocation8 + $0x44] sm:$0xf]
    %v2930 = vld [vmem:[#allocation8 + $0x48] sm:$0xff]
    %v2931 = vld [vmem:[#allocation8 + $0x50] sm:$0xf]
    %v2932 = vld [vmem:[#allocation8 + $0x54] sm:$0xff]
    %v2933 = vld [vmem:[#allocation8 + $0x5c] sm:$0xf]
    %v2934 = vld [vmem:[#allocation8 + $0x60] sm:$0xff]
    %v2935 = vld [vmem:[#allocation8 + $0x68] sm:$0xf]
    %v2936 = vld [vmem:[#allocation8 + $0x6c] sm:$0xff]
    %v2937 = vld [vmem:[#allocation8 + $0x74] sm:$0xf]
    %v2938 = vld [vmem:[#allocation8 + $0x78] sm:$0xff]
    %v2939 = vld [vmem:[#allocation8 + $0x80] sm:$0xf]
    %v2940 = vld [vmem:[#allocation8 + $0x84] sm:$0xff]
    %v2941 = vld [vmem:[#allocation8 + $0x8c] sm:$0xf]
    %v2942 = vld [vmem:[#allocation8 + $0x90] sm:$0xff]
    %v2943 = vld [vmem:[#allocation8 + $0x98] sm:$0xf]
    %v2944 = vld [vmem:[#allocation8 + $0x9c] sm:$0xff]
    %v2945 = vld [vmem:[#allocation8 + $0xa4] sm:$0xf]
    %v2946 = vld [vmem:[#allocation8 + $0xa8] sm:$0xff]
    %v2947 = vld [vmem:[#allocation8 + $0xb0] sm:$0xf]
    %v2948 = vld [vmem:[#allocation8 + $0xb4] sm:$0xff]
    %v2949 = vld [vmem:[#allocation8 + $0xbc] sm:$0xf]
    %s2950 = scalar_lea.vmem [#allocation14], 128
    %v2951 = vld [vmem:[%s2950] sm:$0xf]
    %v2952 = vld [vmem:[%s2950 + $0x4] sm:$0xf]
    %v2953 = vld [vmem:[%s2950 + $0x8] sm:$0xf]
    %v2954 = vld [vmem:[%s2950 + $0xc] sm:$0xf]
    %v2955 = vld [vmem:[%s2950 + $0x10] sm:$0xf]
    %v2956 = vld [vmem:[%s2950 + $0x14] sm:$0xf]
    %v2957 = vld [vmem:[%s2950 + $0x18] sm:$0xf]
    %v2958 = vld [vmem:[%s2950 + $0x1c] sm:$0xf]
    %v2959 = vld [vmem:[%s2950 + $0x20] sm:$0xf]
    %v2960 = vld [vmem:[%s2950 + $0x24] sm:$0xf]
    %v2961 = vld [vmem:[%s2950 + $0x28] sm:$0xf]
    %v2962 = vld [vmem:[%s2950 + $0x2c] sm:$0xf]
    %v2963 = vld [vmem:[%s2950 + $0x30] sm:$0xf]
    %v2964 = vld [vmem:[%s2950 + $0x34] sm:$0xf]
    %v2965 = vld [vmem:[%s2950 + $0x38] sm:$0xf]
    %v2966 = vld [vmem:[%s2950 + $0x3c] sm:$0xf]
    %v2983 = vunpack.c.l.b16 %v2951
    %v2984 = vunpack.c.l.b16 %v2952
    %v2985 = vunpack.c.l.b16 %v2953
    %v2986 = vunpack.c.l.b16 %v2954
    %v2987 = vunpack.c.l.b16 %v2955
    %v2988 = vunpack.c.l.b16 %v2956
    %v2989 = vunpack.c.l.b16 %v2957
    %v2990 = vunpack.c.l.b16 %v2958
    %v2991 = vunpack.c.l.b16 %v2959
    %v2992 = vunpack.c.l.b16 %v2960
    %v2993 = vunpack.c.l.b16 %v2961
    %v2994 = vunpack.c.l.b16 %v2962
    %v2995 = vunpack.c.l.b16 %v2963
    %v2996 = vunpack.c.l.b16 %v2964
    %v2997 = vunpack.c.l.b16 %v2965
    %v2998 = vunpack.c.l.b16 %v2966
    %v2999 = vpack.c.b16 %v2984, %v2983
    %v3000 = vpack.c.b16 %v2986, %v2985
    %v3001 = vpack.c.b16 %v2988, %v2987
    %v3002 = vpack.c.b16 %v2990, %v2989
    %v3003 = vpack.c.b16 %v2992, %v2991
    %v3004 = vpack.c.b16 %v2994, %v2993
    %v3005 = vpack.c.b16 %v2996, %v2995
    %v3006 = vpack.c.b16 %v2998, %v2997
    %3015 = vmatpush.bf16.msra.mxu0 %v3006
    %3016 = vmatpush.bf16.msra.mxu0 %v3005
    %3017 = vmatpush.bf16.msra.mxu0 %v3004
    %3018 = vmatpush.bf16.msra.mxu0 %v3003
    %3019 = vmatpush.bf16.msra.mxu0 %v3002
    %3020 = vmatpush.bf16.msra.mxu0 %v3001
    %3021 = vmatpush.bf16.msra.mxu0 %v3000
    %3022 = vmatpush.bf16.msra.mxu0 %v2999
    %3023 = vmatmul.bf16.gmra.mxu0 %v1168
    %v3024 = vpop.f32.mrf.mxu0
    %v3025 = vadd.f32 0.0, %v3024
    %v3026 = vpop.f32.mrf.mxu0
    %v3027 = vadd.f32 0.0, %v3026
    %3028 = vmatmul.bf16.gmra.mxu0 %v1169
    %v3029 = vpop.f32.mrf.mxu0
    %v3030 = vadd.f32 0.0, %v3029
    %v3031 = vpop.f32.mrf.mxu0
    %v3032 = vadd.f32 0.0, %v3031
    %3033 = vmatmul.bf16.gmra.mxu0 %v1170
    %v3034 = vpop.f32.mrf.mxu0
    %v3035 = vadd.f32 0.0, %v3034
    %v3036 = vpop.f32.mrf.mxu0
    %v3037 = vadd.f32 0.0, %v3036
    %3038 = vmatmul.bf16.gmra.mxu0 %v1171
    %v3039 = vpop.f32.mrf.mxu0
    %v3040 = vadd.f32 0.0, %v3039
    %v3041 = vpop.f32.mrf.mxu0
    %v3042 = vadd.f32 0.0, %v3041
    %3043 = vmatmul.bf16.gmra.mxu0 %v1172
    %v3044 = vpop.f32.mrf.mxu0
    %v3045 = vadd.f32 0.0, %v3044
    %v3046 = vpop.f32.mrf.mxu0
    %v3047 = vadd.f32 0.0, %v3046
    %3048 = vmatmul.bf16.gmra.mxu0 %v1173
    %v3049 = vpop.f32.mrf.mxu0
    %v3050 = vadd.f32 0.0, %v3049
    %v3051 = vpop.f32.mrf.mxu0
    %v3052 = vadd.f32 0.0, %v3051
    %3053 = vmatmul.bf16.gmra.mxu0 %v1174
    %v3054 = vpop.f32.mrf.mxu0
    %v3055 = vadd.f32 0.0, %v3054
    %v3056 = vpop.f32.mrf.mxu0
    %v3057 = vadd.f32 0.0, %v3056
    %3058 = vmatmul.bf16.gmra.mxu0 %v1175
    %v3059 = vpop.f32.mrf.mxu0
    %v3060 = vadd.f32 0.0, %v3059
    %v3061 = vpop.f32.mrf.mxu0
    %v3062 = vadd.f32 0.0, %v3061
    %3063 = vdwg.mxu0
    %v3096 = vunpack.c.l.b16 %v2918
    %v3097 = vunpack.c.h.b16 %v2918
    %v3098 = vunpack.c.l.b16 %v2919
    %v3099 = vunpack.c.l.b16 %v2920
    %v3100 = vunpack.c.h.b16 %v2920
    %v3101 = vunpack.c.l.b16 %v2921
    %v3102 = vunpack.c.l.b16 %v2922
    %v3103 = vunpack.c.h.b16 %v2922
    %v3104 = vunpack.c.l.b16 %v2923
    %v3105 = vunpack.c.l.b16 %v2924
    %v3106 = vunpack.c.h.b16 %v2924
    %v3107 = vunpack.c.l.b16 %v2925
    %v3108 = vunpack.c.l.b16 %v2926
    %v3109 = vunpack.c.h.b16 %v2926
    %v3110 = vunpack.c.l.b16 %v2927
    %v3111 = vunpack.c.l.b16 %v2928
    %v3112 = vunpack.c.h.b16 %v2928
    %v3113 = vunpack.c.l.b16 %v2929
    %v3114 = vunpack.c.l.b16 %v2930
    %v3115 = vunpack.c.h.b16 %v2930
    %v3116 = vunpack.c.l.b16 %v2931
    %v3117 = vunpack.c.l.b16 %v2932
    %v3118 = vunpack.c.h.b16 %v2932
    %v3119 = vunpack.c.l.b16 %v2933
    %v3120 = vunpack.c.l.b16 %v2934
    %v3121 = vunpack.c.h.b16 %v2934
    %v3122 = vunpack.c.l.b16 %v2935
    %v3123 = vunpack.c.l.b16 %v2936
    %v3124 = vunpack.c.h.b16 %v2936
    %v3125 = vunpack.c.l.b16 %v2937
    %v3126 = vunpack.c.l.b16 %v2938
    %v3127 = vunpack.c.h.b16 %v2938
    %v3128 = vunpack.c.l.b16 %v2939
    %v3129 = vunpack.c.l.b16 %v2940
    %v3130 = vunpack.c.h.b16 %v2940
    %v3131 = vunpack.c.l.b16 %v2941
    %v3132 = vunpack.c.l.b16 %v2942
    %v3133 = vunpack.c.h.b16 %v2942
    %v3134 = vunpack.c.l.b16 %v2943
    %v3135 = vunpack.c.l.b16 %v2944
    %v3136 = vunpack.c.h.b16 %v2944
    %v3137 = vunpack.c.l.b16 %v2945
    %v3138 = vunpack.c.l.b16 %v2946
    %v3139 = vunpack.c.h.b16 %v2946
    %v3140 = vunpack.c.l.b16 %v2947
    %v3141 = vunpack.c.l.b16 %v2948
    %v3142 = vunpack.c.h.b16 %v2948
    %v3143 = vunpack.c.l.b16 %v2949
    %v3144 = vpack.c.b16 %v3099, %v3096
    %v3145 = vpack.c.b16 %v3100, %v3097
    %v3146 = vpack.c.b16 %v3101, %v3098
    %v3147 = vpack.c.b16 %v3105, %v3102
    %v3148 = vpack.c.b16 %v3106, %v3103
    %v3149 = vpack.c.b16 %v3107, %v3104
    %v3150 = vpack.c.b16 %v3111, %v3108
    %v3151 = vpack.c.b16 %v3112, %v3109
    %v3152 = vpack.c.b16 %v3113, %v3110
    %v3153 = vpack.c.b16 %v3117, %v3114
    %v3154 = vpack.c.b16 %v3118, %v3115
    %v3155 = vpack.c.b16 %v3119, %v3116
    %v3156 = vpack.c.b16 %v3123, %v3120
    %v3157 = vpack.c.b16 %v3124, %v3121
    %v3158 = vpack.c.b16 %v3125, %v3122
    %v3159 = vpack.c.b16 %v3129, %v3126
    %v3160 = vpack.c.b16 %v3130, %v3127
    %v3161 = vpack.c.b16 %v3131, %v3128
    %v3162 = vpack.c.b16 %v3135, %v3132
    %v3163 = vpack.c.b16 %v3136, %v3133
    %v3164 = vpack.c.b16 %v3137, %v3134
    %v3165 = vpack.c.b16 %v3141, %v3138
    %v3166 = vpack.c.b16 %v3142, %v3139
    %v3167 = vpack.c.b16 %v3143, %v3140
    %3192 = vmatpush.bf16.msra.mxu0 %v2829
    %3193 = vmatpush.bf16.msra.mxu0 %v2828
    %3194 = vmatpush.bf16.msra.mxu0 %v2827
    %3195 = vmatpush.bf16.msra.mxu0 %v2826
    %3196 = vmatpush.bf16.msra.mxu0 %v2825
    %3197 = vmatpush.bf16.msra.mxu0 %v2824
    %3198 = vmatpush.bf16.msra.mxu0 %v2823
    %3199 = vmatpush.bf16.msra.mxu0 %v2822
    %3200 = vmatmul.bf16.gmra.mxu0 %v3144
    %v3201 = vpop.f32.mrf.mxu0
    %v3202 = vadd.f32 %v3025, %v3201
    %v3203 = vpop.f32.mrf.mxu0
    %v3204 = vadd.f32 %v3027, %v3203
    %3205 = vmatmul.bf16.gmra.mxu0 %v3147
    %v3206 = vpop.f32.mrf.mxu0
    %v3207 = vadd.f32 %v3030, %v3206
    %v3208 = vpop.f32.mrf.mxu0
    %v3209 = vadd.f32 %v3032, %v3208
    %3210 = vmatmul.bf16.gmra.mxu0 %v3150
    %v3211 = vpop.f32.mrf.mxu0
    %v3212 = vadd.f32 %v3035, %v3211
    %v3213 = vpop.f32.mrf.mxu0
    %v3214 = vadd.f32 %v3037, %v3213
    %3215 = vmatmul.bf16.gmra.mxu0 %v3153
    %v3216 = vpop.f32.mrf.mxu0
    %v3217 = vadd.f32 %v3040, %v3216
    %v3218 = vpop.f32.mrf.mxu0
    %v3219 = vadd.f32 %v3042, %v3218
    %3220 = vmatmul.bf16.gmra.mxu0 %v3156
    %v3221 = vpop.f32.mrf.mxu0
    %v3222 = vadd.f32 %v3045, %v3221
    %v3223 = vpop.f32.mrf.mxu0
    %v3224 = vadd.f32 %v3047, %v3223
    %3225 = vmatmul.bf16.gmra.mxu0 %v3159
    %v3226 = vpop.f32.mrf.mxu0
    %v3227 = vadd.f32 %v3050, %v3226
    %v3228 = vpop.f32.mrf.mxu0
    %v3229 = vadd.f32 %v3052, %v3228
    %3230 = vmatmul.bf16.gmra.mxu0 %v3162
    %v3231 = vpop.f32.mrf.mxu0
    %v3232 = vadd.f32 %v3055, %v3231
    %v3233 = vpop.f32.mrf.mxu0
    %v3234 = vadd.f32 %v3057, %v3233
    %3235 = vmatmul.bf16.gmra.mxu0 %v3165
    %v3236 = vpop.f32.mrf.mxu0
    %v3237 = vadd.f32 %v3060, %v3236
    %v3238 = vpop.f32.mrf.mxu0
    %v3239 = vadd.f32 %v3062, %v3238
    %3240 = vdwg.mxu0
    %3241 = vmatpush.bf16.msra.mxu0 %v2861
    %3242 = vmatpush.bf16.msra.mxu0 %v2860
    %3243 = vmatpush.bf16.msra.mxu0 %v2859
    %3244 = vmatpush.bf16.msra.mxu0 %v2858
    %3245 = vmatpush.bf16.msra.mxu0 %v2857
    %3246 = vmatpush.bf16.msra.mxu0 %v2856
    %3247 = vmatpush.bf16.msra.mxu0 %v2855
    %3248 = vmatpush.bf16.msra.mxu0 %v2854
    %3249 = vmatmul.bf16.gmra.mxu0 %v3145
    %v3250 = vpop.f32.mrf.mxu0
    %v3251 = vadd.f32 %v3202, %v3250
    %v3252 = vpop.f32.mrf.mxu0
    %v3253 = vadd.f32 %v3204, %v3252
    %3254 = vmatmul.bf16.gmra.mxu0 %v3148
    %v3255 = vpop.f32.mrf.mxu0
    %v3256 = vadd.f32 %v3207, %v3255
    %v3257 = vpop.f32.mrf.mxu0
    %v3258 = vadd.f32 %v3209, %v3257
    %3259 = vmatmul.bf16.gmra.mxu0 %v3151
    %v3260 = vpop.f32.mrf.mxu0
    %v3261 = vadd.f32 %v3212, %v3260
    %v3262 = vpop.f32.mrf.mxu0
    %v3263 = vadd.f32 %v3214, %v3262
    %3264 = vmatmul.bf16.gmra.mxu0 %v3154
    %v3265 = vpop.f32.mrf.mxu0
    %v3266 = vadd.f32 %v3217, %v3265
    %v3267 = vpop.f32.mrf.mxu0
    %v3268 = vadd.f32 %v3219, %v3267
    %3269 = vmatmul.bf16.gmra.mxu0 %v3157
    %v3270 = vpop.f32.mrf.mxu0
    %v3271 = vadd.f32 %v3222, %v3270
    %v3272 = vpop.f32.mrf.mxu0
    %v3273 = vadd.f32 %v3224, %v3272
    %3274 = vmatmul.bf16.gmra.mxu0 %v3160
    %v3275 = vpop.f32.mrf.mxu0
    %v3276 = vadd.f32 %v3227, %v3275
    %v3277 = vpop.f32.mrf.mxu0
    %v3278 = vadd.f32 %v3229, %v3277
    %3279 = vmatmul.bf16.gmra.mxu0 %v3163
    %v3280 = vpop.f32.mrf.mxu0
    %v3281 = vadd.f32 %v3232, %v3280
    %v3282 = vpop.f32.mrf.mxu0
    %v3283 = vadd.f32 %v3234, %v3282
    %3284 = vmatmul.bf16.gmra.mxu0 %v3166
    %v3285 = vpop.f32.mrf.mxu0
    %v3286 = vadd.f32 %v3237, %v3285
    %v3287 = vpop.f32.mrf.mxu0
    %v3288 = vadd.f32 %v3239, %v3287
    %3289 = vdwg.mxu0
    %3290 = vmatpush.bf16.msra.mxu0 %v2909
    %3291 = vmatpush.bf16.msra.mxu0 %v2908
    %3292 = vmatpush.bf16.msra.mxu0 %v2907
    %3293 = vmatpush.bf16.msra.mxu0 %v2906
    %3294 = vmatpush.bf16.msra.mxu0 %v2905
    %3295 = vmatpush.bf16.msra.mxu0 %v2904
    %3296 = vmatpush.bf16.msra.mxu0 %v2903
    %3297 = vmatpush.bf16.msra.mxu0 %v2902
    %3298 = vmatmul.bf16.gmra.mxu0 %v3146
    %v3299 = vpop.f32.mrf.mxu0
    %v3300 = vadd.f32 %v3251, %v3299
    %v3301 = vpop.f32.mrf.mxu0
    %v3302 = vadd.f32 %v3253, %v3301
    %3303 = vmatmul.bf16.gmra.mxu0 %v3149
    %v3304 = vpop.f32.mrf.mxu0
    %v3305 = vadd.f32 %v3256, %v3304
    %v3306 = vpop.f32.mrf.mxu0
    %v3307 = vadd.f32 %v3258, %v3306
    %3308 = vmatmul.bf16.gmra.mxu0 %v3152
    %v3309 = vpop.f32.mrf.mxu0
    %v3310 = vadd.f32 %v3261, %v3309
    %v3311 = vpop.f32.mrf.mxu0
    %v3312 = vadd.f32 %v3263, %v3311
    %3313 = vmatmul.bf16.gmra.mxu0 %v3155
    %v3314 = vpop.f32.mrf.mxu0
    %v3315 = vadd.f32 %v3266, %v3314
    %v3316 = vpop.f32.mrf.mxu0
    %v3317 = vadd.f32 %v3268, %v3316
    %3318 = vmatmul.bf16.gmra.mxu0 %v3158
    %v3319 = vpop.f32.mrf.mxu0
    %v3320 = vadd.f32 %v3271, %v3319
    %v3321 = vpop.f32.mrf.mxu0
    %v3322 = vadd.f32 %v3273, %v3321
    %3323 = vmatmul.bf16.gmra.mxu0 %v3161
    %v3324 = vpop.f32.mrf.mxu0
    %v3325 = vadd.f32 %v3276, %v3324
    %v3326 = vpop.f32.mrf.mxu0
    %v3327 = vadd.f32 %v3278, %v3326
    %3328 = vmatmul.bf16.gmra.mxu0 %v3164
    %v3329 = vpop.f32.mrf.mxu0
    %v3330 = vadd.f32 %v3281, %v3329
    %v3331 = vpop.f32.mrf.mxu0
    %v3332 = vadd.f32 %v3283, %v3331
    %3333 = vmatmul.bf16.gmra.mxu0 %v3167
    %v3334 = vpop.f32.mrf.mxu0
    %v3335 = vadd.f32 %v3286, %v3334
    %v3336 = vpop.f32.mrf.mxu0
    %v3337 = vadd.f32 %v3288, %v3336
    %3338 = vdwg.mxu0
    %s3339 = scalar_lea.vmem [#allocation16], 2
    %v3340 = vld [vmem:[%s3339] sm:$0x1]
    %v3342 = vperm.slane %v3340, 0
    %v3344 = vadd.f32 %v3300, %v3342
    %v3345 = vadd.f32 %v3302, %v3342
    %v3346 = vadd.f32 %v3305, %v3342
    %v3347 = vadd.f32 %v3307, %v3342
    %v3348 = vadd.f32 %v3310, %v3342
    %v3349 = vadd.f32 %v3312, %v3342
    %v3350 = vadd.f32 %v3315, %v3342
    %v3351 = vadd.f32 %v3317, %v3342
    %v3352 = vadd.f32 %v3320, %v3342
    %v3353 = vadd.f32 %v3322, %v3342
    %v3354 = vadd.f32 %v3325, %v3342
    %v3355 = vadd.f32 %v3327, %v3342
    %v3356 = vadd.f32 %v3330, %v3342
    %v3357 = vadd.f32 %v3332, %v3342
    %v3358 = vadd.f32 %v3335, %v3342
    %v3359 = vadd.f32 %v3337, %v3342
    %v3360 = vmax.f32 %v3344, 0.0
    %v3361 = vmax.f32 %v3345, 0.0
    %v3362 = vmax.f32 %v3346, 0.0
    %v3363 = vmax.f32 %v3347, 0.0
    %v3364 = vmax.f32 %v3348, 0.0
    %v3365 = vmax.f32 %v3349, 0.0
    %v3366 = vmax.f32 %v3350, 0.0
    %v3367 = vmax.f32 %v3351, 0.0
    %v3368 = vmax.f32 %v3352, 0.0
    %v3369 = vmax.f32 %v3353, 0.0
    %v3370 = vmax.f32 %v3354, 0.0
    %v3371 = vmax.f32 %v3355, 0.0
    %v3372 = vmax.f32 %v3356, 0.0
    %v3373 = vmax.f32 %v3357, 0.0
    %v3374 = vmax.f32 %v3358, 0.0
    %v3375 = vmax.f32 %v3359, 0.0
    %v3376 = vpack.c.bf16 %v3361, %v3360
    %v3377 = vpack.c.bf16 %v3363, %v3362
    %v3378 = vpack.c.bf16 %v3365, %v3364
    %v3379 = vpack.c.bf16 %v3367, %v3366
    %v3380 = vpack.c.bf16 %v3369, %v3368
    %v3381 = vpack.c.bf16 %v3371, %v3370
    %v3382 = vpack.c.bf16 %v3373, %v3372
    %v3383 = vpack.c.bf16 %v3375, %v3374
    %s3384 = scalar_lea.vmem [#allocation10], 192
    %v3385 = vld [vmem:[%s3384] sm:$0xff]
    %v3386 = vld [vmem:[%s3384 + $0x8] sm:$0xf]
    %v3387 = vld [vmem:[%s3384 + $0xc] sm:$0xff]
    %v3388 = vld [vmem:[%s3384 + $0x14] sm:$0xf]
    %v3389 = vld [vmem:[%s3384 + $0x18] sm:$0xff]
    %v3390 = vld [vmem:[%s3384 + $0x20] sm:$0xf]
    %v3391 = vld [vmem:[%s3384 + $0x24] sm:$0xff]
    %v3392 = vld [vmem:[%s3384 + $0x2c] sm:$0xf]
    %v3393 = vld [vmem:[%s3384 + $0x30] sm:$0xff]
    %v3394 = vld [vmem:[%s3384 + $0x38] sm:$0xf]
    %v3395 = vld [vmem:[%s3384 + $0x3c] sm:$0xff]
    %v3396 = vld [vmem:[%s3384 + $0x44] sm:$0xf]
    %v3397 = vld [vmem:[%s3384 + $0x48] sm:$0xff]
    %v3398 = vld [vmem:[%s3384 + $0x50] sm:$0xf]
    %v3399 = vld [vmem:[%s3384 + $0x54] sm:$0xff]
    %v3400 = vld [vmem:[%s3384 + $0x5c] sm:$0xf]
    %v3401 = vld [vmem:[%s3384 + $0x60] sm:$0xff]
    %v3402 = vld [vmem:[%s3384 + $0x68] sm:$0xf]
    %v3403 = vld [vmem:[%s3384 + $0x6c] sm:$0xff]
    %v3404 = vld [vmem:[%s3384 + $0x74] sm:$0xf]
    %v3405 = vld [vmem:[%s3384 + $0x78] sm:$0xff]
    %v3406 = vld [vmem:[%s3384 + $0x80] sm:$0xf]
    %v3407 = vld [vmem:[%s3384 + $0x84] sm:$0xff]
    %v3408 = vld [vmem:[%s3384 + $0x8c] sm:$0xf]
    %v3409 = vld [vmem:[%s3384 + $0x90] sm:$0xff]
    %v3410 = vld [vmem:[%s3384 + $0x98] sm:$0xf]
    %v3411 = vld [vmem:[%s3384 + $0x9c] sm:$0xff]
    %v3412 = vld [vmem:[%s3384 + $0xa4] sm:$0xf]
    %v3413 = vld [vmem:[%s3384 + $0xa8] sm:$0xff]
    %v3414 = vld [vmem:[%s3384 + $0xb0] sm:$0xf]
    %v3415 = vld [vmem:[%s3384 + $0xb4] sm:$0xff]
    %v3416 = vld [vmem:[%s3384 + $0xbc] sm:$0xf]
    %v3449 = vunpack.c.l.b16 %v3385
    %v3450 = vunpack.c.h.b16 %v3385
    %v3451 = vunpack.c.l.b16 %v3386
    %v3452 = vunpack.c.l.b16 %v3387
    %v3453 = vunpack.c.h.b16 %v3387
    %v3454 = vunpack.c.l.b16 %v3388
    %v3455 = vunpack.c.l.b16 %v3389
    %v3456 = vunpack.c.h.b16 %v3389
    %v3457 = vunpack.c.l.b16 %v3390
    %v3458 = vunpack.c.l.b16 %v3391
    %v3459 = vunpack.c.h.b16 %v3391
    %v3460 = vunpack.c.l.b16 %v3392
    %v3461 = vunpack.c.l.b16 %v3393
    %v3462 = vunpack.c.h.b16 %v3393
    %v3463 = vunpack.c.l.b16 %v3394
    %v3464 = vunpack.c.l.b16 %v3395
    %v3465 = vunpack.c.h.b16 %v3395
    %v3466 = vunpack.c.l.b16 %v3396
    %v3467 = vunpack.c.l.b16 %v3397
    %v3468 = vunpack.c.h.b16 %v3397
    %v3469 = vunpack.c.l.b16 %v3398
    %v3470 = vunpack.c.l.b16 %v3399
    %v3471 = vunpack.c.h.b16 %v3399
    %v3472 = vunpack.c.l.b16 %v3400
    %v3473 = vunpack.c.l.b16 %v3401
    %v3474 = vunpack.c.h.b16 %v3401
    %v3475 = vunpack.c.l.b16 %v3402
    %v3476 = vunpack.c.l.b16 %v3403
    %v3477 = vunpack.c.h.b16 %v3403
    %v3478 = vunpack.c.l.b16 %v3404
    %v3479 = vunpack.c.l.b16 %v3405
    %v3480 = vunpack.c.h.b16 %v3405
    %v3481 = vunpack.c.l.b16 %v3406
    %v3482 = vunpack.c.l.b16 %v3407
    %v3483 = vunpack.c.h.b16 %v3407
    %v3484 = vunpack.c.l.b16 %v3408
    %v3485 = vunpack.c.l.b16 %v3409
    %v3486 = vunpack.c.h.b16 %v3409
    %v3487 = vunpack.c.l.b16 %v3410
    %v3488 = vunpack.c.l.b16 %v3411
    %v3489 = vunpack.c.h.b16 %v3411
    %v3490 = vunpack.c.l.b16 %v3412
    %v3491 = vunpack.c.l.b16 %v3413
    %v3492 = vunpack.c.h.b16 %v3413
    %v3493 = vunpack.c.l.b16 %v3414
    %v3494 = vunpack.c.l.b16 %v3415
    %v3495 = vunpack.c.h.b16 %v3415
    %v3496 = vunpack.c.l.b16 %v3416
    %v3497 = vpack.c.b16 %v3452, %v3449
    %v3498 = vpack.c.b16 %v3453, %v3450
    %v3499 = vpack.c.b16 %v3454, %v3451
    %v3500 = vpack.c.b16 %v3458, %v3455
    %v3501 = vpack.c.b16 %v3459, %v3456
    %v3502 = vpack.c.b16 %v3460, %v3457
    %v3503 = vpack.c.b16 %v3464, %v3461
    %v3504 = vpack.c.b16 %v3465, %v3462
    %v3505 = vpack.c.b16 %v3466, %v3463
    %v3506 = vpack.c.b16 %v3470, %v3467
    %v3507 = vpack.c.b16 %v3471, %v3468
    %v3508 = vpack.c.b16 %v3472, %v3469
    %v3509 = vpack.c.b16 %v3476, %v3473
    %v3510 = vpack.c.b16 %v3477, %v3474
    %v3511 = vpack.c.b16 %v3478, %v3475
    %v3512 = vpack.c.b16 %v3482, %v3479
    %v3513 = vpack.c.b16 %v3483, %v3480
    %v3514 = vpack.c.b16 %v3484, %v3481
    %v3515 = vpack.c.b16 %v3488, %v3485
    %v3516 = vpack.c.b16 %v3489, %v3486
    %v3517 = vpack.c.b16 %v3490, %v3487
    %v3518 = vpack.c.b16 %v3494, %v3491
    %v3519 = vpack.c.b16 %v3495, %v3492
    %v3520 = vpack.c.b16 %v3496, %v3493
    %3545 = vmatpush.bf16.msra.mxu0 %v3518
    %3546 = vmatpush.bf16.msra.mxu0 %v3515
    %3547 = vmatpush.bf16.msra.mxu0 %v3512
    %3548 = vmatpush.bf16.msra.mxu0 %v3509
    %3549 = vmatpush.bf16.msra.mxu0 %v3506
    %3550 = vmatpush.bf16.msra.mxu0 %v3503
    %3551 = vmatpush.bf16.msra.mxu0 %v3500
    %3552 = vmatpush.bf16.msra.mxu0 %v3497
    %3553 = vmatmul.bf16.gmra.mxu0 %v2091
    %v3554 = vpop.f32.mrf.mxu0
    %v3555 = vadd.f32 0.0, %v3554
    %v3556 = vpop.f32.mrf.mxu0
    %v3557 = vadd.f32 0.0, %v3556
    %3558 = vmatmul.bf16.gmra.mxu0 %v2092
    %v3559 = vpop.f32.mrf.mxu0
    %v3560 = vadd.f32 0.0, %v3559
    %v3561 = vpop.f32.mrf.mxu0
    %v3562 = vadd.f32 0.0, %v3561
    %3563 = vmatmul.bf16.gmra.mxu0 %v2093
    %v3564 = vpop.f32.mrf.mxu0
    %v3565 = vadd.f32 0.0, %v3564
    %v3566 = vpop.f32.mrf.mxu0
    %v3567 = vadd.f32 0.0, %v3566
    %3568 = vmatmul.bf16.gmra.mxu0 %v2094
    %v3569 = vpop.f32.mrf.mxu0
    %v3570 = vadd.f32 0.0, %v3569
    %v3571 = vpop.f32.mrf.mxu0
    %v3572 = vadd.f32 0.0, %v3571
    %3573 = vmatmul.bf16.gmra.mxu0 %v2095
    %v3574 = vpop.f32.mrf.mxu0
    %v3575 = vadd.f32 0.0, %v3574
    %v3576 = vpop.f32.mrf.mxu0
    %v3577 = vadd.f32 0.0, %v3576
    %3578 = vmatmul.bf16.gmra.mxu0 %v2096
    %v3579 = vpop.f32.mrf.mxu0
    %v3580 = vadd.f32 0.0, %v3579
    %v3581 = vpop.f32.mrf.mxu0
    %v3582 = vadd.f32 0.0, %v3581
    %3583 = vmatmul.bf16.gmra.mxu0 %v2097
    %v3584 = vpop.f32.mrf.mxu0
    %v3585 = vadd.f32 0.0, %v3584
    %v3586 = vpop.f32.mrf.mxu0
    %v3587 = vadd.f32 0.0, %v3586
    %3588 = vmatmul.bf16.gmra.mxu0 %v2098
    %v3589 = vpop.f32.mrf.mxu0
    %v3590 = vadd.f32 0.0, %v3589
    %v3591 = vpop.f32.mrf.mxu0
    %v3592 = vadd.f32 0.0, %v3591
    %3593 = vdwg.mxu0
    %3594 = vmatpush.bf16.msra.mxu0 %v3519
    %3595 = vmatpush.bf16.msra.mxu0 %v3516
    %3596 = vmatpush.bf16.msra.mxu0 %v3513
    %3597 = vmatpush.bf16.msra.mxu0 %v3510
    %3598 = vmatpush.bf16.msra.mxu0 %v3507
    %3599 = vmatpush.bf16.msra.mxu0 %v3504
    %3600 = vmatpush.bf16.msra.mxu0 %v3501
    %3601 = vmatpush.bf16.msra.mxu0 %v3498
    %3602 = vmatmul.bf16.gmra.mxu0 %v2091
    %v3603 = vpop.f32.mrf.mxu0
    %v3604 = vadd.f32 0.0, %v3603
    %v3605 = vpop.f32.mrf.mxu0
    %v3606 = vadd.f32 0.0, %v3605
    %3607 = vmatmul.bf16.gmra.mxu0 %v2092
    %v3608 = vpop.f32.mrf.mxu0
    %v3609 = vadd.f32 0.0, %v3608
    %v3610 = vpop.f32.mrf.mxu0
    %v3611 = vadd.f32 0.0, %v3610
    %3612 = vmatmul.bf16.gmra.mxu0 %v2093
    %v3613 = vpop.f32.mrf.mxu0
    %v3614 = vadd.f32 0.0, %v3613
    %v3615 = vpop.f32.mrf.mxu0
    %v3616 = vadd.f32 0.0, %v3615
    %3617 = vmatmul.bf16.gmra.mxu0 %v2094
    %v3618 = vpop.f32.mrf.mxu0
    %v3619 = vadd.f32 0.0, %v3618
    %v3620 = vpop.f32.mrf.mxu0
    %v3621 = vadd.f32 0.0, %v3620
    %3622 = vmatmul.bf16.gmra.mxu0 %v2095
    %v3623 = vpop.f32.mrf.mxu0
    %v3624 = vadd.f32 0.0, %v3623
    %v3625 = vpop.f32.mrf.mxu0
    %v3626 = vadd.f32 0.0, %v3625
    %3627 = vmatmul.bf16.gmra.mxu0 %v2096
    %v3628 = vpop.f32.mrf.mxu0
    %v3629 = vadd.f32 0.0, %v3628
    %v3630 = vpop.f32.mrf.mxu0
    %v3631 = vadd.f32 0.0, %v3630
    %3632 = vmatmul.bf16.gmra.mxu0 %v2097
    %v3633 = vpop.f32.mrf.mxu0
    %v3634 = vadd.f32 0.0, %v3633
    %v3635 = vpop.f32.mrf.mxu0
    %v3636 = vadd.f32 0.0, %v3635
    %3637 = vmatmul.bf16.gmra.mxu0 %v2098
    %v3638 = vpop.f32.mrf.mxu0
    %v3639 = vadd.f32 0.0, %v3638
    %v3640 = vpop.f32.mrf.mxu0
    %v3641 = vadd.f32 0.0, %v3640
    %3642 = vdwg.mxu0
    %3643 = vmatpush.bf16.msra.mxu0 %v3520
    %3644 = vmatpush.bf16.msra.mxu0 %v3517
    %3645 = vmatpush.bf16.msra.mxu0 %v3514
    %3646 = vmatpush.bf16.msra.mxu0 %v3511
    %3647 = vmatpush.bf16.msra.mxu0 %v3508
    %3648 = vmatpush.bf16.msra.mxu0 %v3505
    %3649 = vmatpush.bf16.msra.mxu0 %v3502
    %3650 = vmatpush.bf16.msra.mxu0 %v3499
    %3651 = vmatmul.bf16.gmra.mxu0 %v2091
    %v3652 = vpop.f32.mrf.mxu0
    %v3653 = vadd.f32 0.0, %v3652
    %v3654 = vpop.f32.mrf.mxu0
    %v3655 = vadd.f32 0.0, %v3654
    %3656 = vmatmul.bf16.gmra.mxu0 %v2092
    %v3657 = vpop.f32.mrf.mxu0
    %v3658 = vadd.f32 0.0, %v3657
    %v3659 = vpop.f32.mrf.mxu0
    %v3660 = vadd.f32 0.0, %v3659
    %3661 = vmatmul.bf16.gmra.mxu0 %v2093
    %v3662 = vpop.f32.mrf.mxu0
    %v3663 = vadd.f32 0.0, %v3662
    %v3664 = vpop.f32.mrf.mxu0
    %v3665 = vadd.f32 0.0, %v3664
    %3666 = vmatmul.bf16.gmra.mxu0 %v2094
    %v3667 = vpop.f32.mrf.mxu0
    %v3668 = vadd.f32 0.0, %v3667
    %v3669 = vpop.f32.mrf.mxu0
    %v3670 = vadd.f32 0.0, %v3669
    %3671 = vmatmul.bf16.gmra.mxu0 %v2095
    %v3672 = vpop.f32.mrf.mxu0
    %v3673 = vadd.f32 0.0, %v3672
    %v3674 = vpop.f32.mrf.mxu0
    %v3675 = vadd.f32 0.0, %v3674
    %3676 = vmatmul.bf16.gmra.mxu0 %v2096
    %v3677 = vpop.f32.mrf.mxu0
    %v3678 = vadd.f32 0.0, %v3677
    %v3679 = vpop.f32.mrf.mxu0
    %v3680 = vadd.f32 0.0, %v3679
    %3681 = vmatmul.bf16.gmra.mxu0 %v2097
    %v3682 = vpop.f32.mrf.mxu0
    %v3683 = vadd.f32 0.0, %v3682
    %v3684 = vpop.f32.mrf.mxu0
    %v3685 = vadd.f32 0.0, %v3684
    %3686 = vmatmul.bf16.gmra.mxu0 %v2098
    %v3687 = vpop.f32.mrf.mxu0
    %v3688 = vadd.f32 0.0, %v3687
    %v3689 = vpop.f32.mrf.mxu0
    %v3690 = vadd.f32 0.0, %v3689
    %3691 = vdwg.mxu0
    %v3692 = vpack.c.bf16 %v3604, %v3555
    %v3693 = vpack.c.bf16 %v3653, %v3653
    %v3694 = vpack.c.bf16 %v3606, %v3557
    %v3695 = vpack.c.bf16 %v3655, %v3655
    %v3696 = vpack.c.bf16 %v3609, %v3560
    %v3697 = vpack.c.bf16 %v3658, %v3658
    %v3698 = vpack.c.bf16 %v3611, %v3562
    %v3699 = vpack.c.bf16 %v3660, %v3660
    %v3700 = vpack.c.bf16 %v3614, %v3565
    %v3701 = vpack.c.bf16 %v3663, %v3663
    %v3702 = vpack.c.bf16 %v3616, %v3567
    %v3703 = vpack.c.bf16 %v3665, %v3665
    %v3704 = vpack.c.bf16 %v3619, %v3570
    %v3705 = vpack.c.bf16 %v3668, %v3668
    %v3706 = vpack.c.bf16 %v3621, %v3572
    %v3707 = vpack.c.bf16 %v3670, %v3670
    %v3708 = vpack.c.bf16 %v3624, %v3575
    %v3709 = vpack.c.bf16 %v3673, %v3673
    %v3710 = vpack.c.bf16 %v3626, %v3577
    %v3711 = vpack.c.bf16 %v3675, %v3675
    %v3712 = vpack.c.bf16 %v3629, %v3580
    %v3713 = vpack.c.bf16 %v3678, %v3678
    %v3714 = vpack.c.bf16 %v3631, %v3582
    %v3715 = vpack.c.bf16 %v3680, %v3680
    %v3716 = vpack.c.bf16 %v3634, %v3585
    %v3717 = vpack.c.bf16 %v3683, %v3683
    %v3718 = vpack.c.bf16 %v3636, %v3587
    %v3719 = vpack.c.bf16 %v3685, %v3685
    %v3720 = vpack.c.bf16 %v3639, %v3590
    %v3721 = vpack.c.bf16 %v3688, %v3688
    %v3722 = vpack.c.bf16 %v3641, %v3592
    %v3723 = vpack.c.bf16 %v3690, %v3690
    %s3724 = scalar_lea.vmem [#allocation11], 256
    %v3725 = vld [vmem:[%s3724] sm:$0xff]
    %v3726 = vld [vmem:[%s3724 + $0x8] sm:$0xff]
    %v3727 = vld [vmem:[%s3724 + $0x10] sm:$0xff]
    %v3728 = vld [vmem:[%s3724 + $0x18] sm:$0xff]
    %v3729 = vld [vmem:[%s3724 + $0x20] sm:$0xff]
    %v3730 = vld [vmem:[%s3724 + $0x28] sm:$0xff]
    %v3731 = vld [vmem:[%s3724 + $0x30] sm:$0xff]
    %v3732 = vld [vmem:[%s3724 + $0x38] sm:$0xff]
    %v3733 = vld [vmem:[%s3724 + $0x40] sm:$0xff]
    %v3734 = vld [vmem:[%s3724 + $0x48] sm:$0xff]
    %v3735 = vld [vmem:[%s3724 + $0x50] sm:$0xff]
    %v3736 = vld [vmem:[%s3724 + $0x58] sm:$0xff]
    %v3737 = vld [vmem:[%s3724 + $0x60] sm:$0xff]
    %v3738 = vld [vmem:[%s3724 + $0x68] sm:$0xff]
    %v3739 = vld [vmem:[%s3724 + $0x70] sm:$0xff]
    %v3740 = vld [vmem:[%s3724 + $0x78] sm:$0xff]
    %v3741 = vld [vmem:[%s3724 + $0x80] sm:$0xff]
    %v3742 = vld [vmem:[%s3724 + $0x88] sm:$0xff]
    %v3743 = vld [vmem:[%s3724 + $0x90] sm:$0xff]
    %v3744 = vld [vmem:[%s3724 + $0x98] sm:$0xff]
    %v3745 = vld [vmem:[%s3724 + $0xa0] sm:$0xff]
    %v3746 = vld [vmem:[%s3724 + $0xa8] sm:$0xff]
    %v3747 = vld [vmem:[%s3724 + $0xb0] sm:$0xff]
    %v3748 = vld [vmem:[%s3724 + $0xb8] sm:$0xff]
    %v3749 = vld [vmem:[%s3724 + $0xc0] sm:$0xff]
    %v3750 = vld [vmem:[%s3724 + $0xc8] sm:$0xff]
    %v3751 = vld [vmem:[%s3724 + $0xd0] sm:$0xff]
    %v3752 = vld [vmem:[%s3724 + $0xd8] sm:$0xff]
    %v3753 = vld [vmem:[%s3724 + $0xe0] sm:$0xff]
    %v3754 = vld [vmem:[%s3724 + $0xe8] sm:$0xff]
    %v3755 = vld [vmem:[%s3724 + $0xf0] sm:$0xff]
    %v3756 = vld [vmem:[%s3724 + $0xf8] sm:$0xff]
    %v3789 = vunpack.c.l.b16 %v3725
    %v3790 = vunpack.c.h.b16 %v3725
    %v3791 = vunpack.c.l.b16 %v3726
    %v3792 = vunpack.c.h.b16 %v3726
    %v3793 = vunpack.c.l.b16 %v3727
    %v3794 = vunpack.c.h.b16 %v3727
    %v3795 = vunpack.c.l.b16 %v3728
    %v3796 = vunpack.c.h.b16 %v3728
    %v3797 = vunpack.c.l.b16 %v3729
    %v3798 = vunpack.c.h.b16 %v3729
    %v3799 = vunpack.c.l.b16 %v3730
    %v3800 = vunpack.c.h.b16 %v3730
    %v3801 = vunpack.c.l.b16 %v3731
    %v3802 = vunpack.c.h.b16 %v3731
    %v3803 = vunpack.c.l.b16 %v3732
    %v3804 = vunpack.c.h.b16 %v3732
    %v3805 = vunpack.c.l.b16 %v3733
    %v3806 = vunpack.c.h.b16 %v3733
    %v3807 = vunpack.c.l.b16 %v3734
    %v3808 = vunpack.c.h.b16 %v3734
    %v3809 = vunpack.c.l.b16 %v3735
    %v3810 = vunpack.c.h.b16 %v3735
    %v3811 = vunpack.c.l.b16 %v3736
    %v3812 = vunpack.c.h.b16 %v3736
    %v3813 = vunpack.c.l.b16 %v3737
    %v3814 = vunpack.c.h.b16 %v3737
    %v3815 = vunpack.c.l.b16 %v3738
    %v3816 = vunpack.c.h.b16 %v3738
    %v3817 = vunpack.c.l.b16 %v3739
    %v3818 = vunpack.c.h.b16 %v3739
    %v3819 = vunpack.c.l.b16 %v3740
    %v3820 = vunpack.c.h.b16 %v3740
    %v3821 = vunpack.c.l.b16 %v3741
    %v3822 = vunpack.c.h.b16 %v3741
    %v3823 = vunpack.c.l.b16 %v3742
    %v3824 = vunpack.c.h.b16 %v3742
    %v3825 = vunpack.c.l.b16 %v3743
    %v3826 = vunpack.c.h.b16 %v3743
    %v3827 = vunpack.c.l.b16 %v3744
    %v3828 = vunpack.c.h.b16 %v3744
    %v3829 = vunpack.c.l.b16 %v3745
    %v3830 = vunpack.c.h.b16 %v3745
    %v3831 = vunpack.c.l.b16 %v3746
    %v3832 = vunpack.c.h.b16 %v3746
    %v3833 = vunpack.c.l.b16 %v3747
    %v3834 = vunpack.c.h.b16 %v3747
    %v3835 = vunpack.c.l.b16 %v3748
    %v3836 = vunpack.c.h.b16 %v3748
    %v3837 = vunpack.c.l.b16 %v3749
    %v3838 = vunpack.c.h.b16 %v3749
    %v3839 = vunpack.c.l.b16 %v3750
    %v3840 = vunpack.c.h.b16 %v3750
    %v3841 = vunpack.c.l.b16 %v3751
    %v3842 = vunpack.c.h.b16 %v3751
    %v3843 = vunpack.c.l.b16 %v3752
    %v3844 = vunpack.c.h.b16 %v3752
    %v3845 = vunpack.c.l.b16 %v3753
    %v3846 = vunpack.c.h.b16 %v3753
    %v3847 = vunpack.c.l.b16 %v3754
    %v3848 = vunpack.c.h.b16 %v3754
    %v3849 = vunpack.c.l.b16 %v3755
    %v3850 = vunpack.c.h.b16 %v3755
    %v3851 = vunpack.c.l.b16 %v3756
    %v3852 = vunpack.c.h.b16 %v3756
    %v3853 = vpack.c.b16 %v3793, %v3789
    %v3854 = vpack.c.b16 %v3794, %v3790
    %v3855 = vpack.c.b16 %v3795, %v3791
    %v3856 = vpack.c.b16 %v3796, %v3792
    %v3857 = vpack.c.b16 %v3801, %v3797
    %v3858 = vpack.c.b16 %v3802, %v3798
    %v3859 = vpack.c.b16 %v3803, %v3799
    %v3860 = vpack.c.b16 %v3804, %v3800
    %v3861 = vpack.c.b16 %v3809, %v3805
    %v3862 = vpack.c.b16 %v3810, %v3806
    %v3863 = vpack.c.b16 %v3811, %v3807
    %v3864 = vpack.c.b16 %v3812, %v3808
    %v3865 = vpack.c.b16 %v3817, %v3813
    %v3866 = vpack.c.b16 %v3818, %v3814
    %v3867 = vpack.c.b16 %v3819, %v3815
    %v3868 = vpack.c.b16 %v3820, %v3816
    %v3869 = vpack.c.b16 %v3825, %v3821
    %v3870 = vpack.c.b16 %v3826, %v3822
    %v3871 = vpack.c.b16 %v3827, %v3823
    %v3872 = vpack.c.b16 %v3828, %v3824
    %v3873 = vpack.c.b16 %v3833, %v3829
    %v3874 = vpack.c.b16 %v3834, %v3830
    %v3875 = vpack.c.b16 %v3835, %v3831
    %v3876 = vpack.c.b16 %v3836, %v3832
    %v3877 = vpack.c.b16 %v3841, %v3837
    %v3878 = vpack.c.b16 %v3842, %v3838
    %v3879 = vpack.c.b16 %v3843, %v3839
    %v3880 = vpack.c.b16 %v3844, %v3840
    %v3881 = vpack.c.b16 %v3849, %v3845
    %v3882 = vpack.c.b16 %v3850, %v3846
    %v3883 = vpack.c.b16 %v3851, %v3847
    %v3884 = vpack.c.b16 %v3852, %v3848
    %3917 = vmatpush.bf16.msra.mxu0 %v3881
    %3918 = vmatpush.bf16.msra.mxu0 %v3877
    %3919 = vmatpush.bf16.msra.mxu0 %v3873
    %3920 = vmatpush.bf16.msra.mxu0 %v3869
    %3921 = vmatpush.bf16.msra.mxu0 %v3865
    %3922 = vmatpush.bf16.msra.mxu0 %v3861
    %3923 = vmatpush.bf16.msra.mxu0 %v3857
    %3924 = vmatpush.bf16.msra.mxu0 %v3853
    %3925 = vmatmul.bf16.gmra.mxu0 %v2798
    %v3926 = vpop.f32.mrf.mxu0
    %v3927 = vadd.f32 0.0, %v3926
    %v3928 = vpop.f32.mrf.mxu0
    %v3929 = vadd.f32 0.0, %v3928
    %3930 = vmatmul.bf16.gmra.mxu0 %v2799
    %v3931 = vpop.f32.mrf.mxu0
    %v3932 = vadd.f32 0.0, %v3931
    %v3933 = vpop.f32.mrf.mxu0
    %v3934 = vadd.f32 0.0, %v3933
    %3935 = vmatmul.bf16.gmra.mxu0 %v2800
    %v3936 = vpop.f32.mrf.mxu0
    %v3937 = vadd.f32 0.0, %v3936
    %v3938 = vpop.f32.mrf.mxu0
    %v3939 = vadd.f32 0.0, %v3938
    %3940 = vmatmul.bf16.gmra.mxu0 %v2801
    %v3941 = vpop.f32.mrf.mxu0
    %v3942 = vadd.f32 0.0, %v3941
    %v3943 = vpop.f32.mrf.mxu0
    %v3944 = vadd.f32 0.0, %v3943
    %3945 = vmatmul.bf16.gmra.mxu0 %v2802
    %v3946 = vpop.f32.mrf.mxu0
    %v3947 = vadd.f32 0.0, %v3946
    %v3948 = vpop.f32.mrf.mxu0
    %v3949 = vadd.f32 0.0, %v3948
    %3950 = vmatmul.bf16.gmra.mxu0 %v2803
    %v3951 = vpop.f32.mrf.mxu0
    %v3952 = vadd.f32 0.0, %v3951
    %v3953 = vpop.f32.mrf.mxu0
    %v3954 = vadd.f32 0.0, %v3953
    %3955 = vmatmul.bf16.gmra.mxu0 %v2804
    %v3956 = vpop.f32.mrf.mxu0
    %v3957 = vadd.f32 0.0, %v3956
    %v3958 = vpop.f32.mrf.mxu0
    %v3959 = vadd.f32 0.0, %v3958
    %3960 = vmatmul.bf16.gmra.mxu0 %v2805
    %v3961 = vpop.f32.mrf.mxu0
    %v3962 = vadd.f32 0.0, %v3961
    %v3963 = vpop.f32.mrf.mxu0
    %v3964 = vadd.f32 0.0, %v3963
    %3965 = vdwg.mxu0
    %3966 = vmatpush.bf16.msra.mxu0 %v3882
    %3967 = vmatpush.bf16.msra.mxu0 %v3878
    %3968 = vmatpush.bf16.msra.mxu0 %v3874
    %3969 = vmatpush.bf16.msra.mxu0 %v3870
    %3970 = vmatpush.bf16.msra.mxu0 %v3866
    %3971 = vmatpush.bf16.msra.mxu0 %v3862
    %3972 = vmatpush.bf16.msra.mxu0 %v3858
    %3973 = vmatpush.bf16.msra.mxu0 %v3854
    %3974 = vmatmul.bf16.gmra.mxu0 %v2798
    %v3975 = vpop.f32.mrf.mxu0
    %v3976 = vadd.f32 0.0, %v3975
    %v3977 = vpop.f32.mrf.mxu0
    %v3978 = vadd.f32 0.0, %v3977
    %3979 = vmatmul.bf16.gmra.mxu0 %v2799
    %v3980 = vpop.f32.mrf.mxu0
    %v3981 = vadd.f32 0.0, %v3980
    %v3982 = vpop.f32.mrf.mxu0
    %v3983 = vadd.f32 0.0, %v3982
    %3984 = vmatmul.bf16.gmra.mxu0 %v2800
    %v3985 = vpop.f32.mrf.mxu0
    %v3986 = vadd.f32 0.0, %v3985
    %v3987 = vpop.f32.mrf.mxu0
    %v3988 = vadd.f32 0.0, %v3987
    %3989 = vmatmul.bf16.gmra.mxu0 %v2801
    %v3990 = vpop.f32.mrf.mxu0
    %v3991 = vadd.f32 0.0, %v3990
    %v3992 = vpop.f32.mrf.mxu0
    %v3993 = vadd.f32 0.0, %v3992
    %3994 = vmatmul.bf16.gmra.mxu0 %v2802
    %v3995 = vpop.f32.mrf.mxu0
    %v3996 = vadd.f32 0.0, %v3995
    %v3997 = vpop.f32.mrf.mxu0
    %v3998 = vadd.f32 0.0, %v3997
    %3999 = vmatmul.bf16.gmra.mxu0 %v2803
    %v4000 = vpop.f32.mrf.mxu0
    %v4001 = vadd.f32 0.0, %v4000
    %v4002 = vpop.f32.mrf.mxu0
    %v4003 = vadd.f32 0.0, %v4002
    %4004 = vmatmul.bf16.gmra.mxu0 %v2804
    %v4005 = vpop.f32.mrf.mxu0
    %v4006 = vadd.f32 0.0, %v4005
    %v4007 = vpop.f32.mrf.mxu0
    %v4008 = vadd.f32 0.0, %v4007
    %4009 = vmatmul.bf16.gmra.mxu0 %v2805
    %v4010 = vpop.f32.mrf.mxu0
    %v4011 = vadd.f32 0.0, %v4010
    %v4012 = vpop.f32.mrf.mxu0
    %v4013 = vadd.f32 0.0, %v4012
    %4014 = vdwg.mxu0
    %4015 = vmatpush.bf16.msra.mxu0 %v3883
    %4016 = vmatpush.bf16.msra.mxu0 %v3879
    %4017 = vmatpush.bf16.msra.mxu0 %v3875
    %4018 = vmatpush.bf16.msra.mxu0 %v3871
    %4019 = vmatpush.bf16.msra.mxu0 %v3867
    %4020 = vmatpush.bf16.msra.mxu0 %v3863
    %4021 = vmatpush.bf16.msra.mxu0 %v3859
    %4022 = vmatpush.bf16.msra.mxu0 %v3855
    %4023 = vmatmul.bf16.gmra.mxu0 %v2798
    %v4024 = vpop.f32.mrf.mxu0
    %v4025 = vadd.f32 0.0, %v4024
    %v4026 = vpop.f32.mrf.mxu0
    %v4027 = vadd.f32 0.0, %v4026
    %4028 = vmatmul.bf16.gmra.mxu0 %v2799
    %v4029 = vpop.f32.mrf.mxu0
    %v4030 = vadd.f32 0.0, %v4029
    %v4031 = vpop.f32.mrf.mxu0
    %v4032 = vadd.f32 0.0, %v4031
    %4033 = vmatmul.bf16.gmra.mxu0 %v2800
    %v4034 = vpop.f32.mrf.mxu0
    %v4035 = vadd.f32 0.0, %v4034
    %v4036 = vpop.f32.mrf.mxu0
    %v4037 = vadd.f32 0.0, %v4036
    %4038 = vmatmul.bf16.gmra.mxu0 %v2801
    %v4039 = vpop.f32.mrf.mxu0
    %v4040 = vadd.f32 0.0, %v4039
    %v4041 = vpop.f32.mrf.mxu0
    %v4042 = vadd.f32 0.0, %v4041
    %4043 = vmatmul.bf16.gmra.mxu0 %v2802
    %v4044 = vpop.f32.mrf.mxu0
    %v4045 = vadd.f32 0.0, %v4044
    %v4046 = vpop.f32.mrf.mxu0
    %v4047 = vadd.f32 0.0, %v4046
    %4048 = vmatmul.bf16.gmra.mxu0 %v2803
    %v4049 = vpop.f32.mrf.mxu0
    %v4050 = vadd.f32 0.0, %v4049
    %v4051 = vpop.f32.mrf.mxu0
    %v4052 = vadd.f32 0.0, %v4051
    %4053 = vmatmul.bf16.gmra.mxu0 %v2804
    %v4054 = vpop.f32.mrf.mxu0
    %v4055 = vadd.f32 0.0, %v4054
    %v4056 = vpop.f32.mrf.mxu0
    %v4057 = vadd.f32 0.0, %v4056
    %4058 = vmatmul.bf16.gmra.mxu0 %v2805
    %v4059 = vpop.f32.mrf.mxu0
    %v4060 = vadd.f32 0.0, %v4059
    %v4061 = vpop.f32.mrf.mxu0
    %v4062 = vadd.f32 0.0, %v4061
    %4063 = vdwg.mxu0
    %4064 = vmatpush.bf16.msra.mxu0 %v3884
    %4065 = vmatpush.bf16.msra.mxu0 %v3880
    %4066 = vmatpush.bf16.msra.mxu0 %v3876
    %4067 = vmatpush.bf16.msra.mxu0 %v3872
    %4068 = vmatpush.bf16.msra.mxu0 %v3868
    %4069 = vmatpush.bf16.msra.mxu0 %v3864
    %4070 = vmatpush.bf16.msra.mxu0 %v3860
    %4071 = vmatpush.bf16.msra.mxu0 %v3856
    %4072 = vmatmul.bf16.gmra.mxu0 %v2798
    %v4073 = vpop.f32.mrf.mxu0
    %v4074 = vadd.f32 0.0, %v4073
    %v4075 = vpop.f32.mrf.mxu0
    %v4076 = vadd.f32 0.0, %v4075
    %4077 = vmatmul.bf16.gmra.mxu0 %v2799
    %v4078 = vpop.f32.mrf.mxu0
    %v4079 = vadd.f32 0.0, %v4078
    %v4080 = vpop.f32.mrf.mxu0
    %v4081 = vadd.f32 0.0, %v4080
    %4082 = vmatmul.bf16.gmra.mxu0 %v2800
    %v4083 = vpop.f32.mrf.mxu0
    %v4084 = vadd.f32 0.0, %v4083
    %v4085 = vpop.f32.mrf.mxu0
    %v4086 = vadd.f32 0.0, %v4085
    %4087 = vmatmul.bf16.gmra.mxu0 %v2801
    %v4088 = vpop.f32.mrf.mxu0
    %v4089 = vadd.f32 0.0, %v4088
    %v4090 = vpop.f32.mrf.mxu0
    %v4091 = vadd.f32 0.0, %v4090
    %4092 = vmatmul.bf16.gmra.mxu0 %v2802
    %v4093 = vpop.f32.mrf.mxu0
    %v4094 = vadd.f32 0.0, %v4093
    %v4095 = vpop.f32.mrf.mxu0
    %v4096 = vadd.f32 0.0, %v4095
    %4097 = vmatmul.bf16.gmra.mxu0 %v2803
    %v4098 = vpop.f32.mrf.mxu0
    %v4099 = vadd.f32 0.0, %v4098
    %v4100 = vpop.f32.mrf.mxu0
    %v4101 = vadd.f32 0.0, %v4100
    %4102 = vmatmul.bf16.gmra.mxu0 %v2804
    %v4103 = vpop.f32.mrf.mxu0
    %v4104 = vadd.f32 0.0, %v4103
    %v4105 = vpop.f32.mrf.mxu0
    %v4106 = vadd.f32 0.0, %v4105
    %4107 = vmatmul.bf16.gmra.mxu0 %v2805
    %v4108 = vpop.f32.mrf.mxu0
    %v4109 = vadd.f32 0.0, %v4108
    %v4110 = vpop.f32.mrf.mxu0
    %v4111 = vadd.f32 0.0, %v4110
    %4112 = vdwg.mxu0
    %v4113 = vpack.c.bf16 %v3976, %v3927
    %v4114 = vpack.c.bf16 %v4074, %v4025
    %v4115 = vpack.c.bf16 %v3978, %v3929
    %v4116 = vpack.c.bf16 %v4076, %v4027
    %v4117 = vpack.c.bf16 %v3981, %v3932
    %v4118 = vpack.c.bf16 %v4079, %v4030
    %v4119 = vpack.c.bf16 %v3983, %v3934
    %v4120 = vpack.c.bf16 %v4081, %v4032
    %v4121 = vpack.c.bf16 %v3986, %v3937
    %v4122 = vpack.c.bf16 %v4084, %v4035
    %v4123 = vpack.c.bf16 %v3988, %v3939
    %v4124 = vpack.c.bf16 %v4086, %v4037
    %v4125 = vpack.c.bf16 %v3991, %v3942
    %v4126 = vpack.c.bf16 %v4089, %v4040
    %v4127 = vpack.c.bf16 %v3993, %v3944
    %v4128 = vpack.c.bf16 %v4091, %v4042
    %v4129 = vpack.c.bf16 %v3996, %v3947
    %v4130 = vpack.c.bf16 %v4094, %v4045
    %v4131 = vpack.c.bf16 %v3998, %v3949
    %v4132 = vpack.c.bf16 %v4096, %v4047
    %v4133 = vpack.c.bf16 %v4001, %v3952
    %v4134 = vpack.c.bf16 %v4099, %v4050
    %v4135 = vpack.c.bf16 %v4003, %v3954
    %v4136 = vpack.c.bf16 %v4101, %v4052
    %v4137 = vpack.c.bf16 %v4006, %v3957
    %v4138 = vpack.c.bf16 %v4104, %v4055
    %v4139 = vpack.c.bf16 %v4008, %v3959
    %v4140 = vpack.c.bf16 %v4106, %v4057
    %v4141 = vpack.c.bf16 %v4011, %v3962
    %v4142 = vpack.c.bf16 %v4109, %v4060
    %v4143 = vpack.c.bf16 %v4013, %v3964
    %v4144 = vpack.c.bf16 %v4111, %v4062
    %s4145 = scalar_lea.vmem [#allocation13], 192
    %v4146 = vld [vmem:[%s4145] sm:$0xff]
    %v4147 = vld [vmem:[%s4145 + $0x8] sm:$0xf]
    %v4148 = vld [vmem:[%s4145 + $0xc] sm:$0xff]
    %v4149 = vld [vmem:[%s4145 + $0x14] sm:$0xf]
    %v4150 = vld [vmem:[%s4145 + $0x18] sm:$0xff]
    %v4151 = vld [vmem:[%s4145 + $0x20] sm:$0xf]
    %v4152 = vld [vmem:[%s4145 + $0x24] sm:$0xff]
    %v4153 = vld [vmem:[%s4145 + $0x2c] sm:$0xf]
    %v4154 = vld [vmem:[%s4145 + $0x30] sm:$0xff]
    %v4155 = vld [vmem:[%s4145 + $0x38] sm:$0xf]
    %v4156 = vld [vmem:[%s4145 + $0x3c] sm:$0xff]
    %v4157 = vld [vmem:[%s4145 + $0x44] sm:$0xf]
    %v4158 = vld [vmem:[%s4145 + $0x48] sm:$0xff]
    %v4159 = vld [vmem:[%s4145 + $0x50] sm:$0xf]
    %v4160 = vld [vmem:[%s4145 + $0x54] sm:$0xff]
    %v4161 = vld [vmem:[%s4145 + $0x5c] sm:$0xf]
    %v4162 = vld [vmem:[%s4145 + $0x60] sm:$0xff]
    %v4163 = vld [vmem:[%s4145 + $0x68] sm:$0xf]
    %v4164 = vld [vmem:[%s4145 + $0x6c] sm:$0xff]
    %v4165 = vld [vmem:[%s4145 + $0x74] sm:$0xf]
    %v4166 = vld [vmem:[%s4145 + $0x78] sm:$0xff]
    %v4167 = vld [vmem:[%s4145 + $0x80] sm:$0xf]
    %v4168 = vld [vmem:[%s4145 + $0x84] sm:$0xff]
    %v4169 = vld [vmem:[%s4145 + $0x8c] sm:$0xf]
    %v4170 = vld [vmem:[%s4145 + $0x90] sm:$0xff]
    %v4171 = vld [vmem:[%s4145 + $0x98] sm:$0xf]
    %v4172 = vld [vmem:[%s4145 + $0x9c] sm:$0xff]
    %v4173 = vld [vmem:[%s4145 + $0xa4] sm:$0xf]
    %v4174 = vld [vmem:[%s4145 + $0xa8] sm:$0xff]
    %v4175 = vld [vmem:[%s4145 + $0xb0] sm:$0xf]
    %v4176 = vld [vmem:[%s4145 + $0xb4] sm:$0xff]
    %v4177 = vld [vmem:[%s4145 + $0xbc] sm:$0xf]
    %v4210 = vunpack.c.l.b16 %v4146
    %v4211 = vunpack.c.h.b16 %v4146
    %v4212 = vunpack.c.l.b16 %v4147
    %v4213 = vunpack.c.l.b16 %v4148
    %v4214 = vunpack.c.h.b16 %v4148
    %v4215 = vunpack.c.l.b16 %v4149
    %v4216 = vunpack.c.l.b16 %v4150
    %v4217 = vunpack.c.h.b16 %v4150
    %v4218 = vunpack.c.l.b16 %v4151
    %v4219 = vunpack.c.l.b16 %v4152
    %v4220 = vunpack.c.h.b16 %v4152
    %v4221 = vunpack.c.l.b16 %v4153
    %v4222 = vunpack.c.l.b16 %v4154
    %v4223 = vunpack.c.h.b16 %v4154
    %v4224 = vunpack.c.l.b16 %v4155
    %v4225 = vunpack.c.l.b16 %v4156
    %v4226 = vunpack.c.h.b16 %v4156
    %v4227 = vunpack.c.l.b16 %v4157
    %v4228 = vunpack.c.l.b16 %v4158
    %v4229 = vunpack.c.h.b16 %v4158
    %v4230 = vunpack.c.l.b16 %v4159
    %v4231 = vunpack.c.l.b16 %v4160
    %v4232 = vunpack.c.h.b16 %v4160
    %v4233 = vunpack.c.l.b16 %v4161
    %v4234 = vunpack.c.l.b16 %v4162
    %v4235 = vunpack.c.h.b16 %v4162
    %v4236 = vunpack.c.l.b16 %v4163
    %v4237 = vunpack.c.l.b16 %v4164
    %v4238 = vunpack.c.h.b16 %v4164
    %v4239 = vunpack.c.l.b16 %v4165
    %v4240 = vunpack.c.l.b16 %v4166
    %v4241 = vunpack.c.h.b16 %v4166
    %v4242 = vunpack.c.l.b16 %v4167
    %v4243 = vunpack.c.l.b16 %v4168
    %v4244 = vunpack.c.h.b16 %v4168
    %v4245 = vunpack.c.l.b16 %v4169
    %v4246 = vunpack.c.l.b16 %v4170
    %v4247 = vunpack.c.h.b16 %v4170
    %v4248 = vunpack.c.l.b16 %v4171
    %v4249 = vunpack.c.l.b16 %v4172
    %v4250 = vunpack.c.h.b16 %v4172
    %v4251 = vunpack.c.l.b16 %v4173
    %v4252 = vunpack.c.l.b16 %v4174
    %v4253 = vunpack.c.h.b16 %v4174
    %v4254 = vunpack.c.l.b16 %v4175
    %v4255 = vunpack.c.l.b16 %v4176
    %v4256 = vunpack.c.h.b16 %v4176
    %v4257 = vunpack.c.l.b16 %v4177
    %v4258 = vpack.c.b16 %v4213, %v4210
    %v4259 = vpack.c.b16 %v4214, %v4211
    %v4260 = vpack.c.b16 %v4215, %v4212
    %v4261 = vpack.c.b16 %v4219, %v4216
    %v4262 = vpack.c.b16 %v4220, %v4217
    %v4263 = vpack.c.b16 %v4221, %v4218
    %v4264 = vpack.c.b16 %v4225, %v4222
    %v4265 = vpack.c.b16 %v4226, %v4223
    %v4266 = vpack.c.b16 %v4227, %v4224
    %v4267 = vpack.c.b16 %v4231, %v4228
    %v4268 = vpack.c.b16 %v4232, %v4229
    %v4269 = vpack.c.b16 %v4233, %v4230
    %v4270 = vpack.c.b16 %v4237, %v4234
    %v4271 = vpack.c.b16 %v4238, %v4235
    %v4272 = vpack.c.b16 %v4239, %v4236
    %v4273 = vpack.c.b16 %v4243, %v4240
    %v4274 = vpack.c.b16 %v4244, %v4241
    %v4275 = vpack.c.b16 %v4245, %v4242
    %v4276 = vpack.c.b16 %v4249, %v4246
    %v4277 = vpack.c.b16 %v4250, %v4247
    %v4278 = vpack.c.b16 %v4251, %v4248
    %v4279 = vpack.c.b16 %v4255, %v4252
    %v4280 = vpack.c.b16 %v4256, %v4253
    %v4281 = vpack.c.b16 %v4257, %v4254
    %4306 = vmatpush.bf16.msra.mxu0 %v4279
    %4307 = vmatpush.bf16.msra.mxu0 %v4276
    %4308 = vmatpush.bf16.msra.mxu0 %v4273
    %4309 = vmatpush.bf16.msra.mxu0 %v4270
    %4310 = vmatpush.bf16.msra.mxu0 %v4267
    %4311 = vmatpush.bf16.msra.mxu0 %v4264
    %4312 = vmatpush.bf16.msra.mxu0 %v4261
    %4313 = vmatpush.bf16.msra.mxu0 %v4258
    %4314 = vmatmul.bf16.gmra.mxu0 %v3376
    %v4315 = vpop.f32.mrf.mxu0
    %v4316 = vadd.f32 0.0, %v4315
    %v4317 = vpop.f32.mrf.mxu0
    %v4318 = vadd.f32 0.0, %v4317
    %4319 = vmatmul.bf16.gmra.mxu0 %v3377
    %v4320 = vpop.f32.mrf.mxu0
    %v4321 = vadd.f32 0.0, %v4320
    %v4322 = vpop.f32.mrf.mxu0
    %v4323 = vadd.f32 0.0, %v4322
    %4324 = vmatmul.bf16.gmra.mxu0 %v3378
    %v4325 = vpop.f32.mrf.mxu0
    %v4326 = vadd.f32 0.0, %v4325
    %v4327 = vpop.f32.mrf.mxu0
    %v4328 = vadd.f32 0.0, %v4327
    %4329 = vmatmul.bf16.gmra.mxu0 %v3379
    %v4330 = vpop.f32.mrf.mxu0
    %v4331 = vadd.f32 0.0, %v4330
    %v4332 = vpop.f32.mrf.mxu0
    %v4333 = vadd.f32 0.0, %v4332
    %4334 = vmatmul.bf16.gmra.mxu0 %v3380
    %v4335 = vpop.f32.mrf.mxu0
    %v4336 = vadd.f32 0.0, %v4335
    %v4337 = vpop.f32.mrf.mxu0
    %v4338 = vadd.f32 0.0, %v4337
    %4339 = vmatmul.bf16.gmra.mxu0 %v3381
    %v4340 = vpop.f32.mrf.mxu0
    %v4341 = vadd.f32 0.0, %v4340
    %v4342 = vpop.f32.mrf.mxu0
    %v4343 = vadd.f32 0.0, %v4342
    %4344 = vmatmul.bf16.gmra.mxu0 %v3382
    %v4345 = vpop.f32.mrf.mxu0
    %v4346 = vadd.f32 0.0, %v4345
    %v4347 = vpop.f32.mrf.mxu0
    %v4348 = vadd.f32 0.0, %v4347
    %4349 = vmatmul.bf16.gmra.mxu0 %v3383
    %v4350 = vpop.f32.mrf.mxu0
    %v4351 = vadd.f32 0.0, %v4350
    %v4352 = vpop.f32.mrf.mxu0
    %v4353 = vadd.f32 0.0, %v4352
    %4354 = vdwg.mxu0
    %4355 = vmatpush.bf16.msra.mxu0 %v4280
    %4356 = vmatpush.bf16.msra.mxu0 %v4277
    %4357 = vmatpush.bf16.msra.mxu0 %v4274
    %4358 = vmatpush.bf16.msra.mxu0 %v4271
    %4359 = vmatpush.bf16.msra.mxu0 %v4268
    %4360 = vmatpush.bf16.msra.mxu0 %v4265
    %4361 = vmatpush.bf16.msra.mxu0 %v4262
    %4362 = vmatpush.bf16.msra.mxu0 %v4259
    %4363 = vmatmul.bf16.gmra.mxu0 %v3376
    %v4364 = vpop.f32.mrf.mxu0
    %v4365 = vadd.f32 0.0, %v4364
    %v4366 = vpop.f32.mrf.mxu0
    %v4367 = vadd.f32 0.0, %v4366
    %4368 = vmatmul.bf16.gmra.mxu0 %v3377
    %v4369 = vpop.f32.mrf.mxu0
    %v4370 = vadd.f32 0.0, %v4369
    %v4371 = vpop.f32.mrf.mxu0
    %v4372 = vadd.f32 0.0, %v4371
    %4373 = vmatmul.bf16.gmra.mxu0 %v3378
    %v4374 = vpop.f32.mrf.mxu0
    %v4375 = vadd.f32 0.0, %v4374
    %v4376 = vpop.f32.mrf.mxu0
    %v4377 = vadd.f32 0.0, %v4376
    %4378 = vmatmul.bf16.gmra.mxu0 %v3379
    %v4379 = vpop.f32.mrf.mxu0
    %v4380 = vadd.f32 0.0, %v4379
    %v4381 = vpop.f32.mrf.mxu0
    %v4382 = vadd.f32 0.0, %v4381
    %4383 = vmatmul.bf16.gmra.mxu0 %v3380
    %v4384 = vpop.f32.mrf.mxu0
    %v4385 = vadd.f32 0.0, %v4384
    %v4386 = vpop.f32.mrf.mxu0
    %v4387 = vadd.f32 0.0, %v4386
    %4388 = vmatmul.bf16.gmra.mxu0 %v3381
    %v4389 = vpop.f32.mrf.mxu0
    %v4390 = vadd.f32 0.0, %v4389
    %v4391 = vpop.f32.mrf.mxu0
    %v4392 = vadd.f32 0.0, %v4391
    %4393 = vmatmul.bf16.gmra.mxu0 %v3382
    %v4394 = vpop.f32.mrf.mxu0
    %v4395 = vadd.f32 0.0, %v4394
    %v4396 = vpop.f32.mrf.mxu0
    %v4397 = vadd.f32 0.0, %v4396
    %4398 = vmatmul.bf16.gmra.mxu0 %v3383
    %v4399 = vpop.f32.mrf.mxu0
    %v4400 = vadd.f32 0.0, %v4399
    %v4401 = vpop.f32.mrf.mxu0
    %v4402 = vadd.f32 0.0, %v4401
    %4403 = vdwg.mxu0
    %4404 = vmatpush.bf16.msra.mxu0 %v4281
    %4405 = vmatpush.bf16.msra.mxu0 %v4278
    %4406 = vmatpush.bf16.msra.mxu0 %v4275
    %4407 = vmatpush.bf16.msra.mxu0 %v4272
    %4408 = vmatpush.bf16.msra.mxu0 %v4269
    %4409 = vmatpush.bf16.msra.mxu0 %v4266
    %4410 = vmatpush.bf16.msra.mxu0 %v4263
    %4411 = vmatpush.bf16.msra.mxu0 %v4260
    %4412 = vmatmul.bf16.gmra.mxu0 %v3376
    %v4413 = vpop.f32.mrf.mxu0
    %v4414 = vadd.f32 0.0, %v4413
    %v4415 = vpop.f32.mrf.mxu0
    %v4416 = vadd.f32 0.0, %v4415
    %4417 = vmatmul.bf16.gmra.mxu0 %v3377
    %v4418 = vpop.f32.mrf.mxu0
    %v4419 = vadd.f32 0.0, %v4418
    %v4420 = vpop.f32.mrf.mxu0
    %v4421 = vadd.f32 0.0, %v4420
    %4422 = vmatmul.bf16.gmra.mxu0 %v3378
    %v4423 = vpop.f32.mrf.mxu0
    %v4424 = vadd.f32 0.0, %v4423
    %v4425 = vpop.f32.mrf.mxu0
    %v4426 = vadd.f32 0.0, %v4425
    %4427 = vmatmul.bf16.gmra.mxu0 %v3379
    %v4428 = vpop.f32.mrf.mxu0
    %v4429 = vadd.f32 0.0, %v4428
    %v4430 = vpop.f32.mrf.mxu0
    %v4431 = vadd.f32 0.0, %v4430
    %4432 = vmatmul.bf16.gmra.mxu0 %v3380
    %v4433 = vpop.f32.mrf.mxu0
    %v4434 = vadd.f32 0.0, %v4433
    %v4435 = vpop.f32.mrf.mxu0
    %v4436 = vadd.f32 0.0, %v4435
    %4437 = vmatmul.bf16.gmra.mxu0 %v3381
    %v4438 = vpop.f32.mrf.mxu0
    %v4439 = vadd.f32 0.0, %v4438
    %v4440 = vpop.f32.mrf.mxu0
    %v4441 = vadd.f32 0.0, %v4440
    %4442 = vmatmul.bf16.gmra.mxu0 %v3382
    %v4443 = vpop.f32.mrf.mxu0
    %v4444 = vadd.f32 0.0, %v4443
    %v4445 = vpop.f32.mrf.mxu0
    %v4446 = vadd.f32 0.0, %v4445
    %4447 = vmatmul.bf16.gmra.mxu0 %v3383
    %v4448 = vpop.f32.mrf.mxu0
    %v4449 = vadd.f32 0.0, %v4448
    %v4450 = vpop.f32.mrf.mxu0
    %v4451 = vadd.f32 0.0, %v4450
    %4452 = vdwg.mxu0
    %v4453 = vpack.c.bf16 %v4365, %v4316
    %v4454 = vpack.c.bf16 %v4414, %v4414
    %v4455 = vpack.c.bf16 %v4367, %v4318
    %v4456 = vpack.c.bf16 %v4416, %v4416
    %v4457 = vpack.c.bf16 %v4370, %v4321
    %v4458 = vpack.c.bf16 %v4419, %v4419
    %v4459 = vpack.c.bf16 %v4372, %v4323
    %v4460 = vpack.c.bf16 %v4421, %v4421
    %v4461 = vpack.c.bf16 %v4375, %v4326
    %v4462 = vpack.c.bf16 %v4424, %v4424
    %v4463 = vpack.c.bf16 %v4377, %v4328
    %v4464 = vpack.c.bf16 %v4426, %v4426
    %v4465 = vpack.c.bf16 %v4380, %v4331
    %v4466 = vpack.c.bf16 %v4429, %v4429
    %v4467 = vpack.c.bf16 %v4382, %v4333
    %v4468 = vpack.c.bf16 %v4431, %v4431
    %v4469 = vpack.c.bf16 %v4385, %v4336
    %v4470 = vpack.c.bf16 %v4434, %v4434
    %v4471 = vpack.c.bf16 %v4387, %v4338
    %v4472 = vpack.c.bf16 %v4436, %v4436
    %v4473 = vpack.c.bf16 %v4390, %v4341
    %v4474 = vpack.c.bf16 %v4439, %v4439
    %v4475 = vpack.c.bf16 %v4392, %v4343
    %v4476 = vpack.c.bf16 %v4441, %v4441
    %v4477 = vpack.c.bf16 %v4395, %v4346
    %v4478 = vpack.c.bf16 %v4444, %v4444
    %v4479 = vpack.c.bf16 %v4397, %v4348
    %v4480 = vpack.c.bf16 %v4446, %v4446
    %v4481 = vpack.c.bf16 %v4400, %v4351
    %v4482 = vpack.c.bf16 %v4449, %v4449
    %v4483 = vpack.c.bf16 %v4402, %v4353
    %v4484 = vpack.c.bf16 %v4451, %v4451
    %v4501 = vunpack.c.l.b16 %v4113
    %v4502 = vunpack.c.l.b16 %v4115
    %v4503 = vunpack.c.l.b16 %v4117
    %v4504 = vunpack.c.l.b16 %v4119
    %v4505 = vunpack.c.l.b16 %v4121
    %v4506 = vunpack.c.l.b16 %v4123
    %v4507 = vunpack.c.l.b16 %v4125
    %v4508 = vunpack.c.l.b16 %v4127
    %v4509 = vunpack.c.l.b16 %v4129
    %v4510 = vunpack.c.l.b16 %v4131
    %v4511 = vunpack.c.l.b16 %v4133
    %v4512 = vunpack.c.l.b16 %v4135
    %v4513 = vunpack.c.l.b16 %v4137
    %v4514 = vunpack.c.l.b16 %v4139
    %v4515 = vunpack.c.l.b16 %v4141
    %v4516 = vunpack.c.l.b16 %v4143
    %v4517 = vpack.c.b16 %v4502, %v4501
    %v4518 = vpack.c.b16 %v4504, %v4503
    %v4519 = vpack.c.b16 %v4506, %v4505
    %v4520 = vpack.c.b16 %v4508, %v4507
    %v4521 = vpack.c.b16 %v4510, %v4509
    %v4522 = vpack.c.b16 %v4512, %v4511
    %v4523 = vpack.c.b16 %v4514, %v4513
    %v4524 = vpack.c.b16 %v4516, %v4515
    %v4549 = vunpack.c.l.b16 %v4453
    %v4550 = vunpack.c.l.b16 %v4455
    %v4551 = vunpack.c.l.b16 %v4457
    %v4552 = vunpack.c.l.b16 %v4459
    %v4553 = vunpack.c.l.b16 %v4461
    %v4554 = vunpack.c.l.b16 %v4463
    %v4555 = vunpack.c.l.b16 %v4465
    %v4556 = vunpack.c.l.b16 %v4467
    %v4557 = vunpack.c.l.b16 %v4469
    %v4558 = vunpack.c.l.b16 %v4471
    %v4559 = vunpack.c.l.b16 %v4473
    %v4560 = vunpack.c.l.b16 %v4475
    %v4561 = vunpack.c.l.b16 %v4477
    %v4562 = vunpack.c.l.b16 %v4479
    %v4563 = vunpack.c.l.b16 %v4481
    %v4564 = vunpack.c.l.b16 %v4483
    %v4565 = vpack.c.b16 %v4550, %v4549
    %v4566 = vpack.c.b16 %v4552, %v4551
    %v4567 = vpack.c.b16 %v4554, %v4553
    %v4568 = vpack.c.b16 %v4556, %v4555
    %v4569 = vpack.c.b16 %v4558, %v4557
    %v4570 = vpack.c.b16 %v4560, %v4559
    %v4571 = vpack.c.b16 %v4562, %v4561
    %v4572 = vpack.c.b16 %v4564, %v4563
    %v4597 = vunpack.c.l.b16 %v3693
    %v4598 = vunpack.c.l.b16 %v3695
    %v4599 = vunpack.c.l.b16 %v3697
    %v4600 = vunpack.c.l.b16 %v3699
    %v4601 = vunpack.c.l.b16 %v3701
    %v4602 = vunpack.c.l.b16 %v3703
    %v4603 = vunpack.c.l.b16 %v3705
    %v4604 = vunpack.c.l.b16 %v3707
    %v4605 = vunpack.c.l.b16 %v3709
    %v4606 = vunpack.c.l.b16 %v3711
    %v4607 = vunpack.c.l.b16 %v3713
    %v4608 = vunpack.c.l.b16 %v3715
    %v4609 = vunpack.c.l.b16 %v3717
    %v4610 = vunpack.c.l.b16 %v3719
    %v4611 = vunpack.c.l.b16 %v3721
    %v4612 = vunpack.c.l.b16 %v3723
    %v4613 = vpack.c.b16 %v4598, %v4597
    %v4614 = vpack.c.b16 %v4600, %v4599
    %v4615 = vpack.c.b16 %v4602, %v4601
    %v4616 = vpack.c.b16 %v4604, %v4603
    %v4617 = vpack.c.b16 %v4606, %v4605
    %v4618 = vpack.c.b16 %v4608, %v4607
    %v4619 = vpack.c.b16 %v4610, %v4609
    %v4620 = vpack.c.b16 %v4612, %v4611
    %s4629 = scalar_lea.vmem [#allocation14], 192
    %v4630 = vld [vmem:[%s4629] sm:$0xf]
    %v4631 = vld [vmem:[%s4629 + $0x4] sm:$0xf]
    %v4632 = vld [vmem:[%s4629 + $0x8] sm:$0xf]
    %v4633 = vld [vmem:[%s4629 + $0xc] sm:$0xf]
    %v4634 = vld [vmem:[%s4629 + $0x10] sm:$0xf]
    %v4635 = vld [vmem:[%s4629 + $0x14] sm:$0xf]
    %v4636 = vld [vmem:[%s4629 + $0x18] sm:$0xf]
    %v4637 = vld [vmem:[%s4629 + $0x1c] sm:$0xf]
    %v4638 = vld [vmem:[%s4629 + $0x20] sm:$0xf]
    %v4639 = vld [vmem:[%s4629 + $0x24] sm:$0xf]
    %v4640 = vld [vmem:[%s4629 + $0x28] sm:$0xf]
    %v4641 = vld [vmem:[%s4629 + $0x2c] sm:$0xf]
    %v4642 = vld [vmem:[%s4629 + $0x30] sm:$0xf]
    %v4643 = vld [vmem:[%s4629 + $0x34] sm:$0xf]
    %v4644 = vld [vmem:[%s4629 + $0x38] sm:$0xf]
    %v4645 = vld [vmem:[%s4629 + $0x3c] sm:$0xf]
    %v4662 = vunpack.c.l.b16 %v4630
    %v4663 = vunpack.c.l.b16 %v4631
    %v4664 = vunpack.c.l.b16 %v4632
    %v4665 = vunpack.c.l.b16 %v4633
    %v4666 = vunpack.c.l.b16 %v4634
    %v4667 = vunpack.c.l.b16 %v4635
    %v4668 = vunpack.c.l.b16 %v4636
    %v4669 = vunpack.c.l.b16 %v4637
    %v4670 = vunpack.c.l.b16 %v4638
    %v4671 = vunpack.c.l.b16 %v4639
    %v4672 = vunpack.c.l.b16 %v4640
    %v4673 = vunpack.c.l.b16 %v4641
    %v4674 = vunpack.c.l.b16 %v4642
    %v4675 = vunpack.c.l.b16 %v4643
    %v4676 = vunpack.c.l.b16 %v4644
    %v4677 = vunpack.c.l.b16 %v4645
    %v4678 = vpack.c.b16 %v4663, %v4662
    %v4679 = vpack.c.b16 %v4665, %v4664
    %v4680 = vpack.c.b16 %v4667, %v4666
    %v4681 = vpack.c.b16 %v4669, %v4668
    %v4682 = vpack.c.b16 %v4671, %v4670
    %v4683 = vpack.c.b16 %v4673, %v4672
    %v4684 = vpack.c.b16 %v4675, %v4674
    %v4685 = vpack.c.b16 %v4677, %v4676
    %4694 = vmatpush.bf16.msra.mxu0 %v4685
    %4695 = vmatpush.bf16.msra.mxu0 %v4684
    %4696 = vmatpush.bf16.msra.mxu0 %v4683
    %4697 = vmatpush.bf16.msra.mxu0 %v4682
    %4698 = vmatpush.bf16.msra.mxu0 %v4681
    %4699 = vmatpush.bf16.msra.mxu0 %v4680
    %4700 = vmatpush.bf16.msra.mxu0 %v4679
    %4701 = vmatpush.bf16.msra.mxu0 %v4678
    %4702 = vmatmul.bf16.gmra.mxu0 %v2091
    %v4703 = vpop.f32.mrf.mxu0
    %v4704 = vadd.f32 0.0, %v4703
    %v4705 = vpop.f32.mrf.mxu0
    %v4706 = vadd.f32 0.0, %v4705
    %4707 = vmatmul.bf16.gmra.mxu0 %v2092
    %v4708 = vpop.f32.mrf.mxu0
    %v4709 = vadd.f32 0.0, %v4708
    %v4710 = vpop.f32.mrf.mxu0
    %v4711 = vadd.f32 0.0, %v4710
    %4712 = vmatmul.bf16.gmra.mxu0 %v2093
    %v4713 = vpop.f32.mrf.mxu0
    %v4714 = vadd.f32 0.0, %v4713
    %v4715 = vpop.f32.mrf.mxu0
    %v4716 = vadd.f32 0.0, %v4715
    %4717 = vmatmul.bf16.gmra.mxu0 %v2094
    %v4718 = vpop.f32.mrf.mxu0
    %v4719 = vadd.f32 0.0, %v4718
    %v4720 = vpop.f32.mrf.mxu0
    %v4721 = vadd.f32 0.0, %v4720
    %4722 = vmatmul.bf16.gmra.mxu0 %v2095
    %v4723 = vpop.f32.mrf.mxu0
    %v4724 = vadd.f32 0.0, %v4723
    %v4725 = vpop.f32.mrf.mxu0
    %v4726 = vadd.f32 0.0, %v4725
    %4727 = vmatmul.bf16.gmra.mxu0 %v2096
    %v4728 = vpop.f32.mrf.mxu0
    %v4729 = vadd.f32 0.0, %v4728
    %v4730 = vpop.f32.mrf.mxu0
    %v4731 = vadd.f32 0.0, %v4730
    %4732 = vmatmul.bf16.gmra.mxu0 %v2097
    %v4733 = vpop.f32.mrf.mxu0
    %v4734 = vadd.f32 0.0, %v4733
    %v4735 = vpop.f32.mrf.mxu0
    %v4736 = vadd.f32 0.0, %v4735
    %4737 = vmatmul.bf16.gmra.mxu0 %v2098
    %v4738 = vpop.f32.mrf.mxu0
    %v4739 = vadd.f32 0.0, %v4738
    %v4740 = vpop.f32.mrf.mxu0
    %v4741 = vadd.f32 0.0, %v4740
    %4742 = vdwg.mxu0
    %4743 = vmatpush.bf16.msra.mxu0 %v4524
    %4744 = vmatpush.bf16.msra.mxu0 %v4523
    %4745 = vmatpush.bf16.msra.mxu0 %v4522
    %4746 = vmatpush.bf16.msra.mxu0 %v4521
    %4747 = vmatpush.bf16.msra.mxu0 %v4520
    %4748 = vmatpush.bf16.msra.mxu0 %v4519
    %4749 = vmatpush.bf16.msra.mxu0 %v4518
    %4750 = vmatpush.bf16.msra.mxu0 %v4517
    %4751 = vmatmul.bf16.gmra.mxu0 %v1860
    %v4752 = vpop.f32.mrf.mxu0
    %v4753 = vadd.f32 %v4704, %v4752
    %v4754 = vpop.f32.mrf.mxu0
    %v4755 = vadd.f32 %v4706, %v4754
    %4756 = vmatmul.bf16.gmra.mxu0 %v1863
    %v4757 = vpop.f32.mrf.mxu0
    %v4758 = vadd.f32 %v4709, %v4757
    %v4759 = vpop.f32.mrf.mxu0
    %v4760 = vadd.f32 %v4711, %v4759
    %4761 = vmatmul.bf16.gmra.mxu0 %v1866
    %v4762 = vpop.f32.mrf.mxu0
    %v4763 = vadd.f32 %v4714, %v4762
    %v4764 = vpop.f32.mrf.mxu0
    %v4765 = vadd.f32 %v4716, %v4764
    %4766 = vmatmul.bf16.gmra.mxu0 %v1869
    %v4767 = vpop.f32.mrf.mxu0
    %v4768 = vadd.f32 %v4719, %v4767
    %v4769 = vpop.f32.mrf.mxu0
    %v4770 = vadd.f32 %v4721, %v4769
    %4771 = vmatmul.bf16.gmra.mxu0 %v1872
    %v4772 = vpop.f32.mrf.mxu0
    %v4773 = vadd.f32 %v4724, %v4772
    %v4774 = vpop.f32.mrf.mxu0
    %v4775 = vadd.f32 %v4726, %v4774
    %4776 = vmatmul.bf16.gmra.mxu0 %v1875
    %v4777 = vpop.f32.mrf.mxu0
    %v4778 = vadd.f32 %v4729, %v4777
    %v4779 = vpop.f32.mrf.mxu0
    %v4780 = vadd.f32 %v4731, %v4779
    %4781 = vmatmul.bf16.gmra.mxu0 %v1878
    %v4782 = vpop.f32.mrf.mxu0
    %v4783 = vadd.f32 %v4734, %v4782
    %v4784 = vpop.f32.mrf.mxu0
    %v4785 = vadd.f32 %v4736, %v4784
    %4786 = vmatmul.bf16.gmra.mxu0 %v1881
    %v4787 = vpop.f32.mrf.mxu0
    %v4788 = vadd.f32 %v4739, %v4787
    %v4789 = vpop.f32.mrf.mxu0
    %v4790 = vadd.f32 %v4741, %v4789
    %4791 = vdwg.mxu0
    %4792 = vmatpush.bf16.msra.mxu0 %v4572
    %4793 = vmatpush.bf16.msra.mxu0 %v4571
    %4794 = vmatpush.bf16.msra.mxu0 %v4570
    %4795 = vmatpush.bf16.msra.mxu0 %v4569
    %4796 = vmatpush.bf16.msra.mxu0 %v4568
    %4797 = vmatpush.bf16.msra.mxu0 %v4567
    %4798 = vmatpush.bf16.msra.mxu0 %v4566
    %4799 = vmatpush.bf16.msra.mxu0 %v4565
    %4800 = vmatmul.bf16.gmra.mxu0 %v1861
    %v4801 = vpop.f32.mrf.mxu0
    %v4802 = vadd.f32 %v4753, %v4801
    %v4803 = vpop.f32.mrf.mxu0
    %v4804 = vadd.f32 %v4755, %v4803
    %4805 = vmatmul.bf16.gmra.mxu0 %v1864
    %v4806 = vpop.f32.mrf.mxu0
    %v4807 = vadd.f32 %v4758, %v4806
    %v4808 = vpop.f32.mrf.mxu0
    %v4809 = vadd.f32 %v4760, %v4808
    %4810 = vmatmul.bf16.gmra.mxu0 %v1867
    %v4811 = vpop.f32.mrf.mxu0
    %v4812 = vadd.f32 %v4763, %v4811
    %v4813 = vpop.f32.mrf.mxu0
    %v4814 = vadd.f32 %v4765, %v4813
    %4815 = vmatmul.bf16.gmra.mxu0 %v1870
    %v4816 = vpop.f32.mrf.mxu0
    %v4817 = vadd.f32 %v4768, %v4816
    %v4818 = vpop.f32.mrf.mxu0
    %v4819 = vadd.f32 %v4770, %v4818
    %4820 = vmatmul.bf16.gmra.mxu0 %v1873
    %v4821 = vpop.f32.mrf.mxu0
    %v4822 = vadd.f32 %v4773, %v4821
    %v4823 = vpop.f32.mrf.mxu0
    %v4824 = vadd.f32 %v4775, %v4823
    %4825 = vmatmul.bf16.gmra.mxu0 %v1876
    %v4826 = vpop.f32.mrf.mxu0
    %v4827 = vadd.f32 %v4778, %v4826
    %v4828 = vpop.f32.mrf.mxu0
    %v4829 = vadd.f32 %v4780, %v4828
    %4830 = vmatmul.bf16.gmra.mxu0 %v1879
    %v4831 = vpop.f32.mrf.mxu0
    %v4832 = vadd.f32 %v4783, %v4831
    %v4833 = vpop.f32.mrf.mxu0
    %v4834 = vadd.f32 %v4785, %v4833
    %4835 = vmatmul.bf16.gmra.mxu0 %v1882
    %v4836 = vpop.f32.mrf.mxu0
    %v4837 = vadd.f32 %v4788, %v4836
    %v4838 = vpop.f32.mrf.mxu0
    %v4839 = vadd.f32 %v4790, %v4838
    %4840 = vdwg.mxu0
    %4841 = vmatpush.bf16.msra.mxu0 %v4620
    %4842 = vmatpush.bf16.msra.mxu0 %v4619
    %4843 = vmatpush.bf16.msra.mxu0 %v4618
    %4844 = vmatpush.bf16.msra.mxu0 %v4617
    %4845 = vmatpush.bf16.msra.mxu0 %v4616
    %4846 = vmatpush.bf16.msra.mxu0 %v4615
    %4847 = vmatpush.bf16.msra.mxu0 %v4614
    %4848 = vmatpush.bf16.msra.mxu0 %v4613
    %4849 = vmatmul.bf16.gmra.mxu0 %v1862
    %v4850 = vpop.f32.mrf.mxu0
    %v4851 = vadd.f32 %v4802, %v4850
    %v4852 = vpop.f32.mrf.mxu0
    %v4853 = vadd.f32 %v4804, %v4852
    %4854 = vmatmul.bf16.gmra.mxu0 %v1865
    %v4855 = vpop.f32.mrf.mxu0
    %v4856 = vadd.f32 %v4807, %v4855
    %v4857 = vpop.f32.mrf.mxu0
    %v4858 = vadd.f32 %v4809, %v4857
    %4859 = vmatmul.bf16.gmra.mxu0 %v1868
    %v4860 = vpop.f32.mrf.mxu0
    %v4861 = vadd.f32 %v4812, %v4860
    %v4862 = vpop.f32.mrf.mxu0
    %v4863 = vadd.f32 %v4814, %v4862
    %4864 = vmatmul.bf16.gmra.mxu0 %v1871
    %v4865 = vpop.f32.mrf.mxu0
    %v4866 = vadd.f32 %v4817, %v4865
    %v4867 = vpop.f32.mrf.mxu0
    %v4868 = vadd.f32 %v4819, %v4867
    %4869 = vmatmul.bf16.gmra.mxu0 %v1874
    %v4870 = vpop.f32.mrf.mxu0
    %v4871 = vadd.f32 %v4822, %v4870
    %v4872 = vpop.f32.mrf.mxu0
    %v4873 = vadd.f32 %v4824, %v4872
    %4874 = vmatmul.bf16.gmra.mxu0 %v1877
    %v4875 = vpop.f32.mrf.mxu0
    %v4876 = vadd.f32 %v4827, %v4875
    %v4877 = vpop.f32.mrf.mxu0
    %v4878 = vadd.f32 %v4829, %v4877
    %4879 = vmatmul.bf16.gmra.mxu0 %v1880
    %v4880 = vpop.f32.mrf.mxu0
    %v4881 = vadd.f32 %v4832, %v4880
    %v4882 = vpop.f32.mrf.mxu0
    %v4883 = vadd.f32 %v4834, %v4882
    %4884 = vmatmul.bf16.gmra.mxu0 %v1883
    %v4885 = vpop.f32.mrf.mxu0
    %v4886 = vadd.f32 %v4837, %v4885
    %v4887 = vpop.f32.mrf.mxu0
    %v4888 = vadd.f32 %v4839, %v4887
    %4889 = vdwg.mxu0
    %s4890 = scalar_lea.vmem [#allocation16], 3
    %v4891 = vld [vmem:[%s4890] sm:$0x1]
    %v4893 = vperm.slane %v4891, 0
    %v4895 = vadd.f32 %v4851, %v4893
    %v4896 = vadd.f32 %v4853, %v4893
    %v4897 = vadd.f32 %v4856, %v4893
    %v4898 = vadd.f32 %v4858, %v4893
    %v4899 = vadd.f32 %v4861, %v4893
    %v4900 = vadd.f32 %v4863, %v4893
    %v4901 = vadd.f32 %v4866, %v4893
    %v4902 = vadd.f32 %v4868, %v4893
    %v4903 = vadd.f32 %v4871, %v4893
    %v4904 = vadd.f32 %v4873, %v4893
    %v4905 = vadd.f32 %v4876, %v4893
    %v4906 = vadd.f32 %v4878, %v4893
    %v4907 = vadd.f32 %v4881, %v4893
    %v4908 = vadd.f32 %v4883, %v4893
    %v4909 = vadd.f32 %v4886, %v4893
    %v4910 = vadd.f32 %v4888, %v4893
    %v4911 = vmax.f32 %v4895, 0.0
    %v4912 = vmax.f32 %v4896, 0.0
    %v4913 = vmax.f32 %v4897, 0.0
    %v4914 = vmax.f32 %v4898, 0.0
    %v4915 = vmax.f32 %v4899, 0.0
    %v4916 = vmax.f32 %v4900, 0.0
    %v4917 = vmax.f32 %v4901, 0.0
    %v4918 = vmax.f32 %v4902, 0.0
    %v4919 = vmax.f32 %v4903, 0.0
    %v4920 = vmax.f32 %v4904, 0.0
    %v4921 = vmax.f32 %v4905, 0.0
    %v4922 = vmax.f32 %v4906, 0.0
    %v4923 = vmax.f32 %v4907, 0.0
    %v4924 = vmax.f32 %v4908, 0.0
    %v4925 = vmax.f32 %v4909, 0.0
    %v4926 = vmax.f32 %v4910, 0.0
    %v4927 = vpack.c.bf16 %v4912, %v4911
    %v4928 = vpack.c.bf16 %v4914, %v4913
    %v4929 = vpack.c.bf16 %v4916, %v4915
    %v4930 = vpack.c.bf16 %v4918, %v4917
    %v4931 = vpack.c.bf16 %v4920, %v4919
    %v4932 = vpack.c.bf16 %v4922, %v4921
    %v4933 = vpack.c.bf16 %v4924, %v4923
    %v4934 = vpack.c.bf16 %v4926, %v4925
    %v4951 = vunpack.c.l.b16 %v3692
    %v4952 = vunpack.c.l.b16 %v3694
    %v4953 = vunpack.c.l.b16 %v3696
    %v4954 = vunpack.c.l.b16 %v3698
    %v4955 = vunpack.c.l.b16 %v3700
    %v4956 = vunpack.c.l.b16 %v3702
    %v4957 = vunpack.c.l.b16 %v3704
    %v4958 = vunpack.c.l.b16 %v3706
    %v4959 = vunpack.c.l.b16 %v3708
    %v4960 = vunpack.c.l.b16 %v3710
    %v4961 = vunpack.c.l.b16 %v3712
    %v4962 = vunpack.c.l.b16 %v3714
    %v4963 = vunpack.c.l.b16 %v3716
    %v4964 = vunpack.c.l.b16 %v3718
    %v4965 = vunpack.c.l.b16 %v3720
    %v4966 = vunpack.c.l.b16 %v3722
    %v4967 = vpack.c.b16 %v4952, %v4951
    %v4968 = vpack.c.b16 %v4954, %v4953
    %v4969 = vpack.c.b16 %v4956, %v4955
    %v4970 = vpack.c.b16 %v4958, %v4957
    %v4971 = vpack.c.b16 %v4960, %v4959
    %v4972 = vpack.c.b16 %v4962, %v4961
    %v4973 = vpack.c.b16 %v4964, %v4963
    %v4974 = vpack.c.b16 %v4966, %v4965
    %v4983 = vunpack.c.h.b16 %v4453
    %v4984 = vunpack.c.h.b16 %v4455
    %v4985 = vunpack.c.h.b16 %v4457
    %v4986 = vunpack.c.h.b16 %v4459
    %v4987 = vunpack.c.h.b16 %v4461
    %v4988 = vunpack.c.h.b16 %v4463
    %v4989 = vunpack.c.h.b16 %v4465
    %v4990 = vunpack.c.h.b16 %v4467
    %v4991 = vunpack.c.h.b16 %v4469
    %v4992 = vunpack.c.h.b16 %v4471
    %v4993 = vunpack.c.h.b16 %v4473
    %v4994 = vunpack.c.h.b16 %v4475
    %v4995 = vunpack.c.h.b16 %v4477
    %v4996 = vunpack.c.h.b16 %v4479
    %v4997 = vunpack.c.h.b16 %v4481
    %v4998 = vunpack.c.h.b16 %v4483
    %v4999 = vpack.c.b16 %v4984, %v4983
    %v5000 = vpack.c.b16 %v4986, %v4985
    %v5001 = vpack.c.b16 %v4988, %v4987
    %v5002 = vpack.c.b16 %v4990, %v4989
    %v5003 = vpack.c.b16 %v4992, %v4991
    %v5004 = vpack.c.b16 %v4994, %v4993
    %v5005 = vpack.c.b16 %v4996, %v4995
    %v5006 = vpack.c.b16 %v4998, %v4997
    %v5031 = vunpack.c.l.b16 %v4114
    %v5032 = vunpack.c.l.b16 %v4116
    %v5033 = vunpack.c.l.b16 %v4118
    %v5034 = vunpack.c.l.b16 %v4120
    %v5035 = vunpack.c.l.b16 %v4122
    %v5036 = vunpack.c.l.b16 %v4124
    %v5037 = vunpack.c.l.b16 %v4126
    %v5038 = vunpack.c.l.b16 %v4128
    %v5039 = vunpack.c.l.b16 %v4130
    %v5040 = vunpack.c.l.b16 %v4132
    %v5041 = vunpack.c.l.b16 %v4134
    %v5042 = vunpack.c.l.b16 %v4136
    %v5043 = vunpack.c.l.b16 %v4138
    %v5044 = vunpack.c.l.b16 %v4140
    %v5045 = vunpack.c.l.b16 %v4142
    %v5046 = vunpack.c.l.b16 %v4144
    %v5047 = vpack.c.b16 %v5032, %v5031
    %v5048 = vpack.c.b16 %v5034, %v5033
    %v5049 = vpack.c.b16 %v5036, %v5035
    %v5050 = vpack.c.b16 %v5038, %v5037
    %v5051 = vpack.c.b16 %v5040, %v5039
    %v5052 = vpack.c.b16 %v5042, %v5041
    %v5053 = vpack.c.b16 %v5044, %v5043
    %v5054 = vpack.c.b16 %v5046, %v5045
    %v5063 = vunpack.c.h.b16 %v4114
    %v5064 = vunpack.c.h.b16 %v4116
    %v5065 = vunpack.c.h.b16 %v4118
    %v5066 = vunpack.c.h.b16 %v4120
    %v5067 = vunpack.c.h.b16 %v4122
    %v5068 = vunpack.c.h.b16 %v4124
    %v5069 = vunpack.c.h.b16 %v4126
    %v5070 = vunpack.c.h.b16 %v4128
    %v5071 = vunpack.c.h.b16 %v4130
    %v5072 = vunpack.c.h.b16 %v4132
    %v5073 = vunpack.c.h.b16 %v4134
    %v5074 = vunpack.c.h.b16 %v4136
    %v5075 = vunpack.c.h.b16 %v4138
    %v5076 = vunpack.c.h.b16 %v4140
    %v5077 = vunpack.c.h.b16 %v4142
    %v5078 = vunpack.c.h.b16 %v4144
    %v5079 = vpack.c.b16 %v5064, %v5063
    %v5080 = vpack.c.b16 %v5066, %v5065
    %v5081 = vpack.c.b16 %v5068, %v5067
    %v5082 = vpack.c.b16 %v5070, %v5069
    %v5083 = vpack.c.b16 %v5072, %v5071
    %v5084 = vpack.c.b16 %v5074, %v5073
    %v5085 = vpack.c.b16 %v5076, %v5075
    %v5086 = vpack.c.b16 %v5078, %v5077
    %s5095 = scalar_lea.vmem [#allocation14], 256
    %v5096 = vld [vmem:[%s5095] sm:$0xf]
    %v5097 = vld [vmem:[%s5095 + $0x4] sm:$0xf]
    %v5098 = vld [vmem:[%s5095 + $0x8] sm:$0xf]
    %v5099 = vld [vmem:[%s5095 + $0xc] sm:$0xf]
    %v5100 = vld [vmem:[%s5095 + $0x10] sm:$0xf]
    %v5101 = vld [vmem:[%s5095 + $0x14] sm:$0xf]
    %v5102 = vld [vmem:[%s5095 + $0x18] sm:$0xf]
    %v5103 = vld [vmem:[%s5095 + $0x1c] sm:$0xf]
    %v5104 = vld [vmem:[%s5095 + $0x20] sm:$0xf]
    %v5105 = vld [vmem:[%s5095 + $0x24] sm:$0xf]
    %v5106 = vld [vmem:[%s5095 + $0x28] sm:$0xf]
    %v5107 = vld [vmem:[%s5095 + $0x2c] sm:$0xf]
    %v5108 = vld [vmem:[%s5095 + $0x30] sm:$0xf]
    %v5109 = vld [vmem:[%s5095 + $0x34] sm:$0xf]
    %v5110 = vld [vmem:[%s5095 + $0x38] sm:$0xf]
    %v5111 = vld [vmem:[%s5095 + $0x3c] sm:$0xf]
    %v5128 = vunpack.c.l.b16 %v5096
    %v5129 = vunpack.c.l.b16 %v5097
    %v5130 = vunpack.c.l.b16 %v5098
    %v5131 = vunpack.c.l.b16 %v5099
    %v5132 = vunpack.c.l.b16 %v5100
    %v5133 = vunpack.c.l.b16 %v5101
    %v5134 = vunpack.c.l.b16 %v5102
    %v5135 = vunpack.c.l.b16 %v5103
    %v5136 = vunpack.c.l.b16 %v5104
    %v5137 = vunpack.c.l.b16 %v5105
    %v5138 = vunpack.c.l.b16 %v5106
    %v5139 = vunpack.c.l.b16 %v5107
    %v5140 = vunpack.c.l.b16 %v5108
    %v5141 = vunpack.c.l.b16 %v5109
    %v5142 = vunpack.c.l.b16 %v5110
    %v5143 = vunpack.c.l.b16 %v5111
    %v5144 = vpack.c.b16 %v5129, %v5128
    %v5145 = vpack.c.b16 %v5131, %v5130
    %v5146 = vpack.c.b16 %v5133, %v5132
    %v5147 = vpack.c.b16 %v5135, %v5134
    %v5148 = vpack.c.b16 %v5137, %v5136
    %v5149 = vpack.c.b16 %v5139, %v5138
    %v5150 = vpack.c.b16 %v5141, %v5140
    %v5151 = vpack.c.b16 %v5143, %v5142
    %5160 = vmatpush.bf16.msra.mxu0 %v5151
    %5161 = vmatpush.bf16.msra.mxu0 %v5150
    %5162 = vmatpush.bf16.msra.mxu0 %v5149
    %5163 = vmatpush.bf16.msra.mxu0 %v5148
    %5164 = vmatpush.bf16.msra.mxu0 %v5147
    %5165 = vmatpush.bf16.msra.mxu0 %v5146
    %5166 = vmatpush.bf16.msra.mxu0 %v5145
    %5167 = vmatpush.bf16.msra.mxu0 %v5144
    %5168 = vmatmul.bf16.gmra.mxu0 %v2798
    %v5169 = vpop.f32.mrf.mxu0
    %v5170 = vadd.f32 0.0, %v5169
    %v5171 = vpop.f32.mrf.mxu0
    %v5172 = vadd.f32 0.0, %v5171
    %5173 = vmatmul.bf16.gmra.mxu0 %v2799
    %v5174 = vpop.f32.mrf.mxu0
    %v5175 = vadd.f32 0.0, %v5174
    %v5176 = vpop.f32.mrf.mxu0
    %v5177 = vadd.f32 0.0, %v5176
    %5178 = vmatmul.bf16.gmra.mxu0 %v2800
    %v5179 = vpop.f32.mrf.mxu0
    %v5180 = vadd.f32 0.0, %v5179
    %v5181 = vpop.f32.mrf.mxu0
    %v5182 = vadd.f32 0.0, %v5181
    %5183 = vmatmul.bf16.gmra.mxu0 %v2801
    %v5184 = vpop.f32.mrf.mxu0
    %v5185 = vadd.f32 0.0, %v5184
    %v5186 = vpop.f32.mrf.mxu0
    %v5187 = vadd.f32 0.0, %v5186
    %5188 = vmatmul.bf16.gmra.mxu0 %v2802
    %v5189 = vpop.f32.mrf.mxu0
    %v5190 = vadd.f32 0.0, %v5189
    %v5191 = vpop.f32.mrf.mxu0
    %v5192 = vadd.f32 0.0, %v5191
    %5193 = vmatmul.bf16.gmra.mxu0 %v2803
    %v5194 = vpop.f32.mrf.mxu0
    %v5195 = vadd.f32 0.0, %v5194
    %v5196 = vpop.f32.mrf.mxu0
    %v5197 = vadd.f32 0.0, %v5196
    %5198 = vmatmul.bf16.gmra.mxu0 %v2804
    %v5199 = vpop.f32.mrf.mxu0
    %v5200 = vadd.f32 0.0, %v5199
    %v5201 = vpop.f32.mrf.mxu0
    %v5202 = vadd.f32 0.0, %v5201
    %5203 = vmatmul.bf16.gmra.mxu0 %v2805
    %v5204 = vpop.f32.mrf.mxu0
    %v5205 = vadd.f32 0.0, %v5204
    %v5206 = vpop.f32.mrf.mxu0
    %v5207 = vadd.f32 0.0, %v5206
    %5208 = vdwg.mxu0
    %5209 = vmatpush.bf16.msra.mxu0 %v4974
    %5210 = vmatpush.bf16.msra.mxu0 %v4973
    %5211 = vmatpush.bf16.msra.mxu0 %v4972
    %5212 = vmatpush.bf16.msra.mxu0 %v4971
    %5213 = vmatpush.bf16.msra.mxu0 %v4970
    %5214 = vmatpush.bf16.msra.mxu0 %v4969
    %5215 = vmatpush.bf16.msra.mxu0 %v4968
    %5216 = vmatpush.bf16.msra.mxu0 %v4967
    %5217 = vmatmul.bf16.gmra.mxu0 %v2501
    %v5218 = vpop.f32.mrf.mxu0
    %v5219 = vadd.f32 %v5170, %v5218
    %v5220 = vpop.f32.mrf.mxu0
    %v5221 = vadd.f32 %v5172, %v5220
    %5222 = vmatmul.bf16.gmra.mxu0 %v2505
    %v5223 = vpop.f32.mrf.mxu0
    %v5224 = vadd.f32 %v5175, %v5223
    %v5225 = vpop.f32.mrf.mxu0
    %v5226 = vadd.f32 %v5177, %v5225
    %5227 = vmatmul.bf16.gmra.mxu0 %v2509
    %v5228 = vpop.f32.mrf.mxu0
    %v5229 = vadd.f32 %v5180, %v5228
    %v5230 = vpop.f32.mrf.mxu0
    %v5231 = vadd.f32 %v5182, %v5230
    %5232 = vmatmul.bf16.gmra.mxu0 %v2513
    %v5233 = vpop.f32.mrf.mxu0
    %v5234 = vadd.f32 %v5185, %v5233
    %v5235 = vpop.f32.mrf.mxu0
    %v5236 = vadd.f32 %v5187, %v5235
    %5237 = vmatmul.bf16.gmra.mxu0 %v2517
    %v5238 = vpop.f32.mrf.mxu0
    %v5239 = vadd.f32 %v5190, %v5238
    %v5240 = vpop.f32.mrf.mxu0
    %v5241 = vadd.f32 %v5192, %v5240
    %5242 = vmatmul.bf16.gmra.mxu0 %v2521
    %v5243 = vpop.f32.mrf.mxu0
    %v5244 = vadd.f32 %v5195, %v5243
    %v5245 = vpop.f32.mrf.mxu0
    %v5246 = vadd.f32 %v5197, %v5245
    %5247 = vmatmul.bf16.gmra.mxu0 %v2525
    %v5248 = vpop.f32.mrf.mxu0
    %v5249 = vadd.f32 %v5200, %v5248
    %v5250 = vpop.f32.mrf.mxu0
    %v5251 = vadd.f32 %v5202, %v5250
    %5252 = vmatmul.bf16.gmra.mxu0 %v2529
    %v5253 = vpop.f32.mrf.mxu0
    %v5254 = vadd.f32 %v5205, %v5253
    %v5255 = vpop.f32.mrf.mxu0
    %v5256 = vadd.f32 %v5207, %v5255
    %5257 = vdwg.mxu0
    %5258 = vmatpush.bf16.msra.mxu0 %v5006
    %5259 = vmatpush.bf16.msra.mxu0 %v5005
    %5260 = vmatpush.bf16.msra.mxu0 %v5004
    %5261 = vmatpush.bf16.msra.mxu0 %v5003
    %5262 = vmatpush.bf16.msra.mxu0 %v5002
    %5263 = vmatpush.bf16.msra.mxu0 %v5001
    %5264 = vmatpush.bf16.msra.mxu0 %v5000
    %5265 = vmatpush.bf16.msra.mxu0 %v4999
    %5266 = vmatmul.bf16.gmra.mxu0 %v2502
    %v5267 = vpop.f32.mrf.mxu0
    %v5268 = vadd.f32 %v5219, %v5267
    %v5269 = vpop.f32.mrf.mxu0
    %v5270 = vadd.f32 %v5221, %v5269
    %5271 = vmatmul.bf16.gmra.mxu0 %v2506
    %v5272 = vpop.f32.mrf.mxu0
    %v5273 = vadd.f32 %v5224, %v5272
    %v5274 = vpop.f32.mrf.mxu0
    %v5275 = vadd.f32 %v5226, %v5274
    %5276 = vmatmul.bf16.gmra.mxu0 %v2510
    %v5277 = vpop.f32.mrf.mxu0
    %v5278 = vadd.f32 %v5229, %v5277
    %v5279 = vpop.f32.mrf.mxu0
    %v5280 = vadd.f32 %v5231, %v5279
    %5281 = vmatmul.bf16.gmra.mxu0 %v2514
    %v5282 = vpop.f32.mrf.mxu0
    %v5283 = vadd.f32 %v5234, %v5282
    %v5284 = vpop.f32.mrf.mxu0
    %v5285 = vadd.f32 %v5236, %v5284
    %5286 = vmatmul.bf16.gmra.mxu0 %v2518
    %v5287 = vpop.f32.mrf.mxu0
    %v5288 = vadd.f32 %v5239, %v5287
    %v5289 = vpop.f32.mrf.mxu0
    %v5290 = vadd.f32 %v5241, %v5289
    %5291 = vmatmul.bf16.gmra.mxu0 %v2522
    %v5292 = vpop.f32.mrf.mxu0
    %v5293 = vadd.f32 %v5244, %v5292
    %v5294 = vpop.f32.mrf.mxu0
    %v5295 = vadd.f32 %v5246, %v5294
    %5296 = vmatmul.bf16.gmra.mxu0 %v2526
    %v5297 = vpop.f32.mrf.mxu0
    %v5298 = vadd.f32 %v5249, %v5297
    %v5299 = vpop.f32.mrf.mxu0
    %v5300 = vadd.f32 %v5251, %v5299
    %5301 = vmatmul.bf16.gmra.mxu0 %v2530
    %v5302 = vpop.f32.mrf.mxu0
    %v5303 = vadd.f32 %v5254, %v5302
    %v5304 = vpop.f32.mrf.mxu0
    %v5305 = vadd.f32 %v5256, %v5304
    %5306 = vdwg.mxu0
    %5307 = vmatpush.bf16.msra.mxu0 %v5054
    %5308 = vmatpush.bf16.msra.mxu0 %v5053
    %5309 = vmatpush.bf16.msra.mxu0 %v5052
    %5310 = vmatpush.bf16.msra.mxu0 %v5051
    %5311 = vmatpush.bf16.msra.mxu0 %v5050
    %5312 = vmatpush.bf16.msra.mxu0 %v5049
    %5313 = vmatpush.bf16.msra.mxu0 %v5048
    %5314 = vmatpush.bf16.msra.mxu0 %v5047
    %5315 = vmatmul.bf16.gmra.mxu0 %v2503
    %v5316 = vpop.f32.mrf.mxu0
    %v5317 = vadd.f32 %v5268, %v5316
    %v5318 = vpop.f32.mrf.mxu0
    %v5319 = vadd.f32 %v5270, %v5318
    %5320 = vmatmul.bf16.gmra.mxu0 %v2507
    %v5321 = vpop.f32.mrf.mxu0
    %v5322 = vadd.f32 %v5273, %v5321
    %v5323 = vpop.f32.mrf.mxu0
    %v5324 = vadd.f32 %v5275, %v5323
    %5325 = vmatmul.bf16.gmra.mxu0 %v2511
    %v5326 = vpop.f32.mrf.mxu0
    %v5327 = vadd.f32 %v5278, %v5326
    %v5328 = vpop.f32.mrf.mxu0
    %v5329 = vadd.f32 %v5280, %v5328
    %5330 = vmatmul.bf16.gmra.mxu0 %v2515
    %v5331 = vpop.f32.mrf.mxu0
    %v5332 = vadd.f32 %v5283, %v5331
    %v5333 = vpop.f32.mrf.mxu0
    %v5334 = vadd.f32 %v5285, %v5333
    %5335 = vmatmul.bf16.gmra.mxu0 %v2519
    %v5336 = vpop.f32.mrf.mxu0
    %v5337 = vadd.f32 %v5288, %v5336
    %v5338 = vpop.f32.mrf.mxu0
    %v5339 = vadd.f32 %v5290, %v5338
    %5340 = vmatmul.bf16.gmra.mxu0 %v2523
    %v5341 = vpop.f32.mrf.mxu0
    %v5342 = vadd.f32 %v5293, %v5341
    %v5343 = vpop.f32.mrf.mxu0
    %v5344 = vadd.f32 %v5295, %v5343
    %5345 = vmatmul.bf16.gmra.mxu0 %v2527
    %v5346 = vpop.f32.mrf.mxu0
    %v5347 = vadd.f32 %v5298, %v5346
    %v5348 = vpop.f32.mrf.mxu0
    %v5349 = vadd.f32 %v5300, %v5348
    %5350 = vmatmul.bf16.gmra.mxu0 %v2531
    %v5351 = vpop.f32.mrf.mxu0
    %v5352 = vadd.f32 %v5303, %v5351
    %v5353 = vpop.f32.mrf.mxu0
    %v5354 = vadd.f32 %v5305, %v5353
    %5355 = vdwg.mxu0
    %5356 = vmatpush.bf16.msra.mxu0 %v5086
    %5357 = vmatpush.bf16.msra.mxu0 %v5085
    %5358 = vmatpush.bf16.msra.mxu0 %v5084
    %5359 = vmatpush.bf16.msra.mxu0 %v5083
    %5360 = vmatpush.bf16.msra.mxu0 %v5082
    %5361 = vmatpush.bf16.msra.mxu0 %v5081
    %5362 = vmatpush.bf16.msra.mxu0 %v5080
    %5363 = vmatpush.bf16.msra.mxu0 %v5079
    %5364 = vmatmul.bf16.gmra.mxu0 %v2504
    %v5365 = vpop.f32.mrf.mxu0
    %v5366 = vadd.f32 %v5317, %v5365
    %v5367 = vpop.f32.mrf.mxu0
    %v5368 = vadd.f32 %v5319, %v5367
    %5369 = vmatmul.bf16.gmra.mxu0 %v2508
    %v5370 = vpop.f32.mrf.mxu0
    %v5371 = vadd.f32 %v5322, %v5370
    %v5372 = vpop.f32.mrf.mxu0
    %v5373 = vadd.f32 %v5324, %v5372
    %5374 = vmatmul.bf16.gmra.mxu0 %v2512
    %v5375 = vpop.f32.mrf.mxu0
    %v5376 = vadd.f32 %v5327, %v5375
    %v5377 = vpop.f32.mrf.mxu0
    %v5378 = vadd.f32 %v5329, %v5377
    %5379 = vmatmul.bf16.gmra.mxu0 %v2516
    %v5380 = vpop.f32.mrf.mxu0
    %v5381 = vadd.f32 %v5332, %v5380
    %v5382 = vpop.f32.mrf.mxu0
    %v5383 = vadd.f32 %v5334, %v5382
    %5384 = vmatmul.bf16.gmra.mxu0 %v2520
    %v5385 = vpop.f32.mrf.mxu0
    %v5386 = vadd.f32 %v5337, %v5385
    %v5387 = vpop.f32.mrf.mxu0
    %v5388 = vadd.f32 %v5339, %v5387
    %5389 = vmatmul.bf16.gmra.mxu0 %v2524
    %v5390 = vpop.f32.mrf.mxu0
    %v5391 = vadd.f32 %v5342, %v5390
    %v5392 = vpop.f32.mrf.mxu0
    %v5393 = vadd.f32 %v5344, %v5392
    %5394 = vmatmul.bf16.gmra.mxu0 %v2528
    %v5395 = vpop.f32.mrf.mxu0
    %v5396 = vadd.f32 %v5347, %v5395
    %v5397 = vpop.f32.mrf.mxu0
    %v5398 = vadd.f32 %v5349, %v5397
    %5399 = vmatmul.bf16.gmra.mxu0 %v2532
    %v5400 = vpop.f32.mrf.mxu0
    %v5401 = vadd.f32 %v5352, %v5400
    %v5402 = vpop.f32.mrf.mxu0
    %v5403 = vadd.f32 %v5354, %v5402
    %5404 = vdwg.mxu0
    %s5405 = scalar_lea.vmem [#allocation16], 4
    %v5406 = vld [vmem:[%s5405] sm:$0x1]
    %v5408 = vperm.slane %v5406, 0
    %v5410 = vadd.f32 %v5366, %v5408
    %v5411 = vadd.f32 %v5368, %v5408
    %v5412 = vadd.f32 %v5371, %v5408
    %v5413 = vadd.f32 %v5373, %v5408
    %v5414 = vadd.f32 %v5376, %v5408
    %v5415 = vadd.f32 %v5378, %v5408
    %v5416 = vadd.f32 %v5381, %v5408
    %v5417 = vadd.f32 %v5383, %v5408
    %v5418 = vadd.f32 %v5386, %v5408
    %v5419 = vadd.f32 %v5388, %v5408
    %v5420 = vadd.f32 %v5391, %v5408
    %v5421 = vadd.f32 %v5393, %v5408
    %v5422 = vadd.f32 %v5396, %v5408
    %v5423 = vadd.f32 %v5398, %v5408
    %v5424 = vadd.f32 %v5401, %v5408
    %v5425 = vadd.f32 %v5403, %v5408
    %v5426 = vmax.f32 %v5410, 0.0
    %v5427 = vmax.f32 %v5411, 0.0
    %v5428 = vmax.f32 %v5412, 0.0
    %v5429 = vmax.f32 %v5413, 0.0
    %v5430 = vmax.f32 %v5414, 0.0
    %v5431 = vmax.f32 %v5415, 0.0
    %v5432 = vmax.f32 %v5416, 0.0
    %v5433 = vmax.f32 %v5417, 0.0
    %v5434 = vmax.f32 %v5418, 0.0
    %v5435 = vmax.f32 %v5419, 0.0
    %v5436 = vmax.f32 %v5420, 0.0
    %v5437 = vmax.f32 %v5421, 0.0
    %v5438 = vmax.f32 %v5422, 0.0
    %v5439 = vmax.f32 %v5423, 0.0
    %v5440 = vmax.f32 %v5424, 0.0
    %v5441 = vmax.f32 %v5425, 0.0
    %v5442 = vpack.c.bf16 %v5427, %v5426
    %v5443 = vpack.c.bf16 %v5429, %v5428
    %v5444 = vpack.c.bf16 %v5431, %v5430
    %v5445 = vpack.c.bf16 %v5433, %v5432
    %v5446 = vpack.c.bf16 %v5435, %v5434
    %v5447 = vpack.c.bf16 %v5437, %v5436
    %v5448 = vpack.c.bf16 %v5439, %v5438
    %v5449 = vpack.c.bf16 %v5441, %v5440
    %v5450 = vunpack.c.h.b16 %v3692
    %v5451 = vunpack.c.h.b16 %v3694
    %v5452 = vunpack.c.h.b16 %v3696
    %v5453 = vunpack.c.h.b16 %v3698
    %v5454 = vunpack.c.h.b16 %v3700
    %v5455 = vunpack.c.h.b16 %v3702
    %v5456 = vunpack.c.h.b16 %v3704
    %v5457 = vunpack.c.h.b16 %v3706
    %v5458 = vunpack.c.h.b16 %v3708
    %v5459 = vunpack.c.h.b16 %v3710
    %v5460 = vunpack.c.h.b16 %v3712
    %v5461 = vunpack.c.h.b16 %v3714
    %v5462 = vunpack.c.h.b16 %v3716
    %v5463 = vunpack.c.h.b16 %v3718
    %v5464 = vunpack.c.h.b16 %v3720
    %v5465 = vunpack.c.h.b16 %v3722
    %v5466 = vpack.c.b16 %v5451, %v5450
    %v5467 = vpack.c.b16 %v5453, %v5452
    %v5468 = vpack.c.b16 %v5455, %v5454
    %v5469 = vpack.c.b16 %v5457, %v5456
    %v5470 = vpack.c.b16 %v5459, %v5458
    %v5471 = vpack.c.b16 %v5461, %v5460
    %v5472 = vpack.c.b16 %v5463, %v5462
    %v5473 = vpack.c.b16 %v5465, %v5464
    %v5482 = vunpack.c.h.b16 %v4113
    %v5483 = vunpack.c.h.b16 %v4115
    %v5484 = vunpack.c.h.b16 %v4117
    %v5485 = vunpack.c.h.b16 %v4119
    %v5486 = vunpack.c.h.b16 %v4121
    %v5487 = vunpack.c.h.b16 %v4123
    %v5488 = vunpack.c.h.b16 %v4125
    %v5489 = vunpack.c.h.b16 %v4127
    %v5490 = vunpack.c.h.b16 %v4129
    %v5491 = vunpack.c.h.b16 %v4131
    %v5492 = vunpack.c.h.b16 %v4133
    %v5493 = vunpack.c.h.b16 %v4135
    %v5494 = vunpack.c.h.b16 %v4137
    %v5495 = vunpack.c.h.b16 %v4139
    %v5496 = vunpack.c.h.b16 %v4141
    %v5497 = vunpack.c.h.b16 %v4143
    %v5498 = vpack.c.b16 %v5483, %v5482
    %v5499 = vpack.c.b16 %v5485, %v5484
    %v5500 = vpack.c.b16 %v5487, %v5486
    %v5501 = vpack.c.b16 %v5489, %v5488
    %v5502 = vpack.c.b16 %v5491, %v5490
    %v5503 = vpack.c.b16 %v5493, %v5492
    %v5504 = vpack.c.b16 %v5495, %v5494
    %v5505 = vpack.c.b16 %v5497, %v5496
    %v5530 = vunpack.c.l.b16 %v4454
    %v5531 = vunpack.c.l.b16 %v4456
    %v5532 = vunpack.c.l.b16 %v4458
    %v5533 = vunpack.c.l.b16 %v4460
    %v5534 = vunpack.c.l.b16 %v4462
    %v5535 = vunpack.c.l.b16 %v4464
    %v5536 = vunpack.c.l.b16 %v4466
    %v5537 = vunpack.c.l.b16 %v4468
    %v5538 = vunpack.c.l.b16 %v4470
    %v5539 = vunpack.c.l.b16 %v4472
    %v5540 = vunpack.c.l.b16 %v4474
    %v5541 = vunpack.c.l.b16 %v4476
    %v5542 = vunpack.c.l.b16 %v4478
    %v5543 = vunpack.c.l.b16 %v4480
    %v5544 = vunpack.c.l.b16 %v4482
    %v5545 = vunpack.c.l.b16 %v4484
    %v5546 = vpack.c.b16 %v5531, %v5530
    %v5547 = vpack.c.b16 %v5533, %v5532
    %v5548 = vpack.c.b16 %v5535, %v5534
    %v5549 = vpack.c.b16 %v5537, %v5536
    %v5550 = vpack.c.b16 %v5539, %v5538
    %v5551 = vpack.c.b16 %v5541, %v5540
    %v5552 = vpack.c.b16 %v5543, %v5542
    %v5553 = vpack.c.b16 %v5545, %v5544
    %s5562 = scalar_lea.vmem [#allocation14], 320
    %v5563 = vld [vmem:[%s5562] sm:$0xf]
    %v5564 = vld [vmem:[%s5562 + $0x4] sm:$0xf]
    %v5565 = vld [vmem:[%s5562 + $0x8] sm:$0xf]
    %v5566 = vld [vmem:[%s5562 + $0xc] sm:$0xf]
    %v5567 = vld [vmem:[%s5562 + $0x10] sm:$0xf]
    %v5568 = vld [vmem:[%s5562 + $0x14] sm:$0xf]
    %v5569 = vld [vmem:[%s5562 + $0x18] sm:$0xf]
    %v5570 = vld [vmem:[%s5562 + $0x1c] sm:$0xf]
    %v5571 = vld [vmem:[%s5562 + $0x20] sm:$0xf]
    %v5572 = vld [vmem:[%s5562 + $0x24] sm:$0xf]
    %v5573 = vld [vmem:[%s5562 + $0x28] sm:$0xf]
    %v5574 = vld [vmem:[%s5562 + $0x2c] sm:$0xf]
    %v5575 = vld [vmem:[%s5562 + $0x30] sm:$0xf]
    %v5576 = vld [vmem:[%s5562 + $0x34] sm:$0xf]
    %v5577 = vld [vmem:[%s5562 + $0x38] sm:$0xf]
    %v5578 = vld [vmem:[%s5562 + $0x3c] sm:$0xf]
    %v5595 = vunpack.c.l.b16 %v5563
    %v5596 = vunpack.c.l.b16 %v5564
    %v5597 = vunpack.c.l.b16 %v5565
    %v5598 = vunpack.c.l.b16 %v5566
    %v5599 = vunpack.c.l.b16 %v5567
    %v5600 = vunpack.c.l.b16 %v5568
    %v5601 = vunpack.c.l.b16 %v5569
    %v5602 = vunpack.c.l.b16 %v5570
    %v5603 = vunpack.c.l.b16 %v5571
    %v5604 = vunpack.c.l.b16 %v5572
    %v5605 = vunpack.c.l.b16 %v5573
    %v5606 = vunpack.c.l.b16 %v5574
    %v5607 = vunpack.c.l.b16 %v5575
    %v5608 = vunpack.c.l.b16 %v5576
    %v5609 = vunpack.c.l.b16 %v5577
    %v5610 = vunpack.c.l.b16 %v5578
    %v5611 = vpack.c.b16 %v5596, %v5595
    %v5612 = vpack.c.b16 %v5598, %v5597
    %v5613 = vpack.c.b16 %v5600, %v5599
    %v5614 = vpack.c.b16 %v5602, %v5601
    %v5615 = vpack.c.b16 %v5604, %v5603
    %v5616 = vpack.c.b16 %v5606, %v5605
    %v5617 = vpack.c.b16 %v5608, %v5607
    %v5618 = vpack.c.b16 %v5610, %v5609
    %5627 = vmatpush.bf16.msra.mxu0 %v5618
    %5628 = vmatpush.bf16.msra.mxu0 %v5617
    %5629 = vmatpush.bf16.msra.mxu0 %v5616
    %5630 = vmatpush.bf16.msra.mxu0 %v5615
    %5631 = vmatpush.bf16.msra.mxu0 %v5614
    %5632 = vmatpush.bf16.msra.mxu0 %v5613
    %5633 = vmatpush.bf16.msra.mxu0 %v5612
    %5634 = vmatpush.bf16.msra.mxu0 %v5611
    %5635 = vmatmul.bf16.gmra.mxu0 %v3376
    %v5636 = vpop.f32.mrf.mxu0
    %v5637 = vadd.f32 0.0, %v5636
    %v5638 = vpop.f32.mrf.mxu0
    %v5639 = vadd.f32 0.0, %v5638
    %5640 = vmatmul.bf16.gmra.mxu0 %v3377
    %v5641 = vpop.f32.mrf.mxu0
    %v5642 = vadd.f32 0.0, %v5641
    %v5643 = vpop.f32.mrf.mxu0
    %v5644 = vadd.f32 0.0, %v5643
    %5645 = vmatmul.bf16.gmra.mxu0 %v3378
    %v5646 = vpop.f32.mrf.mxu0
    %v5647 = vadd.f32 0.0, %v5646
    %v5648 = vpop.f32.mrf.mxu0
    %v5649 = vadd.f32 0.0, %v5648
    %5650 = vmatmul.bf16.gmra.mxu0 %v3379
    %v5651 = vpop.f32.mrf.mxu0
    %v5652 = vadd.f32 0.0, %v5651
    %v5653 = vpop.f32.mrf.mxu0
    %v5654 = vadd.f32 0.0, %v5653
    %5655 = vmatmul.bf16.gmra.mxu0 %v3380
    %v5656 = vpop.f32.mrf.mxu0
    %v5657 = vadd.f32 0.0, %v5656
    %v5658 = vpop.f32.mrf.mxu0
    %v5659 = vadd.f32 0.0, %v5658
    %5660 = vmatmul.bf16.gmra.mxu0 %v3381
    %v5661 = vpop.f32.mrf.mxu0
    %v5662 = vadd.f32 0.0, %v5661
    %v5663 = vpop.f32.mrf.mxu0
    %v5664 = vadd.f32 0.0, %v5663
    %5665 = vmatmul.bf16.gmra.mxu0 %v3382
    %v5666 = vpop.f32.mrf.mxu0
    %v5667 = vadd.f32 0.0, %v5666
    %v5668 = vpop.f32.mrf.mxu0
    %v5669 = vadd.f32 0.0, %v5668
    %5670 = vmatmul.bf16.gmra.mxu0 %v3383
    %v5671 = vpop.f32.mrf.mxu0
    %v5672 = vadd.f32 0.0, %v5671
    %v5673 = vpop.f32.mrf.mxu0
    %v5674 = vadd.f32 0.0, %v5673
    %5675 = vdwg.mxu0
    %5676 = vmatpush.bf16.msra.mxu0 %v5473
    %5677 = vmatpush.bf16.msra.mxu0 %v5472
    %5678 = vmatpush.bf16.msra.mxu0 %v5471
    %5679 = vmatpush.bf16.msra.mxu0 %v5470
    %5680 = vmatpush.bf16.msra.mxu0 %v5469
    %5681 = vmatpush.bf16.msra.mxu0 %v5468
    %5682 = vmatpush.bf16.msra.mxu0 %v5467
    %5683 = vmatpush.bf16.msra.mxu0 %v5466
    %5684 = vmatmul.bf16.gmra.mxu0 %v3144
    %v5685 = vpop.f32.mrf.mxu0
    %v5686 = vadd.f32 %v5637, %v5685
    %v5687 = vpop.f32.mrf.mxu0
    %v5688 = vadd.f32 %v5639, %v5687
    %5689 = vmatmul.bf16.gmra.mxu0 %v3147
    %v5690 = vpop.f32.mrf.mxu0
    %v5691 = vadd.f32 %v5642, %v5690
    %v5692 = vpop.f32.mrf.mxu0
    %v5693 = vadd.f32 %v5644, %v5692
    %5694 = vmatmul.bf16.gmra.mxu0 %v3150
    %v5695 = vpop.f32.mrf.mxu0
    %v5696 = vadd.f32 %v5647, %v5695
    %v5697 = vpop.f32.mrf.mxu0
    %v5698 = vadd.f32 %v5649, %v5697
    %5699 = vmatmul.bf16.gmra.mxu0 %v3153
    %v5700 = vpop.f32.mrf.mxu0
    %v5701 = vadd.f32 %v5652, %v5700
    %v5702 = vpop.f32.mrf.mxu0
    %v5703 = vadd.f32 %v5654, %v5702
    %5704 = vmatmul.bf16.gmra.mxu0 %v3156
    %v5705 = vpop.f32.mrf.mxu0
    %v5706 = vadd.f32 %v5657, %v5705
    %v5707 = vpop.f32.mrf.mxu0
    %v5708 = vadd.f32 %v5659, %v5707
    %5709 = vmatmul.bf16.gmra.mxu0 %v3159
    %v5710 = vpop.f32.mrf.mxu0
    %v5711 = vadd.f32 %v5662, %v5710
    %v5712 = vpop.f32.mrf.mxu0
    %v5713 = vadd.f32 %v5664, %v5712
    %5714 = vmatmul.bf16.gmra.mxu0 %v3162
    %v5715 = vpop.f32.mrf.mxu0
    %v5716 = vadd.f32 %v5667, %v5715
    %v5717 = vpop.f32.mrf.mxu0
    %v5718 = vadd.f32 %v5669, %v5717
    %5719 = vmatmul.bf16.gmra.mxu0 %v3165
    %v5720 = vpop.f32.mrf.mxu0
    %v5721 = vadd.f32 %v5672, %v5720
    %v5722 = vpop.f32.mrf.mxu0
    %v5723 = vadd.f32 %v5674, %v5722
    %5724 = vdwg.mxu0
    %5725 = vmatpush.bf16.msra.mxu0 %v5505
    %5726 = vmatpush.bf16.msra.mxu0 %v5504
    %5727 = vmatpush.bf16.msra.mxu0 %v5503
    %5728 = vmatpush.bf16.msra.mxu0 %v5502
    %5729 = vmatpush.bf16.msra.mxu0 %v5501
    %5730 = vmatpush.bf16.msra.mxu0 %v5500
    %5731 = vmatpush.bf16.msra.mxu0 %v5499
    %5732 = vmatpush.bf16.msra.mxu0 %v5498
    %5733 = vmatmul.bf16.gmra.mxu0 %v3145
    %v5734 = vpop.f32.mrf.mxu0
    %v5735 = vadd.f32 %v5686, %v5734
    %v5736 = vpop.f32.mrf.mxu0
    %v5737 = vadd.f32 %v5688, %v5736
    %5738 = vmatmul.bf16.gmra.mxu0 %v3148
    %v5739 = vpop.f32.mrf.mxu0
    %v5740 = vadd.f32 %v5691, %v5739
    %v5741 = vpop.f32.mrf.mxu0
    %v5742 = vadd.f32 %v5693, %v5741
    %5743 = vmatmul.bf16.gmra.mxu0 %v3151
    %v5744 = vpop.f32.mrf.mxu0
    %v5745 = vadd.f32 %v5696, %v5744
    %v5746 = vpop.f32.mrf.mxu0
    %v5747 = vadd.f32 %v5698, %v5746
    %5748 = vmatmul.bf16.gmra.mxu0 %v3154
    %v5749 = vpop.f32.mrf.mxu0
    %v5750 = vadd.f32 %v5701, %v5749
    %v5751 = vpop.f32.mrf.mxu0
    %v5752 = vadd.f32 %v5703, %v5751
    %5753 = vmatmul.bf16.gmra.mxu0 %v3157
    %v5754 = vpop.f32.mrf.mxu0
    %v5755 = vadd.f32 %v5706, %v5754
    %v5756 = vpop.f32.mrf.mxu0
    %v5757 = vadd.f32 %v5708, %v5756
    %5758 = vmatmul.bf16.gmra.mxu0 %v3160
    %v5759 = vpop.f32.mrf.mxu0
    %v5760 = vadd.f32 %v5711, %v5759
    %v5761 = vpop.f32.mrf.mxu0
    %v5762 = vadd.f32 %v5713, %v5761
    %5763 = vmatmul.bf16.gmra.mxu0 %v3163
    %v5764 = vpop.f32.mrf.mxu0
    %v5765 = vadd.f32 %v5716, %v5764
    %v5766 = vpop.f32.mrf.mxu0
    %v5767 = vadd.f32 %v5718, %v5766
    %5768 = vmatmul.bf16.gmra.mxu0 %v3166
    %v5769 = vpop.f32.mrf.mxu0
    %v5770 = vadd.f32 %v5721, %v5769
    %v5771 = vpop.f32.mrf.mxu0
    %v5772 = vadd.f32 %v5723, %v5771
    %5773 = vdwg.mxu0
    %5774 = vmatpush.bf16.msra.mxu0 %v5553
    %5775 = vmatpush.bf16.msra.mxu0 %v5552
    %5776 = vmatpush.bf16.msra.mxu0 %v5551
    %5777 = vmatpush.bf16.msra.mxu0 %v5550
    %5778 = vmatpush.bf16.msra.mxu0 %v5549
    %5779 = vmatpush.bf16.msra.mxu0 %v5548
    %5780 = vmatpush.bf16.msra.mxu0 %v5547
    %5781 = vmatpush.bf16.msra.mxu0 %v5546
    %5782 = vmatmul.bf16.gmra.mxu0 %v3146
    %v5783 = vpop.f32.mrf.mxu0
    %v5784 = vadd.f32 %v5735, %v5783
    %v5785 = vpop.f32.mrf.mxu0
    %v5786 = vadd.f32 %v5737, %v5785
    %5787 = vmatmul.bf16.gmra.mxu0 %v3149
    %v5788 = vpop.f32.mrf.mxu0
    %v5789 = vadd.f32 %v5740, %v5788
    %v5790 = vpop.f32.mrf.mxu0
    %v5791 = vadd.f32 %v5742, %v5790
    %5792 = vmatmul.bf16.gmra.mxu0 %v3152
    %v5793 = vpop.f32.mrf.mxu0
    %v5794 = vadd.f32 %v5745, %v5793
    %v5795 = vpop.f32.mrf.mxu0
    %v5796 = vadd.f32 %v5747, %v5795
    %5797 = vmatmul.bf16.gmra.mxu0 %v3155
    %v5798 = vpop.f32.mrf.mxu0
    %v5799 = vadd.f32 %v5750, %v5798
    %v5800 = vpop.f32.mrf.mxu0
    %v5801 = vadd.f32 %v5752, %v5800
    %5802 = vmatmul.bf16.gmra.mxu0 %v3158
    %v5803 = vpop.f32.mrf.mxu0
    %v5804 = vadd.f32 %v5755, %v5803
    %v5805 = vpop.f32.mrf.mxu0
    %v5806 = vadd.f32 %v5757, %v5805
    %5807 = vmatmul.bf16.gmra.mxu0 %v3161
    %v5808 = vpop.f32.mrf.mxu0
    %v5809 = vadd.f32 %v5760, %v5808
    %v5810 = vpop.f32.mrf.mxu0
    %v5811 = vadd.f32 %v5762, %v5810
    %5812 = vmatmul.bf16.gmra.mxu0 %v3164
    %v5813 = vpop.f32.mrf.mxu0
    %v5814 = vadd.f32 %v5765, %v5813
    %v5815 = vpop.f32.mrf.mxu0
    %v5816 = vadd.f32 %v5767, %v5815
    %5817 = vmatmul.bf16.gmra.mxu0 %v3167
    %v5818 = vpop.f32.mrf.mxu0
    %v5819 = vadd.f32 %v5770, %v5818
    %v5820 = vpop.f32.mrf.mxu0
    %v5821 = vadd.f32 %v5772, %v5820
    %5822 = vdwg.mxu0
    %s5823 = scalar_lea.vmem [#allocation16], 5
    %v5824 = vld [vmem:[%s5823] sm:$0x1]
    %v5826 = vperm.slane %v5824, 0
    %v5828 = vadd.f32 %v5784, %v5826
    %v5829 = vadd.f32 %v5786, %v5826
    %v5830 = vadd.f32 %v5789, %v5826
    %v5831 = vadd.f32 %v5791, %v5826
    %v5832 = vadd.f32 %v5794, %v5826
    %v5833 = vadd.f32 %v5796, %v5826
    %v5834 = vadd.f32 %v5799, %v5826
    %v5835 = vadd.f32 %v5801, %v5826
    %v5836 = vadd.f32 %v5804, %v5826
    %v5837 = vadd.f32 %v5806, %v5826
    %v5838 = vadd.f32 %v5809, %v5826
    %v5839 = vadd.f32 %v5811, %v5826
    %v5840 = vadd.f32 %v5814, %v5826
    %v5841 = vadd.f32 %v5816, %v5826
    %v5842 = vadd.f32 %v5819, %v5826
    %v5843 = vadd.f32 %v5821, %v5826
    %v5844 = vmax.f32 %v5828, 0.0
    %v5845 = vmax.f32 %v5829, 0.0
    %v5846 = vmax.f32 %v5830, 0.0
    %v5847 = vmax.f32 %v5831, 0.0
    %v5848 = vmax.f32 %v5832, 0.0
    %v5849 = vmax.f32 %v5833, 0.0
    %v5850 = vmax.f32 %v5834, 0.0
    %v5851 = vmax.f32 %v5835, 0.0
    %v5852 = vmax.f32 %v5836, 0.0
    %v5853 = vmax.f32 %v5837, 0.0
    %v5854 = vmax.f32 %v5838, 0.0
    %v5855 = vmax.f32 %v5839, 0.0
    %v5856 = vmax.f32 %v5840, 0.0
    %v5857 = vmax.f32 %v5841, 0.0
    %v5858 = vmax.f32 %v5842, 0.0
    %v5859 = vmax.f32 %v5843, 0.0
    %v5860 = vpack.c.bf16 %v5845, %v5844
    %v5861 = vpack.c.bf16 %v5847, %v5846
    %v5862 = vpack.c.bf16 %v5849, %v5848
    %v5863 = vpack.c.bf16 %v5851, %v5850
    %v5864 = vpack.c.bf16 %v5853, %v5852
    %v5865 = vpack.c.bf16 %v5855, %v5854
    %v5866 = vpack.c.bf16 %v5857, %v5856
    %v5867 = vpack.c.bf16 %v5859, %v5858
    %s5868 = scalar_lea.vmem [#allocation10], 384
    %v5869 = vld [vmem:[%s5868] sm:$0xff]
    %v5870 = vld [vmem:[%s5868 + $0x8] sm:$0xf]
    %v5871 = vld [vmem:[%s5868 + $0xc] sm:$0xff]
    %v5872 = vld [vmem:[%s5868 + $0x14] sm:$0xf]
    %v5873 = vld [vmem:[%s5868 + $0x18] sm:$0xff]
    %v5874 = vld [vmem:[%s5868 + $0x20] sm:$0xf]
    %v5875 = vld [vmem:[%s5868 + $0x24] sm:$0xff]
    %v5876 = vld [vmem:[%s5868 + $0x2c] sm:$0xf]
    %v5877 = vld [vmem:[%s5868 + $0x30] sm:$0xff]
    %v5878 = vld [vmem:[%s5868 + $0x38] sm:$0xf]
    %v5879 = vld [vmem:[%s5868 + $0x3c] sm:$0xff]
    %v5880 = vld [vmem:[%s5868 + $0x44] sm:$0xf]
    %v5881 = vld [vmem:[%s5868 + $0x48] sm:$0xff]
    %v5882 = vld [vmem:[%s5868 + $0x50] sm:$0xf]
    %v5883 = vld [vmem:[%s5868 + $0x54] sm:$0xff]
    %v5884 = vld [vmem:[%s5868 + $0x5c] sm:$0xf]
    %v5885 = vld [vmem:[%s5868 + $0x60] sm:$0xff]
    %v5886 = vld [vmem:[%s5868 + $0x68] sm:$0xf]
    %v5887 = vld [vmem:[%s5868 + $0x6c] sm:$0xff]
    %v5888 = vld [vmem:[%s5868 + $0x74] sm:$0xf]
    %v5889 = vld [vmem:[%s5868 + $0x78] sm:$0xff]
    %v5890 = vld [vmem:[%s5868 + $0x80] sm:$0xf]
    %v5891 = vld [vmem:[%s5868 + $0x84] sm:$0xff]
    %v5892 = vld [vmem:[%s5868 + $0x8c] sm:$0xf]
    %v5893 = vld [vmem:[%s5868 + $0x90] sm:$0xff]
    %v5894 = vld [vmem:[%s5868 + $0x98] sm:$0xf]
    %v5895 = vld [vmem:[%s5868 + $0x9c] sm:$0xff]
    %v5896 = vld [vmem:[%s5868 + $0xa4] sm:$0xf]
    %v5897 = vld [vmem:[%s5868 + $0xa8] sm:$0xff]
    %v5898 = vld [vmem:[%s5868 + $0xb0] sm:$0xf]
    %v5899 = vld [vmem:[%s5868 + $0xb4] sm:$0xff]
    %v5900 = vld [vmem:[%s5868 + $0xbc] sm:$0xf]
    %v5933 = vunpack.c.l.b16 %v5869
    %v5934 = vunpack.c.h.b16 %v5869
    %v5935 = vunpack.c.l.b16 %v5870
    %v5936 = vunpack.c.l.b16 %v5871
    %v5937 = vunpack.c.h.b16 %v5871
    %v5938 = vunpack.c.l.b16 %v5872
    %v5939 = vunpack.c.l.b16 %v5873
    %v5940 = vunpack.c.h.b16 %v5873
    %v5941 = vunpack.c.l.b16 %v5874
    %v5942 = vunpack.c.l.b16 %v5875
    %v5943 = vunpack.c.h.b16 %v5875
    %v5944 = vunpack.c.l.b16 %v5876
    %v5945 = vunpack.c.l.b16 %v5877
    %v5946 = vunpack.c.h.b16 %v5877
    %v5947 = vunpack.c.l.b16 %v5878
    %v5948 = vunpack.c.l.b16 %v5879
    %v5949 = vunpack.c.h.b16 %v5879
    %v5950 = vunpack.c.l.b16 %v5880
    %v5951 = vunpack.c.l.b16 %v5881
    %v5952 = vunpack.c.h.b16 %v5881
    %v5953 = vunpack.c.l.b16 %v5882
    %v5954 = vunpack.c.l.b16 %v5883
    %v5955 = vunpack.c.h.b16 %v5883
    %v5956 = vunpack.c.l.b16 %v5884
    %v5957 = vunpack.c.l.b16 %v5885
    %v5958 = vunpack.c.h.b16 %v5885
    %v5959 = vunpack.c.l.b16 %v5886
    %v5960 = vunpack.c.l.b16 %v5887
    %v5961 = vunpack.c.h.b16 %v5887
    %v5962 = vunpack.c.l.b16 %v5888
    %v5963 = vunpack.c.l.b16 %v5889
    %v5964 = vunpack.c.h.b16 %v5889
    %v5965 = vunpack.c.l.b16 %v5890
    %v5966 = vunpack.c.l.b16 %v5891
    %v5967 = vunpack.c.h.b16 %v5891
    %v5968 = vunpack.c.l.b16 %v5892
    %v5969 = vunpack.c.l.b16 %v5893
    %v5970 = vunpack.c.h.b16 %v5893
    %v5971 = vunpack.c.l.b16 %v5894
    %v5972 = vunpack.c.l.b16 %v5895
    %v5973 = vunpack.c.h.b16 %v5895
    %v5974 = vunpack.c.l.b16 %v5896
    %v5975 = vunpack.c.l.b16 %v5897
    %v5976 = vunpack.c.h.b16 %v5897
    %v5977 = vunpack.c.l.b16 %v5898
    %v5978 = vunpack.c.l.b16 %v5899
    %v5979 = vunpack.c.h.b16 %v5899
    %v5980 = vunpack.c.l.b16 %v5900
    %v5981 = vpack.c.b16 %v5936, %v5933
    %v5982 = vpack.c.b16 %v5937, %v5934
    %v5983 = vpack.c.b16 %v5938, %v5935
    %v5984 = vpack.c.b16 %v5942, %v5939
    %v5985 = vpack.c.b16 %v5943, %v5940
    %v5986 = vpack.c.b16 %v5944, %v5941
    %v5987 = vpack.c.b16 %v5948, %v5945
    %v5988 = vpack.c.b16 %v5949, %v5946
    %v5989 = vpack.c.b16 %v5950, %v5947
    %v5990 = vpack.c.b16 %v5954, %v5951
    %v5991 = vpack.c.b16 %v5955, %v5952
    %v5992 = vpack.c.b16 %v5956, %v5953
    %v5993 = vpack.c.b16 %v5960, %v5957
    %v5994 = vpack.c.b16 %v5961, %v5958
    %v5995 = vpack.c.b16 %v5962, %v5959
    %v5996 = vpack.c.b16 %v5966, %v5963
    %v5997 = vpack.c.b16 %v5967, %v5964
    %v5998 = vpack.c.b16 %v5968, %v5965
    %v5999 = vpack.c.b16 %v5972, %v5969
    %v6000 = vpack.c.b16 %v5973, %v5970
    %v6001 = vpack.c.b16 %v5974, %v5971
    %v6002 = vpack.c.b16 %v5978, %v5975
    %v6003 = vpack.c.b16 %v5979, %v5976
    %v6004 = vpack.c.b16 %v5980, %v5977
    %6029 = vmatpush.bf16.msra.mxu0 %v6002
    %6030 = vmatpush.bf16.msra.mxu0 %v5999
    %6031 = vmatpush.bf16.msra.mxu0 %v5996
    %6032 = vmatpush.bf16.msra.mxu0 %v5993
    %6033 = vmatpush.bf16.msra.mxu0 %v5990
    %6034 = vmatpush.bf16.msra.mxu0 %v5987
    %6035 = vmatpush.bf16.msra.mxu0 %v5984
    %6036 = vmatpush.bf16.msra.mxu0 %v5981
    %6037 = vmatmul.bf16.gmra.mxu0 %v4927
    %v6038 = vpop.f32.mrf.mxu0
    %v6039 = vadd.f32 0.0, %v6038
    %v6040 = vpop.f32.mrf.mxu0
    %v6041 = vadd.f32 0.0, %v6040
    %6042 = vmatmul.bf16.gmra.mxu0 %v4928
    %v6043 = vpop.f32.mrf.mxu0
    %v6044 = vadd.f32 0.0, %v6043
    %v6045 = vpop.f32.mrf.mxu0
    %v6046 = vadd.f32 0.0, %v6045
    %6047 = vmatmul.bf16.gmra.mxu0 %v4929
    %v6048 = vpop.f32.mrf.mxu0
    %v6049 = vadd.f32 0.0, %v6048
    %v6050 = vpop.f32.mrf.mxu0
    %v6051 = vadd.f32 0.0, %v6050
    %6052 = vmatmul.bf16.gmra.mxu0 %v4930
    %v6053 = vpop.f32.mrf.mxu0
    %v6054 = vadd.f32 0.0, %v6053
    %v6055 = vpop.f32.mrf.mxu0
    %v6056 = vadd.f32 0.0, %v6055
    %6057 = vmatmul.bf16.gmra.mxu0 %v4931
    %v6058 = vpop.f32.mrf.mxu0
    %v6059 = vadd.f32 0.0, %v6058
    %v6060 = vpop.f32.mrf.mxu0
    %v6061 = vadd.f32 0.0, %v6060
    %6062 = vmatmul.bf16.gmra.mxu0 %v4932
    %v6063 = vpop.f32.mrf.mxu0
    %v6064 = vadd.f32 0.0, %v6063
    %v6065 = vpop.f32.mrf.mxu0
    %v6066 = vadd.f32 0.0, %v6065
    %6067 = vmatmul.bf16.gmra.mxu0 %v4933
    %v6068 = vpop.f32.mrf.mxu0
    %v6069 = vadd.f32 0.0, %v6068
    %v6070 = vpop.f32.mrf.mxu0
    %v6071 = vadd.f32 0.0, %v6070
    %6072 = vmatmul.bf16.gmra.mxu0 %v4934
    %v6073 = vpop.f32.mrf.mxu0
    %v6074 = vadd.f32 0.0, %v6073
    %v6075 = vpop.f32.mrf.mxu0
    %v6076 = vadd.f32 0.0, %v6075
    %6077 = vdwg.mxu0
    %6078 = vmatpush.bf16.msra.mxu0 %v6003
    %6079 = vmatpush.bf16.msra.mxu0 %v6000
    %6080 = vmatpush.bf16.msra.mxu0 %v5997
    %6081 = vmatpush.bf16.msra.mxu0 %v5994
    %6082 = vmatpush.bf16.msra.mxu0 %v5991
    %6083 = vmatpush.bf16.msra.mxu0 %v5988
    %6084 = vmatpush.bf16.msra.mxu0 %v5985
    %6085 = vmatpush.bf16.msra.mxu0 %v5982
    %6086 = vmatmul.bf16.gmra.mxu0 %v4927
    %v6087 = vpop.f32.mrf.mxu0
    %v6088 = vadd.f32 0.0, %v6087
    %v6089 = vpop.f32.mrf.mxu0
    %v6090 = vadd.f32 0.0, %v6089
    %6091 = vmatmul.bf16.gmra.mxu0 %v4928
    %v6092 = vpop.f32.mrf.mxu0
    %v6093 = vadd.f32 0.0, %v6092
    %v6094 = vpop.f32.mrf.mxu0
    %v6095 = vadd.f32 0.0, %v6094
    %6096 = vmatmul.bf16.gmra.mxu0 %v4929
    %v6097 = vpop.f32.mrf.mxu0
    %v6098 = vadd.f32 0.0, %v6097
    %v6099 = vpop.f32.mrf.mxu0
    %v6100 = vadd.f32 0.0, %v6099
    %6101 = vmatmul.bf16.gmra.mxu0 %v4930
    %v6102 = vpop.f32.mrf.mxu0
    %v6103 = vadd.f32 0.0, %v6102
    %v6104 = vpop.f32.mrf.mxu0
    %v6105 = vadd.f32 0.0, %v6104
    %6106 = vmatmul.bf16.gmra.mxu0 %v4931
    %v6107 = vpop.f32.mrf.mxu0
    %v6108 = vadd.f32 0.0, %v6107
    %v6109 = vpop.f32.mrf.mxu0
    %v6110 = vadd.f32 0.0, %v6109
    %6111 = vmatmul.bf16.gmra.mxu0 %v4932
    %v6112 = vpop.f32.mrf.mxu0
    %v6113 = vadd.f32 0.0, %v6112
    %v6114 = vpop.f32.mrf.mxu0
    %v6115 = vadd.f32 0.0, %v6114
    %6116 = vmatmul.bf16.gmra.mxu0 %v4933
    %v6117 = vpop.f32.mrf.mxu0
    %v6118 = vadd.f32 0.0, %v6117
    %v6119 = vpop.f32.mrf.mxu0
    %v6120 = vadd.f32 0.0, %v6119
    %6121 = vmatmul.bf16.gmra.mxu0 %v4934
    %v6122 = vpop.f32.mrf.mxu0
    %v6123 = vadd.f32 0.0, %v6122
    %v6124 = vpop.f32.mrf.mxu0
    %v6125 = vadd.f32 0.0, %v6124
    %6126 = vdwg.mxu0
    %6127 = vmatpush.bf16.msra.mxu0 %v6004
    %6128 = vmatpush.bf16.msra.mxu0 %v6001
    %6129 = vmatpush.bf16.msra.mxu0 %v5998
    %6130 = vmatpush.bf16.msra.mxu0 %v5995
    %6131 = vmatpush.bf16.msra.mxu0 %v5992
    %6132 = vmatpush.bf16.msra.mxu0 %v5989
    %6133 = vmatpush.bf16.msra.mxu0 %v5986
    %6134 = vmatpush.bf16.msra.mxu0 %v5983
    %6135 = vmatmul.bf16.gmra.mxu0 %v4927
    %v6136 = vpop.f32.mrf.mxu0
    %v6137 = vadd.f32 0.0, %v6136
    %v6138 = vpop.f32.mrf.mxu0
    %v6139 = vadd.f32 0.0, %v6138
    %6140 = vmatmul.bf16.gmra.mxu0 %v4928
    %v6141 = vpop.f32.mrf.mxu0
    %v6142 = vadd.f32 0.0, %v6141
    %v6143 = vpop.f32.mrf.mxu0
    %v6144 = vadd.f32 0.0, %v6143
    %6145 = vmatmul.bf16.gmra.mxu0 %v4929
    %v6146 = vpop.f32.mrf.mxu0
    %v6147 = vadd.f32 0.0, %v6146
    %v6148 = vpop.f32.mrf.mxu0
    %v6149 = vadd.f32 0.0, %v6148
    %6150 = vmatmul.bf16.gmra.mxu0 %v4930
    %v6151 = vpop.f32.mrf.mxu0
    %v6152 = vadd.f32 0.0, %v6151
    %v6153 = vpop.f32.mrf.mxu0
    %v6154 = vadd.f32 0.0, %v6153
    %6155 = vmatmul.bf16.gmra.mxu0 %v4931
    %v6156 = vpop.f32.mrf.mxu0
    %v6157 = vadd.f32 0.0, %v6156
    %v6158 = vpop.f32.mrf.mxu0
    %v6159 = vadd.f32 0.0, %v6158
    %6160 = vmatmul.bf16.gmra.mxu0 %v4932
    %v6161 = vpop.f32.mrf.mxu0
    %v6162 = vadd.f32 0.0, %v6161
    %v6163 = vpop.f32.mrf.mxu0
    %v6164 = vadd.f32 0.0, %v6163
    %6165 = vmatmul.bf16.gmra.mxu0 %v4933
    %v6166 = vpop.f32.mrf.mxu0
    %v6167 = vadd.f32 0.0, %v6166
    %v6168 = vpop.f32.mrf.mxu0
    %v6169 = vadd.f32 0.0, %v6168
    %6170 = vmatmul.bf16.gmra.mxu0 %v4934
    %v6171 = vpop.f32.mrf.mxu0
    %v6172 = vadd.f32 0.0, %v6171
    %v6173 = vpop.f32.mrf.mxu0
    %v6174 = vadd.f32 0.0, %v6173
    %6175 = vdwg.mxu0
    %v6176 = vpack.c.bf16 %v6088, %v6039
    %v6177 = vpack.c.bf16 %v6137, %v6137
    %v6178 = vpack.c.bf16 %v6090, %v6041
    %v6179 = vpack.c.bf16 %v6139, %v6139
    %v6180 = vpack.c.bf16 %v6093, %v6044
    %v6181 = vpack.c.bf16 %v6142, %v6142
    %v6182 = vpack.c.bf16 %v6095, %v6046
    %v6183 = vpack.c.bf16 %v6144, %v6144
    %v6184 = vpack.c.bf16 %v6098, %v6049
    %v6185 = vpack.c.bf16 %v6147, %v6147
    %v6186 = vpack.c.bf16 %v6100, %v6051
    %v6187 = vpack.c.bf16 %v6149, %v6149
    %v6188 = vpack.c.bf16 %v6103, %v6054
    %v6189 = vpack.c.bf16 %v6152, %v6152
    %v6190 = vpack.c.bf16 %v6105, %v6056
    %v6191 = vpack.c.bf16 %v6154, %v6154
    %v6192 = vpack.c.bf16 %v6108, %v6059
    %v6193 = vpack.c.bf16 %v6157, %v6157
    %v6194 = vpack.c.bf16 %v6110, %v6061
    %v6195 = vpack.c.bf16 %v6159, %v6159
    %v6196 = vpack.c.bf16 %v6113, %v6064
    %v6197 = vpack.c.bf16 %v6162, %v6162
    %v6198 = vpack.c.bf16 %v6115, %v6066
    %v6199 = vpack.c.bf16 %v6164, %v6164
    %v6200 = vpack.c.bf16 %v6118, %v6069
    %v6201 = vpack.c.bf16 %v6167, %v6167
    %v6202 = vpack.c.bf16 %v6120, %v6071
    %v6203 = vpack.c.bf16 %v6169, %v6169
    %v6204 = vpack.c.bf16 %v6123, %v6074
    %v6205 = vpack.c.bf16 %v6172, %v6172
    %v6206 = vpack.c.bf16 %v6125, %v6076
    %v6207 = vpack.c.bf16 %v6174, %v6174
    %s6208 = scalar_lea.vmem [#allocation11], 512
    %v6209 = vld [vmem:[%s6208] sm:$0xff]
    %v6210 = vld [vmem:[%s6208 + $0x8] sm:$0xff]
    %v6211 = vld [vmem:[%s6208 + $0x10] sm:$0xff]
    %v6212 = vld [vmem:[%s6208 + $0x18] sm:$0xff]
    %v6213 = vld [vmem:[%s6208 + $0x20] sm:$0xff]
    %v6214 = vld [vmem:[%s6208 + $0x28] sm:$0xff]
    %v6215 = vld [vmem:[%s6208 + $0x30] sm:$0xff]
    %v6216 = vld [vmem:[%s6208 + $0x38] sm:$0xff]
    %v6217 = vld [vmem:[%s6208 + $0x40] sm:$0xff]
    %v6218 = vld [vmem:[%s6208 + $0x48] sm:$0xff]
    %v6219 = vld [vmem:[%s6208 + $0x50] sm:$0xff]
    %v6220 = vld [vmem:[%s6208 + $0x58] sm:$0xff]
    %v6221 = vld [vmem:[%s6208 + $0x60] sm:$0xff]
    %v6222 = vld [vmem:[%s6208 + $0x68] sm:$0xff]
    %v6223 = vld [vmem:[%s6208 + $0x70] sm:$0xff]
    %v6224 = vld [vmem:[%s6208 + $0x78] sm:$0xff]
    %v6225 = vld [vmem:[%s6208 + $0x80] sm:$0xff]
    %v6226 = vld [vmem:[%s6208 + $0x88] sm:$0xff]
    %v6227 = vld [vmem:[%s6208 + $0x90] sm:$0xff]
    %v6228 = vld [vmem:[%s6208 + $0x98] sm:$0xff]
    %v6229 = vld [vmem:[%s6208 + $0xa0] sm:$0xff]
    %v6230 = vld [vmem:[%s6208 + $0xa8] sm:$0xff]
    %v6231 = vld [vmem:[%s6208 + $0xb0] sm:$0xff]
    %v6232 = vld [vmem:[%s6208 + $0xb8] sm:$0xff]
    %v6233 = vld [vmem:[%s6208 + $0xc0] sm:$0xff]
    %v6234 = vld [vmem:[%s6208 + $0xc8] sm:$0xff]
    %v6235 = vld [vmem:[%s6208 + $0xd0] sm:$0xff]
    %v6236 = vld [vmem:[%s6208 + $0xd8] sm:$0xff]
    %v6237 = vld [vmem:[%s6208 + $0xe0] sm:$0xff]
    %v6238 = vld [vmem:[%s6208 + $0xe8] sm:$0xff]
    %v6239 = vld [vmem:[%s6208 + $0xf0] sm:$0xff]
    %v6240 = vld [vmem:[%s6208 + $0xf8] sm:$0xff]
    %v6273 = vunpack.c.l.b16 %v6209
    %v6274 = vunpack.c.h.b16 %v6209
    %v6275 = vunpack.c.l.b16 %v6210
    %v6276 = vunpack.c.h.b16 %v6210
    %v6277 = vunpack.c.l.b16 %v6211
    %v6278 = vunpack.c.h.b16 %v6211
    %v6279 = vunpack.c.l.b16 %v6212
    %v6280 = vunpack.c.h.b16 %v6212
    %v6281 = vunpack.c.l.b16 %v6213
    %v6282 = vunpack.c.h.b16 %v6213
    %v6283 = vunpack.c.l.b16 %v6214
    %v6284 = vunpack.c.h.b16 %v6214
    %v6285 = vunpack.c.l.b16 %v6215
    %v6286 = vunpack.c.h.b16 %v6215
    %v6287 = vunpack.c.l.b16 %v6216
    %v6288 = vunpack.c.h.b16 %v6216
    %v6289 = vunpack.c.l.b16 %v6217
    %v6290 = vunpack.c.h.b16 %v6217
    %v6291 = vunpack.c.l.b16 %v6218
    %v6292 = vunpack.c.h.b16 %v6218
    %v6293 = vunpack.c.l.b16 %v6219
    %v6294 = vunpack.c.h.b16 %v6219
    %v6295 = vunpack.c.l.b16 %v6220
    %v6296 = vunpack.c.h.b16 %v6220
    %v6297 = vunpack.c.l.b16 %v6221
    %v6298 = vunpack.c.h.b16 %v6221
    %v6299 = vunpack.c.l.b16 %v6222
    %v6300 = vunpack.c.h.b16 %v6222
    %v6301 = vunpack.c.l.b16 %v6223
    %v6302 = vunpack.c.h.b16 %v6223
    %v6303 = vunpack.c.l.b16 %v6224
    %v6304 = vunpack.c.h.b16 %v6224
    %v6305 = vunpack.c.l.b16 %v6225
    %v6306 = vunpack.c.h.b16 %v6225
    %v6307 = vunpack.c.l.b16 %v6226
    %v6308 = vunpack.c.h.b16 %v6226
    %v6309 = vunpack.c.l.b16 %v6227
    %v6310 = vunpack.c.h.b16 %v6227
    %v6311 = vunpack.c.l.b16 %v6228
    %v6312 = vunpack.c.h.b16 %v6228
    %v6313 = vunpack.c.l.b16 %v6229
    %v6314 = vunpack.c.h.b16 %v6229
    %v6315 = vunpack.c.l.b16 %v6230
    %v6316 = vunpack.c.h.b16 %v6230
    %v6317 = vunpack.c.l.b16 %v6231
    %v6318 = vunpack.c.h.b16 %v6231
    %v6319 = vunpack.c.l.b16 %v6232
    %v6320 = vunpack.c.h.b16 %v6232
    %v6321 = vunpack.c.l.b16 %v6233
    %v6322 = vunpack.c.h.b16 %v6233
    %v6323 = vunpack.c.l.b16 %v6234
    %v6324 = vunpack.c.h.b16 %v6234
    %v6325 = vunpack.c.l.b16 %v6235
    %v6326 = vunpack.c.h.b16 %v6235
    %v6327 = vunpack.c.l.b16 %v6236
    %v6328 = vunpack.c.h.b16 %v6236
    %v6329 = vunpack.c.l.b16 %v6237
    %v6330 = vunpack.c.h.b16 %v6237
    %v6331 = vunpack.c.l.b16 %v6238
    %v6332 = vunpack.c.h.b16 %v6238
    %v6333 = vunpack.c.l.b16 %v6239
    %v6334 = vunpack.c.h.b16 %v6239
    %v6335 = vunpack.c.l.b16 %v6240
    %v6336 = vunpack.c.h.b16 %v6240
    %v6337 = vpack.c.b16 %v6277, %v6273
    %v6338 = vpack.c.b16 %v6278, %v6274
    %v6339 = vpack.c.b16 %v6279, %v6275
    %v6340 = vpack.c.b16 %v6280, %v6276
    %v6341 = vpack.c.b16 %v6285, %v6281
    %v6342 = vpack.c.b16 %v6286, %v6282
    %v6343 = vpack.c.b16 %v6287, %v6283
    %v6344 = vpack.c.b16 %v6288, %v6284
    %v6345 = vpack.c.b16 %v6293, %v6289
    %v6346 = vpack.c.b16 %v6294, %v6290
    %v6347 = vpack.c.b16 %v6295, %v6291
    %v6348 = vpack.c.b16 %v6296, %v6292
    %v6349 = vpack.c.b16 %v6301, %v6297
    %v6350 = vpack.c.b16 %v6302, %v6298
    %v6351 = vpack.c.b16 %v6303, %v6299
    %v6352 = vpack.c.b16 %v6304, %v6300
    %v6353 = vpack.c.b16 %v6309, %v6305
    %v6354 = vpack.c.b16 %v6310, %v6306
    %v6355 = vpack.c.b16 %v6311, %v6307
    %v6356 = vpack.c.b16 %v6312, %v6308
    %v6357 = vpack.c.b16 %v6317, %v6313
    %v6358 = vpack.c.b16 %v6318, %v6314
    %v6359 = vpack.c.b16 %v6319, %v6315
    %v6360 = vpack.c.b16 %v6320, %v6316
    %v6361 = vpack.c.b16 %v6325, %v6321
    %v6362 = vpack.c.b16 %v6326, %v6322
    %v6363 = vpack.c.b16 %v6327, %v6323
    %v6364 = vpack.c.b16 %v6328, %v6324
    %v6365 = vpack.c.b16 %v6333, %v6329
    %v6366 = vpack.c.b16 %v6334, %v6330
    %v6367 = vpack.c.b16 %v6335, %v6331
    %v6368 = vpack.c.b16 %v6336, %v6332
    %6401 = vmatpush.bf16.msra.mxu0 %v6365
    %6402 = vmatpush.bf16.msra.mxu0 %v6361
    %6403 = vmatpush.bf16.msra.mxu0 %v6357
    %6404 = vmatpush.bf16.msra.mxu0 %v6353
    %6405 = vmatpush.bf16.msra.mxu0 %v6349
    %6406 = vmatpush.bf16.msra.mxu0 %v6345
    %6407 = vmatpush.bf16.msra.mxu0 %v6341
    %6408 = vmatpush.bf16.msra.mxu0 %v6337
    %6409 = vmatmul.bf16.gmra.mxu0 %v5442
    %v6410 = vpop.f32.mrf.mxu0
    %v6411 = vadd.f32 0.0, %v6410
    %v6412 = vpop.f32.mrf.mxu0
    %v6413 = vadd.f32 0.0, %v6412
    %6414 = vmatmul.bf16.gmra.mxu0 %v5443
    %v6415 = vpop.f32.mrf.mxu0
    %v6416 = vadd.f32 0.0, %v6415
    %v6417 = vpop.f32.mrf.mxu0
    %v6418 = vadd.f32 0.0, %v6417
    %6419 = vmatmul.bf16.gmra.mxu0 %v5444
    %v6420 = vpop.f32.mrf.mxu0
    %v6421 = vadd.f32 0.0, %v6420
    %v6422 = vpop.f32.mrf.mxu0
    %v6423 = vadd.f32 0.0, %v6422
    %6424 = vmatmul.bf16.gmra.mxu0 %v5445
    %v6425 = vpop.f32.mrf.mxu0
    %v6426 = vadd.f32 0.0, %v6425
    %v6427 = vpop.f32.mrf.mxu0
    %v6428 = vadd.f32 0.0, %v6427
    %6429 = vmatmul.bf16.gmra.mxu0 %v5446
    %v6430 = vpop.f32.mrf.mxu0
    %v6431 = vadd.f32 0.0, %v6430
    %v6432 = vpop.f32.mrf.mxu0
    %v6433 = vadd.f32 0.0, %v6432
    %6434 = vmatmul.bf16.gmra.mxu0 %v5447
    %v6435 = vpop.f32.mrf.mxu0
    %v6436 = vadd.f32 0.0, %v6435
    %v6437 = vpop.f32.mrf.mxu0
    %v6438 = vadd.f32 0.0, %v6437
    %6439 = vmatmul.bf16.gmra.mxu0 %v5448
    %v6440 = vpop.f32.mrf.mxu0
    %v6441 = vadd.f32 0.0, %v6440
    %v6442 = vpop.f32.mrf.mxu0
    %v6443 = vadd.f32 0.0, %v6442
    %6444 = vmatmul.bf16.gmra.mxu0 %v5449
    %v6445 = vpop.f32.mrf.mxu0
    %v6446 = vadd.f32 0.0, %v6445
    %v6447 = vpop.f32.mrf.mxu0
    %v6448 = vadd.f32 0.0, %v6447
    %6449 = vdwg.mxu0
    %6450 = vmatpush.bf16.msra.mxu0 %v6366
    %6451 = vmatpush.bf16.msra.mxu0 %v6362
    %6452 = vmatpush.bf16.msra.mxu0 %v6358
    %6453 = vmatpush.bf16.msra.mxu0 %v6354
    %6454 = vmatpush.bf16.msra.mxu0 %v6350
    %6455 = vmatpush.bf16.msra.mxu0 %v6346
    %6456 = vmatpush.bf16.msra.mxu0 %v6342
    %6457 = vmatpush.bf16.msra.mxu0 %v6338
    %6458 = vmatmul.bf16.gmra.mxu0 %v5442
    %v6459 = vpop.f32.mrf.mxu0
    %v6460 = vadd.f32 0.0, %v6459
    %v6461 = vpop.f32.mrf.mxu0
    %v6462 = vadd.f32 0.0, %v6461
    %6463 = vmatmul.bf16.gmra.mxu0 %v5443
    %v6464 = vpop.f32.mrf.mxu0
    %v6465 = vadd.f32 0.0, %v6464
    %v6466 = vpop.f32.mrf.mxu0
    %v6467 = vadd.f32 0.0, %v6466
    %6468 = vmatmul.bf16.gmra.mxu0 %v5444
    %v6469 = vpop.f32.mrf.mxu0
    %v6470 = vadd.f32 0.0, %v6469
    %v6471 = vpop.f32.mrf.mxu0
    %v6472 = vadd.f32 0.0, %v6471
    %6473 = vmatmul.bf16.gmra.mxu0 %v5445
    %v6474 = vpop.f32.mrf.mxu0
    %v6475 = vadd.f32 0.0, %v6474
    %v6476 = vpop.f32.mrf.mxu0
    %v6477 = vadd.f32 0.0, %v6476
    %6478 = vmatmul.bf16.gmra.mxu0 %v5446
    %v6479 = vpop.f32.mrf.mxu0
    %v6480 = vadd.f32 0.0, %v6479
    %v6481 = vpop.f32.mrf.mxu0
    %v6482 = vadd.f32 0.0, %v6481
    %6483 = vmatmul.bf16.gmra.mxu0 %v5447
    %v6484 = vpop.f32.mrf.mxu0
    %v6485 = vadd.f32 0.0, %v6484
    %v6486 = vpop.f32.mrf.mxu0
    %v6487 = vadd.f32 0.0, %v6486
    %6488 = vmatmul.bf16.gmra.mxu0 %v5448
    %v6489 = vpop.f32.mrf.mxu0
    %v6490 = vadd.f32 0.0, %v6489
    %v6491 = vpop.f32.mrf.mxu0
    %v6492 = vadd.f32 0.0, %v6491
    %6493 = vmatmul.bf16.gmra.mxu0 %v5449
    %v6494 = vpop.f32.mrf.mxu0
    %v6495 = vadd.f32 0.0, %v6494
    %v6496 = vpop.f32.mrf.mxu0
    %v6497 = vadd.f32 0.0, %v6496
    %6498 = vdwg.mxu0
    %6499 = vmatpush.bf16.msra.mxu0 %v6367
    %6500 = vmatpush.bf16.msra.mxu0 %v6363
    %6501 = vmatpush.bf16.msra.mxu0 %v6359
    %6502 = vmatpush.bf16.msra.mxu0 %v6355
    %6503 = vmatpush.bf16.msra.mxu0 %v6351
    %6504 = vmatpush.bf16.msra.mxu0 %v6347
    %6505 = vmatpush.bf16.msra.mxu0 %v6343
    %6506 = vmatpush.bf16.msra.mxu0 %v6339
    %6507 = vmatmul.bf16.gmra.mxu0 %v5442
    %v6508 = vpop.f32.mrf.mxu0
    %v6509 = vadd.f32 0.0, %v6508
    %v6510 = vpop.f32.mrf.mxu0
    %v6511 = vadd.f32 0.0, %v6510
    %6512 = vmatmul.bf16.gmra.mxu0 %v5443
    %v6513 = vpop.f32.mrf.mxu0
    %v6514 = vadd.f32 0.0, %v6513
    %v6515 = vpop.f32.mrf.mxu0
    %v6516 = vadd.f32 0.0, %v6515
    %6517 = vmatmul.bf16.gmra.mxu0 %v5444
    %v6518 = vpop.f32.mrf.mxu0
    %v6519 = vadd.f32 0.0, %v6518
    %v6520 = vpop.f32.mrf.mxu0
    %v6521 = vadd.f32 0.0, %v6520
    %6522 = vmatmul.bf16.gmra.mxu0 %v5445
    %v6523 = vpop.f32.mrf.mxu0
    %v6524 = vadd.f32 0.0, %v6523
    %v6525 = vpop.f32.mrf.mxu0
    %v6526 = vadd.f32 0.0, %v6525
    %6527 = vmatmul.bf16.gmra.mxu0 %v5446
    %v6528 = vpop.f32.mrf.mxu0
    %v6529 = vadd.f32 0.0, %v6528
    %v6530 = vpop.f32.mrf.mxu0
    %v6531 = vadd.f32 0.0, %v6530
    %6532 = vmatmul.bf16.gmra.mxu0 %v5447
    %v6533 = vpop.f32.mrf.mxu0
    %v6534 = vadd.f32 0.0, %v6533
    %v6535 = vpop.f32.mrf.mxu0
    %v6536 = vadd.f32 0.0, %v6535
    %6537 = vmatmul.bf16.gmra.mxu0 %v5448
    %v6538 = vpop.f32.mrf.mxu0
    %v6539 = vadd.f32 0.0, %v6538
    %v6540 = vpop.f32.mrf.mxu0
    %v6541 = vadd.f32 0.0, %v6540
    %6542 = vmatmul.bf16.gmra.mxu0 %v5449
    %v6543 = vpop.f32.mrf.mxu0
    %v6544 = vadd.f32 0.0, %v6543
    %v6545 = vpop.f32.mrf.mxu0
    %v6546 = vadd.f32 0.0, %v6545
    %6547 = vdwg.mxu0
    %6548 = vmatpush.bf16.msra.mxu0 %v6368
    %6549 = vmatpush.bf16.msra.mxu0 %v6364
    %6550 = vmatpush.bf16.msra.mxu0 %v6360
    %6551 = vmatpush.bf16.msra.mxu0 %v6356
    %6552 = vmatpush.bf16.msra.mxu0 %v6352
    %6553 = vmatpush.bf16.msra.mxu0 %v6348
    %6554 = vmatpush.bf16.msra.mxu0 %v6344
    %6555 = vmatpush.bf16.msra.mxu0 %v6340
    %6556 = vmatmul.bf16.gmra.mxu0 %v5442
    %v6557 = vpop.f32.mrf.mxu0
    %v6558 = vadd.f32 0.0, %v6557
    %v6559 = vpop.f32.mrf.mxu0
    %v6560 = vadd.f32 0.0, %v6559
    %6561 = vmatmul.bf16.gmra.mxu0 %v5443
    %v6562 = vpop.f32.mrf.mxu0
    %v6563 = vadd.f32 0.0, %v6562
    %v6564 = vpop.f32.mrf.mxu0
    %v6565 = vadd.f32 0.0, %v6564
    %6566 = vmatmul.bf16.gmra.mxu0 %v5444
    %v6567 = vpop.f32.mrf.mxu0
    %v6568 = vadd.f32 0.0, %v6567
    %v6569 = vpop.f32.mrf.mxu0
    %v6570 = vadd.f32 0.0, %v6569
    %6571 = vmatmul.bf16.gmra.mxu0 %v5445
    %v6572 = vpop.f32.mrf.mxu0
    %v6573 = vadd.f32 0.0, %v6572
    %v6574 = vpop.f32.mrf.mxu0
    %v6575 = vadd.f32 0.0, %v6574
    %6576 = vmatmul.bf16.gmra.mxu0 %v5446
    %v6577 = vpop.f32.mrf.mxu0
    %v6578 = vadd.f32 0.0, %v6577
    %v6579 = vpop.f32.mrf.mxu0
    %v6580 = vadd.f32 0.0, %v6579
    %6581 = vmatmul.bf16.gmra.mxu0 %v5447
    %v6582 = vpop.f32.mrf.mxu0
    %v6583 = vadd.f32 0.0, %v6582
    %v6584 = vpop.f32.mrf.mxu0
    %v6585 = vadd.f32 0.0, %v6584
    %6586 = vmatmul.bf16.gmra.mxu0 %v5448
    %v6587 = vpop.f32.mrf.mxu0
    %v6588 = vadd.f32 0.0, %v6587
    %v6589 = vpop.f32.mrf.mxu0
    %v6590 = vadd.f32 0.0, %v6589
    %6591 = vmatmul.bf16.gmra.mxu0 %v5449
    %v6592 = vpop.f32.mrf.mxu0
    %v6593 = vadd.f32 0.0, %v6592
    %v6594 = vpop.f32.mrf.mxu0
    %v6595 = vadd.f32 0.0, %v6594
    %6596 = vdwg.mxu0
    %v6597 = vpack.c.bf16 %v6460, %v6411
    %v6598 = vpack.c.bf16 %v6558, %v6509
    %v6599 = vpack.c.bf16 %v6462, %v6413
    %v6600 = vpack.c.bf16 %v6560, %v6511
    %v6601 = vpack.c.bf16 %v6465, %v6416
    %v6602 = vpack.c.bf16 %v6563, %v6514
    %v6603 = vpack.c.bf16 %v6467, %v6418
    %v6604 = vpack.c.bf16 %v6565, %v6516
    %v6605 = vpack.c.bf16 %v6470, %v6421
    %v6606 = vpack.c.bf16 %v6568, %v6519
    %v6607 = vpack.c.bf16 %v6472, %v6423
    %v6608 = vpack.c.bf16 %v6570, %v6521
    %v6609 = vpack.c.bf16 %v6475, %v6426
    %v6610 = vpack.c.bf16 %v6573, %v6524
    %v6611 = vpack.c.bf16 %v6477, %v6428
    %v6612 = vpack.c.bf16 %v6575, %v6526
    %v6613 = vpack.c.bf16 %v6480, %v6431
    %v6614 = vpack.c.bf16 %v6578, %v6529
    %v6615 = vpack.c.bf16 %v6482, %v6433
    %v6616 = vpack.c.bf16 %v6580, %v6531
    %v6617 = vpack.c.bf16 %v6485, %v6436
    %v6618 = vpack.c.bf16 %v6583, %v6534
    %v6619 = vpack.c.bf16 %v6487, %v6438
    %v6620 = vpack.c.bf16 %v6585, %v6536
    %v6621 = vpack.c.bf16 %v6490, %v6441
    %v6622 = vpack.c.bf16 %v6588, %v6539
    %v6623 = vpack.c.bf16 %v6492, %v6443
    %v6624 = vpack.c.bf16 %v6590, %v6541
    %v6625 = vpack.c.bf16 %v6495, %v6446
    %v6626 = vpack.c.bf16 %v6593, %v6544
    %v6627 = vpack.c.bf16 %v6497, %v6448
    %v6628 = vpack.c.bf16 %v6595, %v6546
    %s6629 = scalar_lea.vmem [#allocation13], 384
    %v6630 = vld [vmem:[%s6629] sm:$0xff]
    %v6631 = vld [vmem:[%s6629 + $0x8] sm:$0xf]
    %v6632 = vld [vmem:[%s6629 + $0xc] sm:$0xff]
    %v6633 = vld [vmem:[%s6629 + $0x14] sm:$0xf]
    %v6634 = vld [vmem:[%s6629 + $0x18] sm:$0xff]
    %v6635 = vld [vmem:[%s6629 + $0x20] sm:$0xf]
    %v6636 = vld [vmem:[%s6629 + $0x24] sm:$0xff]
    %v6637 = vld [vmem:[%s6629 + $0x2c] sm:$0xf]
    %v6638 = vld [vmem:[%s6629 + $0x30] sm:$0xff]
    %v6639 = vld [vmem:[%s6629 + $0x38] sm:$0xf]
    %v6640 = vld [vmem:[%s6629 + $0x3c] sm:$0xff]
    %v6641 = vld [vmem:[%s6629 + $0x44] sm:$0xf]
    %v6642 = vld [vmem:[%s6629 + $0x48] sm:$0xff]
    %v6643 = vld [vmem:[%s6629 + $0x50] sm:$0xf]
    %v6644 = vld [vmem:[%s6629 + $0x54] sm:$0xff]
    %v6645 = vld [vmem:[%s6629 + $0x5c] sm:$0xf]
    %v6646 = vld [vmem:[%s6629 + $0x60] sm:$0xff]
    %v6647 = vld [vmem:[%s6629 + $0x68] sm:$0xf]
    %v6648 = vld [vmem:[%s6629 + $0x6c] sm:$0xff]
    %v6649 = vld [vmem:[%s6629 + $0x74] sm:$0xf]
    %v6650 = vld [vmem:[%s6629 + $0x78] sm:$0xff]
    %v6651 = vld [vmem:[%s6629 + $0x80] sm:$0xf]
    %v6652 = vld [vmem:[%s6629 + $0x84] sm:$0xff]
    %v6653 = vld [vmem:[%s6629 + $0x8c] sm:$0xf]
    %v6654 = vld [vmem:[%s6629 + $0x90] sm:$0xff]
    %v6655 = vld [vmem:[%s6629 + $0x98] sm:$0xf]
    %v6656 = vld [vmem:[%s6629 + $0x9c] sm:$0xff]
    %v6657 = vld [vmem:[%s6629 + $0xa4] sm:$0xf]
    %v6658 = vld [vmem:[%s6629 + $0xa8] sm:$0xff]
    %v6659 = vld [vmem:[%s6629 + $0xb0] sm:$0xf]
    %v6660 = vld [vmem:[%s6629 + $0xb4] sm:$0xff]
    %v6661 = vld [vmem:[%s6629 + $0xbc] sm:$0xf]
    %v6694 = vunpack.c.l.b16 %v6630
    %v6695 = vunpack.c.h.b16 %v6630
    %v6696 = vunpack.c.l.b16 %v6631
    %v6697 = vunpack.c.l.b16 %v6632
    %v6698 = vunpack.c.h.b16 %v6632
    %v6699 = vunpack.c.l.b16 %v6633
    %v6700 = vunpack.c.l.b16 %v6634
    %v6701 = vunpack.c.h.b16 %v6634
    %v6702 = vunpack.c.l.b16 %v6635
    %v6703 = vunpack.c.l.b16 %v6636
    %v6704 = vunpack.c.h.b16 %v6636
    %v6705 = vunpack.c.l.b16 %v6637
    %v6706 = vunpack.c.l.b16 %v6638
    %v6707 = vunpack.c.h.b16 %v6638
    %v6708 = vunpack.c.l.b16 %v6639
    %v6709 = vunpack.c.l.b16 %v6640
    %v6710 = vunpack.c.h.b16 %v6640
    %v6711 = vunpack.c.l.b16 %v6641
    %v6712 = vunpack.c.l.b16 %v6642
    %v6713 = vunpack.c.h.b16 %v6642
    %v6714 = vunpack.c.l.b16 %v6643
    %v6715 = vunpack.c.l.b16 %v6644
    %v6716 = vunpack.c.h.b16 %v6644
    %v6717 = vunpack.c.l.b16 %v6645
    %v6718 = vunpack.c.l.b16 %v6646
    %v6719 = vunpack.c.h.b16 %v6646
    %v6720 = vunpack.c.l.b16 %v6647
    %v6721 = vunpack.c.l.b16 %v6648
    %v6722 = vunpack.c.h.b16 %v6648
    %v6723 = vunpack.c.l.b16 %v6649
    %v6724 = vunpack.c.l.b16 %v6650
    %v6725 = vunpack.c.h.b16 %v6650
    %v6726 = vunpack.c.l.b16 %v6651
    %v6727 = vunpack.c.l.b16 %v6652
    %v6728 = vunpack.c.h.b16 %v6652
    %v6729 = vunpack.c.l.b16 %v6653
    %v6730 = vunpack.c.l.b16 %v6654
    %v6731 = vunpack.c.h.b16 %v6654
    %v6732 = vunpack.c.l.b16 %v6655
    %v6733 = vunpack.c.l.b16 %v6656
    %v6734 = vunpack.c.h.b16 %v6656
    %v6735 = vunpack.c.l.b16 %v6657
    %v6736 = vunpack.c.l.b16 %v6658
    %v6737 = vunpack.c.h.b16 %v6658
    %v6738 = vunpack.c.l.b16 %v6659
    %v6739 = vunpack.c.l.b16 %v6660
    %v6740 = vunpack.c.h.b16 %v6660
    %v6741 = vunpack.c.l.b16 %v6661
    %v6742 = vpack.c.b16 %v6697, %v6694
    %v6743 = vpack.c.b16 %v6698, %v6695
    %v6744 = vpack.c.b16 %v6699, %v6696
    %v6745 = vpack.c.b16 %v6703, %v6700
    %v6746 = vpack.c.b16 %v6704, %v6701
    %v6747 = vpack.c.b16 %v6705, %v6702
    %v6748 = vpack.c.b16 %v6709, %v6706
    %v6749 = vpack.c.b16 %v6710, %v6707
    %v6750 = vpack.c.b16 %v6711, %v6708
    %v6751 = vpack.c.b16 %v6715, %v6712
    %v6752 = vpack.c.b16 %v6716, %v6713
    %v6753 = vpack.c.b16 %v6717, %v6714
    %v6754 = vpack.c.b16 %v6721, %v6718
    %v6755 = vpack.c.b16 %v6722, %v6719
    %v6756 = vpack.c.b16 %v6723, %v6720
    %v6757 = vpack.c.b16 %v6727, %v6724
    %v6758 = vpack.c.b16 %v6728, %v6725
    %v6759 = vpack.c.b16 %v6729, %v6726
    %v6760 = vpack.c.b16 %v6733, %v6730
    %v6761 = vpack.c.b16 %v6734, %v6731
    %v6762 = vpack.c.b16 %v6735, %v6732
    %v6763 = vpack.c.b16 %v6739, %v6736
    %v6764 = vpack.c.b16 %v6740, %v6737
    %v6765 = vpack.c.b16 %v6741, %v6738
    %6790 = vmatpush.bf16.msra.mxu0 %v6763
    %6791 = vmatpush.bf16.msra.mxu0 %v6760
    %6792 = vmatpush.bf16.msra.mxu0 %v6757
    %6793 = vmatpush.bf16.msra.mxu0 %v6754
    %6794 = vmatpush.bf16.msra.mxu0 %v6751
    %6795 = vmatpush.bf16.msra.mxu0 %v6748
    %6796 = vmatpush.bf16.msra.mxu0 %v6745
    %6797 = vmatpush.bf16.msra.mxu0 %v6742
    %6798 = vmatmul.bf16.gmra.mxu0 %v5860
    %v6799 = vpop.f32.mrf.mxu0
    %v6800 = vadd.f32 0.0, %v6799
    %v6801 = vpop.f32.mrf.mxu0
    %v6802 = vadd.f32 0.0, %v6801
    %6803 = vmatmul.bf16.gmra.mxu0 %v5861
    %v6804 = vpop.f32.mrf.mxu0
    %v6805 = vadd.f32 0.0, %v6804
    %v6806 = vpop.f32.mrf.mxu0
    %v6807 = vadd.f32 0.0, %v6806
    %6808 = vmatmul.bf16.gmra.mxu0 %v5862
    %v6809 = vpop.f32.mrf.mxu0
    %v6810 = vadd.f32 0.0, %v6809
    %v6811 = vpop.f32.mrf.mxu0
    %v6812 = vadd.f32 0.0, %v6811
    %6813 = vmatmul.bf16.gmra.mxu0 %v5863
    %v6814 = vpop.f32.mrf.mxu0
    %v6815 = vadd.f32 0.0, %v6814
    %v6816 = vpop.f32.mrf.mxu0
    %v6817 = vadd.f32 0.0, %v6816
    %6818 = vmatmul.bf16.gmra.mxu0 %v5864
    %v6819 = vpop.f32.mrf.mxu0
    %v6820 = vadd.f32 0.0, %v6819
    %v6821 = vpop.f32.mrf.mxu0
    %v6822 = vadd.f32 0.0, %v6821
    %6823 = vmatmul.bf16.gmra.mxu0 %v5865
    %v6824 = vpop.f32.mrf.mxu0
    %v6825 = vadd.f32 0.0, %v6824
    %v6826 = vpop.f32.mrf.mxu0
    %v6827 = vadd.f32 0.0, %v6826
    %6828 = vmatmul.bf16.gmra.mxu0 %v5866
    %v6829 = vpop.f32.mrf.mxu0
    %v6830 = vadd.f32 0.0, %v6829
    %v6831 = vpop.f32.mrf.mxu0
    %v6832 = vadd.f32 0.0, %v6831
    %6833 = vmatmul.bf16.gmra.mxu0 %v5867
    %v6834 = vpop.f32.mrf.mxu0
    %v6835 = vadd.f32 0.0, %v6834
    %v6836 = vpop.f32.mrf.mxu0
    %v6837 = vadd.f32 0.0, %v6836
    %6838 = vdwg.mxu0
    %6839 = vmatpush.bf16.msra.mxu0 %v6764
    %6840 = vmatpush.bf16.msra.mxu0 %v6761
    %6841 = vmatpush.bf16.msra.mxu0 %v6758
    %6842 = vmatpush.bf16.msra.mxu0 %v6755
    %6843 = vmatpush.bf16.msra.mxu0 %v6752
    %6844 = vmatpush.bf16.msra.mxu0 %v6749
    %6845 = vmatpush.bf16.msra.mxu0 %v6746
    %6846 = vmatpush.bf16.msra.mxu0 %v6743
    %6847 = vmatmul.bf16.gmra.mxu0 %v5860
    %v6848 = vpop.f32.mrf.mxu0
    %v6849 = vadd.f32 0.0, %v6848
    %v6850 = vpop.f32.mrf.mxu0
    %v6851 = vadd.f32 0.0, %v6850
    %6852 = vmatmul.bf16.gmra.mxu0 %v5861
    %v6853 = vpop.f32.mrf.mxu0
    %v6854 = vadd.f32 0.0, %v6853
    %v6855 = vpop.f32.mrf.mxu0
    %v6856 = vadd.f32 0.0, %v6855
    %6857 = vmatmul.bf16.gmra.mxu0 %v5862
    %v6858 = vpop.f32.mrf.mxu0
    %v6859 = vadd.f32 0.0, %v6858
    %v6860 = vpop.f32.mrf.mxu0
    %v6861 = vadd.f32 0.0, %v6860
    %6862 = vmatmul.bf16.gmra.mxu0 %v5863
    %v6863 = vpop.f32.mrf.mxu0
    %v6864 = vadd.f32 0.0, %v6863
    %v6865 = vpop.f32.mrf.mxu0
    %v6866 = vadd.f32 0.0, %v6865
    %6867 = vmatmul.bf16.gmra.mxu0 %v5864
    %v6868 = vpop.f32.mrf.mxu0
    %v6869 = vadd.f32 0.0, %v6868
    %v6870 = vpop.f32.mrf.mxu0
    %v6871 = vadd.f32 0.0, %v6870
    %6872 = vmatmul.bf16.gmra.mxu0 %v5865
    %v6873 = vpop.f32.mrf.mxu0
    %v6874 = vadd.f32 0.0, %v6873
    %v6875 = vpop.f32.mrf.mxu0
    %v6876 = vadd.f32 0.0, %v6875
    %6877 = vmatmul.bf16.gmra.mxu0 %v5866
    %v6878 = vpop.f32.mrf.mxu0
    %v6879 = vadd.f32 0.0, %v6878
    %v6880 = vpop.f32.mrf.mxu0
    %v6881 = vadd.f32 0.0, %v6880
    %6882 = vmatmul.bf16.gmra.mxu0 %v5867
    %v6883 = vpop.f32.mrf.mxu0
    %v6884 = vadd.f32 0.0, %v6883
    %v6885 = vpop.f32.mrf.mxu0
    %v6886 = vadd.f32 0.0, %v6885
    %6887 = vdwg.mxu0
    %6888 = vmatpush.bf16.msra.mxu0 %v6765
    %6889 = vmatpush.bf16.msra.mxu0 %v6762
    %6890 = vmatpush.bf16.msra.mxu0 %v6759
    %6891 = vmatpush.bf16.msra.mxu0 %v6756
    %6892 = vmatpush.bf16.msra.mxu0 %v6753
    %6893 = vmatpush.bf16.msra.mxu0 %v6750
    %6894 = vmatpush.bf16.msra.mxu0 %v6747
    %6895 = vmatpush.bf16.msra.mxu0 %v6744
    %6896 = vmatmul.bf16.gmra.mxu0 %v5860
    %v6897 = vpop.f32.mrf.mxu0
    %v6898 = vadd.f32 0.0, %v6897
    %v6899 = vpop.f32.mrf.mxu0
    %v6900 = vadd.f32 0.0, %v6899
    %6901 = vmatmul.bf16.gmra.mxu0 %v5861
    %v6902 = vpop.f32.mrf.mxu0
    %v6903 = vadd.f32 0.0, %v6902
    %v6904 = vpop.f32.mrf.mxu0
    %v6905 = vadd.f32 0.0, %v6904
    %6906 = vmatmul.bf16.gmra.mxu0 %v5862
    %v6907 = vpop.f32.mrf.mxu0
    %v6908 = vadd.f32 0.0, %v6907
    %v6909 = vpop.f32.mrf.mxu0
    %v6910 = vadd.f32 0.0, %v6909
    %6911 = vmatmul.bf16.gmra.mxu0 %v5863
    %v6912 = vpop.f32.mrf.mxu0
    %v6913 = vadd.f32 0.0, %v6912
    %v6914 = vpop.f32.mrf.mxu0
    %v6915 = vadd.f32 0.0, %v6914
    %6916 = vmatmul.bf16.gmra.mxu0 %v5864
    %v6917 = vpop.f32.mrf.mxu0
    %v6918 = vadd.f32 0.0, %v6917
    %v6919 = vpop.f32.mrf.mxu0
    %v6920 = vadd.f32 0.0, %v6919
    %6921 = vmatmul.bf16.gmra.mxu0 %v5865
    %v6922 = vpop.f32.mrf.mxu0
    %v6923 = vadd.f32 0.0, %v6922
    %v6924 = vpop.f32.mrf.mxu0
    %v6925 = vadd.f32 0.0, %v6924
    %6926 = vmatmul.bf16.gmra.mxu0 %v5866
    %v6927 = vpop.f32.mrf.mxu0
    %v6928 = vadd.f32 0.0, %v6927
    %v6929 = vpop.f32.mrf.mxu0
    %v6930 = vadd.f32 0.0, %v6929
    %6931 = vmatmul.bf16.gmra.mxu0 %v5867
    %v6932 = vpop.f32.mrf.mxu0
    %v6933 = vadd.f32 0.0, %v6932
    %v6934 = vpop.f32.mrf.mxu0
    %v6935 = vadd.f32 0.0, %v6934
    %6936 = vdwg.mxu0
    %v6937 = vpack.c.bf16 %v6849, %v6800
    %v6938 = vpack.c.bf16 %v6898, %v6898
    %v6939 = vpack.c.bf16 %v6851, %v6802
    %v6940 = vpack.c.bf16 %v6900, %v6900
    %v6941 = vpack.c.bf16 %v6854, %v6805
    %v6942 = vpack.c.bf16 %v6903, %v6903
    %v6943 = vpack.c.bf16 %v6856, %v6807
    %v6944 = vpack.c.bf16 %v6905, %v6905
    %v6945 = vpack.c.bf16 %v6859, %v6810
    %v6946 = vpack.c.bf16 %v6908, %v6908
    %v6947 = vpack.c.bf16 %v6861, %v6812
    %v6948 = vpack.c.bf16 %v6910, %v6910
    %v6949 = vpack.c.bf16 %v6864, %v6815
    %v6950 = vpack.c.bf16 %v6913, %v6913
    %v6951 = vpack.c.bf16 %v6866, %v6817
    %v6952 = vpack.c.bf16 %v6915, %v6915
    %v6953 = vpack.c.bf16 %v6869, %v6820
    %v6954 = vpack.c.bf16 %v6918, %v6918
    %v6955 = vpack.c.bf16 %v6871, %v6822
    %v6956 = vpack.c.bf16 %v6920, %v6920
    %v6957 = vpack.c.bf16 %v6874, %v6825
    %v6958 = vpack.c.bf16 %v6923, %v6923
    %v6959 = vpack.c.bf16 %v6876, %v6827
    %v6960 = vpack.c.bf16 %v6925, %v6925
    %v6961 = vpack.c.bf16 %v6879, %v6830
    %v6962 = vpack.c.bf16 %v6928, %v6928
    %v6963 = vpack.c.bf16 %v6881, %v6832
    %v6964 = vpack.c.bf16 %v6930, %v6930
    %v6965 = vpack.c.bf16 %v6884, %v6835
    %v6966 = vpack.c.bf16 %v6933, %v6933
    %v6967 = vpack.c.bf16 %v6886, %v6837
    %v6968 = vpack.c.bf16 %v6935, %v6935
    %v6985 = vunpack.c.l.b16 %v6597
    %v6986 = vunpack.c.l.b16 %v6599
    %v6987 = vunpack.c.l.b16 %v6601
    %v6988 = vunpack.c.l.b16 %v6603
    %v6989 = vunpack.c.l.b16 %v6605
    %v6990 = vunpack.c.l.b16 %v6607
    %v6991 = vunpack.c.l.b16 %v6609
    %v6992 = vunpack.c.l.b16 %v6611
    %v6993 = vunpack.c.l.b16 %v6613
    %v6994 = vunpack.c.l.b16 %v6615
    %v6995 = vunpack.c.l.b16 %v6617
    %v6996 = vunpack.c.l.b16 %v6619
    %v6997 = vunpack.c.l.b16 %v6621
    %v6998 = vunpack.c.l.b16 %v6623
    %v6999 = vunpack.c.l.b16 %v6625
    %v7000 = vunpack.c.l.b16 %v6627
    %v7001 = vpack.c.b16 %v6986, %v6985
    %v7002 = vpack.c.b16 %v6988, %v6987
    %v7003 = vpack.c.b16 %v6990, %v6989
    %v7004 = vpack.c.b16 %v6992, %v6991
    %v7005 = vpack.c.b16 %v6994, %v6993
    %v7006 = vpack.c.b16 %v6996, %v6995
    %v7007 = vpack.c.b16 %v6998, %v6997
    %v7008 = vpack.c.b16 %v7000, %v6999
    %v7033 = vunpack.c.l.b16 %v6937
    %v7034 = vunpack.c.l.b16 %v6939
    %v7035 = vunpack.c.l.b16 %v6941
    %v7036 = vunpack.c.l.b16 %v6943
    %v7037 = vunpack.c.l.b16 %v6945
    %v7038 = vunpack.c.l.b16 %v6947
    %v7039 = vunpack.c.l.b16 %v6949
    %v7040 = vunpack.c.l.b16 %v6951
    %v7041 = vunpack.c.l.b16 %v6953
    %v7042 = vunpack.c.l.b16 %v6955
    %v7043 = vunpack.c.l.b16 %v6957
    %v7044 = vunpack.c.l.b16 %v6959
    %v7045 = vunpack.c.l.b16 %v6961
    %v7046 = vunpack.c.l.b16 %v6963
    %v7047 = vunpack.c.l.b16 %v6965
    %v7048 = vunpack.c.l.b16 %v6967
    %v7049 = vpack.c.b16 %v7034, %v7033
    %v7050 = vpack.c.b16 %v7036, %v7035
    %v7051 = vpack.c.b16 %v7038, %v7037
    %v7052 = vpack.c.b16 %v7040, %v7039
    %v7053 = vpack.c.b16 %v7042, %v7041
    %v7054 = vpack.c.b16 %v7044, %v7043
    %v7055 = vpack.c.b16 %v7046, %v7045
    %v7056 = vpack.c.b16 %v7048, %v7047
    %v7081 = vunpack.c.l.b16 %v6177
    %v7082 = vunpack.c.l.b16 %v6179
    %v7083 = vunpack.c.l.b16 %v6181
    %v7084 = vunpack.c.l.b16 %v6183
    %v7085 = vunpack.c.l.b16 %v6185
    %v7086 = vunpack.c.l.b16 %v6187
    %v7087 = vunpack.c.l.b16 %v6189
    %v7088 = vunpack.c.l.b16 %v6191
    %v7089 = vunpack.c.l.b16 %v6193
    %v7090 = vunpack.c.l.b16 %v6195
    %v7091 = vunpack.c.l.b16 %v6197
    %v7092 = vunpack.c.l.b16 %v6199
    %v7093 = vunpack.c.l.b16 %v6201
    %v7094 = vunpack.c.l.b16 %v6203
    %v7095 = vunpack.c.l.b16 %v6205
    %v7096 = vunpack.c.l.b16 %v6207
    %v7097 = vpack.c.b16 %v7082, %v7081
    %v7098 = vpack.c.b16 %v7084, %v7083
    %v7099 = vpack.c.b16 %v7086, %v7085
    %v7100 = vpack.c.b16 %v7088, %v7087
    %v7101 = vpack.c.b16 %v7090, %v7089
    %v7102 = vpack.c.b16 %v7092, %v7091
    %v7103 = vpack.c.b16 %v7094, %v7093
    %v7104 = vpack.c.b16 %v7096, %v7095
    %s7113 = scalar_lea.vmem [#allocation14], 384
    %v7114 = vld [vmem:[%s7113] sm:$0xf]
    %v7115 = vld [vmem:[%s7113 + $0x4] sm:$0xf]
    %v7116 = vld [vmem:[%s7113 + $0x8] sm:$0xf]
    %v7117 = vld [vmem:[%s7113 + $0xc] sm:$0xf]
    %v7118 = vld [vmem:[%s7113 + $0x10] sm:$0xf]
    %v7119 = vld [vmem:[%s7113 + $0x14] sm:$0xf]
    %v7120 = vld [vmem:[%s7113 + $0x18] sm:$0xf]
    %v7121 = vld [vmem:[%s7113 + $0x1c] sm:$0xf]
    %v7122 = vld [vmem:[%s7113 + $0x20] sm:$0xf]
    %v7123 = vld [vmem:[%s7113 + $0x24] sm:$0xf]
    %v7124 = vld [vmem:[%s7113 + $0x28] sm:$0xf]
    %v7125 = vld [vmem:[%s7113 + $0x2c] sm:$0xf]
    %v7126 = vld [vmem:[%s7113 + $0x30] sm:$0xf]
    %v7127 = vld [vmem:[%s7113 + $0x34] sm:$0xf]
    %v7128 = vld [vmem:[%s7113 + $0x38] sm:$0xf]
    %v7129 = vld [vmem:[%s7113 + $0x3c] sm:$0xf]
    %v7146 = vunpack.c.l.b16 %v7114
    %v7147 = vunpack.c.l.b16 %v7115
    %v7148 = vunpack.c.l.b16 %v7116
    %v7149 = vunpack.c.l.b16 %v7117
    %v7150 = vunpack.c.l.b16 %v7118
    %v7151 = vunpack.c.l.b16 %v7119
    %v7152 = vunpack.c.l.b16 %v7120
    %v7153 = vunpack.c.l.b16 %v7121
    %v7154 = vunpack.c.l.b16 %v7122
    %v7155 = vunpack.c.l.b16 %v7123
    %v7156 = vunpack.c.l.b16 %v7124
    %v7157 = vunpack.c.l.b16 %v7125
    %v7158 = vunpack.c.l.b16 %v7126
    %v7159 = vunpack.c.l.b16 %v7127
    %v7160 = vunpack.c.l.b16 %v7128
    %v7161 = vunpack.c.l.b16 %v7129
    %v7162 = vpack.c.b16 %v7147, %v7146
    %v7163 = vpack.c.b16 %v7149, %v7148
    %v7164 = vpack.c.b16 %v7151, %v7150
    %v7165 = vpack.c.b16 %v7153, %v7152
    %v7166 = vpack.c.b16 %v7155, %v7154
    %v7167 = vpack.c.b16 %v7157, %v7156
    %v7168 = vpack.c.b16 %v7159, %v7158
    %v7169 = vpack.c.b16 %v7161, %v7160
    %7178 = vmatpush.bf16.msra.mxu0 %v7169
    %7179 = vmatpush.bf16.msra.mxu0 %v7168
    %7180 = vmatpush.bf16.msra.mxu0 %v7167
    %7181 = vmatpush.bf16.msra.mxu0 %v7166
    %7182 = vmatpush.bf16.msra.mxu0 %v7165
    %7183 = vmatpush.bf16.msra.mxu0 %v7164
    %7184 = vmatpush.bf16.msra.mxu0 %v7163
    %7185 = vmatpush.bf16.msra.mxu0 %v7162
    %7186 = vmatmul.bf16.gmra.mxu0 %v4927
    %v7187 = vpop.f32.mrf.mxu0
    %v7188 = vadd.f32 0.0, %v7187
    %v7189 = vpop.f32.mrf.mxu0
    %v7190 = vadd.f32 0.0, %v7189
    %7191 = vmatmul.bf16.gmra.mxu0 %v4928
    %v7192 = vpop.f32.mrf.mxu0
    %v7193 = vadd.f32 0.0, %v7192
    %v7194 = vpop.f32.mrf.mxu0
    %v7195 = vadd.f32 0.0, %v7194
    %7196 = vmatmul.bf16.gmra.mxu0 %v4929
    %v7197 = vpop.f32.mrf.mxu0
    %v7198 = vadd.f32 0.0, %v7197
    %v7199 = vpop.f32.mrf.mxu0
    %v7200 = vadd.f32 0.0, %v7199
    %7201 = vmatmul.bf16.gmra.mxu0 %v4930
    %v7202 = vpop.f32.mrf.mxu0
    %v7203 = vadd.f32 0.0, %v7202
    %v7204 = vpop.f32.mrf.mxu0
    %v7205 = vadd.f32 0.0, %v7204
    %7206 = vmatmul.bf16.gmra.mxu0 %v4931
    %v7207 = vpop.f32.mrf.mxu0
    %v7208 = vadd.f32 0.0, %v7207
    %v7209 = vpop.f32.mrf.mxu0
    %v7210 = vadd.f32 0.0, %v7209
    %7211 = vmatmul.bf16.gmra.mxu0 %v4932
    %v7212 = vpop.f32.mrf.mxu0
    %v7213 = vadd.f32 0.0, %v7212
    %v7214 = vpop.f32.mrf.mxu0
    %v7215 = vadd.f32 0.0, %v7214
    %7216 = vmatmul.bf16.gmra.mxu0 %v4933
    %v7217 = vpop.f32.mrf.mxu0
    %v7218 = vadd.f32 0.0, %v7217
    %v7219 = vpop.f32.mrf.mxu0
    %v7220 = vadd.f32 0.0, %v7219
    %7221 = vmatmul.bf16.gmra.mxu0 %v4934
    %v7222 = vpop.f32.mrf.mxu0
    %v7223 = vadd.f32 0.0, %v7222
    %v7224 = vpop.f32.mrf.mxu0
    %v7225 = vadd.f32 0.0, %v7224
    %7226 = vdwg.mxu0
    %7227 = vmatpush.bf16.msra.mxu0 %v7008
    %7228 = vmatpush.bf16.msra.mxu0 %v7007
    %7229 = vmatpush.bf16.msra.mxu0 %v7006
    %7230 = vmatpush.bf16.msra.mxu0 %v7005
    %7231 = vmatpush.bf16.msra.mxu0 %v7004
    %7232 = vmatpush.bf16.msra.mxu0 %v7003
    %7233 = vmatpush.bf16.msra.mxu0 %v7002
    %7234 = vmatpush.bf16.msra.mxu0 %v7001
    %7235 = vmatmul.bf16.gmra.mxu0 %v1860
    %v7236 = vpop.f32.mrf.mxu0
    %v7237 = vadd.f32 %v7188, %v7236
    %v7238 = vpop.f32.mrf.mxu0
    %v7239 = vadd.f32 %v7190, %v7238
    %7240 = vmatmul.bf16.gmra.mxu0 %v1863
    %v7241 = vpop.f32.mrf.mxu0
    %v7242 = vadd.f32 %v7193, %v7241
    %v7243 = vpop.f32.mrf.mxu0
    %v7244 = vadd.f32 %v7195, %v7243
    %7245 = vmatmul.bf16.gmra.mxu0 %v1866
    %v7246 = vpop.f32.mrf.mxu0
    %v7247 = vadd.f32 %v7198, %v7246
    %v7248 = vpop.f32.mrf.mxu0
    %v7249 = vadd.f32 %v7200, %v7248
    %7250 = vmatmul.bf16.gmra.mxu0 %v1869
    %v7251 = vpop.f32.mrf.mxu0
    %v7252 = vadd.f32 %v7203, %v7251
    %v7253 = vpop.f32.mrf.mxu0
    %v7254 = vadd.f32 %v7205, %v7253
    %7255 = vmatmul.bf16.gmra.mxu0 %v1872
    %v7256 = vpop.f32.mrf.mxu0
    %v7257 = vadd.f32 %v7208, %v7256
    %v7258 = vpop.f32.mrf.mxu0
    %v7259 = vadd.f32 %v7210, %v7258
    %7260 = vmatmul.bf16.gmra.mxu0 %v1875
    %v7261 = vpop.f32.mrf.mxu0
    %v7262 = vadd.f32 %v7213, %v7261
    %v7263 = vpop.f32.mrf.mxu0
    %v7264 = vadd.f32 %v7215, %v7263
    %7265 = vmatmul.bf16.gmra.mxu0 %v1878
    %v7266 = vpop.f32.mrf.mxu0
    %v7267 = vadd.f32 %v7218, %v7266
    %v7268 = vpop.f32.mrf.mxu0
    %v7269 = vadd.f32 %v7220, %v7268
    %7270 = vmatmul.bf16.gmra.mxu0 %v1881
    %v7271 = vpop.f32.mrf.mxu0
    %v7272 = vadd.f32 %v7223, %v7271
    %v7273 = vpop.f32.mrf.mxu0
    %v7274 = vadd.f32 %v7225, %v7273
    %7275 = vdwg.mxu0
    %7276 = vmatpush.bf16.msra.mxu0 %v7056
    %7277 = vmatpush.bf16.msra.mxu0 %v7055
    %7278 = vmatpush.bf16.msra.mxu0 %v7054
    %7279 = vmatpush.bf16.msra.mxu0 %v7053
    %7280 = vmatpush.bf16.msra.mxu0 %v7052
    %7281 = vmatpush.bf16.msra.mxu0 %v7051
    %7282 = vmatpush.bf16.msra.mxu0 %v7050
    %7283 = vmatpush.bf16.msra.mxu0 %v7049
    %7284 = vmatmul.bf16.gmra.mxu0 %v1861
    %v7285 = vpop.f32.mrf.mxu0
    %v7286 = vadd.f32 %v7237, %v7285
    %v7287 = vpop.f32.mrf.mxu0
    %v7288 = vadd.f32 %v7239, %v7287
    %7289 = vmatmul.bf16.gmra.mxu0 %v1864
    %v7290 = vpop.f32.mrf.mxu0
    %v7291 = vadd.f32 %v7242, %v7290
    %v7292 = vpop.f32.mrf.mxu0
    %v7293 = vadd.f32 %v7244, %v7292
    %7294 = vmatmul.bf16.gmra.mxu0 %v1867
    %v7295 = vpop.f32.mrf.mxu0
    %v7296 = vadd.f32 %v7247, %v7295
    %v7297 = vpop.f32.mrf.mxu0
    %v7298 = vadd.f32 %v7249, %v7297
    %7299 = vmatmul.bf16.gmra.mxu0 %v1870
    %v7300 = vpop.f32.mrf.mxu0
    %v7301 = vadd.f32 %v7252, %v7300
    %v7302 = vpop.f32.mrf.mxu0
    %v7303 = vadd.f32 %v7254, %v7302
    %7304 = vmatmul.bf16.gmra.mxu0 %v1873
    %v7305 = vpop.f32.mrf.mxu0
    %v7306 = vadd.f32 %v7257, %v7305
    %v7307 = vpop.f32.mrf.mxu0
    %v7308 = vadd.f32 %v7259, %v7307
    %7309 = vmatmul.bf16.gmra.mxu0 %v1876
    %v7310 = vpop.f32.mrf.mxu0
    %v7311 = vadd.f32 %v7262, %v7310
    %v7312 = vpop.f32.mrf.mxu0
    %v7313 = vadd.f32 %v7264, %v7312
    %7314 = vmatmul.bf16.gmra.mxu0 %v1879
    %v7315 = vpop.f32.mrf.mxu0
    %v7316 = vadd.f32 %v7267, %v7315
    %v7317 = vpop.f32.mrf.mxu0
    %v7318 = vadd.f32 %v7269, %v7317
    %7319 = vmatmul.bf16.gmra.mxu0 %v1882
    %v7320 = vpop.f32.mrf.mxu0
    %v7321 = vadd.f32 %v7272, %v7320
    %v7322 = vpop.f32.mrf.mxu0
    %v7323 = vadd.f32 %v7274, %v7322
    %7324 = vdwg.mxu0
    %7325 = vmatpush.bf16.msra.mxu0 %v7104
    %7326 = vmatpush.bf16.msra.mxu0 %v7103
    %7327 = vmatpush.bf16.msra.mxu0 %v7102
    %7328 = vmatpush.bf16.msra.mxu0 %v7101
    %7329 = vmatpush.bf16.msra.mxu0 %v7100
    %7330 = vmatpush.bf16.msra.mxu0 %v7099
    %7331 = vmatpush.bf16.msra.mxu0 %v7098
    %7332 = vmatpush.bf16.msra.mxu0 %v7097
    %7333 = vmatmul.bf16.gmra.mxu0 %v1862
    %v7334 = vpop.f32.mrf.mxu0
    %v7335 = vadd.f32 %v7286, %v7334
    %v7336 = vpop.f32.mrf.mxu0
    %v7337 = vadd.f32 %v7288, %v7336
    %7338 = vmatmul.bf16.gmra.mxu0 %v1865
    %v7339 = vpop.f32.mrf.mxu0
    %v7340 = vadd.f32 %v7291, %v7339
    %v7341 = vpop.f32.mrf.mxu0
    %v7342 = vadd.f32 %v7293, %v7341
    %7343 = vmatmul.bf16.gmra.mxu0 %v1868
    %v7344 = vpop.f32.mrf.mxu0
    %v7345 = vadd.f32 %v7296, %v7344
    %v7346 = vpop.f32.mrf.mxu0
    %v7347 = vadd.f32 %v7298, %v7346
    %7348 = vmatmul.bf16.gmra.mxu0 %v1871
    %v7349 = vpop.f32.mrf.mxu0
    %v7350 = vadd.f32 %v7301, %v7349
    %v7351 = vpop.f32.mrf.mxu0
    %v7352 = vadd.f32 %v7303, %v7351
    %7353 = vmatmul.bf16.gmra.mxu0 %v1874
    %v7354 = vpop.f32.mrf.mxu0
    %v7355 = vadd.f32 %v7306, %v7354
    %v7356 = vpop.f32.mrf.mxu0
    %v7357 = vadd.f32 %v7308, %v7356
    %7358 = vmatmul.bf16.gmra.mxu0 %v1877
    %v7359 = vpop.f32.mrf.mxu0
    %v7360 = vadd.f32 %v7311, %v7359
    %v7361 = vpop.f32.mrf.mxu0
    %v7362 = vadd.f32 %v7313, %v7361
    %7363 = vmatmul.bf16.gmra.mxu0 %v1880
    %v7364 = vpop.f32.mrf.mxu0
    %v7365 = vadd.f32 %v7316, %v7364
    %v7366 = vpop.f32.mrf.mxu0
    %v7367 = vadd.f32 %v7318, %v7366
    %7368 = vmatmul.bf16.gmra.mxu0 %v1883
    %v7369 = vpop.f32.mrf.mxu0
    %v7370 = vadd.f32 %v7321, %v7369
    %v7371 = vpop.f32.mrf.mxu0
    %v7372 = vadd.f32 %v7323, %v7371
    %7373 = vdwg.mxu0
    %s7374 = scalar_lea.vmem [#allocation16], 6
    %v7375 = vld [vmem:[%s7374] sm:$0x1]
    %v7377 = vperm.slane %v7375, 0
    %v7379 = vadd.f32 %v7335, %v7377
    %v7380 = vadd.f32 %v7337, %v7377
    %v7381 = vadd.f32 %v7340, %v7377
    %v7382 = vadd.f32 %v7342, %v7377
    %v7383 = vadd.f32 %v7345, %v7377
    %v7384 = vadd.f32 %v7347, %v7377
    %v7385 = vadd.f32 %v7350, %v7377
    %v7386 = vadd.f32 %v7352, %v7377
    %v7387 = vadd.f32 %v7355, %v7377
    %v7388 = vadd.f32 %v7357, %v7377
    %v7389 = vadd.f32 %v7360, %v7377
    %v7390 = vadd.f32 %v7362, %v7377
    %v7391 = vadd.f32 %v7365, %v7377
    %v7392 = vadd.f32 %v7367, %v7377
    %v7393 = vadd.f32 %v7370, %v7377
    %v7394 = vadd.f32 %v7372, %v7377
    %v7395 = vmax.f32 %v7379, 0.0
    %v7396 = vmax.f32 %v7380, 0.0
    %v7397 = vmax.f32 %v7381, 0.0
    %v7398 = vmax.f32 %v7382, 0.0
    %v7399 = vmax.f32 %v7383, 0.0
    %v7400 = vmax.f32 %v7384, 0.0
    %v7401 = vmax.f32 %v7385, 0.0
    %v7402 = vmax.f32 %v7386, 0.0
    %v7403 = vmax.f32 %v7387, 0.0
    %v7404 = vmax.f32 %v7388, 0.0
    %v7405 = vmax.f32 %v7389, 0.0
    %v7406 = vmax.f32 %v7390, 0.0
    %v7407 = vmax.f32 %v7391, 0.0
    %v7408 = vmax.f32 %v7392, 0.0
    %v7409 = vmax.f32 %v7393, 0.0
    %v7410 = vmax.f32 %v7394, 0.0
    %v7411 = vpack.c.bf16 %v7395, %v7395
    %v7412 = vpack.c.bf16 %v7396, %v7396
    %v7413 = vpack.c.bf16 %v7397, %v7397
    %v7414 = vpack.c.bf16 %v7398, %v7398
    %v7415 = vpack.c.bf16 %v7399, %v7399
    %v7416 = vpack.c.bf16 %v7400, %v7400
    %v7417 = vpack.c.bf16 %v7401, %v7401
    %v7418 = vpack.c.bf16 %v7402, %v7402
    %v7419 = vpack.c.bf16 %v7403, %v7403
    %v7420 = vpack.c.bf16 %v7404, %v7404
    %v7421 = vpack.c.bf16 %v7405, %v7405
    %v7422 = vpack.c.bf16 %v7406, %v7406
    %v7423 = vpack.c.bf16 %v7407, %v7407
    %v7424 = vpack.c.bf16 %v7408, %v7408
    %v7425 = vpack.c.bf16 %v7409, %v7409
    %v7426 = vpack.c.bf16 %v7410, %v7410
    %v7443 = vunpack.c.l.b16 %v6176
    %v7444 = vunpack.c.l.b16 %v6178
    %v7445 = vunpack.c.l.b16 %v6180
    %v7446 = vunpack.c.l.b16 %v6182
    %v7447 = vunpack.c.l.b16 %v6184
    %v7448 = vunpack.c.l.b16 %v6186
    %v7449 = vunpack.c.l.b16 %v6188
    %v7450 = vunpack.c.l.b16 %v6190
    %v7451 = vunpack.c.l.b16 %v6192
    %v7452 = vunpack.c.l.b16 %v6194
    %v7453 = vunpack.c.l.b16 %v6196
    %v7454 = vunpack.c.l.b16 %v6198
    %v7455 = vunpack.c.l.b16 %v6200
    %v7456 = vunpack.c.l.b16 %v6202
    %v7457 = vunpack.c.l.b16 %v6204
    %v7458 = vunpack.c.l.b16 %v6206
    %v7459 = vpack.c.b16 %v7444, %v7443
    %v7460 = vpack.c.b16 %v7446, %v7445
    %v7461 = vpack.c.b16 %v7448, %v7447
    %v7462 = vpack.c.b16 %v7450, %v7449
    %v7463 = vpack.c.b16 %v7452, %v7451
    %v7464 = vpack.c.b16 %v7454, %v7453
    %v7465 = vpack.c.b16 %v7456, %v7455
    %v7466 = vpack.c.b16 %v7458, %v7457
    %v7475 = vunpack.c.h.b16 %v6937
    %v7476 = vunpack.c.h.b16 %v6939
    %v7477 = vunpack.c.h.b16 %v6941
    %v7478 = vunpack.c.h.b16 %v6943
    %v7479 = vunpack.c.h.b16 %v6945
    %v7480 = vunpack.c.h.b16 %v6947
    %v7481 = vunpack.c.h.b16 %v6949
    %v7482 = vunpack.c.h.b16 %v6951
    %v7483 = vunpack.c.h.b16 %v6953
    %v7484 = vunpack.c.h.b16 %v6955
    %v7485 = vunpack.c.h.b16 %v6957
    %v7486 = vunpack.c.h.b16 %v6959
    %v7487 = vunpack.c.h.b16 %v6961
    %v7488 = vunpack.c.h.b16 %v6963
    %v7489 = vunpack.c.h.b16 %v6965
    %v7490 = vunpack.c.h.b16 %v6967
    %v7491 = vpack.c.b16 %v7476, %v7475
    %v7492 = vpack.c.b16 %v7478, %v7477
    %v7493 = vpack.c.b16 %v7480, %v7479
    %v7494 = vpack.c.b16 %v7482, %v7481
    %v7495 = vpack.c.b16 %v7484, %v7483
    %v7496 = vpack.c.b16 %v7486, %v7485
    %v7497 = vpack.c.b16 %v7488, %v7487
    %v7498 = vpack.c.b16 %v7490, %v7489
    %v7523 = vunpack.c.l.b16 %v6598
    %v7524 = vunpack.c.l.b16 %v6600
    %v7525 = vunpack.c.l.b16 %v6602
    %v7526 = vunpack.c.l.b16 %v6604
    %v7527 = vunpack.c.l.b16 %v6606
    %v7528 = vunpack.c.l.b16 %v6608
    %v7529 = vunpack.c.l.b16 %v6610
    %v7530 = vunpack.c.l.b16 %v6612
    %v7531 = vunpack.c.l.b16 %v6614
    %v7532 = vunpack.c.l.b16 %v6616
    %v7533 = vunpack.c.l.b16 %v6618
    %v7534 = vunpack.c.l.b16 %v6620
    %v7535 = vunpack.c.l.b16 %v6622
    %v7536 = vunpack.c.l.b16 %v6624
    %v7537 = vunpack.c.l.b16 %v6626
    %v7538 = vunpack.c.l.b16 %v6628
    %v7539 = vpack.c.b16 %v7524, %v7523
    %v7540 = vpack.c.b16 %v7526, %v7525
    %v7541 = vpack.c.b16 %v7528, %v7527
    %v7542 = vpack.c.b16 %v7530, %v7529
    %v7543 = vpack.c.b16 %v7532, %v7531
    %v7544 = vpack.c.b16 %v7534, %v7533
    %v7545 = vpack.c.b16 %v7536, %v7535
    %v7546 = vpack.c.b16 %v7538, %v7537
    %v7555 = vunpack.c.h.b16 %v6598
    %v7556 = vunpack.c.h.b16 %v6600
    %v7557 = vunpack.c.h.b16 %v6602
    %v7558 = vunpack.c.h.b16 %v6604
    %v7559 = vunpack.c.h.b16 %v6606
    %v7560 = vunpack.c.h.b16 %v6608
    %v7561 = vunpack.c.h.b16 %v6610
    %v7562 = vunpack.c.h.b16 %v6612
    %v7563 = vunpack.c.h.b16 %v6614
    %v7564 = vunpack.c.h.b16 %v6616
    %v7565 = vunpack.c.h.b16 %v6618
    %v7566 = vunpack.c.h.b16 %v6620
    %v7567 = vunpack.c.h.b16 %v6622
    %v7568 = vunpack.c.h.b16 %v6624
    %v7569 = vunpack.c.h.b16 %v6626
    %v7570 = vunpack.c.h.b16 %v6628
    %v7571 = vpack.c.b16 %v7556, %v7555
    %v7572 = vpack.c.b16 %v7558, %v7557
    %v7573 = vpack.c.b16 %v7560, %v7559
    %v7574 = vpack.c.b16 %v7562, %v7561
    %v7575 = vpack.c.b16 %v7564, %v7563
    %v7576 = vpack.c.b16 %v7566, %v7565
    %v7577 = vpack.c.b16 %v7568, %v7567
    %v7578 = vpack.c.b16 %v7570, %v7569
    %s7587 = scalar_lea.vmem [#allocation14], 448
    %v7588 = vld [vmem:[%s7587] sm:$0xf]
    %v7589 = vld [vmem:[%s7587 + $0x4] sm:$0xf]
    %v7590 = vld [vmem:[%s7587 + $0x8] sm:$0xf]
    %v7591 = vld [vmem:[%s7587 + $0xc] sm:$0xf]
    %v7592 = vld [vmem:[%s7587 + $0x10] sm:$0xf]
    %v7593 = vld [vmem:[%s7587 + $0x14] sm:$0xf]
    %v7594 = vld [vmem:[%s7587 + $0x18] sm:$0xf]
    %v7595 = vld [vmem:[%s7587 + $0x1c] sm:$0xf]
    %v7596 = vld [vmem:[%s7587 + $0x20] sm:$0xf]
    %v7597 = vld [vmem:[%s7587 + $0x24] sm:$0xf]
    %v7598 = vld [vmem:[%s7587 + $0x28] sm:$0xf]
    %v7599 = vld [vmem:[%s7587 + $0x2c] sm:$0xf]
    %v7600 = vld [vmem:[%s7587 + $0x30] sm:$0xf]
    %v7601 = vld [vmem:[%s7587 + $0x34] sm:$0xf]
    %v7602 = vld [vmem:[%s7587 + $0x38] sm:$0xf]
    %v7603 = vld [vmem:[%s7587 + $0x3c] sm:$0xf]
    %v7620 = vunpack.c.l.b16 %v7588
    %v7621 = vunpack.c.l.b16 %v7589
    %v7622 = vunpack.c.l.b16 %v7590
    %v7623 = vunpack.c.l.b16 %v7591
    %v7624 = vunpack.c.l.b16 %v7592
    %v7625 = vunpack.c.l.b16 %v7593
    %v7626 = vunpack.c.l.b16 %v7594
    %v7627 = vunpack.c.l.b16 %v7595
    %v7628 = vunpack.c.l.b16 %v7596
    %v7629 = vunpack.c.l.b16 %v7597
    %v7630 = vunpack.c.l.b16 %v7598
    %v7631 = vunpack.c.l.b16 %v7599
    %v7632 = vunpack.c.l.b16 %v7600
    %v7633 = vunpack.c.l.b16 %v7601
    %v7634 = vunpack.c.l.b16 %v7602
    %v7635 = vunpack.c.l.b16 %v7603
    %v7636 = vpack.c.b16 %v7621, %v7620
    %v7637 = vpack.c.b16 %v7623, %v7622
    %v7638 = vpack.c.b16 %v7625, %v7624
    %v7639 = vpack.c.b16 %v7627, %v7626
    %v7640 = vpack.c.b16 %v7629, %v7628
    %v7641 = vpack.c.b16 %v7631, %v7630
    %v7642 = vpack.c.b16 %v7633, %v7632
    %v7643 = vpack.c.b16 %v7635, %v7634
    %7652 = vmatpush.bf16.msra.mxu0 %v7643
    %7653 = vmatpush.bf16.msra.mxu0 %v7642
    %7654 = vmatpush.bf16.msra.mxu0 %v7641
    %7655 = vmatpush.bf16.msra.mxu0 %v7640
    %7656 = vmatpush.bf16.msra.mxu0 %v7639
    %7657 = vmatpush.bf16.msra.mxu0 %v7638
    %7658 = vmatpush.bf16.msra.mxu0 %v7637
    %7659 = vmatpush.bf16.msra.mxu0 %v7636
    %7660 = vmatmul.bf16.gmra.mxu0 %v5442
    %v7661 = vpop.f32.mrf.mxu0
    %v7662 = vadd.f32 0.0, %v7661
    %v7663 = vpop.f32.mrf.mxu0
    %v7664 = vadd.f32 0.0, %v7663
    %7665 = vmatmul.bf16.gmra.mxu0 %v5443
    %v7666 = vpop.f32.mrf.mxu0
    %v7667 = vadd.f32 0.0, %v7666
    %v7668 = vpop.f32.mrf.mxu0
    %v7669 = vadd.f32 0.0, %v7668
    %7670 = vmatmul.bf16.gmra.mxu0 %v5444
    %v7671 = vpop.f32.mrf.mxu0
    %v7672 = vadd.f32 0.0, %v7671
    %v7673 = vpop.f32.mrf.mxu0
    %v7674 = vadd.f32 0.0, %v7673
    %7675 = vmatmul.bf16.gmra.mxu0 %v5445
    %v7676 = vpop.f32.mrf.mxu0
    %v7677 = vadd.f32 0.0, %v7676
    %v7678 = vpop.f32.mrf.mxu0
    %v7679 = vadd.f32 0.0, %v7678
    %7680 = vmatmul.bf16.gmra.mxu0 %v5446
    %v7681 = vpop.f32.mrf.mxu0
    %v7682 = vadd.f32 0.0, %v7681
    %v7683 = vpop.f32.mrf.mxu0
    %v7684 = vadd.f32 0.0, %v7683
    %7685 = vmatmul.bf16.gmra.mxu0 %v5447
    %v7686 = vpop.f32.mrf.mxu0
    %v7687 = vadd.f32 0.0, %v7686
    %v7688 = vpop.f32.mrf.mxu0
    %v7689 = vadd.f32 0.0, %v7688
    %7690 = vmatmul.bf16.gmra.mxu0 %v5448
    %v7691 = vpop.f32.mrf.mxu0
    %v7692 = vadd.f32 0.0, %v7691
    %v7693 = vpop.f32.mrf.mxu0
    %v7694 = vadd.f32 0.0, %v7693
    %7695 = vmatmul.bf16.gmra.mxu0 %v5449
    %v7696 = vpop.f32.mrf.mxu0
    %v7697 = vadd.f32 0.0, %v7696
    %v7698 = vpop.f32.mrf.mxu0
    %v7699 = vadd.f32 0.0, %v7698
    %7700 = vdwg.mxu0
    %7701 = vmatpush.bf16.msra.mxu0 %v7466
    %7702 = vmatpush.bf16.msra.mxu0 %v7465
    %7703 = vmatpush.bf16.msra.mxu0 %v7464
    %7704 = vmatpush.bf16.msra.mxu0 %v7463
    %7705 = vmatpush.bf16.msra.mxu0 %v7462
    %7706 = vmatpush.bf16.msra.mxu0 %v7461
    %7707 = vmatpush.bf16.msra.mxu0 %v7460
    %7708 = vmatpush.bf16.msra.mxu0 %v7459
    %7709 = vmatmul.bf16.gmra.mxu0 %v2501
    %v7710 = vpop.f32.mrf.mxu0
    %v7711 = vadd.f32 %v7662, %v7710
    %v7712 = vpop.f32.mrf.mxu0
    %v7713 = vadd.f32 %v7664, %v7712
    %7714 = vmatmul.bf16.gmra.mxu0 %v2505
    %v7715 = vpop.f32.mrf.mxu0
    %v7716 = vadd.f32 %v7667, %v7715
    %v7717 = vpop.f32.mrf.mxu0
    %v7718 = vadd.f32 %v7669, %v7717
    %7719 = vmatmul.bf16.gmra.mxu0 %v2509
    %v7720 = vpop.f32.mrf.mxu0
    %v7721 = vadd.f32 %v7672, %v7720
    %v7722 = vpop.f32.mrf.mxu0
    %v7723 = vadd.f32 %v7674, %v7722
    %7724 = vmatmul.bf16.gmra.mxu0 %v2513
    %v7725 = vpop.f32.mrf.mxu0
    %v7726 = vadd.f32 %v7677, %v7725
    %v7727 = vpop.f32.mrf.mxu0
    %v7728 = vadd.f32 %v7679, %v7727
    %7729 = vmatmul.bf16.gmra.mxu0 %v2517
    %v7730 = vpop.f32.mrf.mxu0
    %v7731 = vadd.f32 %v7682, %v7730
    %v7732 = vpop.f32.mrf.mxu0
    %v7733 = vadd.f32 %v7684, %v7732
    %7734 = vmatmul.bf16.gmra.mxu0 %v2521
    %v7735 = vpop.f32.mrf.mxu0
    %v7736 = vadd.f32 %v7687, %v7735
    %v7737 = vpop.f32.mrf.mxu0
    %v7738 = vadd.f32 %v7689, %v7737
    %7739 = vmatmul.bf16.gmra.mxu0 %v2525
    %v7740 = vpop.f32.mrf.mxu0
    %v7741 = vadd.f32 %v7692, %v7740
    %v7742 = vpop.f32.mrf.mxu0
    %v7743 = vadd.f32 %v7694, %v7742
    %7744 = vmatmul.bf16.gmra.mxu0 %v2529
    %v7745 = vpop.f32.mrf.mxu0
    %v7746 = vadd.f32 %v7697, %v7745
    %v7747 = vpop.f32.mrf.mxu0
    %v7748 = vadd.f32 %v7699, %v7747
    %7749 = vdwg.mxu0
    %7750 = vmatpush.bf16.msra.mxu0 %v7498
    %7751 = vmatpush.bf16.msra.mxu0 %v7497
    %7752 = vmatpush.bf16.msra.mxu0 %v7496
    %7753 = vmatpush.bf16.msra.mxu0 %v7495
    %7754 = vmatpush.bf16.msra.mxu0 %v7494
    %7755 = vmatpush.bf16.msra.mxu0 %v7493
    %7756 = vmatpush.bf16.msra.mxu0 %v7492
    %7757 = vmatpush.bf16.msra.mxu0 %v7491
    %7758 = vmatmul.bf16.gmra.mxu0 %v2502
    %v7759 = vpop.f32.mrf.mxu0
    %v7760 = vadd.f32 %v7711, %v7759
    %v7761 = vpop.f32.mrf.mxu0
    %v7762 = vadd.f32 %v7713, %v7761
    %7763 = vmatmul.bf16.gmra.mxu0 %v2506
    %v7764 = vpop.f32.mrf.mxu0
    %v7765 = vadd.f32 %v7716, %v7764
    %v7766 = vpop.f32.mrf.mxu0
    %v7767 = vadd.f32 %v7718, %v7766
    %7768 = vmatmul.bf16.gmra.mxu0 %v2510
    %v7769 = vpop.f32.mrf.mxu0
    %v7770 = vadd.f32 %v7721, %v7769
    %v7771 = vpop.f32.mrf.mxu0
    %v7772 = vadd.f32 %v7723, %v7771
    %7773 = vmatmul.bf16.gmra.mxu0 %v2514
    %v7774 = vpop.f32.mrf.mxu0
    %v7775 = vadd.f32 %v7726, %v7774
    %v7776 = vpop.f32.mrf.mxu0
    %v7777 = vadd.f32 %v7728, %v7776
    %7778 = vmatmul.bf16.gmra.mxu0 %v2518
    %v7779 = vpop.f32.mrf.mxu0
    %v7780 = vadd.f32 %v7731, %v7779
    %v7781 = vpop.f32.mrf.mxu0
    %v7782 = vadd.f32 %v7733, %v7781
    %7783 = vmatmul.bf16.gmra.mxu0 %v2522
    %v7784 = vpop.f32.mrf.mxu0
    %v7785 = vadd.f32 %v7736, %v7784
    %v7786 = vpop.f32.mrf.mxu0
    %v7787 = vadd.f32 %v7738, %v7786
    %7788 = vmatmul.bf16.gmra.mxu0 %v2526
    %v7789 = vpop.f32.mrf.mxu0
    %v7790 = vadd.f32 %v7741, %v7789
    %v7791 = vpop.f32.mrf.mxu0
    %v7792 = vadd.f32 %v7743, %v7791
    %7793 = vmatmul.bf16.gmra.mxu0 %v2530
    %v7794 = vpop.f32.mrf.mxu0
    %v7795 = vadd.f32 %v7746, %v7794
    %v7796 = vpop.f32.mrf.mxu0
    %v7797 = vadd.f32 %v7748, %v7796
    %7798 = vdwg.mxu0
    %7799 = vmatpush.bf16.msra.mxu0 %v7546
    %7800 = vmatpush.bf16.msra.mxu0 %v7545
    %7801 = vmatpush.bf16.msra.mxu0 %v7544
    %7802 = vmatpush.bf16.msra.mxu0 %v7543
    %7803 = vmatpush.bf16.msra.mxu0 %v7542
    %7804 = vmatpush.bf16.msra.mxu0 %v7541
    %7805 = vmatpush.bf16.msra.mxu0 %v7540
    %7806 = vmatpush.bf16.msra.mxu0 %v7539
    %7807 = vmatmul.bf16.gmra.mxu0 %v2503
    %v7808 = vpop.f32.mrf.mxu0
    %v7809 = vadd.f32 %v7760, %v7808
    %v7810 = vpop.f32.mrf.mxu0
    %v7811 = vadd.f32 %v7762, %v7810
    %7812 = vmatmul.bf16.gmra.mxu0 %v2507
    %v7813 = vpop.f32.mrf.mxu0
    %v7814 = vadd.f32 %v7765, %v7813
    %v7815 = vpop.f32.mrf.mxu0
    %v7816 = vadd.f32 %v7767, %v7815
    %7817 = vmatmul.bf16.gmra.mxu0 %v2511
    %v7818 = vpop.f32.mrf.mxu0
    %v7819 = vadd.f32 %v7770, %v7818
    %v7820 = vpop.f32.mrf.mxu0
    %v7821 = vadd.f32 %v7772, %v7820
    %7822 = vmatmul.bf16.gmra.mxu0 %v2515
    %v7823 = vpop.f32.mrf.mxu0
    %v7824 = vadd.f32 %v7775, %v7823
    %v7825 = vpop.f32.mrf.mxu0
    %v7826 = vadd.f32 %v7777, %v7825
    %7827 = vmatmul.bf16.gmra.mxu0 %v2519
    %v7828 = vpop.f32.mrf.mxu0
    %v7829 = vadd.f32 %v7780, %v7828
    %v7830 = vpop.f32.mrf.mxu0
    %v7831 = vadd.f32 %v7782, %v7830
    %7832 = vmatmul.bf16.gmra.mxu0 %v2523
    %v7833 = vpop.f32.mrf.mxu0
    %v7834 = vadd.f32 %v7785, %v7833
    %v7835 = vpop.f32.mrf.mxu0
    %v7836 = vadd.f32 %v7787, %v7835
    %7837 = vmatmul.bf16.gmra.mxu0 %v2527
    %v7838 = vpop.f32.mrf.mxu0
    %v7839 = vadd.f32 %v7790, %v7838
    %v7840 = vpop.f32.mrf.mxu0
    %v7841 = vadd.f32 %v7792, %v7840
    %7842 = vmatmul.bf16.gmra.mxu0 %v2531
    %v7843 = vpop.f32.mrf.mxu0
    %v7844 = vadd.f32 %v7795, %v7843
    %v7845 = vpop.f32.mrf.mxu0
    %v7846 = vadd.f32 %v7797, %v7845
    %7847 = vdwg.mxu0
    %7848 = vmatpush.bf16.msra.mxu0 %v7578
    %7849 = vmatpush.bf16.msra.mxu0 %v7577
    %7850 = vmatpush.bf16.msra.mxu0 %v7576
    %7851 = vmatpush.bf16.msra.mxu0 %v7575
    %7852 = vmatpush.bf16.msra.mxu0 %v7574
    %7853 = vmatpush.bf16.msra.mxu0 %v7573
    %7854 = vmatpush.bf16.msra.mxu0 %v7572
    %7855 = vmatpush.bf16.msra.mxu0 %v7571
    %7856 = vmatmul.bf16.gmra.mxu0 %v2504
    %v7857 = vpop.f32.mrf.mxu0
    %v7858 = vadd.f32 %v7809, %v7857
    %v7859 = vpop.f32.mrf.mxu0
    %v7860 = vadd.f32 %v7811, %v7859
    %7861 = vmatmul.bf16.gmra.mxu0 %v2508
    %v7862 = vpop.f32.mrf.mxu0
    %v7863 = vadd.f32 %v7814, %v7862
    %v7864 = vpop.f32.mrf.mxu0
    %v7865 = vadd.f32 %v7816, %v7864
    %7866 = vmatmul.bf16.gmra.mxu0 %v2512
    %v7867 = vpop.f32.mrf.mxu0
    %v7868 = vadd.f32 %v7819, %v7867
    %v7869 = vpop.f32.mrf.mxu0
    %v7870 = vadd.f32 %v7821, %v7869
    %7871 = vmatmul.bf16.gmra.mxu0 %v2516
    %v7872 = vpop.f32.mrf.mxu0
    %v7873 = vadd.f32 %v7824, %v7872
    %v7874 = vpop.f32.mrf.mxu0
    %v7875 = vadd.f32 %v7826, %v7874
    %7876 = vmatmul.bf16.gmra.mxu0 %v2520
    %v7877 = vpop.f32.mrf.mxu0
    %v7878 = vadd.f32 %v7829, %v7877
    %v7879 = vpop.f32.mrf.mxu0
    %v7880 = vadd.f32 %v7831, %v7879
    %7881 = vmatmul.bf16.gmra.mxu0 %v2524
    %v7882 = vpop.f32.mrf.mxu0
    %v7883 = vadd.f32 %v7834, %v7882
    %v7884 = vpop.f32.mrf.mxu0
    %v7885 = vadd.f32 %v7836, %v7884
    %7886 = vmatmul.bf16.gmra.mxu0 %v2528
    %v7887 = vpop.f32.mrf.mxu0
    %v7888 = vadd.f32 %v7839, %v7887
    %v7889 = vpop.f32.mrf.mxu0
    %v7890 = vadd.f32 %v7841, %v7889
    %7891 = vmatmul.bf16.gmra.mxu0 %v2532
    %v7892 = vpop.f32.mrf.mxu0
    %v7893 = vadd.f32 %v7844, %v7892
    %v7894 = vpop.f32.mrf.mxu0
    %v7895 = vadd.f32 %v7846, %v7894
    %7896 = vdwg.mxu0
    %s7897 = scalar_lea.vmem [#allocation16], 7
    %v7898 = vld [vmem:[%s7897] sm:$0x1]
    %v7900 = vperm.slane %v7898, 0
    %v7902 = vadd.f32 %v7858, %v7900
    %v7903 = vadd.f32 %v7860, %v7900
    %v7904 = vadd.f32 %v7863, %v7900
    %v7905 = vadd.f32 %v7865, %v7900
    %v7906 = vadd.f32 %v7868, %v7900
    %v7907 = vadd.f32 %v7870, %v7900
    %v7908 = vadd.f32 %v7873, %v7900
    %v7909 = vadd.f32 %v7875, %v7900
    %v7910 = vadd.f32 %v7878, %v7900
    %v7911 = vadd.f32 %v7880, %v7900
    %v7912 = vadd.f32 %v7883, %v7900
    %v7913 = vadd.f32 %v7885, %v7900
    %v7914 = vadd.f32 %v7888, %v7900
    %v7915 = vadd.f32 %v7890, %v7900
    %v7916 = vadd.f32 %v7893, %v7900
    %v7917 = vadd.f32 %v7895, %v7900
    %v7918 = vmax.f32 %v7902, 0.0
    %v7919 = vmax.f32 %v7903, 0.0
    %v7920 = vmax.f32 %v7904, 0.0
    %v7921 = vmax.f32 %v7905, 0.0
    %v7922 = vmax.f32 %v7906, 0.0
    %v7923 = vmax.f32 %v7907, 0.0
    %v7924 = vmax.f32 %v7908, 0.0
    %v7925 = vmax.f32 %v7909, 0.0
    %v7926 = vmax.f32 %v7910, 0.0
    %v7927 = vmax.f32 %v7911, 0.0
    %v7928 = vmax.f32 %v7912, 0.0
    %v7929 = vmax.f32 %v7913, 0.0
    %v7930 = vmax.f32 %v7914, 0.0
    %v7931 = vmax.f32 %v7915, 0.0
    %v7932 = vmax.f32 %v7916, 0.0
    %v7933 = vmax.f32 %v7917, 0.0
    %v7934 = vpack.c.bf16 %v7919, %v7918
    %v7935 = vpack.c.bf16 %v7921, %v7920
    %v7936 = vpack.c.bf16 %v7923, %v7922
    %v7937 = vpack.c.bf16 %v7925, %v7924
    %v7938 = vpack.c.bf16 %v7927, %v7926
    %v7939 = vpack.c.bf16 %v7929, %v7928
    %v7940 = vpack.c.bf16 %v7931, %v7930
    %v7941 = vpack.c.bf16 %v7933, %v7932
    %v7942 = vunpack.c.h.b16 %v6176
    %v7943 = vunpack.c.h.b16 %v6178
    %v7944 = vunpack.c.h.b16 %v6180
    %v7945 = vunpack.c.h.b16 %v6182
    %v7946 = vunpack.c.h.b16 %v6184
    %v7947 = vunpack.c.h.b16 %v6186
    %v7948 = vunpack.c.h.b16 %v6188
    %v7949 = vunpack.c.h.b16 %v6190
    %v7950 = vunpack.c.h.b16 %v6192
    %v7951 = vunpack.c.h.b16 %v6194
    %v7952 = vunpack.c.h.b16 %v6196
    %v7953 = vunpack.c.h.b16 %v6198
    %v7954 = vunpack.c.h.b16 %v6200
    %v7955 = vunpack.c.h.b16 %v6202
    %v7956 = vunpack.c.h.b16 %v6204
    %v7957 = vunpack.c.h.b16 %v6206
    %v7958 = vpack.c.b16 %v7943, %v7942
    %v7959 = vpack.c.b16 %v7945, %v7944
    %v7960 = vpack.c.b16 %v7947, %v7946
    %v7961 = vpack.c.b16 %v7949, %v7948
    %v7962 = vpack.c.b16 %v7951, %v7950
    %v7963 = vpack.c.b16 %v7953, %v7952
    %v7964 = vpack.c.b16 %v7955, %v7954
    %v7965 = vpack.c.b16 %v7957, %v7956
    %v7974 = vunpack.c.h.b16 %v6597
    %v7975 = vunpack.c.h.b16 %v6599
    %v7976 = vunpack.c.h.b16 %v6601
    %v7977 = vunpack.c.h.b16 %v6603
    %v7978 = vunpack.c.h.b16 %v6605
    %v7979 = vunpack.c.h.b16 %v6607
    %v7980 = vunpack.c.h.b16 %v6609
    %v7981 = vunpack.c.h.b16 %v6611
    %v7982 = vunpack.c.h.b16 %v6613
    %v7983 = vunpack.c.h.b16 %v6615
    %v7984 = vunpack.c.h.b16 %v6617
    %v7985 = vunpack.c.h.b16 %v6619
    %v7986 = vunpack.c.h.b16 %v6621
    %v7987 = vunpack.c.h.b16 %v6623
    %v7988 = vunpack.c.h.b16 %v6625
    %v7989 = vunpack.c.h.b16 %v6627
    %v7990 = vpack.c.b16 %v7975, %v7974
    %v7991 = vpack.c.b16 %v7977, %v7976
    %v7992 = vpack.c.b16 %v7979, %v7978
    %v7993 = vpack.c.b16 %v7981, %v7980
    %v7994 = vpack.c.b16 %v7983, %v7982
    %v7995 = vpack.c.b16 %v7985, %v7984
    %v7996 = vpack.c.b16 %v7987, %v7986
    %v7997 = vpack.c.b16 %v7989, %v7988
    %v8022 = vunpack.c.l.b16 %v6938
    %v8023 = vunpack.c.l.b16 %v6940
    %v8024 = vunpack.c.l.b16 %v6942
    %v8025 = vunpack.c.l.b16 %v6944
    %v8026 = vunpack.c.l.b16 %v6946
    %v8027 = vunpack.c.l.b16 %v6948
    %v8028 = vunpack.c.l.b16 %v6950
    %v8029 = vunpack.c.l.b16 %v6952
    %v8030 = vunpack.c.l.b16 %v6954
    %v8031 = vunpack.c.l.b16 %v6956
    %v8032 = vunpack.c.l.b16 %v6958
    %v8033 = vunpack.c.l.b16 %v6960
    %v8034 = vunpack.c.l.b16 %v6962
    %v8035 = vunpack.c.l.b16 %v6964
    %v8036 = vunpack.c.l.b16 %v6966
    %v8037 = vunpack.c.l.b16 %v6968
    %v8038 = vpack.c.b16 %v8023, %v8022
    %v8039 = vpack.c.b16 %v8025, %v8024
    %v8040 = vpack.c.b16 %v8027, %v8026
    %v8041 = vpack.c.b16 %v8029, %v8028
    %v8042 = vpack.c.b16 %v8031, %v8030
    %v8043 = vpack.c.b16 %v8033, %v8032
    %v8044 = vpack.c.b16 %v8035, %v8034
    %v8045 = vpack.c.b16 %v8037, %v8036
    %s8054 = scalar_lea.vmem [#allocation14], 512
    %v8055 = vld [vmem:[%s8054] sm:$0xf]
    %v8056 = vld [vmem:[%s8054 + $0x4] sm:$0xf]
    %v8057 = vld [vmem:[%s8054 + $0x8] sm:$0xf]
    %v8058 = vld [vmem:[%s8054 + $0xc] sm:$0xf]
    %v8059 = vld [vmem:[%s8054 + $0x10] sm:$0xf]
    %v8060 = vld [vmem:[%s8054 + $0x14] sm:$0xf]
    %v8061 = vld [vmem:[%s8054 + $0x18] sm:$0xf]
    %v8062 = vld [vmem:[%s8054 + $0x1c] sm:$0xf]
    %v8063 = vld [vmem:[%s8054 + $0x20] sm:$0xf]
    %v8064 = vld [vmem:[%s8054 + $0x24] sm:$0xf]
    %v8065 = vld [vmem:[%s8054 + $0x28] sm:$0xf]
    %v8066 = vld [vmem:[%s8054 + $0x2c] sm:$0xf]
    %v8067 = vld [vmem:[%s8054 + $0x30] sm:$0xf]
    %v8068 = vld [vmem:[%s8054 + $0x34] sm:$0xf]
    %v8069 = vld [vmem:[%s8054 + $0x38] sm:$0xf]
    %v8070 = vld [vmem:[%s8054 + $0x3c] sm:$0xf]
    %v8087 = vunpack.c.l.b16 %v8055
    %v8088 = vunpack.c.l.b16 %v8056
    %v8089 = vunpack.c.l.b16 %v8057
    %v8090 = vunpack.c.l.b16 %v8058
    %v8091 = vunpack.c.l.b16 %v8059
    %v8092 = vunpack.c.l.b16 %v8060
    %v8093 = vunpack.c.l.b16 %v8061
    %v8094 = vunpack.c.l.b16 %v8062
    %v8095 = vunpack.c.l.b16 %v8063
    %v8096 = vunpack.c.l.b16 %v8064
    %v8097 = vunpack.c.l.b16 %v8065
    %v8098 = vunpack.c.l.b16 %v8066
    %v8099 = vunpack.c.l.b16 %v8067
    %v8100 = vunpack.c.l.b16 %v8068
    %v8101 = vunpack.c.l.b16 %v8069
    %v8102 = vunpack.c.l.b16 %v8070
    %v8103 = vpack.c.b16 %v8088, %v8087
    %v8104 = vpack.c.b16 %v8090, %v8089
    %v8105 = vpack.c.b16 %v8092, %v8091
    %v8106 = vpack.c.b16 %v8094, %v8093
    %v8107 = vpack.c.b16 %v8096, %v8095
    %v8108 = vpack.c.b16 %v8098, %v8097
    %v8109 = vpack.c.b16 %v8100, %v8099
    %v8110 = vpack.c.b16 %v8102, %v8101
    %8119 = vmatpush.bf16.msra.mxu0 %v8110
    %8120 = vmatpush.bf16.msra.mxu0 %v8109
    %8121 = vmatpush.bf16.msra.mxu0 %v8108
    %8122 = vmatpush.bf16.msra.mxu0 %v8107
    %8123 = vmatpush.bf16.msra.mxu0 %v8106
    %8124 = vmatpush.bf16.msra.mxu0 %v8105
    %8125 = vmatpush.bf16.msra.mxu0 %v8104
    %8126 = vmatpush.bf16.msra.mxu0 %v8103
    %8127 = vmatmul.bf16.gmra.mxu0 %v5860
    %v8128 = vpop.f32.mrf.mxu0
    %v8129 = vadd.f32 0.0, %v8128
    %v8130 = vpop.f32.mrf.mxu0
    %v8131 = vadd.f32 0.0, %v8130
    %8132 = vmatmul.bf16.gmra.mxu0 %v5861
    %v8133 = vpop.f32.mrf.mxu0
    %v8134 = vadd.f32 0.0, %v8133
    %v8135 = vpop.f32.mrf.mxu0
    %v8136 = vadd.f32 0.0, %v8135
    %8137 = vmatmul.bf16.gmra.mxu0 %v5862
    %v8138 = vpop.f32.mrf.mxu0
    %v8139 = vadd.f32 0.0, %v8138
    %v8140 = vpop.f32.mrf.mxu0
    %v8141 = vadd.f32 0.0, %v8140
    %8142 = vmatmul.bf16.gmra.mxu0 %v5863
    %v8143 = vpop.f32.mrf.mxu0
    %v8144 = vadd.f32 0.0, %v8143
    %v8145 = vpop.f32.mrf.mxu0
    %v8146 = vadd.f32 0.0, %v8145
    %8147 = vmatmul.bf16.gmra.mxu0 %v5864
    %v8148 = vpop.f32.mrf.mxu0
    %v8149 = vadd.f32 0.0, %v8148
    %v8150 = vpop.f32.mrf.mxu0
    %v8151 = vadd.f32 0.0, %v8150
    %8152 = vmatmul.bf16.gmra.mxu0 %v5865
    %v8153 = vpop.f32.mrf.mxu0
    %v8154 = vadd.f32 0.0, %v8153
    %v8155 = vpop.f32.mrf.mxu0
    %v8156 = vadd.f32 0.0, %v8155
    %8157 = vmatmul.bf16.gmra.mxu0 %v5866
    %v8158 = vpop.f32.mrf.mxu0
    %v8159 = vadd.f32 0.0, %v8158
    %v8160 = vpop.f32.mrf.mxu0
    %v8161 = vadd.f32 0.0, %v8160
    %8162 = vmatmul.bf16.gmra.mxu0 %v5867
    %v8163 = vpop.f32.mrf.mxu0
    %v8164 = vadd.f32 0.0, %v8163
    %v8165 = vpop.f32.mrf.mxu0
    %v8166 = vadd.f32 0.0, %v8165
    %8167 = vdwg.mxu0
    %8168 = vmatpush.bf16.msra.mxu0 %v7965
    %8169 = vmatpush.bf16.msra.mxu0 %v7964
    %8170 = vmatpush.bf16.msra.mxu0 %v7963
    %8171 = vmatpush.bf16.msra.mxu0 %v7962
    %8172 = vmatpush.bf16.msra.mxu0 %v7961
    %8173 = vmatpush.bf16.msra.mxu0 %v7960
    %8174 = vmatpush.bf16.msra.mxu0 %v7959
    %8175 = vmatpush.bf16.msra.mxu0 %v7958
    %8176 = vmatmul.bf16.gmra.mxu0 %v3144
    %v8177 = vpop.f32.mrf.mxu0
    %v8178 = vadd.f32 %v8129, %v8177
    %v8179 = vpop.f32.mrf.mxu0
    %v8180 = vadd.f32 %v8131, %v8179
    %8181 = vmatmul.bf16.gmra.mxu0 %v3147
    %v8182 = vpop.f32.mrf.mxu0
    %v8183 = vadd.f32 %v8134, %v8182
    %v8184 = vpop.f32.mrf.mxu0
    %v8185 = vadd.f32 %v8136, %v8184
    %8186 = vmatmul.bf16.gmra.mxu0 %v3150
    %v8187 = vpop.f32.mrf.mxu0
    %v8188 = vadd.f32 %v8139, %v8187
    %v8189 = vpop.f32.mrf.mxu0
    %v8190 = vadd.f32 %v8141, %v8189
    %8191 = vmatmul.bf16.gmra.mxu0 %v3153
    %v8192 = vpop.f32.mrf.mxu0
    %v8193 = vadd.f32 %v8144, %v8192
    %v8194 = vpop.f32.mrf.mxu0
    %v8195 = vadd.f32 %v8146, %v8194
    %8196 = vmatmul.bf16.gmra.mxu0 %v3156
    %v8197 = vpop.f32.mrf.mxu0
    %v8198 = vadd.f32 %v8149, %v8197
    %v8199 = vpop.f32.mrf.mxu0
    %v8200 = vadd.f32 %v8151, %v8199
    %8201 = vmatmul.bf16.gmra.mxu0 %v3159
    %v8202 = vpop.f32.mrf.mxu0
    %v8203 = vadd.f32 %v8154, %v8202
    %v8204 = vpop.f32.mrf.mxu0
    %v8205 = vadd.f32 %v8156, %v8204
    %8206 = vmatmul.bf16.gmra.mxu0 %v3162
    %v8207 = vpop.f32.mrf.mxu0
    %v8208 = vadd.f32 %v8159, %v8207
    %v8209 = vpop.f32.mrf.mxu0
    %v8210 = vadd.f32 %v8161, %v8209
    %8211 = vmatmul.bf16.gmra.mxu0 %v3165
    %v8212 = vpop.f32.mrf.mxu0
    %v8213 = vadd.f32 %v8164, %v8212
    %v8214 = vpop.f32.mrf.mxu0
    %v8215 = vadd.f32 %v8166, %v8214
    %8216 = vdwg.mxu0
    %8217 = vmatpush.bf16.msra.mxu0 %v7997
    %8218 = vmatpush.bf16.msra.mxu0 %v7996
    %8219 = vmatpush.bf16.msra.mxu0 %v7995
    %8220 = vmatpush.bf16.msra.mxu0 %v7994
    %8221 = vmatpush.bf16.msra.mxu0 %v7993
    %8222 = vmatpush.bf16.msra.mxu0 %v7992
    %8223 = vmatpush.bf16.msra.mxu0 %v7991
    %8224 = vmatpush.bf16.msra.mxu0 %v7990
    %8225 = vmatmul.bf16.gmra.mxu0 %v3145
    %v8226 = vpop.f32.mrf.mxu0
    %v8227 = vadd.f32 %v8178, %v8226
    %v8228 = vpop.f32.mrf.mxu0
    %v8229 = vadd.f32 %v8180, %v8228
    %8230 = vmatmul.bf16.gmra.mxu0 %v3148
    %v8231 = vpop.f32.mrf.mxu0
    %v8232 = vadd.f32 %v8183, %v8231
    %v8233 = vpop.f32.mrf.mxu0
    %v8234 = vadd.f32 %v8185, %v8233
    %8235 = vmatmul.bf16.gmra.mxu0 %v3151
    %v8236 = vpop.f32.mrf.mxu0
    %v8237 = vadd.f32 %v8188, %v8236
    %v8238 = vpop.f32.mrf.mxu0
    %v8239 = vadd.f32 %v8190, %v8238
    %8240 = vmatmul.bf16.gmra.mxu0 %v3154
    %v8241 = vpop.f32.mrf.mxu0
    %v8242 = vadd.f32 %v8193, %v8241
    %v8243 = vpop.f32.mrf.mxu0
    %v8244 = vadd.f32 %v8195, %v8243
    %8245 = vmatmul.bf16.gmra.mxu0 %v3157
    %v8246 = vpop.f32.mrf.mxu0
    %v8247 = vadd.f32 %v8198, %v8246
    %v8248 = vpop.f32.mrf.mxu0
    %v8249 = vadd.f32 %v8200, %v8248
    %8250 = vmatmul.bf16.gmra.mxu0 %v3160
    %v8251 = vpop.f32.mrf.mxu0
    %v8252 = vadd.f32 %v8203, %v8251
    %v8253 = vpop.f32.mrf.mxu0
    %v8254 = vadd.f32 %v8205, %v8253
    %8255 = vmatmul.bf16.gmra.mxu0 %v3163
    %v8256 = vpop.f32.mrf.mxu0
    %v8257 = vadd.f32 %v8208, %v8256
    %v8258 = vpop.f32.mrf.mxu0
    %v8259 = vadd.f32 %v8210, %v8258
    %8260 = vmatmul.bf16.gmra.mxu0 %v3166
    %v8261 = vpop.f32.mrf.mxu0
    %v8262 = vadd.f32 %v8213, %v8261
    %v8263 = vpop.f32.mrf.mxu0
    %v8264 = vadd.f32 %v8215, %v8263
    %8265 = vdwg.mxu0
    %8266 = vmatpush.bf16.msra.mxu0 %v8045
    %8267 = vmatpush.bf16.msra.mxu0 %v8044
    %8268 = vmatpush.bf16.msra.mxu0 %v8043
    %8269 = vmatpush.bf16.msra.mxu0 %v8042
    %8270 = vmatpush.bf16.msra.mxu0 %v8041
    %8271 = vmatpush.bf16.msra.mxu0 %v8040
    %8272 = vmatpush.bf16.msra.mxu0 %v8039
    %8273 = vmatpush.bf16.msra.mxu0 %v8038
    %8274 = vmatmul.bf16.gmra.mxu0 %v3146
    %v8275 = vpop.f32.mrf.mxu0
    %v8276 = vadd.f32 %v8227, %v8275
    %v8277 = vpop.f32.mrf.mxu0
    %v8278 = vadd.f32 %v8229, %v8277
    %8279 = vmatmul.bf16.gmra.mxu0 %v3149
    %v8280 = vpop.f32.mrf.mxu0
    %v8281 = vadd.f32 %v8232, %v8280
    %v8282 = vpop.f32.mrf.mxu0
    %v8283 = vadd.f32 %v8234, %v8282
    %8284 = vmatmul.bf16.gmra.mxu0 %v3152
    %v8285 = vpop.f32.mrf.mxu0
    %v8286 = vadd.f32 %v8237, %v8285
    %v8287 = vpop.f32.mrf.mxu0
    %v8288 = vadd.f32 %v8239, %v8287
    %8289 = vmatmul.bf16.gmra.mxu0 %v3155
    %v8290 = vpop.f32.mrf.mxu0
    %v8291 = vadd.f32 %v8242, %v8290
    %v8292 = vpop.f32.mrf.mxu0
    %v8293 = vadd.f32 %v8244, %v8292
    %8294 = vmatmul.bf16.gmra.mxu0 %v3158
    %v8295 = vpop.f32.mrf.mxu0
    %v8296 = vadd.f32 %v8247, %v8295
    %v8297 = vpop.f32.mrf.mxu0
    %v8298 = vadd.f32 %v8249, %v8297
    %8299 = vmatmul.bf16.gmra.mxu0 %v3161
    %v8300 = vpop.f32.mrf.mxu0
    %v8301 = vadd.f32 %v8252, %v8300
    %v8302 = vpop.f32.mrf.mxu0
    %v8303 = vadd.f32 %v8254, %v8302
    %8304 = vmatmul.bf16.gmra.mxu0 %v3164
    %v8305 = vpop.f32.mrf.mxu0
    %v8306 = vadd.f32 %v8257, %v8305
    %v8307 = vpop.f32.mrf.mxu0
    %v8308 = vadd.f32 %v8259, %v8307
    %8309 = vmatmul.bf16.gmra.mxu0 %v3167
    %v8310 = vpop.f32.mrf.mxu0
    %v8311 = vadd.f32 %v8262, %v8310
    %v8312 = vpop.f32.mrf.mxu0
    %v8313 = vadd.f32 %v8264, %v8312
    %8314 = vdwg.mxu0
    %s8315 = scalar_lea.vmem [#allocation16], 8
    %v8316 = vld [vmem:[%s8315] sm:$0x1]
    %v8318 = vperm.slane %v8316, 0
    %v8320 = vadd.f32 %v8276, %v8318
    %v8321 = vadd.f32 %v8278, %v8318
    %v8322 = vadd.f32 %v8281, %v8318
    %v8323 = vadd.f32 %v8283, %v8318
    %v8324 = vadd.f32 %v8286, %v8318
    %v8325 = vadd.f32 %v8288, %v8318
    %v8326 = vadd.f32 %v8291, %v8318
    %v8327 = vadd.f32 %v8293, %v8318
    %v8328 = vadd.f32 %v8296, %v8318
    %v8329 = vadd.f32 %v8298, %v8318
    %v8330 = vadd.f32 %v8301, %v8318
    %v8331 = vadd.f32 %v8303, %v8318
    %v8332 = vadd.f32 %v8306, %v8318
    %v8333 = vadd.f32 %v8308, %v8318
    %v8334 = vadd.f32 %v8311, %v8318
    %v8335 = vadd.f32 %v8313, %v8318
    %v8336 = vmax.f32 %v8320, 0.0
    %v8337 = vmax.f32 %v8321, 0.0
    %v8338 = vmax.f32 %v8322, 0.0
    %v8339 = vmax.f32 %v8323, 0.0
    %v8340 = vmax.f32 %v8324, 0.0
    %v8341 = vmax.f32 %v8325, 0.0
    %v8342 = vmax.f32 %v8326, 0.0
    %v8343 = vmax.f32 %v8327, 0.0
    %v8344 = vmax.f32 %v8328, 0.0
    %v8345 = vmax.f32 %v8329, 0.0
    %v8346 = vmax.f32 %v8330, 0.0
    %v8347 = vmax.f32 %v8331, 0.0
    %v8348 = vmax.f32 %v8332, 0.0
    %v8349 = vmax.f32 %v8333, 0.0
    %v8350 = vmax.f32 %v8334, 0.0
    %v8351 = vmax.f32 %v8335, 0.0
    %v8352 = vpack.c.bf16 %v8337, %v8336
    %v8353 = vpack.c.bf16 %v8339, %v8338
    %v8354 = vpack.c.bf16 %v8341, %v8340
    %v8355 = vpack.c.bf16 %v8343, %v8342
    %v8356 = vpack.c.bf16 %v8345, %v8344
    %v8357 = vpack.c.bf16 %v8347, %v8346
    %v8358 = vpack.c.bf16 %v8349, %v8348
    %v8359 = vpack.c.bf16 %v8351, %v8350
    %v8360 = vunpack.c.l.bf16 %v7411
    %v8361 = vunpack.c.l.bf16 %v7412
    %v8362 = vunpack.c.l.bf16 %v7413
    %v8363 = vunpack.c.l.bf16 %v7414
    %v8364 = vunpack.c.l.bf16 %v7415
    %v8365 = vunpack.c.l.bf16 %v7416
    %v8366 = vunpack.c.l.bf16 %v7417
    %v8367 = vunpack.c.l.bf16 %v7418
    %v8368 = vunpack.c.l.bf16 %v7419
    %v8369 = vunpack.c.l.bf16 %v7420
    %v8370 = vunpack.c.l.bf16 %v7421
    %v8371 = vunpack.c.l.bf16 %v7422
    %v8372 = vunpack.c.l.bf16 %v7423
    %v8373 = vunpack.c.l.bf16 %v7424
    %v8374 = vunpack.c.l.bf16 %v7425
    %v8375 = vunpack.c.l.bf16 %v7426
    %8376 = vst [vmem:[#allocation19] sm:$0xff] %v8360
    %8377 = vst [vmem:[#allocation19 + $0x8] sm:$0xff] %v8361
    %8378 = vst [vmem:[#allocation19 + $0x10] sm:$0xff] %v8362
    %8379 = vst [vmem:[#allocation19 + $0x18] sm:$0xff] %v8363
    %8380 = vst [vmem:[#allocation19 + $0x20] sm:$0xff] %v8364
    %8381 = vst [vmem:[#allocation19 + $0x28] sm:$0xff] %v8365
    %8382 = vst [vmem:[#allocation19 + $0x30] sm:$0xff] %v8366
    %8383 = vst [vmem:[#allocation19 + $0x38] sm:$0xff] %v8367
    %8384 = vst [vmem:[#allocation19 + $0x40] sm:$0xff] %v8368
    %8385 = vst [vmem:[#allocation19 + $0x48] sm:$0xff] %v8369
    %8386 = vst [vmem:[#allocation19 + $0x50] sm:$0xff] %v8370
    %8387 = vst [vmem:[#allocation19 + $0x58] sm:$0xff] %v8371
    %8388 = vst [vmem:[#allocation19 + $0x60] sm:$0xff] %v8372
    %8389 = vst [vmem:[#allocation19 + $0x68] sm:$0xff] %v8373
    %8390 = vst [vmem:[#allocation19 + $0x70] sm:$0xff] %v8374
    %8391 = vst [vmem:[#allocation19 + $0x78] sm:$0xff] %v8375
    %v8392 = vld [vmem:[#allocation17] sm:$0xf]
    %v8393 = vld [vmem:[#allocation17 + $0x4] sm:$0xf]
    %v8394 = vld [vmem:[#allocation17 + $0x8] sm:$0xf]
    %v8395 = vld [vmem:[#allocation17 + $0xc] sm:$0xf]
    %v8396 = vld [vmem:[#allocation17 + $0x10] sm:$0xf]
    %v8397 = vld [vmem:[#allocation17 + $0x14] sm:$0xf]
    %v8398 = vld [vmem:[#allocation17 + $0x18] sm:$0xf]
    %v8399 = vld [vmem:[#allocation17 + $0x1c] sm:$0xf]
    %v8400 = vld [vmem:[#allocation17 + $0x20] sm:$0xf]
    %v8401 = vld [vmem:[#allocation17 + $0x24] sm:$0xf]
    %v8402 = vld [vmem:[#allocation17 + $0x28] sm:$0xf]
    %v8403 = vld [vmem:[#allocation17 + $0x2c] sm:$0xf]
    %v8404 = vld [vmem:[#allocation17 + $0x30] sm:$0xf]
    %v8405 = vld [vmem:[#allocation17 + $0x34] sm:$0xf]
    %v8406 = vld [vmem:[#allocation17 + $0x38] sm:$0xf]
    %v8407 = vld [vmem:[#allocation17 + $0x3c] sm:$0xf]
    %v8408 = vld [vmem:[%s10] sm:$0x1]
    %v8410 = vperm.slane %v8408, 0
    %v8428 = vunpack.c.l.b16 %v8392
    %v8429 = vunpack.c.l.b16 %v8393
    %v8430 = vunpack.c.l.b16 %v8394
    %v8431 = vunpack.c.l.b16 %v8395
    %v8432 = vunpack.c.l.b16 %v8396
    %v8433 = vunpack.c.l.b16 %v8397
    %v8434 = vunpack.c.l.b16 %v8398
    %v8435 = vunpack.c.l.b16 %v8399
    %v8436 = vunpack.c.l.b16 %v8400
    %v8437 = vunpack.c.l.b16 %v8401
    %v8438 = vunpack.c.l.b16 %v8402
    %v8439 = vunpack.c.l.b16 %v8403
    %v8440 = vunpack.c.l.b16 %v8404
    %v8441 = vunpack.c.l.b16 %v8405
    %v8442 = vunpack.c.l.b16 %v8406
    %v8443 = vunpack.c.l.b16 %v8407
    %v8444 = vpack.c.b16 %v8429, %v8428
    %v8445 = vpack.c.b16 %v8431, %v8430
    %v8446 = vpack.c.b16 %v8433, %v8432
    %v8447 = vpack.c.b16 %v8435, %v8434
    %v8448 = vpack.c.b16 %v8437, %v8436
    %v8449 = vpack.c.b16 %v8439, %v8438
    %v8450 = vpack.c.b16 %v8441, %v8440
    %v8451 = vpack.c.b16 %v8443, %v8442
    %8460 = vmatpush.bf16.msra.mxu0 %v8451
    %8461 = vmatpush.bf16.msra.mxu0 %v8450
    %8462 = vmatpush.bf16.msra.mxu0 %v8449
    %8463 = vmatpush.bf16.msra.mxu0 %v8448
    %8464 = vmatpush.bf16.msra.mxu0 %v8447
    %8465 = vmatpush.bf16.msra.mxu0 %v8446
    %8466 = vmatpush.bf16.msra.mxu0 %v8445
    %8467 = vmatpush.bf16.msra.mxu0 %v8444
    %8468 = vmatmul.bf16.gmra.mxu0 %v7934
    %v8469 = vpop.f32.mrf.mxu0
    %v8470 = vadd.f32 %v8410, %v8469
    %v8471 = vpop.f32.mrf.mxu0
    %v8472 = vadd.f32 %v8410, %v8471
    %8473 = vmatmul.bf16.gmra.mxu0 %v7935
    %v8474 = vpop.f32.mrf.mxu0
    %v8475 = vadd.f32 %v8410, %v8474
    %v8476 = vpop.f32.mrf.mxu0
    %v8477 = vadd.f32 %v8410, %v8476
    %8478 = vmatmul.bf16.gmra.mxu0 %v7936
    %v8479 = vpop.f32.mrf.mxu0
    %v8480 = vadd.f32 %v8410, %v8479
    %v8481 = vpop.f32.mrf.mxu0
    %v8482 = vadd.f32 %v8410, %v8481
    %8483 = vmatmul.bf16.gmra.mxu0 %v7937
    %v8484 = vpop.f32.mrf.mxu0
    %v8485 = vadd.f32 %v8410, %v8484
    %v8486 = vpop.f32.mrf.mxu0
    %v8487 = vadd.f32 %v8410, %v8486
    %8488 = vmatmul.bf16.gmra.mxu0 %v7938
    %v8489 = vpop.f32.mrf.mxu0
    %v8490 = vadd.f32 %v8410, %v8489
    %v8491 = vpop.f32.mrf.mxu0
    %v8492 = vadd.f32 %v8410, %v8491
    %8493 = vmatmul.bf16.gmra.mxu0 %v7939
    %v8494 = vpop.f32.mrf.mxu0
    %v8495 = vadd.f32 %v8410, %v8494
    %v8496 = vpop.f32.mrf.mxu0
    %v8497 = vadd.f32 %v8410, %v8496
    %8498 = vmatmul.bf16.gmra.mxu0 %v7940
    %v8499 = vpop.f32.mrf.mxu0
    %v8500 = vadd.f32 %v8410, %v8499
    %v8501 = vpop.f32.mrf.mxu0
    %v8502 = vadd.f32 %v8410, %v8501
    %8503 = vmatmul.bf16.gmra.mxu0 %v7941
    %v8504 = vpop.f32.mrf.mxu0
    %v8505 = vadd.f32 %v8410, %v8504
    %v8506 = vpop.f32.mrf.mxu0
    %v8507 = vadd.f32 %v8410, %v8506
    %8508 = vdwg.mxu0
    %8509 = vst [vmem:[#allocation20] sm:$0xff] %v8470
    %8510 = vst [vmem:[#allocation20 + $0x8] sm:$0xff] %v8472
    %8511 = vst [vmem:[#allocation20 + $0x10] sm:$0xff] %v8475
    %8512 = vst [vmem:[#allocation20 + $0x18] sm:$0xff] %v8477
    %8513 = vst [vmem:[#allocation20 + $0x20] sm:$0xff] %v8480
    %8514 = vst [vmem:[#allocation20 + $0x28] sm:$0xff] %v8482
    %8515 = vst [vmem:[#allocation20 + $0x30] sm:$0xff] %v8485
    %8516 = vst [vmem:[#allocation20 + $0x38] sm:$0xff] %v8487
    %8517 = vst [vmem:[#allocation20 + $0x40] sm:$0xff] %v8490
    %8518 = vst [vmem:[#allocation20 + $0x48] sm:$0xff] %v8492
    %8519 = vst [vmem:[#allocation20 + $0x50] sm:$0xff] %v8495
    %8520 = vst [vmem:[#allocation20 + $0x58] sm:$0xff] %v8497
    %8521 = vst [vmem:[#allocation20 + $0x60] sm:$0xff] %v8500
    %8522 = vst [vmem:[#allocation20 + $0x68] sm:$0xff] %v8502
    %8523 = vst [vmem:[#allocation20 + $0x70] sm:$0xff] %v8505
    %8524 = vst [vmem:[#allocation20 + $0x78] sm:$0xff] %v8507
    %s8525 = scalar_lea.vmem [#allocation17], 64
    %v8526 = vld [vmem:[%s8525] sm:$0xf]
    %v8527 = vld [vmem:[%s8525 + $0x4] sm:$0xf]
    %v8528 = vld [vmem:[%s8525 + $0x8] sm:$0xf]
    %v8529 = vld [vmem:[%s8525 + $0xc] sm:$0xf]
    %v8530 = vld [vmem:[%s8525 + $0x10] sm:$0xf]
    %v8531 = vld [vmem:[%s8525 + $0x14] sm:$0xf]
    %v8532 = vld [vmem:[%s8525 + $0x18] sm:$0xf]
    %v8533 = vld [vmem:[%s8525 + $0x1c] sm:$0xf]
    %v8534 = vld [vmem:[%s8525 + $0x20] sm:$0xf]
    %v8535 = vld [vmem:[%s8525 + $0x24] sm:$0xf]
    %v8536 = vld [vmem:[%s8525 + $0x28] sm:$0xf]
    %v8537 = vld [vmem:[%s8525 + $0x2c] sm:$0xf]
    %v8538 = vld [vmem:[%s8525 + $0x30] sm:$0xf]
    %v8539 = vld [vmem:[%s8525 + $0x34] sm:$0xf]
    %v8540 = vld [vmem:[%s8525 + $0x38] sm:$0xf]
    %v8541 = vld [vmem:[%s8525 + $0x3c] sm:$0xf]
    %s8542 = scalar_lea.vmem %s10, 1
    %v8543 = vld [vmem:[%s8542] sm:$0x1]
    %v8545 = vperm.slane %v8543, 0
    %v8563 = vunpack.c.l.b16 %v8526
    %v8564 = vunpack.c.l.b16 %v8527
    %v8565 = vunpack.c.l.b16 %v8528
    %v8566 = vunpack.c.l.b16 %v8529
    %v8567 = vunpack.c.l.b16 %v8530
    %v8568 = vunpack.c.l.b16 %v8531
    %v8569 = vunpack.c.l.b16 %v8532
    %v8570 = vunpack.c.l.b16 %v8533
    %v8571 = vunpack.c.l.b16 %v8534
    %v8572 = vunpack.c.l.b16 %v8535
    %v8573 = vunpack.c.l.b16 %v8536
    %v8574 = vunpack.c.l.b16 %v8537
    %v8575 = vunpack.c.l.b16 %v8538
    %v8576 = vunpack.c.l.b16 %v8539
    %v8577 = vunpack.c.l.b16 %v8540
    %v8578 = vunpack.c.l.b16 %v8541
    %v8579 = vpack.c.b16 %v8564, %v8563
    %v8580 = vpack.c.b16 %v8566, %v8565
    %v8581 = vpack.c.b16 %v8568, %v8567
    %v8582 = vpack.c.b16 %v8570, %v8569
    %v8583 = vpack.c.b16 %v8572, %v8571
    %v8584 = vpack.c.b16 %v8574, %v8573
    %v8585 = vpack.c.b16 %v8576, %v8575
    %v8586 = vpack.c.b16 %v8578, %v8577
    %8595 = vmatpush.bf16.msra.mxu0 %v8586
    %8596 = vmatpush.bf16.msra.mxu0 %v8585
    %8597 = vmatpush.bf16.msra.mxu0 %v8584
    %8598 = vmatpush.bf16.msra.mxu0 %v8583
    %8599 = vmatpush.bf16.msra.mxu0 %v8582
    %8600 = vmatpush.bf16.msra.mxu0 %v8581
    %8601 = vmatpush.bf16.msra.mxu0 %v8580
    %8602 = vmatpush.bf16.msra.mxu0 %v8579
    %8603 = vmatmul.bf16.gmra.mxu0 %v8352
    %v8604 = vpop.f32.mrf.mxu0
    %v8605 = vadd.f32 %v8545, %v8604
    %v8606 = vpop.f32.mrf.mxu0
    %v8607 = vadd.f32 %v8545, %v8606
    %8608 = vmatmul.bf16.gmra.mxu0 %v8353
    %v8609 = vpop.f32.mrf.mxu0
    %v8610 = vadd.f32 %v8545, %v8609
    %v8611 = vpop.f32.mrf.mxu0
    %v8612 = vadd.f32 %v8545, %v8611
    %8613 = vmatmul.bf16.gmra.mxu0 %v8354
    %v8614 = vpop.f32.mrf.mxu0
    %v8615 = vadd.f32 %v8545, %v8614
    %v8616 = vpop.f32.mrf.mxu0
    %v8617 = vadd.f32 %v8545, %v8616
    %8618 = vmatmul.bf16.gmra.mxu0 %v8355
    %v8619 = vpop.f32.mrf.mxu0
    %v8620 = vadd.f32 %v8545, %v8619
    %v8621 = vpop.f32.mrf.mxu0
    %v8622 = vadd.f32 %v8545, %v8621
    %8623 = vmatmul.bf16.gmra.mxu0 %v8356
    %v8624 = vpop.f32.mrf.mxu0
    %v8625 = vadd.f32 %v8545, %v8624
    %v8626 = vpop.f32.mrf.mxu0
    %v8627 = vadd.f32 %v8545, %v8626
    %8628 = vmatmul.bf16.gmra.mxu0 %v8357
    %v8629 = vpop.f32.mrf.mxu0
    %v8630 = vadd.f32 %v8545, %v8629
    %v8631 = vpop.f32.mrf.mxu0
    %v8632 = vadd.f32 %v8545, %v8631
    %8633 = vmatmul.bf16.gmra.mxu0 %v8358
    %v8634 = vpop.f32.mrf.mxu0
    %v8635 = vadd.f32 %v8545, %v8634
    %v8636 = vpop.f32.mrf.mxu0
    %v8637 = vadd.f32 %v8545, %v8636
    %8638 = vmatmul.bf16.gmra.mxu0 %v8359
    %v8639 = vpop.f32.mrf.mxu0
    %v8640 = vadd.f32 %v8545, %v8639
    %v8641 = vpop.f32.mrf.mxu0
    %v8642 = vadd.f32 %v8545, %v8641
    %8643 = vdwg.mxu0
    %8644 = vst [vmem:[#allocation22] sm:$0xff] %v8605
    %8645 = vst [vmem:[#allocation22 + $0x8] sm:$0xff] %v8607
    %8646 = vst [vmem:[#allocation22 + $0x10] sm:$0xff] %v8610
    %8647 = vst [vmem:[#allocation22 + $0x18] sm:$0xff] %v8612
    %8648 = vst [vmem:[#allocation22 + $0x20] sm:$0xff] %v8615
    %8649 = vst [vmem:[#allocation22 + $0x28] sm:$0xff] %v8617
    %8650 = vst [vmem:[#allocation22 + $0x30] sm:$0xff] %v8620
    %8651 = vst [vmem:[#allocation22 + $0x38] sm:$0xff] %v8622
    %8652 = vst [vmem:[#allocation22 + $0x40] sm:$0xff] %v8625
    %8653 = vst [vmem:[#allocation22 + $0x48] sm:$0xff] %v8627
    %8654 = vst [vmem:[#allocation22 + $0x50] sm:$0xff] %v8630
    %8655 = vst [vmem:[#allocation22 + $0x58] sm:$0xff] %v8632
    %8656 = vst [vmem:[#allocation22 + $0x60] sm:$0xff] %v8635
    %8657 = vst [vmem:[#allocation22 + $0x68] sm:$0xff] %v8637
    %8658 = vst [vmem:[#allocation22 + $0x70] sm:$0xff] %v8640
    %8659 = vst [vmem:[#allocation22 + $0x78] sm:$0xff] %v8642
    // Predicated region
    $region86: #{tpu_custom_call.1} parent=1 // pred_check
      _
    $region87: #{tpu_custom_call.1} parent=1 // pred_check_branch
      %8661 = sbr.rel (0) target = $region89
    $region88: #{tpu_custom_call.1} parent=1 // pred_region
      %8663 = vsyncadd [#allocation4], 0
      %s8664 = sshll.u32 [#allocation19], 4
      %s8665 = int_to_ptr.vmem [resolvable:$true] %s8664
      %s8666 = sshll.u32 %s11, 4
      %s8667 = int_to_ptr.hbm [resolvable:$true] %s8666
      %8672 = dma.vmem_to_hbm [thread:$0]  %s8665, 2048, %s8667, [#allocation4], 128, 128, 8
    $region89: #{tpu_custom_call.1} parent=1 // pred_fallthru
      _
    // Predicated region
    $region90: #{tpu_custom_call.1} parent=1 // pred_check
      _
    $region91: #{tpu_custom_call.1} parent=1 // pred_check_branch
      %8674 = sbr.rel (0) target = $region93
    $region92: #{tpu_custom_call.1} parent=1 // pred_region
      %8676 = vsyncadd [#allocation21], 0
      %s8677 = sshll.u32 [#allocation20], 4
      %s8678 = int_to_ptr.vmem [resolvable:$true] %s8677
      %s8679 = sshll.u32 %s12, 4
      %s8680 = int_to_ptr.hbm [resolvable:$true] %s8679
      %8685 = dma.vmem_to_hbm [thread:$0]  %s8678, 2048, %s8680, [#allocation21], 128, 128, 8
    $region93: #{tpu_custom_call.1} parent=1 // pred_fallthru
      _
    // Predicated region
    $region94: #{tpu_custom_call.1} parent=1 // pred_check
      _
    $region95: #{tpu_custom_call.1} parent=1 // pred_check_branch
      %8687 = sbr.rel (0) target = $region97
    $region96: #{tpu_custom_call.1} parent=1 // pred_region
      %8689 = vsyncadd [#allocation21], 0
      %s8690 = sshll.u32 [#allocation22], 4
      %s8691 = int_to_ptr.vmem [resolvable:$true] %s8690
      %s8692 = sshll.u32 %s13, 4
      %s8693 = int_to_ptr.hbm [resolvable:$true] %s8692
      %8698 = dma.vmem_to_hbm [thread:$0]  %s8691, 2048, %s8693, [#allocation21], 128, 128, 8
    $region97: #{tpu_custom_call.1} parent=1 // pred_fallthru
      _
    // Predicated region
    $region98: #{tpu_custom_call.1} parent=1 // pred_check
      _
    $region99: #{tpu_custom_call.1} parent=1 // pred_check_branch
      %8700 = sbr.rel (0) target = $region101
    $region100: #{tpu_custom_call.1} parent=1 // pred_region
      %8702 = dma.done [#allocation4], 2048
    $region101: #{tpu_custom_call.1} parent=1 // pred_fallthru
      _
    // Predicated region
    $region102: #{tpu_custom_call.1} parent=1 // pred_check
      _
    $region103: #{tpu_custom_call.1} parent=1 // pred_check_branch
      %8704 = sbr.rel (0) target = $region105
    $region104: #{tpu_custom_call.1} parent=1 // pred_region
      %8706 = dma.done [#allocation21], 2048
    $region105: #{tpu_custom_call.1} parent=1 // pred_fallthru
      _
    // Predicated region
    $region106: #{tpu_custom_call.1} parent=1 // pred_check
      _
    $region107: #{tpu_custom_call.1} parent=1 // pred_check_branch
      %8708 = sbr.rel (0) target = $region109
    $region108: #{tpu_custom_call.1} parent=1 // pred_region
      %8710 = dma.done [#allocation21], 2048
    $region109: #{tpu_custom_call.1} parent=1 // pred_fallthru
      _
    %8711 = vsyncpa [#allocation3], 1
    %8712 = vsyncpa [#allocation6], 1
    %8713 = vsyncpa [#allocation9], 1
    %8714 = vsyncpa [#allocation12], 1
    %8715 = vsyncpa [#allocation15], 1
    %8716 = vsyncpa [#allocation18], 1
    %8717 = vsyncpa [#allocation4], 1
    %8718 = vsyncpa [#allocation21], 1

</llo_original>
